<compile_context>
chip_gen: v7x
topology: tpu7x:2x2x1
jax: 0.10.0
libtpu: 0.0.40
codegen_flags: <defaults>
</compile_context>

<pallas_src>
import functools

import jax
import jax.numpy as jnp
import numpy as np
from jax.experimental import pallas as pl
from jax.experimental.pallas import tpu as pltpu

# Geometry fixed by the PyTorch module (32x32 RGB input, 2048 = 128*4*4).
_H = 32
_C_IN = 3
_C1, _C2, _C3 = 8, 16, 128
_FC1, _FC2 = 512, 32
_PAD_N = 128            # lane-dense padding for the 32-wide feature / logits
_BN_EPS = 1e-5


# ---------------------------------------------------------------------------
# The single fused kernel
# ---------------------------------------------------------------------------

def _mymodel_kernel(x_ref, w1_ref, p1_ref, w2_ref, p2_ref, w3_ref, p3_ref,
                    wa_ref, ba_ref, wb_ref, bb_ref, wc_ref, bc_ref,
                    feat_ref, out_ref, pad2_ref):
    f32, bf16 = jnp.float32, jnp.bfloat16
    tb = x_ref.shape[0]

    def conv_rows(xp, w_ref, p_ref, *, taps, oh, kin):
        """Row-Toeplitz conv + bias + ReLU + eval-mode BN.

        xp:    (tb, oh + taps - 1, kin) bf16; row r is one (H-padded) input
               row, lanes are (w_in, c_in) with c_in fastest.
        w_ref: (taps, kin, ncol) bf16 Toeplitz weights (kw and c_in folded
               into K; W-padding and output column order folded in).
        p_ref: (3, ncol) f32 rows = [conv bias, bn scale, bn shift] per column.
        Returns (tb*oh, ncol) f32.
        """
        ncol = w_ref.shape[-1]
        acc = jnp.zeros((tb * oh, ncol), f32)
        for kh in range(taps):
            rows = xp[:, kh:kh + oh, :].reshape(tb * oh, kin)
            acc = acc + jnp.dot(rows, w_ref[kh], preferred_element_type=f32)
        return (jnp.maximum(acc + p_ref[0:1, :], 0.0) * p_ref[1:2, :]
                + p_ref[2:3, :])

    def pool2x2(y, *, oh, ncol):
        """2x2 max-pool, fully lane-dense.

        Output columns were ordered by the Toeplitz weights as
        (w%2, w//2, c), so the W-pool is a max of the two 128-lane halves
        (no lane shuffle) and the H-pool a max of row pairs.
        y: (tb*oh, ncol) -> (tb, oh//2, ncol//2).
        """
        t = y.reshape(tb, oh // 2, 2, ncol)
        t = jnp.maximum(t[:, :, 0, :], t[:, :, 1, :])                 # H pool
        return jnp.maximum(t[:, :, :ncol // 2], t[:, :, ncol // 2:])  # W pool

    # conv block 1: 3->8, k3, pad 1 (H pad comes with the input block,
    # W pad is inside w1) -> ReLU -> BN -> MaxPool2
    y1 = conv_rows(x_ref[...], w1_ref, p1_ref, taps=3, oh=32, kin=96)
    p1 = pool2x2(y1, oh=32, ncol=256).astype(bf16)                # (tb, 16, 128)

    # conv block 2: 8->16, k3, pad 1.  H pad via a VMEM scratch whose two
    # border rows only are zeroed each step (interior is fully overwritten).
    pad2_ref[:, 0:1, :] = jnp.zeros((tb, 1, 128), bf16)
    pad2_ref[:, 17:18, :] = jnp.zeros((tb, 1, 128), bf16)
    pad2_ref[:, 1:17, :] = p1
    y2 = conv_rows(pad2_ref[...], w2_ref, p2_ref, taps=3, oh=16, kin=128)
    p2 = pool2x2(y2, oh=16, ncol=256).astype(bf16)                # (tb, 8, 128)

    # conv block 3: 16->128, k5, no pad -> ReLU -> BN
    y3 = conv_rows(p2, w3_ref, p3_ref, taps=5, oh=4, kin=128)     # (tb*4, 512)

    # fc1a: Linear(2048, 512) + ReLU.  The NCHW flatten is folded into the
    # weight permutation; the contraction is 4 K=512 blocks (one per conv3
    # output row h), avoiding any lane-merging relayout of y3.
    # Dropout(0.5) is identity in eval mode.
    z = y3.reshape(tb, 4, 512).astype(bf16)
    hacc = jnp.zeros((tb, _FC1), f32)
    for hh in range(4):
        hacc = hacc + jnp.dot(z[:, hh, :], wa_ref[hh],
                              preferred_element_type=f32)
    h = jnp.maximum(hacc + ba_ref[...], 0.0)                      # (tb, 512)

    # fc1b: Linear(512, 32) + ReLU, zero-padded to 128 lanes (lane-dense store)
    feat = jnp.maximum(
        jnp.dot(h.astype(bf16), wb_ref[...], preferred_element_type=f32)
        + bb_ref[...], 0.0)
    feat_ref[...] = feat

    # fc2: Linear(32, num_class) + ReLU, zero-padded to 128 lanes
    out_ref[...] = jnp.maximum(
        jnp.dot(feat.astype(bf16), wc_ref[...], preferred_element_type=f32)
        + bc_ref[...], 0.0)


# ---------------------------------------------------------------------------
# Parameter generation and one-time packing
# ---------------------------------------------------------------------------

def init_params(key, num_class=10):
    """Random parameters in PyTorch conventions (conv: OIHW, fc: x @ W)."""
    ks = jax.random.split(key, 24)

    def u(k, shape, scale=0.05):
        return jax.random.uniform(k, shape, jnp.float32, -1.0, 1.0) * scale

    p = {}
    p["conv1_w"] = u(ks[0], (_C1, _C_IN, 3, 3)); p["conv1_b"] = u(ks[1], (_C1,))
    p["conv2_w"] = u(ks[2], (_C2, _C1, 3, 3));   p["conv2_b"] = u(ks[3], (_C2,))
    p["conv3_w"] = u(ks[4], (_C3, _C2, 5, 5));   p["conv3_b"] = u(ks[5], (_C3,))
    i = 6
    for name, c in (("bn1", _C1), ("bn2", _C2), ("bn3", _C3)):
        p[name + "_gamma"] = 1.0 + u(ks[i], (c,), 0.3); i += 1
        p[name + "_beta"] = u(ks[i], (c,), 0.1);        i += 1
        p[name + "_mean"] = u(ks[i], (c,), 0.1);        i += 1
        p[name + "_var"] = 1.0 + u(ks[i], (c,), 0.3);   i += 1
    p["fc1a_w"] = u(ks[18], (2048, _FC1), 0.02); p["fc1a_b"] = u(ks[19], (_FC1,))
    p["fc1b_w"] = u(ks[20], (_FC1, _FC2));       p["fc1b_b"] = u(ks[21], (_FC2,))
    p["fc2_w"] = u(ks[22], (_FC2, num_class));   p["fc2_b"] = u(ks[23], (num_class,))
    return p


def prepare_params(params, *, num_class=10):
    """One-time packing:
      * each conv -> stack of per-kh 'row Toeplitz' matrices (kw, c_in folded
        into K; W zero-padding and a pool-friendly (w%2, w//2, c) output column
        order folded into the matrix);
      * eval-mode BN + conv bias folded into per-column [bias, scale, shift];
      * fc1a weight absorbs the NCHW flatten permutation; narrow fc layers are
        zero-padded to 128 lanes; all matmul weights cast to bf16.
    """
    f = lambda a: np.asarray(a, np.float32)

    def conv_toeplitz(w, *, win, wout, pad, in_stride, col_of):
        w = f(w)
        cout, cin, k, _ = w.shape
        t = np.zeros((k, win * in_stride, wout * cout), np.float32)
        for kh in range(k):
            for wo in range(wout):
                base = col_of(wo)
                for kw in range(k):
                    wi = wo + kw - pad
                    if 0 <= wi < win:
                        t[kh, wi * in_stride:wi * in_stride + cin,
                          base:base + cout] = w[:, :, kh, kw].T
        return t

    def bn_pack(bias, gamma, beta, mean, var, reps):
        scale = f(gamma) / np.sqrt(f(var) + _BN_EPS)
        shift = f(beta) - f(mean) * scale
        return np.stack([np.tile(f(bias), reps), np.tile(scale, reps),
                         np.tile(shift, reps)]).astype(np.float32)

    # Output column orderings.  For conv1/conv2 the W-parity is the high bit so
    # that 2x2 max-pool reduces to a max of the two 128-lane halves.
    col1 = lambda wo: (wo % 2) * 128 + (wo // 2) * _C1
    col2 = lambda wo: (wo % 2) * 128 + (wo // 2) * _C2
    col3 = lambda wo: wo * _C3

    w1 = conv_toeplitz(params["conv1_w"], win=32, wout=32, pad=1, in_stride=3,
                       col_of=col1)                               # (3,  96, 256)
    w2 = conv_toeplitz(params["conv2_w"], win=16, wout=16, pad=1, in_stride=8,
                       col_of=col2)                               # (3, 128, 256)
    w3 = conv_toeplitz(params["conv3_w"], win=8, wout=4, pad=0, in_stride=16,
                       col_of=col3)                               # (5, 128, 512)

    # fc1a: torch flatten index is c*16 + h*4 + w; re-order rows to
    # (h, w*128 + c) so the kernel consumes conv3's (w, c)-ordered rows as-is.
    wa = f(params["fc1a_w"]).reshape(_C3, 4, 4, _FC1).transpose(1, 2, 0, 3)
    wa = wa.reshape(4, 4 * _C3, _FC1)                             # (4, 512, 512)
    wb = np.zeros((_FC1, _PAD_N), np.float32); wb[:, :_FC2] = f(params["fc1b_w"])
    bb = np.zeros((1, _PAD_N), np.float32);    bb[0, :_FC2] = f(params["fc1b_b"])
    wc = np.zeros((_PAD_N, _PAD_N), np.float32)
    wc[:_FC2, :num_class] = f(params["fc2_w"])
    bc = np.zeros((1, _PAD_N), np.float32);    bc[0, :num_class] = f(params["fc2_b"])

    bf = jnp.bfloat16
    return {
        "w1": jnp.asarray(w1, bf),
        "p1": jnp.asarray(bn_pack(params["conv1_b"], params["bn1_gamma"],
                                  params["bn1_beta"], params["bn1_mean"],
                                  params["bn1_var"], 32)),
        "w2": jnp.asarray(w2, bf),
        "p2": jnp.asarray(bn_pack(params["conv2_b"], params["bn2_gamma"],
                                  params["bn2_beta"], params["bn2_mean"],
                                  params["bn2_var"], 16)),
        "w3": jnp.asarray(w3, bf),
        "p3": jnp.asarray(bn_pack(params["conv3_b"], params["bn3_gamma"],
                                  params["bn3_beta"], params["bn3_mean"],
                                  params["bn3_var"], 4)),
        "wa": jnp.asarray(wa, bf),
        "ba": jnp.asarray(f(params["fc1a_b"]).reshape(1, _FC1)),
        "wb": jnp.asarray(wb, bf), "bb": jnp.asarray(bb),
        "wc": jnp.asarray(wc, bf), "bc": jnp.asarray(bc),
    }


# ---------------------------------------------------------------------------
# Forward wrapper
# ---------------------------------------------------------------------------

@functools.partial(jax.jit, static_argnames=("num_class", "tile_b"))
def forward(prep, imgs_nchw, *, num_class=10, tile_b=32):
    """Returns (logits (B, num_class), feature (B, 32)).

    Per-generation tuning notes:
      * v5e / v6e (128 MiB VMEM): tile_b=32 is a good default; 64 also fits.
      * v7x (64 MiB VMEM / TC, 2 TCs): keep tile_b <= 32 and use batches with
        nb >= 2 grid steps so the "parallel" axis feeds both TensorCores.
      * vmem_limit is 48 MiB (actual use ~12 MiB at tile_b=32, within the v7x
        budget); only raise it if tile_b is pushed past 64.
    """
    B = imgs_nchw.shape[0]
    assert imgs_nchw.shape[1:] == (_C_IN, _H, _H)

    # Lane-dense input prep (layout-only, ~12 KiB/image): NCHW -> (B, H, W*C)
    # with C fastest, one zero H-padding row on each side, cast to bf16.  The
    # W padding of conv1 lives inside the Toeplitz weights, so the lane-sparse
    # (B, 34, 34, 3) tensor of the previous version is never materialised.
    # TODO(synk): the NCHW->NHWC permute could be moved into the kernel at the
    # cost of an in-kernel transpose; it is a tiny layout op so XLA keeps it.
    x = jnp.transpose(imgs_nchw.astype(jnp.float32), (0, 2, 3, 1))
    x = x.reshape(B, _H, _H * _C_IN)
    x = jnp.pad(x, ((0, 0), (1, 1), (0, 0))).astype(jnp.bfloat16)   # (B, 34, 96)

    if B <= tile_b:
        tb, bp = B, B
    else:
        tb = tile_b
        bp = pl.cdiv(B, tb) * tb
        if bp != B:                       # padded rows are sliced off below
            x = jnp.pad(x, ((0, bp - B), (0, 0), (0, 0)))
    nb = bp // tb

    def full(arr):
        nd = arr.ndim
        return pl.BlockSpec(arr.shape, lambda i, _nd=nd: (0,) * _nd)

    # Constant-index weight blocks are only DMA'd on the first grid step (the
    # block index never changes).  They are still double-buffered (~3 MiB
    # extra); single-buffering them is not required to fit any generation.
    in_specs = [
        pl.BlockSpec((tb, _H + 2, _H * _C_IN), lambda i: (i, 0, 0)),
        full(prep["w1"]), full(prep["p1"]),
        full(prep["w2"]), full(prep["p2"]),
        full(prep["w3"]), full(prep["p3"]),
        full(prep["wa"]), full(prep["ba"]),
        full(prep["wb"]), full(prep["bb"]),
        full(prep["wc"]), full(prep["bc"]),
    ]
    out_specs = (
        pl.BlockSpec((tb, _PAD_N), lambda i: (i, 0)),   # feature (padded lanes)
        pl.BlockSpec((tb, _PAD_N), lambda i: (i, 0)),   # logits  (padded lanes)
    )
    out_shape = (
        jax.ShapeDtypeStruct((bp, _PAD_N), jnp.float32),
        jax.ShapeDtypeStruct((bp, _PAD_N), jnp.float32),
    )

    feat_pad, out_pad = pl.pallas_call(
        _mymodel_kernel,
        out_shape=out_shape,
        grid=(nb,),
        in_specs=in_specs,
        out_specs=out_specs,
        scratch_shapes=[pltpu.VMEM((tb, 18, 128), jnp.bfloat16)],
        compiler_params=pltpu.CompilerParams(
            dimension_semantics=("parallel",),
            vmem_limit_bytes=48 * 1024 * 1024,
        ),
    )(x, prep["w1"], prep["p1"], prep["w2"], prep["p2"], prep["w3"], prep["p3"],
      prep["wa"], prep["ba"], prep["wb"], prep["bb"], prep["wc"], prep["bc"])

    output = out_pad[:B, :num_class]
    feature = feat_pad[:B, :_FC2]
    # TODO(synk): PyTorch accumulates `feature` into self.features via torch.cat
    # (mutable module state); here it is returned as a second output instead.
    return output, feature


# ---------------------------------------------------------------------------
# Pure-XLA reference (same bf16-operand / f32-accumulation precision) for the
# correctness check in __main__.
# ---------------------------------------------------------------------------

@jax.jit
def _reference_forward(params, imgs):
    f32, bf16 = jnp.float32, jnp.bfloat16

    def conv(x, w, b, pad):
        y = jax.lax.conv_general_dilated(
            x.astype(bf16), w.astype(bf16), (1, 1),
            ((pad, pad), (pad, pad)),
            dimension_numbers=("NCHW", "OIHW", "NCHW"),
            preferred_element_type=f32)
        return y + b.reshape(1, -1, 1, 1)

    def bn(x, g, be, m, v):
        s = g / jnp.sqrt(v + _BN_EPS)
        return x * s.reshape(1, -1, 1, 1) + (be - m * s).reshape(1, -1, 1, 1)

    def pool(x):
        b, c, h, w = x.shape
        return x.reshape(b, c, h // 2, 2, w // 2, 2).max(axis=(3, 5))

    y = imgs.astype(f32)
    y = pool(bn(jnp.maximum(conv(y, params["conv1_w"], params["conv1_b"], 1), 0.0),
                params["bn1_gamma"], params["bn1_beta"],
                params["bn1_mean"], params["bn1_var"]))
    y = pool(bn(jnp.maximum(conv(y, params["conv2_w"], params["conv2_b"], 1), 0.0),
                params["bn2_gamma"], params["bn2_beta"],
                params["bn2_mean"], params["bn2_var"]))
    y = bn(jnp.maximum(conv(y, params["conv3_w"], params["conv3_b"], 0), 0.0),
           params["bn3_gamma"], params["bn3_beta"],
           params["bn3_mean"], params["bn3_var"])
    flat = y.reshape(y.shape[0], -1)                      # NCHW flatten
    h = jnp.maximum(jnp.dot(flat.astype(bf16), params["fc1a_w"].astype(bf16),
                            preferred_element_type=f32) + params["fc1a_b"], 0.0)
    feat = jnp.maximum(jnp.dot(h.astype(bf16), params["fc1b_w"].astype(bf16),
                               preferred_element_type=f32) + params["fc1b_b"], 0.0)
    out = jnp.maximum(jnp.dot(feat.astype(bf16), params["fc2_w"].astype(bf16),
                              preferred_element_type=f32) + params["fc2_b"], 0.0)
    return out, feat


if __name__ == "__main__":
    num_class = 10
    params = init_params(jax.random.PRNGKey(42), num_class=num_class)
    prep = prepare_params(params, num_class=num_class)

    # Small run (batch 2): single grid step.
    imgs = jax.random.normal(jax.random.PRNGKey(0), (2, _C_IN, _H, _H),
                             jnp.float32)
    output, feature = forward(prep, imgs, num_class=num_class)
    jax.block_until_ready((output, feature))
    assert output.shape == (2, num_class) and feature.shape == (2, _FC2)

    ref_out, ref_feat = jax.block_until_ready(_reference_forward(params, imgs))
    np.testing.assert_allclose(np.asarray(output), np.asarray(ref_out),
                               rtol=2e-2, atol=2e-3)
    np.testing.assert_allclose(np.asarray(feature), np.asarray(ref_feat),
                               rtol=2e-2, atol=2e-3)

    # Batched run (batch 80 -> padded to 96, 3 grid steps of tile_b=32):
    # exercises the tiled / batch-padded / "parallel" path.
    imgs_b = jax.random.normal(jax.random.PRNGKey(1), (80, _C_IN, _H, _H),
                               jnp.float32)
    out_b, feat_b = forward(prep, imgs_b, num_class=num_class)
    jax.block_until_ready((out_b, feat_b))
    ref_out_b, ref_feat_b = jax.block_until_ready(
        _reference_forward(params, imgs_b))
    np.testing.assert_allclose(np.asarray(out_b), np.asarray(ref_out_b),
                               rtol=2e-2, atol=2e-3)
    np.testing.assert_allclose(np.asarray(feat_b), np.asarray(ref_feat_b),
                               rtol=2e-2, atol=2e-3)

    print("KERNEL_OK")
</pallas_src>

<mosaic_0001>
module attributes {stable_mosaic.version = 11 : i64} {
  func.func @_mymodel_kernel(%arg0: i32, %arg1: memref<2x34x96xbf16, #tpu.memory_space<vmem>>, %arg2: memref<3x96x256xbf16, #tpu.memory_space<vmem>>, %arg3: memref<3x256xf32, #tpu.memory_space<vmem>>, %arg4: memref<3x128x256xbf16, #tpu.memory_space<vmem>>, %arg5: memref<3x256xf32, #tpu.memory_space<vmem>>, %arg6: memref<5x128x512xbf16, #tpu.memory_space<vmem>>, %arg7: memref<3x512xf32, #tpu.memory_space<vmem>>, %arg8: memref<4x512x512xbf16, #tpu.memory_space<vmem>>, %arg9: memref<1x512xf32, #tpu.memory_space<vmem>>, %arg10: memref<512x128xbf16, #tpu.memory_space<vmem>>, %arg11: memref<1x128xf32, #tpu.memory_space<vmem>>, %arg12: memref<128x128xbf16, #tpu.memory_space<vmem>>, %arg13: memref<1x128xf32, #tpu.memory_space<vmem>>, %arg14: memref<2x128xf32, #tpu.memory_space<vmem>>, %arg15: memref<2x128xf32, #tpu.memory_space<vmem>>, %arg16: memref<2x18x128xbf16, #tpu.memory_space<vmem>>) attributes {dimension_semantics = [#tpu.dimension_semantics<parallel>], iteration_bounds = array<i64: 1>, scalar_prefetch = 0 : i64, scratch_operands = 1 : i64, tpu.core_type = #tpu.core_type<tc>, window_params = [{transform_indices = @transform_0, window_bounds = array<i64: 2, 34, 96>}, {pipeline_mode = #tpu.pipeline_mode<synchronous>, transform_indices = @transform_1, window_bounds = array<i64: 3, 96, 256>}, {pipeline_mode = #tpu.pipeline_mode<synchronous>, transform_indices = @transform_2, window_bounds = array<i64: 3, 256>}, {pipeline_mode = #tpu.pipeline_mode<synchronous>, transform_indices = @transform_3, window_bounds = array<i64: 3, 128, 256>}, {pipeline_mode = #tpu.pipeline_mode<synchronous>, transform_indices = @transform_4, window_bounds = array<i64: 3, 256>}, {pipeline_mode = #tpu.pipeline_mode<synchronous>, transform_indices = @transform_5, window_bounds = array<i64: 5, 128, 512>}, {pipeline_mode = #tpu.pipeline_mode<synchronous>, transform_indices = @transform_6, window_bounds = array<i64: 3, 512>}, {pipeline_mode = #tpu.pipeline_mode<synchronous>, transform_indices = @transform_7, window_bounds = array<i64: 4, 512, 512>}, {pipeline_mode = #tpu.pipeline_mode<synchronous>, transform_indices = @transform_8, window_bounds = array<i64: 1, 512>}, {pipeline_mode = #tpu.pipeline_mode<synchronous>, transform_indices = @transform_9, window_bounds = array<i64: 512, 128>}, {pipeline_mode = #tpu.pipeline_mode<synchronous>, transform_indices = @transform_10, window_bounds = array<i64: 1, 128>}, {pipeline_mode = #tpu.pipeline_mode<synchronous>, transform_indices = @transform_11, window_bounds = array<i64: 128, 128>}, {pipeline_mode = #tpu.pipeline_mode<synchronous>, transform_indices = @transform_12, window_bounds = array<i64: 1, 128>}, {transform_indices = @transform_13, window_bounds = array<i64: 2, 128>}, {transform_indices = @transform_14, window_bounds = array<i64: 2, 128>}]} {
    %c0 = arith.constant 0 : index
    %c0_0 = arith.constant 0 : index
    %c0_1 = arith.constant 0 : index
    %0 = vector.load %arg1[%c0, %c0_0, %c0_1] : memref<2x34x96xbf16, #tpu.memory_space<vmem>>, vector<2x34x96xbf16>
    %cst = arith.constant 0.000000e+00 : f32
    %1 = vector.broadcast %cst : f32 to vector<64x256xf32>
    %2 = vector.extract_strided_slice %0 {offsets = [0, 0, 0], sizes = [2, 32, 96], strides = [1, 1, 1]} : vector<2x34x96xbf16> to vector<2x32x96xbf16>
    %3 = vector.shape_cast %2 : vector<2x32x96xbf16> to vector<64x96xbf16>
    %c0_2 = arith.constant 0 : index
    %c0_3 = arith.constant 0 : index
    %c0_4 = arith.constant 0 : index
    %4 = vector.load %arg2[%c0_2, %c0_3, %c0_4] : memref<3x96x256xbf16, #tpu.memory_space<vmem>>, vector<1x96x256xbf16>
    %5 = vector.shape_cast %4 : vector<1x96x256xbf16> to vector<96x256xbf16>
    %cst_5 = arith.constant dense<0.000000e+00> : vector<64x256xf32>
    %6 = tpu.matmul %3, %5, %cst_5 {dimension_numbers = #tpu.dot_dimension_numbers<[1], [0], [0], [1], [0, 0, 1, 1], [], []>} : vector<64x96xbf16>, vector<96x256xbf16>, vector<64x256xf32> -> vector<64x256xf32>
    %7 = arith.addf %1, %6 : vector<64x256xf32>
    %8 = vector.extract_strided_slice %0 {offsets = [0, 1, 0], sizes = [2, 32, 96], strides = [1, 1, 1]} : vector<2x34x96xbf16> to vector<2x32x96xbf16>
    %9 = vector.shape_cast %8 : vector<2x32x96xbf16> to vector<64x96xbf16>
    %c1 = arith.constant 1 : index
    %c0_6 = arith.constant 0 : index
    %c0_7 = arith.constant 0 : index
    %10 = vector.load %arg2[%c1, %c0_6, %c0_7] : memref<3x96x256xbf16, #tpu.memory_space<vmem>>, vector<1x96x256xbf16>
    %11 = vector.shape_cast %10 : vector<1x96x256xbf16> to vector<96x256xbf16>
    %cst_8 = arith.constant dense<0.000000e+00> : vector<64x256xf32>
    %12 = tpu.matmul %9, %11, %cst_8 {dimension_numbers = #tpu.dot_dimension_numbers<[1], [0], [0], [1], [0, 0, 1, 1], [], []>} : vector<64x96xbf16>, vector<96x256xbf16>, vector<64x256xf32> -> vector<64x256xf32>
    %13 = arith.addf %7, %12 : vector<64x256xf32>
    %14 = vector.extract_strided_slice %0 {offsets = [0, 2, 0], sizes = [2, 32, 96], strides = [1, 1, 1]} : vector<2x34x96xbf16> to vector<2x32x96xbf16>
    %15 = vector.shape_cast %14 : vector<2x32x96xbf16> to vector<64x96xbf16>
    %c2 = arith.constant 2 : index
    %c0_9 = arith.constant 0 : index
    %c0_10 = arith.constant 0 : index
    %16 = vector.load %arg2[%c2, %c0_9, %c0_10] : memref<3x96x256xbf16, #tpu.memory_space<vmem>>, vector<1x96x256xbf16>
    %17 = vector.shape_cast %16 : vector<1x96x256xbf16> to vector<96x256xbf16>
    %cst_11 = arith.constant dense<0.000000e+00> : vector<64x256xf32>
    %18 = tpu.matmul %15, %17, %cst_11 {dimension_numbers = #tpu.dot_dimension_numbers<[1], [0], [0], [1], [0, 0, 1, 1], [], []>} : vector<64x96xbf16>, vector<96x256xbf16>, vector<64x256xf32> -> vector<64x256xf32>
    %19 = arith.addf %13, %18 : vector<64x256xf32>
    %c0_12 = arith.constant 0 : index
    %c0_13 = arith.constant 0 : index
    %20 = vector.load %arg3[%c0_12, %c0_13] : memref<3x256xf32, #tpu.memory_space<vmem>>, vector<1x256xf32>
    %21 = vector.broadcast %20 : vector<1x256xf32> to vector<64x256xf32>
    %22 = arith.addf %19, %21 : vector<64x256xf32>
    %cst_14 = arith.constant 0.000000e+00 : f32
    %23 = vector.broadcast %cst_14 : f32 to vector<64x256xf32>
    %24 = arith.maximumf %22, %23 : vector<64x256xf32>
    %c1_15 = arith.constant 1 : index
    %c0_16 = arith.constant 0 : index
    %25 = vector.load %arg3[%c1_15, %c0_16] : memref<3x256xf32, #tpu.memory_space<vmem>>, vector<1x256xf32>
    %26 = vector.broadcast %25 : vector<1x256xf32> to vector<64x256xf32>
    %27 = arith.mulf %24, %26 : vector<64x256xf32>
    %c2_17 = arith.constant 2 : index
    %c0_18 = arith.constant 0 : index
    %28 = vector.load %arg3[%c2_17, %c0_18] : memref<3x256xf32, #tpu.memory_space<vmem>>, vector<1x256xf32>
    %29 = vector.broadcast %28 : vector<1x256xf32> to vector<64x256xf32>
    %30 = arith.addf %27, %29 : vector<64x256xf32>
    %31 = vector.shape_cast %30 : vector<64x256xf32> to vector<2x16x2x256xf32>
    %32 = vector.extract_strided_slice %31 {offsets = [0, 0, 0, 0], sizes = [2, 16, 1, 256], strides = [1, 1, 1, 1]} : vector<2x16x2x256xf32> to vector<2x16x1x256xf32>
    %33 = vector.shape_cast %32 : vector<2x16x1x256xf32> to vector<2x16x256xf32>
    %34 = vector.extract_strided_slice %31 {offsets = [0, 0, 1, 0], sizes = [2, 16, 1, 256], strides = [1, 1, 1, 1]} : vector<2x16x2x256xf32> to vector<2x16x1x256xf32>
    %35 = vector.shape_cast %34 : vector<2x16x1x256xf32> to vector<2x16x256xf32>
    %36 = arith.maximumf %33, %35 : vector<2x16x256xf32>
    %37 = vector.extract_strided_slice %36 {offsets = [0, 0, 0], sizes = [2, 16, 128], strides = [1, 1, 1]} : vector<2x16x256xf32> to vector<2x16x128xf32>
    %38 = vector.extract_strided_slice %36 {offsets = [0, 0, 128], sizes = [2, 16, 128], strides = [1, 1, 1]} : vector<2x16x256xf32> to vector<2x16x128xf32>
    %39 = arith.maximumf %37, %38 : vector<2x16x128xf32>
    %40 = arith.truncf %39 : vector<2x16x128xf32> to vector<2x16x128xbf16>
    %cst_19 = arith.constant 0.000000e+00 : bf16
    %41 = vector.broadcast %cst_19 : bf16 to vector<2x1x128xbf16>
    %c0_20 = arith.constant 0 : index
    %c0_21 = arith.constant 0 : index
    %c0_22 = arith.constant 0 : index
    %42 = vector.load %arg16[%c0_20, %c0_21, %c0_22] : memref<2x18x128xbf16, #tpu.memory_space<vmem>>, vector<2x1x128xbf16>
    tpu.vector_store %arg16[%c0_20, %c0_21, %c0_22], %41 {strides = array<i32>} : memref<2x18x128xbf16, #tpu.memory_space<vmem>>, vector<2x1x128xbf16>,
    %cst_23 = arith.constant 0.000000e+00 : bf16
    %43 = vector.broadcast %cst_23 : bf16 to vector<2x1x128xbf16>
    %c0_24 = arith.constant 0 : index
    %c17 = arith.constant 17 : index
    %c0_25 = arith.constant 0 : index
    %44 = vector.load %arg16[%c0_24, %c17, %c0_25] : memref<2x18x128xbf16, #tpu.memory_space<vmem>>, vector<2x1x128xbf16>
    tpu.vector_store %arg16[%c0_24, %c17, %c0_25], %43 {strides = array<i32>} : memref<2x18x128xbf16, #tpu.memory_space<vmem>>, vector<2x1x128xbf16>,
    %c0_26 = arith.constant 0 : index
    %c1_27 = arith.constant 1 : index
    %c0_28 = arith.constant 0 : index
    %45 = vector.load %arg16[%c0_26, %c1_27, %c0_28] : memref<2x18x128xbf16, #tpu.memory_space<vmem>>, vector<2x16x128xbf16>
    tpu.vector_store %arg16[%c0_26, %c1_27, %c0_28], %40 {strides = array<i32>} : memref<2x18x128xbf16, #tpu.memory_space<vmem>>, vector<2x16x128xbf16>,
    %c0_29 = arith.constant 0 : index
    %c0_30 = arith.constant 0 : index
    %c0_31 = arith.constant 0 : index
    %46 = vector.load %arg16[%c0_29, %c0_30, %c0_31] : memref<2x18x128xbf16, #tpu.memory_space<vmem>>, vector<2x18x128xbf16>
    %cst_32 = arith.constant 0.000000e+00 : f32
    %47 = vector.broadcast %cst_32 : f32 to vector<32x256xf32>
    %48 = vector.extract_strided_slice %46 {offsets = [0, 0, 0], sizes = [2, 16, 128], strides = [1, 1, 1]} : vector<2x18x128xbf16> to vector<2x16x128xbf16>
    %49 = vector.shape_cast %48 : vector<2x16x128xbf16> to vector<32x128xbf16>
    %c0_33 = arith.constant 0 : index
    %c0_34 = arith.constant 0 : index
    %c0_35 = arith.constant 0 : index
    %50 = vector.load %arg4[%c0_33, %c0_34, %c0_35] : memref<3x128x256xbf16, #tpu.memory_space<vmem>>, vector<1x128x256xbf16>
    %51 = vector.shape_cast %50 : vector<1x128x256xbf16> to vector<128x256xbf16>
    %cst_36 = arith.constant dense<0.000000e+00> : vector<32x256xf32>
    %52 = tpu.matmul %49, %51, %cst_36 {dimension_numbers = #tpu.dot_dimension_numbers<[1], [0], [0], [1], [0, 0, 1, 1], [], []>} : vector<32x128xbf16>, vector<128x256xbf16>, vector<32x256xf32> -> vector<32x256xf32>
    %53 = arith.addf %47, %52 : vector<32x256xf32>
    %54 = vector.extract_strided_slice %46 {offsets = [0, 1, 0], sizes = [2, 16, 128], strides = [1, 1, 1]} : vector<2x18x128xbf16> to vector<2x16x128xbf16>
    %55 = vector.shape_cast %54 : vector<2x16x128xbf16> to vector<32x128xbf16>
    %c1_37 = arith.constant 1 : index
    %c0_38 = arith.constant 0 : index
    %c0_39 = arith.constant 0 : index
    %56 = vector.load %arg4[%c1_37, %c0_38, %c0_39] : memref<3x128x256xbf16, #tpu.memory_space<vmem>>, vector<1x128x256xbf16>
    %57 = vector.shape_cast %56 : vector<1x128x256xbf16> to vector<128x256xbf16>
    %cst_40 = arith.constant dense<0.000000e+00> : vector<32x256xf32>
    %58 = tpu.matmul %55, %57, %cst_40 {dimension_numbers = #tpu.dot_dimension_numbers<[1], [0], [0], [1], [0, 0, 1, 1], [], []>} : vector<32x128xbf16>, vector<128x256xbf16>, vector<32x256xf32> -> vector<32x256xf32>
    %59 = arith.addf %53, %58 : vector<32x256xf32>
    %60 = vector.extract_strided_slice %46 {offsets = [0, 2, 0], sizes = [2, 16, 128], strides = [1, 1, 1]} : vector<2x18x128xbf16> to vector<2x16x128xbf16>
    %61 = vector.shape_cast %60 : vector<2x16x128xbf16> to vector<32x128xbf16>
    %c2_41 = arith.constant 2 : index
    %c0_42 = arith.constant 0 : index
    %c0_43 = arith.constant 0 : index
    %62 = vector.load %arg4[%c2_41, %c0_42, %c0_43] : memref<3x128x256xbf16, #tpu.memory_space<vmem>>, vector<1x128x256xbf16>
    %63 = vector.shape_cast %62 : vector<1x128x256xbf16> to vector<128x256xbf16>
    %cst_44 = arith.constant dense<0.000000e+00> : vector<32x256xf32>
    %64 = tpu.matmul %61, %63, %cst_44 {dimension_numbers = #tpu.dot_dimension_numbers<[1], [0], [0], [1], [0, 0, 1, 1], [], []>} : vector<32x128xbf16>, vector<128x256xbf16>, vector<32x256xf32> -> vector<32x256xf32>
    %65 = arith.addf %59, %64 : vector<32x256xf32>
    %c0_45 = arith.constant 0 : index
    %c0_46 = arith.constant 0 : index
    %66 = vector.load %arg5[%c0_45, %c0_46] : memref<3x256xf32, #tpu.memory_space<vmem>>, vector<1x256xf32>
    %67 = vector.broadcast %66 : vector<1x256xf32> to vector<32x256xf32>
    %68 = arith.addf %65, %67 : vector<32x256xf32>
    %cst_47 = arith.constant 0.000000e+00 : f32
    %69 = vector.broadcast %cst_47 : f32 to vector<32x256xf32>
    %70 = arith.maximumf %68, %69 : vector<32x256xf32>
    %c1_48 = arith.constant 1 : index
    %c0_49 = arith.constant 0 : index
    %71 = vector.load %arg5[%c1_48, %c0_49] : memref<3x256xf32, #tpu.memory_space<vmem>>, vector<1x256xf32>
    %72 = vector.broadcast %71 : vector<1x256xf32> to vector<32x256xf32>
    %73 = arith.mulf %70, %72 : vector<32x256xf32>
    %c2_50 = arith.constant 2 : index
    %c0_51 = arith.constant 0 : index
    %74 = vector.load %arg5[%c2_50, %c0_51] : memref<3x256xf32, #tpu.memory_space<vmem>>, vector<1x256xf32>
    %75 = vector.broadcast %74 : vector<1x256xf32> to vector<32x256xf32>
    %76 = arith.addf %73, %75 : vector<32x256xf32>
    %77 = vector.shape_cast %76 : vector<32x256xf32> to vector<2x8x2x256xf32>
    %78 = vector.extract_strided_slice %77 {offsets = [0, 0, 0, 0], sizes = [2, 8, 1, 256], strides = [1, 1, 1, 1]} : vector<2x8x2x256xf32> to vector<2x8x1x256xf32>
    %79 = vector.shape_cast %78 : vector<2x8x1x256xf32> to vector<2x8x256xf32>
    %80 = vector.extract_strided_slice %77 {offsets = [0, 0, 1, 0], sizes = [2, 8, 1, 256], strides = [1, 1, 1, 1]} : vector<2x8x2x256xf32> to vector<2x8x1x256xf32>
    %81 = vector.shape_cast %80 : vector<2x8x1x256xf32> to vector<2x8x256xf32>
    %82 = arith.maximumf %79, %81 : vector<2x8x256xf32>
    %83 = vector.extract_strided_slice %82 {offsets = [0, 0, 0], sizes = [2, 8, 128], strides = [1, 1, 1]} : vector<2x8x256xf32> to vector<2x8x128xf32>
    %84 = vector.extract_strided_slice %82 {offsets = [0, 0, 128], sizes = [2, 8, 128], strides = [1, 1, 1]} : vector<2x8x256xf32> to vector<2x8x128xf32>
    %85 = arith.maximumf %83, %84 : vector<2x8x128xf32>
    %86 = arith.truncf %85 : vector<2x8x128xf32> to vector<2x8x128xbf16>
    %cst_52 = arith.constant 0.000000e+00 : f32
    %87 = vector.broadcast %cst_52 : f32 to vector<8x512xf32>
    %88 = vector.extract_strided_slice %86 {offsets = [0, 0, 0], sizes = [2, 4, 128], strides = [1, 1, 1]} : vector<2x8x128xbf16> to vector<2x4x128xbf16>
    %89 = vector.shape_cast %88 : vector<2x4x128xbf16> to vector<8x128xbf16>
    %c0_53 = arith.constant 0 : index
    %c0_54 = arith.constant 0 : index
    %c0_55 = arith.constant 0 : index
    %90 = vector.load %arg6[%c0_53, %c0_54, %c0_55] : memref<5x128x512xbf16, #tpu.memory_space<vmem>>, vector<1x128x512xbf16>
    %91 = vector.shape_cast %90 : vector<1x128x512xbf16> to vector<128x512xbf16>
    %cst_56 = arith.constant dense<0.000000e+00> : vector<8x512xf32>
    %92 = tpu.matmul %89, %91, %cst_56 {dimension_numbers = #tpu.dot_dimension_numbers<[1], [0], [0], [1], [0, 0, 1, 1], [], []>} : vector<8x128xbf16>, vector<128x512xbf16>, vector<8x512xf32> -> vector<8x512xf32>
    %93 = arith.addf %87, %92 : vector<8x512xf32>
    %94 = vector.extract_strided_slice %86 {offsets = [0, 1, 0], sizes = [2, 4, 128], strides = [1, 1, 1]} : vector<2x8x128xbf16> to vector<2x4x128xbf16>
    %95 = vector.shape_cast %94 : vector<2x4x128xbf16> to vector<8x128xbf16>
    %c1_57 = arith.constant 1 : index
    %c0_58 = arith.constant 0 : index
    %c0_59 = arith.constant 0 : index
    %96 = vector.load %arg6[%c1_57, %c0_58, %c0_59] : memref<5x128x512xbf16, #tpu.memory_space<vmem>>, vector<1x128x512xbf16>
    %97 = vector.shape_cast %96 : vector<1x128x512xbf16> to vector<128x512xbf16>
    %cst_60 = arith.constant dense<0.000000e+00> : vector<8x512xf32>
    %98 = tpu.matmul %95, %97, %cst_60 {dimension_numbers = #tpu.dot_dimension_numbers<[1], [0], [0], [1], [0, 0, 1, 1], [], []>} : vector<8x128xbf16>, vector<128x512xbf16>, vector<8x512xf32> -> vector<8x512xf32>
    %99 = arith.addf %93, %98 : vector<8x512xf32>
    %100 = vector.extract_strided_slice %86 {offsets = [0, 2, 0], sizes = [2, 4, 128], strides = [1, 1, 1]} : vector<2x8x128xbf16> to vector<2x4x128xbf16>
    %101 = vector.shape_cast %100 : vector<2x4x128xbf16> to vector<8x128xbf16>
    %c2_61 = arith.constant 2 : index
    %c0_62 = arith.constant 0 : index
    %c0_63 = arith.constant 0 : index
    %102 = vector.load %arg6[%c2_61, %c0_62, %c0_63] : memref<5x128x512xbf16, #tpu.memory_space<vmem>>, vector<1x128x512xbf16>
    %103 = vector.shape_cast %102 : vector<1x128x512xbf16> to vector<128x512xbf16>
    %cst_64 = arith.constant dense<0.000000e+00> : vector<8x512xf32>
    %104 = tpu.matmul %101, %103, %cst_64 {dimension_numbers = #tpu.dot_dimension_numbers<[1], [0], [0], [1], [0, 0, 1, 1], [], []>} : vector<8x128xbf16>, vector<128x512xbf16>, vector<8x512xf32> -> vector<8x512xf32>
    %105 = arith.addf %99, %104 : vector<8x512xf32>
    %106 = vector.extract_strided_slice %86 {offsets = [0, 3, 0], sizes = [2, 4, 128], strides = [1, 1, 1]} : vector<2x8x128xbf16> to vector<2x4x128xbf16>
    %107 = vector.shape_cast %106 : vector<2x4x128xbf16> to vector<8x128xbf16>
    %c3 = arith.constant 3 : index
    %c0_65 = arith.constant 0 : index
    %c0_66 = arith.constant 0 : index
    %108 = vector.load %arg6[%c3, %c0_65, %c0_66] : memref<5x128x512xbf16, #tpu.memory_space<vmem>>, vector<1x128x512xbf16>
    %109 = vector.shape_cast %108 : vector<1x128x512xbf16> to vector<128x512xbf16>
    %cst_67 = arith.constant dense<0.000000e+00> : vector<8x512xf32>
    %110 = tpu.matmul %107, %109, %cst_67 {dimension_numbers = #tpu.dot_dimension_numbers<[1], [0], [0], [1], [0, 0, 1, 1], [], []>} : vector<8x128xbf16>, vector<128x512xbf16>, vector<8x512xf32> -> vector<8x512xf32>
    %111 = arith.addf %105, %110 : vector<8x512xf32>
    %112 = vector.extract_strided_slice %86 {offsets = [0, 4, 0], sizes = [2, 4, 128], strides = [1, 1, 1]} : vector<2x8x128xbf16> to vector<2x4x128xbf16>
    %113 = vector.shape_cast %112 : vector<2x4x128xbf16> to vector<8x128xbf16>
    %c4 = arith.constant 4 : index
    %c0_68 = arith.constant 0 : index
    %c0_69 = arith.constant 0 : index
    %114 = vector.load %arg6[%c4, %c0_68, %c0_69] : memref<5x128x512xbf16, #tpu.memory_space<vmem>>, vector<1x128x512xbf16>
    %115 = vector.shape_cast %114 : vector<1x128x512xbf16> to vector<128x512xbf16>
    %cst_70 = arith.constant dense<0.000000e+00> : vector<8x512xf32>
    %116 = tpu.matmul %113, %115, %cst_70 {dimension_numbers = #tpu.dot_dimension_numbers<[1], [0], [0], [1], [0, 0, 1, 1], [], []>} : vector<8x128xbf16>, vector<128x512xbf16>, vector<8x512xf32> -> vector<8x512xf32>
    %117 = arith.addf %111, %116 : vector<8x512xf32>
    %c0_71 = arith.constant 0 : index
    %c0_72 = arith.constant 0 : index
    %118 = vector.load %arg7[%c0_71, %c0_72] : memref<3x512xf32, #tpu.memory_space<vmem>>, vector<1x512xf32>
    %119 = vector.broadcast %118 : vector<1x512xf32> to vector<8x512xf32>
    %120 = arith.addf %117, %119 : vector<8x512xf32>
    %cst_73 = arith.constant 0.000000e+00 : f32
    %121 = vector.broadcast %cst_73 : f32 to vector<8x512xf32>
    %122 = arith.maximumf %120, %121 : vector<8x512xf32>
    %c1_74 = arith.constant 1 : index
    %c0_75 = arith.constant 0 : index
    %123 = vector.load %arg7[%c1_74, %c0_75] : memref<3x512xf32, #tpu.memory_space<vmem>>, vector<1x512xf32>
    %124 = vector.broadcast %123 : vector<1x512xf32> to vector<8x512xf32>
    %125 = arith.mulf %122, %124 : vector<8x512xf32>
    %c2_76 = arith.constant 2 : index
    %c0_77 = arith.constant 0 : index
    %126 = vector.load %arg7[%c2_76, %c0_77] : memref<3x512xf32, #tpu.memory_space<vmem>>, vector<1x512xf32>
    %127 = vector.broadcast %126 : vector<1x512xf32> to vector<8x512xf32>
    %128 = arith.addf %125, %127 : vector<8x512xf32>
    %129 = vector.shape_cast %128 : vector<8x512xf32> to vector<2x4x512xf32>
    %130 = arith.truncf %129 : vector<2x4x512xf32> to vector<2x4x512xbf16>
    %cst_78 = arith.constant 0.000000e+00 : f32
    %131 = vector.broadcast %cst_78 : f32 to vector<2x512xf32>
    %132 = vector.extract_strided_slice %130 {offsets = [0, 0, 0], sizes = [2, 1, 512], strides = [1, 1, 1]} : vector<2x4x512xbf16> to vector<2x1x512xbf16>
    %133 = vector.shape_cast %132 : vector<2x1x512xbf16> to vector<2x512xbf16>
    %c0_79 = arith.constant 0 : index
    %c0_80 = arith.constant 0 : index
    %c0_81 = arith.constant 0 : index
    %134 = vector.load %arg8[%c0_79, %c0_80, %c0_81] : memref<4x512x512xbf16, #tpu.memory_space<vmem>>, vector<1x512x512xbf16>
    %135 = vector.shape_cast %134 : vector<1x512x512xbf16> to vector<512x512xbf16>
    %cst_82 = arith.constant dense<0.000000e+00> : vector<2x512xf32>
    %136 = tpu.matmul %133, %135, %cst_82 {dimension_numbers = #tpu.dot_dimension_numbers<[1], [0], [0], [1], [0, 0, 1, 1], [], []>} : vector<2x512xbf16>, vector<512x512xbf16>, vector<2x512xf32> -> vector<2x512xf32>
    %137 = arith.addf %131, %136 : vector<2x512xf32>
    %138 = vector.extract_strided_slice %130 {offsets = [0, 1, 0], sizes = [2, 1, 512], strides = [1, 1, 1]} : vector<2x4x512xbf16> to vector<2x1x512xbf16>
    %139 = vector.shape_cast %138 : vector<2x1x512xbf16> to vector<2x512xbf16>
    %c1_83 = arith.constant 1 : index
    %c0_84 = arith.constant 0 : index
    %c0_85 = arith.constant 0 : index
    %140 = vector.load %arg8[%c1_83, %c0_84, %c0_85] : memref<4x512x512xbf16, #tpu.memory_space<vmem>>, vector<1x512x512xbf16>
    %141 = vector.shape_cast %140 : vector<1x512x512xbf16> to vector<512x512xbf16>
    %cst_86 = arith.constant dense<0.000000e+00> : vector<2x512xf32>
    %142 = tpu.matmul %139, %141, %cst_86 {dimension_numbers = #tpu.dot_dimension_numbers<[1], [0], [0], [1], [0, 0, 1, 1], [], []>} : vector<2x512xbf16>, vector<512x512xbf16>, vector<2x512xf32> -> vector<2x512xf32>
    %143 = arith.addf %137, %142 : vector<2x512xf32>
    %144 = vector.extract_strided_slice %130 {offsets = [0, 2, 0], sizes = [2, 1, 512], strides = [1, 1, 1]} : vector<2x4x512xbf16> to vector<2x1x512xbf16>
    %145 = vector.shape_cast %144 : vector<2x1x512xbf16> to vector<2x512xbf16>
    %c2_87 = arith.constant 2 : index
    %c0_88 = arith.constant 0 : index
    %c0_89 = arith.constant 0 : index
    %146 = vector.load %arg8[%c2_87, %c0_88, %c0_89] : memref<4x512x512xbf16, #tpu.memory_space<vmem>>, vector<1x512x512xbf16>
    %147 = vector.shape_cast %146 : vector<1x512x512xbf16> to vector<512x512xbf16>
    %cst_90 = arith.constant dense<0.000000e+00> : vector<2x512xf32>
    %148 = tpu.matmul %145, %147, %cst_90 {dimension_numbers = #tpu.dot_dimension_numbers<[1], [0], [0], [1], [0, 0, 1, 1], [], []>} : vector<2x512xbf16>, vector<512x512xbf16>, vector<2x512xf32> -> vector<2x512xf32>
    %149 = arith.addf %143, %148 : vector<2x512xf32>
    %150 = vector.extract_strided_slice %130 {offsets = [0, 3, 0], sizes = [2, 1, 512], strides = [1, 1, 1]} : vector<2x4x512xbf16> to vector<2x1x512xbf16>
    %151 = vector.shape_cast %150 : vector<2x1x512xbf16> to vector<2x512xbf16>
    %c3_91 = arith.constant 3 : index
    %c0_92 = arith.constant 0 : index
    %c0_93 = arith.constant 0 : index
    %152 = vector.load %arg8[%c3_91, %c0_92, %c0_93] : memref<4x512x512xbf16, #tpu.memory_space<vmem>>, vector<1x512x512xbf16>
    %153 = vector.shape_cast %152 : vector<1x512x512xbf16> to vector<512x512xbf16>
    %cst_94 = arith.constant dense<0.000000e+00> : vector<2x512xf32>
    %154 = tpu.matmul %151, %153, %cst_94 {dimension_numbers = #tpu.dot_dimension_numbers<[1], [0], [0], [1], [0, 0, 1, 1], [], []>} : vector<2x512xbf16>, vector<512x512xbf16>, vector<2x512xf32> -> vector<2x512xf32>
    %155 = arith.addf %149, %154 : vector<2x512xf32>
    %c0_95 = arith.constant 0 : index
    %c0_96 = arith.constant 0 : index
    %156 = vector.load %arg9[%c0_95, %c0_96] : memref<1x512xf32, #tpu.memory_space<vmem>>, vector<1x512xf32>
    %157 = vector.broadcast %156 : vector<1x512xf32> to vector<2x512xf32>
    %158 = arith.addf %155, %157 : vector<2x512xf32>
    %cst_97 = arith.constant 0.000000e+00 : f32
    %159 = vector.broadcast %cst_97 : f32 to vector<2x512xf32>
    %160 = arith.maximumf %158, %159 : vector<2x512xf32>
    %161 = arith.truncf %160 : vector<2x512xf32> to vector<2x512xbf16>
    %c0_98 = arith.constant 0 : index
    %c0_99 = arith.constant 0 : index
    %162 = vector.load %arg10[%c0_98, %c0_99] : memref<512x128xbf16, #tpu.memory_space<vmem>>, vector<512x128xbf16>
    %cst_100 = arith.constant dense<0.000000e+00> : vector<2x128xf32>
    %163 = tpu.matmul %161, %162, %cst_100 {dimension_numbers = #tpu.dot_dimension_numbers<[1], [0], [0], [1], [0, 0, 1, 1], [], []>} : vector<2x512xbf16>, vector<512x128xbf16>, vector<2x128xf32> -> vector<2x128xf32>
    %c0_101 = arith.constant 0 : index
    %c0_102 = arith.constant 0 : index
    %164 = vector.load %arg11[%c0_101, %c0_102] : memref<1x128xf32, #tpu.memory_space<vmem>>, vector<1x128xf32>
    %165 = vector.broadcast %164 : vector<1x128xf32> to vector<2x128xf32>
    %166 = arith.addf %163, %165 : vector<2x128xf32>
    %cst_103 = arith.constant 0.000000e+00 : f32
    %167 = vector.broadcast %cst_103 : f32 to vector<2x128xf32>
    %168 = arith.maximumf %166, %167 : vector<2x128xf32>
    %c0_104 = arith.constant 0 : index
    %c0_105 = arith.constant 0 : index
    %169 = vector.load %arg14[%c0_104, %c0_105] : memref<2x128xf32, #tpu.memory_space<vmem>>, vector<2x128xf32>
    tpu.vector_store %arg14[%c0_104, %c0_105], %168 {strides = array<i32>} : memref<2x128xf32, #tpu.memory_space<vmem>>, vector<2x128xf32>,
    %170 = arith.truncf %168 : vector<2x128xf32> to vector<2x128xbf16>
    %c0_106 = arith.constant 0 : index
    %c0_107 = arith.constant 0 : index
    %171 = vector.load %arg12[%c0_106, %c0_107] : memref<128x128xbf16, #tpu.memory_space<vmem>>, vector<128x128xbf16>
    %cst_108 = arith.constant dense<0.000000e+00> : vector<2x128xf32>
    %172 = tpu.matmul %170, %171, %cst_108 {dimension_numbers = #tpu.dot_dimension_numbers<[1], [0], [0], [1], [0, 0, 1, 1], [], []>} : vector<2x128xbf16>, vector<128x128xbf16>, vector<2x128xf32> -> vector<2x128xf32>
    %c0_109 = arith.constant 0 : index
    %c0_110 = arith.constant 0 : index
    %173 = vector.load %arg13[%c0_109, %c0_110] : memref<1x128xf32, #tpu.memory_space<vmem>>, vector<1x128xf32>
    %174 = vector.broadcast %173 : vector<1x128xf32> to vector<2x128xf32>
    %175 = arith.addf %172, %174 : vector<2x128xf32>
    %cst_111 = arith.constant 0.000000e+00 : f32
    %176 = vector.broadcast %cst_111 : f32 to vector<2x128xf32>
    %177 = arith.maximumf %175, %176 : vector<2x128xf32>
    %c0_112 = arith.constant 0 : index
    %c0_113 = arith.constant 0 : index
    %178 = vector.load %arg15[%c0_112, %c0_113] : memref<2x128xf32, #tpu.memory_space<vmem>>, vector<2x128xf32>
    tpu.vector_store %arg15[%c0_112, %c0_113], %177 {strides = array<i32>} : memref<2x128xf32, #tpu.memory_space<vmem>>, vector<2x128xf32>,
    return
  }
  func.func @transform_0(%arg0: i32) -> (i32, i32, i32) {
    %c0_i32 = arith.constant 0 : i32
    %c0_i32_0 = arith.constant 0 : i32
    %c0_i32_1 = arith.constant 0 : i32
    return %arg0, %c0_i32, %c0_i32_0 : i32, i32, i32
  }
  func.func @transform_1(%arg0: i32) -> (i32, i32, i32) {
    %c0_i32 = arith.constant 0 : i32
    %c0_i32_0 = arith.constant 0 : i32
    %c0_i32_1 = arith.constant 0 : i32
    %c0_i32_2 = arith.constant 0 : i32
    return %c0_i32, %c0_i32_0, %c0_i32_1 : i32, i32, i32
  }
  func.func @transform_2(%arg0: i32) -> (i32, i32) {
    %c0_i32 = arith.constant 0 : i32
    %c0_i32_0 = arith.constant 0 : i32
    %c0_i32_1 = arith.constant 0 : i32
    return %c0_i32, %c0_i32_0 : i32, i32
  }
  func.func @transform_3(%arg0: i32) -> (i32, i32, i32) {
    %c0_i32 = arith.constant 0 : i32
    %c0_i32_0 = arith.constant 0 : i32
    %c0_i32_1 = arith.constant 0 : i32
    %c0_i32_2 = arith.constant 0 : i32
    return %c0_i32, %c0_i32_0, %c0_i32_1 : i32, i32, i32
  }
  func.func @transform_4(%arg0: i32) -> (i32, i32) {
    %c0_i32 = arith.constant 0 : i32
    %c0_i32_0 = arith.constant 0 : i32
    %c0_i32_1 = arith.constant 0 : i32
    return %c0_i32, %c0_i32_0 : i32, i32
  }
  func.func @transform_5(%arg0: i32) -> (i32, i32, i32) {
    %c0_i32 = arith.constant 0 : i32
    %c0_i32_0 = arith.constant 0 : i32
    %c0_i32_1 = arith.constant 0 : i32
    %c0_i32_2 = arith.constant 0 : i32
    return %c0_i32, %c0_i32_0, %c0_i32_1 : i32, i32, i32
  }
  func.func @transform_6(%arg0: i32) -> (i32, i32) {
    %c0_i32 = arith.constant 0 : i32
    %c0_i32_0 = arith.constant 0 : i32
    %c0_i32_1 = arith.constant 0 : i32
    return %c0_i32, %c0_i32_0 : i32, i32
  }
  func.func @transform_7(%arg0: i32) -> (i32, i32, i32) {
    %c0_i32 = arith.constant 0 : i32
    %c0_i32_0 = arith.constant 0 : i32
    %c0_i32_1 = arith.constant 0 : i32
    %c0_i32_2 = arith.constant 0 : i32
    return %c0_i32, %c0_i32_0, %c0_i32_1 : i32, i32, i32
  }
  func.func @transform_8(%arg0: i32) -> (i32, i32) {
    %c0_i32 = arith.constant 0 : i32
    %c0_i32_0 = arith.constant 0 : i32
    %c0_i32_1 = arith.constant 0 : i32
    return %c0_i32, %c0_i32_0 : i32, i32
  }
  func.func @transform_9(%arg0: i32) -> (i32, i32) {
    %c0_i32 = arith.constant 0 : i32
    %c0_i32_0 = arith.constant 0 : i32
    %c0_i32_1 = arith.constant 0 : i32
    return %c0_i32, %c0_i32_0 : i32, i32
  }
  func.func @transform_10(%arg0: i32) -> (i32, i32) {
    %c0_i32 = arith.constant 0 : i32
    %c0_i32_0 = arith.constant 0 : i32
    %c0_i32_1 = arith.constant 0 : i32
    return %c0_i32, %c0_i32_0 : i32, i32
  }
  func.func @transform_11(%arg0: i32) -> (i32, i32) {
    %c0_i32 = arith.constant 0 : i32
    %c0_i32_0 = arith.constant 0 : i32
    %c0_i32_1 = arith.constant 0 : i32
    return %c0_i32, %c0_i32_0 : i32, i32
  }
  func.func @transform_12(%arg0: i32) -> (i32, i32) {
    %c0_i32 = arith.constant 0 : i32
    %c0_i32_0 = arith.constant 0 : i32
    %c0_i32_1 = arith.constant 0 : i32
    return %c0_i32, %c0_i32_0 : i32, i32
  }
  func.func @transform_13(%arg0: i32) -> (i32, i32) {
    %c0_i32 = arith.constant 0 : i32
    %c0_i32_0 = arith.constant 0 : i32
    return %arg0, %c0_i32 : i32, i32
  }
  func.func @transform_14(%arg0: i32) -> (i32, i32) {
    %c0_i32 = arith.constant 0 : i32
    %c0_i32_0 = arith.constant 0 : i32
    return %arg0, %c0_i32 : i32, i32
  }
}

</mosaic_0001>

<llo_original>
// kernel: forward.1
$region0: #{forward.1}
  #allocation0 [shape = 'u32[]', space=smem, size = 0x4, offset = 0x4, fixed_abs, tag = 'smem constant byte address 0x4 - core index']
  #allocation1 [shape = 'u32[144,128]{1,0:T(1,128)}', space=vmem, size = 0x12000, scoped, tag = 'internal scratch']
  #allocation2 [shape = 'bf16[2,18,128]{2,1,0:T(8,128)(2,1)}', space=vmem, size = 0x3000, scoped, tag = 'scratch operand']
  %s0 = inlined_call_operand.vmem [shape: bf16[2,34,96], index: 0, kind: input, shape index: {}]
  %s1 = inlined_call_operand.hbm [shape: bf16[3,96,256], index: 1, kind: input, shape index: {}]
  %s2 = inlined_call_operand.hbm [shape: f32[3,256], index: 2, kind: input, shape index: {}]
  %s3 = inlined_call_operand.hbm [shape: bf16[3,128,256], index: 3, kind: input, shape index: {}]
  %s4 = inlined_call_operand.hbm [shape: f32[3,256], index: 4, kind: input, shape index: {}]
  %s5 = inlined_call_operand.hbm [shape: bf16[5,128,512], index: 5, kind: input, shape index: {}]
  %s6 = inlined_call_operand.hbm [shape: f32[3,512], index: 6, kind: input, shape index: {}]
  %s7 = inlined_call_operand.hbm [shape: bf16[4,512,512], index: 7, kind: input, shape index: {}]
  %s8 = inlined_call_operand.hbm [shape: f32[1,512], index: 8, kind: input, shape index: {}]
  %s9 = inlined_call_operand.hbm [shape: bf16[512,128], index: 9, kind: input, shape index: {}]
  %s10 = inlined_call_operand.hbm [shape: f32[1,128], index: 10, kind: input, shape index: {}]
  %s11 = inlined_call_operand.hbm [shape: bf16[128,128], index: 11, kind: input, shape index: {}]
  %s12 = inlined_call_operand.hbm [shape: f32[1,128], index: 12, kind: input, shape index: {}]
  %s13 = inlined_call_operand.hbm [shape: f32[2,128], index: 13, kind: output, shape index: {0}]
  %s14 = inlined_call_operand.hbm [shape: f32[2,128], index: 14, kind: output, shape index: {1}]
  %15 = xla_tuple %s13, %s14
  %s16 = sld [smem:[#allocation0]]
  $region118: #{forward.1} parent=0
    _
  %s18 = ssub.s32 1, %s16
  %s19 = scalar_select 0, %s18, %s16
  $region1: #{forward.1} parent=0
    #allocation3 [shape = 'u8[147456]{0}', space=vmem, size = 0x24000, scoped, tag = 'input window, operand 1, single buffered']
    #allocation4 [shape = 's32[1]{0}', space=sflag, size = 0x4, scoped, tag = 'scoped memory for forward.1']
    #allocation5 [shape = 's32[1]{0}', space=sflag, size = 0x4, scoped, tag = 'scoped memory for forward.1']
    #allocation6 [shape = 'u8[4096]{0}', space=vmem, size = 0x1000, scoped, tag = 'input window, operand 2, single buffered']
    #allocation7 [shape = 's32[1]{0}', space=sflag, size = 0x4, scoped, tag = 'scoped memory for forward.1']
    #allocation8 [shape = 'u8[196608]{0}', space=vmem, size = 0x30000, scoped, tag = 'input window, operand 3, single buffered']
    #allocation9 [shape = 'u8[4096]{0}', space=vmem, size = 0x1000, scoped, tag = 'input window, operand 4, single buffered']
    #allocation10 [shape = 's32[1]{0}', space=sflag, size = 0x4, scoped, tag = 'scoped memory for forward.1']
    #allocation11 [shape = 'u8[655360]{0}', space=vmem, size = 0xa0000, scoped, tag = 'input window, operand 5, single buffered']
    #allocation12 [shape = 'u8[8192]{0}', space=vmem, size = 0x2000, scoped, tag = 'input window, operand 6, single buffered']
    #allocation13 [shape = 's32[1]{0}', space=sflag, size = 0x4, scoped, tag = 'scoped memory for forward.1']
    #allocation14 [shape = 'u8[2097152]{0}', space=vmem, size = 0x200000, scoped, tag = 'input window, operand 7, single buffered']
    #allocation15 [shape = 'u8[2048]{0}', space=vmem, size = 0x800, scoped, tag = 'input window, operand 8, single buffered']
    #allocation16 [shape = 's32[1]{0}', space=sflag, size = 0x4, scoped, tag = 'scoped memory for forward.1']
    #allocation17 [shape = 'u8[131072]{0}', space=vmem, size = 0x20000, scoped, tag = 'input window, operand 9, single buffered']
    #allocation18 [shape = 'u8[512]{0}', space=vmem, size = 0x400, scoped, tag = 'input window, operand 10, single buffered']
    #allocation19 [shape = 's32[1]{0}', space=sflag, size = 0x4, scoped, tag = 'scoped memory for forward.1']
    #allocation20 [shape = 'u8[32768]{0}', space=vmem, size = 0x8000, scoped, tag = 'input window, operand 11, single buffered']
    #allocation21 [shape = 'u8[512]{0}', space=vmem, size = 0x400, scoped, tag = 'input window, operand 12, single buffered']
    #allocation22 [shape = 's32[1]{0}', space=sflag, size = 0x4, scoped, tag = 'scoped memory for forward.1']
    #allocation23 [shape = 'u8[1024]{0}', space=vmem, size = 0x400, scoped, tag = 'output window, operand 0, single buffered']
    #allocation24 [shape = 'u8[1024]{0}', space=vmem, size = 0x400, scoped, tag = 'output window, operand 1, single buffered']
    #allocation25 [shape = 's32[1]{0}', space=sflag, size = 0x4, scoped, tag = 'scoped memory for forward.1']
    %20 = vsyncpa [#allocation4], 0
    %21 = vsyncpa [#allocation7], 0
    %22 = vsyncpa [#allocation10], 0
    %23 = vsyncpa [#allocation13], 0
    %24 = vsyncpa [#allocation16], 0
    %25 = vsyncpa [#allocation19], 0
    %26 = vsyncpa [#allocation22], 0
    %27 = vsyncpa [#allocation5], 0
    %28 = vsyncpa [#allocation25], 0
    // Predicated region
    $region2: #{forward.1} parent=1 // pred_check
      _
    $region3: #{forward.1} parent=1 // pred_check_branch
      %30 = sbr.rel (0) target = $region5
    $region4: #{forward.1} parent=1 // pred_region
      _
    $region5: #{forward.1} parent=1 // pred_fallthru
      _
    // Predicated region
    $region6: #{forward.1} parent=1 // pred_check
      _
    $region7: #{forward.1} parent=1 // pred_check_branch
      %32 = sbr.rel (0) target = $region9
    $region8: #{forward.1} parent=1 // pred_region
      %s34 = ssub.s32 4608, 4608
      %35 = vsyncadd [#allocation4], %s34
      %s36 = sshll.u32 [#allocation3], 4
      %s37 = int_to_ptr.vmem [resolvable:$true] %s36
      %42 = dma.hbm_to_vmem [thread:$0]  %s1, 4608, %s37, [#allocation4], 128, 128, 8
    $region9: #{forward.1} parent=1 // pred_fallthru
      _
    // Predicated region
    $region10: #{forward.1} parent=1 // pred_check
      _
    $region11: #{forward.1} parent=1 // pred_check_branch
      %44 = sbr.rel (0) target = $region13
    $region12: #{forward.1} parent=1 // pred_region
      %s46 = ssub.s32 128, 128
      %47 = vsyncadd [#allocation7], %s46
      %s49 = sshll.u32 [#allocation6], 4
      %s50 = int_to_ptr.vmem [resolvable:$true] %s49
      %52 = dma.hbm_to_vmem [thread:$0]  %s2, 128, %s50, [#allocation7]
    $region13: #{forward.1} parent=1 // pred_fallthru
      _
    // Predicated region
    $region14: #{forward.1} parent=1 // pred_check
      _
    $region15: #{forward.1} parent=1 // pred_check_branch
      %54 = sbr.rel (0) target = $region17
    $region16: #{forward.1} parent=1 // pred_region
      %s56 = ssub.s32 6144, 6144
      %57 = vsyncadd [#allocation7], %s56
      %s58 = sshll.u32 [#allocation8], 4
      %s59 = int_to_ptr.vmem [resolvable:$true] %s58
      %64 = dma.hbm_to_vmem [thread:$0]  %s3, 6144, %s59, [#allocation7], 128, 128, 8
    $region17: #{forward.1} parent=1 // pred_fallthru
      _
    // Predicated region
    $region18: #{forward.1} parent=1 // pred_check
      _
    $region19: #{forward.1} parent=1 // pred_check_branch
      %66 = sbr.rel (0) target = $region21
    $region20: #{forward.1} parent=1 // pred_region
      %s68 = ssub.s32 128, 128
      %69 = vsyncadd [#allocation10], %s68
      %s71 = sshll.u32 [#allocation9], 4
      %s72 = int_to_ptr.vmem [resolvable:$true] %s71
      %74 = dma.hbm_to_vmem [thread:$0]  %s4, 128, %s72, [#allocation10]
    $region21: #{forward.1} parent=1 // pred_fallthru
      _
    // Predicated region
    $region22: #{forward.1} parent=1 // pred_check
      _
    $region23: #{forward.1} parent=1 // pred_check_branch
      %76 = sbr.rel (0) target = $region25
    $region24: #{forward.1} parent=1 // pred_region
      %s78 = ssub.s32 20480, 20480
      %79 = vsyncadd [#allocation10], %s78
      %s80 = sshll.u32 [#allocation11], 4
      %s81 = int_to_ptr.vmem [resolvable:$true] %s80
      %86 = dma.hbm_to_vmem [thread:$0]  %s5, 20480, %s81, [#allocation10], 256, 256, 16
    $region25: #{forward.1} parent=1 // pred_fallthru
      _
    // Predicated region
    $region26: #{forward.1} parent=1 // pred_check
      _
    $region27: #{forward.1} parent=1 // pred_check_branch
      %88 = sbr.rel (0) target = $region29
    $region28: #{forward.1} parent=1 // pred_region
      %s90 = ssub.s32 256, 256
      %91 = vsyncadd [#allocation13], %s90
      %s93 = sshll.u32 [#allocation12], 4
      %s94 = int_to_ptr.vmem [resolvable:$true] %s93
      %96 = dma.hbm_to_vmem [thread:$0]  %s6, 256, %s94, [#allocation13]
    $region29: #{forward.1} parent=1 // pred_fallthru
      _
    // Predicated region
    $region30: #{forward.1} parent=1 // pred_check
      _
    $region31: #{forward.1} parent=1 // pred_check_branch
      %98 = sbr.rel (0) target = $region33
    $region32: #{forward.1} parent=1 // pred_region
      %s100 = ssub.s32 65536, 65536
      %101 = vsyncadd [#allocation13], %s100
      %s102 = sshll.u32 [#allocation14], 4
      %s103 = int_to_ptr.vmem [resolvable:$true] %s102
      %108 = dma.hbm_to_vmem [thread:$0]  %s7, 65536, %s103, [#allocation13], 256, 256, 16
    $region33: #{forward.1} parent=1 // pred_fallthru
      _
    // Predicated region
    $region34: #{forward.1} parent=1 // pred_check
      _
    $region35: #{forward.1} parent=1 // pred_check_branch
      %110 = sbr.rel (0) target = $region37
    $region36: #{forward.1} parent=1 // pred_region
      %s112 = ssub.s32 64, 64
      %113 = vsyncadd [#allocation16], %s112
      %s115 = sshll.u32 [#allocation15], 4
      %s116 = int_to_ptr.vmem [resolvable:$true] %s115
      %118 = dma.hbm_to_vmem [thread:$0]  %s8, 64, %s116, [#allocation16]
    $region37: #{forward.1} parent=1 // pred_fallthru
      _
    // Predicated region
    $region38: #{forward.1} parent=1 // pred_check
      _
    $region39: #{forward.1} parent=1 // pred_check_branch
      %120 = sbr.rel (0) target = $region41
    $region40: #{forward.1} parent=1 // pred_region
      %s122 = ssub.s32 4096, 4096
      %123 = vsyncadd [#allocation16], %s122
      %s124 = sshll.u32 [#allocation17], 4
      %s125 = int_to_ptr.vmem [resolvable:$true] %s124
      %130 = dma.hbm_to_vmem [thread:$0]  %s9, 4096, %s125, [#allocation16], 64, 64, 4
    $region41: #{forward.1} parent=1 // pred_fallthru
      _
    // Predicated region
    $region42: #{forward.1} parent=1 // pred_check
      _
    $region43: #{forward.1} parent=1 // pred_check_branch
      %132 = sbr.rel (0) target = $region45
    $region44: #{forward.1} parent=1 // pred_region
      %s134 = ssub.s32 16, 16
      %135 = vsyncadd [#allocation19], %s134
      %s137 = sshll.u32 [#allocation18], 4
      %s138 = int_to_ptr.vmem [resolvable:$true] %s137
      %140 = dma.hbm_to_vmem [thread:$0]  %s10, 16, %s138, [#allocation19]
    $region45: #{forward.1} parent=1 // pred_fallthru
      _
    // Predicated region
    $region46: #{forward.1} parent=1 // pred_check
      _
    $region47: #{forward.1} parent=1 // pred_check_branch
      %142 = sbr.rel (0) target = $region49
    $region48: #{forward.1} parent=1 // pred_region
      %s144 = ssub.s32 1024, 1024
      %145 = vsyncadd [#allocation19], %s144
      %s146 = sshll.u32 [#allocation20], 4
      %s147 = int_to_ptr.vmem [resolvable:$true] %s146
      %152 = dma.hbm_to_vmem [thread:$0]  %s11, 1024, %s147, [#allocation19], 64, 64, 4
    $region49: #{forward.1} parent=1 // pred_fallthru
      _
    // Predicated region
    $region50: #{forward.1} parent=1 // pred_check
      _
    $region51: #{forward.1} parent=1 // pred_check_branch
      %154 = sbr.rel (0) target = $region53
    $region52: #{forward.1} parent=1 // pred_region
      %s156 = ssub.s32 16, 16
      %157 = vsyncadd [#allocation22], %s156
      %s159 = sshll.u32 [#allocation21], 4
      %s160 = int_to_ptr.vmem [resolvable:$true] %s159
      %162 = dma.hbm_to_vmem [thread:$0]  %s12, 16, %s160, [#allocation22]
    $region53: #{forward.1} parent=1 // pred_fallthru
      _
    // Predicated region
    $region54: #{forward.1} parent=1 // pred_check
      _
    $region55: #{forward.1} parent=1 // pred_check_branch
      %164 = sbr.rel (0) target = $region57
    $region56: #{forward.1} parent=1 // pred_region
      %165 = dma.done [#allocation4], 4608
    $region57: #{forward.1} parent=1 // pred_fallthru
      _
    // Predicated region
    $region58: #{forward.1} parent=1 // pred_check
      _
    $region59: #{forward.1} parent=1 // pred_check_branch
      %167 = sbr.rel (0) target = $region61
    $region60: #{forward.1} parent=1 // pred_region
      %168 = dma.done [#allocation7], 128
    $region61: #{forward.1} parent=1 // pred_fallthru
      _
    // Predicated region
    $region62: #{forward.1} parent=1 // pred_check
      _
    $region63: #{forward.1} parent=1 // pred_check_branch
      %170 = sbr.rel (0) target = $region65
    $region64: #{forward.1} parent=1 // pred_region
      %171 = dma.done [#allocation7], 6144
    $region65: #{forward.1} parent=1 // pred_fallthru
      _
    // Predicated region
    $region66: #{forward.1} parent=1 // pred_check
      _
    $region67: #{forward.1} parent=1 // pred_check_branch
      %173 = sbr.rel (0) target = $region69
    $region68: #{forward.1} parent=1 // pred_region
      %174 = dma.done [#allocation10], 128
    $region69: #{forward.1} parent=1 // pred_fallthru
      _
    // Predicated region
    $region70: #{forward.1} parent=1 // pred_check
      _
    $region71: #{forward.1} parent=1 // pred_check_branch
      %176 = sbr.rel (0) target = $region73
    $region72: #{forward.1} parent=1 // pred_region
      %177 = dma.done [#allocation10], 20480
    $region73: #{forward.1} parent=1 // pred_fallthru
      _
    // Predicated region
    $region74: #{forward.1} parent=1 // pred_check
      _
    $region75: #{forward.1} parent=1 // pred_check_branch
      %179 = sbr.rel (0) target = $region77
    $region76: #{forward.1} parent=1 // pred_region
      %180 = dma.done [#allocation13], 256
    $region77: #{forward.1} parent=1 // pred_fallthru
      _
    // Predicated region
    $region78: #{forward.1} parent=1 // pred_check
      _
    $region79: #{forward.1} parent=1 // pred_check_branch
      %182 = sbr.rel (0) target = $region81
    $region80: #{forward.1} parent=1 // pred_region
      %183 = dma.done [#allocation13], 65536
    $region81: #{forward.1} parent=1 // pred_fallthru
      _
    // Predicated region
    $region82: #{forward.1} parent=1 // pred_check
      _
    $region83: #{forward.1} parent=1 // pred_check_branch
      %185 = sbr.rel (0) target = $region85
    $region84: #{forward.1} parent=1 // pred_region
      %186 = dma.done [#allocation16], 64
    $region85: #{forward.1} parent=1 // pred_fallthru
      _
    // Predicated region
    $region86: #{forward.1} parent=1 // pred_check
      _
    $region87: #{forward.1} parent=1 // pred_check_branch
      %188 = sbr.rel (0) target = $region89
    $region88: #{forward.1} parent=1 // pred_region
      %189 = dma.done [#allocation16], 4096
    $region89: #{forward.1} parent=1 // pred_fallthru
      _
    // Predicated region
    $region90: #{forward.1} parent=1 // pred_check
      _
    $region91: #{forward.1} parent=1 // pred_check_branch
      %191 = sbr.rel (0) target = $region93
    $region92: #{forward.1} parent=1 // pred_region
      %192 = dma.done [#allocation19], 16
    $region93: #{forward.1} parent=1 // pred_fallthru
      _
    // Predicated region
    $region94: #{forward.1} parent=1 // pred_check
      _
    $region95: #{forward.1} parent=1 // pred_check_branch
      %194 = sbr.rel (0) target = $region97
    $region96: #{forward.1} parent=1 // pred_region
      %195 = dma.done [#allocation19], 1024
    $region97: #{forward.1} parent=1 // pred_fallthru
      _
    // Predicated region
    $region98: #{forward.1} parent=1 // pred_check
      _
    $region99: #{forward.1} parent=1 // pred_check_branch
      %197 = sbr.rel (0) target = $region101
    $region100: #{forward.1} parent=1 // pred_region
      %198 = dma.done [#allocation22], 16
    $region101: #{forward.1} parent=1 // pred_fallthru
      _
    %v200 = vld [vmem:[%s0] sm:$0xf]
    %v201 = vld [vmem:[%s0 + $0x4] sm:$0xf]
    %v202 = vld [vmem:[%s0 + $0x8] sm:$0xf]
    %v203 = vld [vmem:[%s0 + $0xc] sm:$0xf]
    %v204 = vld [vmem:[%s0 + $0x10] sm:$0x1]
    %v205 = vld [vmem:[%s0 + $0x14] sm:$0xf]
    %v206 = vld [vmem:[%s0 + $0x18] sm:$0xf]
    %v207 = vld [vmem:[%s0 + $0x1c] sm:$0xf]
    %v208 = vld [vmem:[%s0 + $0x20] sm:$0xf]
    %v209 = vld [vmem:[%s0 + $0x24] sm:$0x1]
    %v210 = vld [vmem:[#allocation3] sm:$0xff]
    %v211 = vld [vmem:[#allocation3 + $0x8] sm:$0xff]
    %v212 = vld [vmem:[#allocation3 + $0x10] sm:$0xff]
    %v213 = vld [vmem:[#allocation3 + $0x18] sm:$0xff]
    %v214 = vld [vmem:[#allocation3 + $0x20] sm:$0xff]
    %v215 = vld [vmem:[#allocation3 + $0x28] sm:$0xff]
    %v216 = vld [vmem:[#allocation3 + $0x30] sm:$0xff]
    %v217 = vld [vmem:[#allocation3 + $0x38] sm:$0xff]
    %v218 = vld [vmem:[#allocation3 + $0x40] sm:$0xff]
    %v219 = vld [vmem:[#allocation3 + $0x48] sm:$0xff]
    %v220 = vld [vmem:[#allocation3 + $0x50] sm:$0xff]
    %v221 = vld [vmem:[#allocation3 + $0x58] sm:$0xff]
    %vm222 = vsmask.f32 3328
    %vm223 = vsmask.f32 7440
    %vm224 = vmor %vm222, %vm223
    %v226 = vshrl.u32 %v200, 16
    %v228 = vrot.slane %v226, 4
    %v229 = vshll.u32 %v200, 16
    %v231 = vrot.slane %v229, 5
    %v232 = vor.u32 %v228, %v231
    %v233 = vrot.slane %v232, 4
    %v235 = vshll.u32 %v201, 16
    %v237 = vrot.slane %v235, 5
    %v238 = vsel %vm224, %v233, %v237
    %v239 = vshrl.u32 %v201, 16
    %v241 = vrot.slane %v239, 4
    %v242 = vor.u32 %v241, %v237
    %v243 = vrot.slane %v242, 4
    %v245 = vshll.u32 %v202, 16
    %v247 = vrot.slane %v245, 5
    %v248 = vsel %vm224, %v243, %v247
    %v249 = vshrl.u32 %v202, 16
    %v251 = vrot.slane %v249, 4
    %v252 = vor.u32 %v251, %v247
    %v253 = vrot.slane %v252, 4
    %v255 = vshll.u32 %v203, 16
    %v257 = vrot.slane %v255, 5
    %v258 = vsel %vm224, %v253, %v257
    %v259 = vshrl.u32 %v203, 16
    %v261 = vrot.slane %v259, 4
    %v262 = vor.u32 %v261, %v257
    %v263 = vrot.slane %v262, 4
    %v265 = vshll.u32 %v204, 16
    %v267 = vrot.slane %v265, 5
    %v268 = vsel %vm224, %v263, %v267
    %v270 = vshrl.u32 %v205, 16
    %v272 = vrot.slane %v270, 4
    %v273 = vshll.u32 %v205, 16
    %v275 = vrot.slane %v273, 5
    %v276 = vor.u32 %v272, %v275
    %v277 = vrot.slane %v276, 4
    %v279 = vshll.u32 %v206, 16
    %v281 = vrot.slane %v279, 5
    %v282 = vsel %vm224, %v277, %v281
    %v283 = vshrl.u32 %v206, 16
    %v285 = vrot.slane %v283, 4
    %v286 = vor.u32 %v285, %v281
    %v287 = vrot.slane %v286, 4
    %v289 = vshll.u32 %v207, 16
    %v291 = vrot.slane %v289, 5
    %v292 = vsel %vm224, %v287, %v291
    %v293 = vshrl.u32 %v207, 16
    %v295 = vrot.slane %v293, 4
    %v296 = vor.u32 %v295, %v291
    %v297 = vrot.slane %v296, 4
    %v299 = vshll.u32 %v208, 16
    %v301 = vrot.slane %v299, 5
    %v302 = vsel %vm224, %v297, %v301
    %v303 = vshrl.u32 %v208, 16
    %v305 = vrot.slane %v303, 4
    %v306 = vor.u32 %v305, %v301
    %v307 = vrot.slane %v306, 4
    %v309 = vshll.u32 %v209, 16
    %v311 = vrot.slane %v309, 5
    %v312 = vsel %vm224, %v307, %v311
    %s313 = scalar_lea.vmem [#allocation3], 96
    %v314 = vld [vmem:[%s313] sm:$0xff]
    %v315 = vld [vmem:[%s313 + $0x8] sm:$0xff]
    %v316 = vld [vmem:[%s313 + $0x10] sm:$0xff]
    %v317 = vld [vmem:[%s313 + $0x18] sm:$0xff]
    %v318 = vld [vmem:[%s313 + $0x20] sm:$0xff]
    %v319 = vld [vmem:[%s313 + $0x28] sm:$0xff]
    %v320 = vld [vmem:[%s313 + $0x30] sm:$0xff]
    %v321 = vld [vmem:[%s313 + $0x38] sm:$0xff]
    %v322 = vld [vmem:[%s313 + $0x40] sm:$0xff]
    %v323 = vld [vmem:[%s313 + $0x48] sm:$0xff]
    %v324 = vld [vmem:[%s313 + $0x50] sm:$0xff]
    %v325 = vld [vmem:[%s313 + $0x58] sm:$0xff]
    %v326 = vunpack.c.l.b16 %v238
    %v327 = vunpack.c.l.b16 %v248
    %v328 = vunpack.c.l.b16 %v258
    %v329 = vunpack.c.l.b16 %v268
    %v330 = vunpack.c.l.b16 %v282
    %v331 = vunpack.c.l.b16 %v292
    %v332 = vunpack.c.l.b16 %v302
    %v333 = vunpack.c.l.b16 %v312
    %v334 = vpack.c.b16 %v327, %v326
    %v335 = vpack.c.b16 %v329, %v328
    %v336 = vpack.c.b16 %v331, %v330
    %v337 = vpack.c.b16 %v333, %v332
    %v350 = vunpack.c.l.b16 %v314
    %v351 = vunpack.c.h.b16 %v314
    %v352 = vunpack.c.l.b16 %v315
    %v353 = vunpack.c.h.b16 %v315
    %v354 = vunpack.c.l.b16 %v316
    %v355 = vunpack.c.h.b16 %v316
    %v356 = vunpack.c.l.b16 %v317
    %v357 = vunpack.c.h.b16 %v317
    %v358 = vunpack.c.l.b16 %v318
    %v359 = vunpack.c.h.b16 %v318
    %v360 = vunpack.c.l.b16 %v319
    %v361 = vunpack.c.h.b16 %v319
    %v362 = vunpack.c.l.b16 %v320
    %v363 = vunpack.c.h.b16 %v320
    %v364 = vunpack.c.l.b16 %v321
    %v365 = vunpack.c.h.b16 %v321
    %v366 = vunpack.c.l.b16 %v322
    %v367 = vunpack.c.h.b16 %v322
    %v368 = vunpack.c.l.b16 %v323
    %v369 = vunpack.c.h.b16 %v323
    %v370 = vunpack.c.l.b16 %v324
    %v371 = vunpack.c.h.b16 %v324
    %v372 = vunpack.c.l.b16 %v325
    %v373 = vunpack.c.h.b16 %v325
    %v374 = vpack.c.b16 %v352, %v350
    %v375 = vpack.c.b16 %v353, %v351
    %v376 = vpack.c.b16 %v356, %v354
    %v377 = vpack.c.b16 %v357, %v355
    %v378 = vpack.c.b16 %v360, %v358
    %v379 = vpack.c.b16 %v361, %v359
    %v380 = vpack.c.b16 %v364, %v362
    %v381 = vpack.c.b16 %v365, %v363
    %v382 = vpack.c.b16 %v368, %v366
    %v383 = vpack.c.b16 %v369, %v367
    %v384 = vpack.c.b16 %v372, %v370
    %v385 = vpack.c.b16 %v373, %v371
    %vm398 = vcmask 785408
    %v400 = vsel %vm398, %v334, 0
    %v403 = vsel %vm398, %v335, 0
    %v406 = vsel %vm398, %v336, 0
    %v409 = vsel %vm398, %v337, 0
    %411 = vmatprep.subr.bf16.mxu0 %v375
    %412 = vmatpush1.bf16.msra.mxu0 %v374
    %413 = vmatprep.subr.bf16.mxu0 %v377
    %414 = vmatpush1.bf16.msra.mxu0 %v376
    %415 = vmatprep.subr.bf16.mxu0 %v379
    %416 = vmatpush1.bf16.msra.mxu0 %v378
    %417 = vmatprep.subr.bf16.mxu0 %v381
    %418 = vmatpush1.bf16.msra.mxu0 %v380
    %419 = vmatprep.subr.bf16.mxu0 %v383
    %420 = vmatpush1.bf16.msra.mxu0 %v382
    %421 = vmatprep.subr.bf16.mxu0 %v385
    %422 = vmatpush1.bf16.msra.mxu0 %v384
    %423 = vmatprep.subr.bf16.mxu0 0
    %424 = vmatpush1.bf16.msra.mxu0 0
    %425 = vmatprep.subr.bf16.mxu0 0
    %426 = vmatpush1.bf16.msra.mxu0 0
    %427 = vmatprep.subr.bf16.mxu0 0
    %428 = vmatpush1.bf16.msra.mxu0 0
    %429 = vmatprep.subr.bf16.mxu0 0
    %430 = vmatpush1.bf16.msra.mxu0 0
    %431 = vmatprep.subr.bf16.mxu0 0
    %432 = vmatpush1.bf16.msra.mxu0 0
    %433 = vmatprep.subr.bf16.mxu0 0
    %434 = vmatpush1.bf16.msra.mxu0 0
    %435 = vmatprep.subr.bf16.mxu0 0
    %436 = vmatpush1.bf16.msra.mxu0 0
    %437 = vmatprep.subr.bf16.mxu0 0
    %438 = vmatpush1.bf16.msra.mxu0 0
    %439 = vmatprep.subr.bf16.mxu0 0
    %440 = vmatpush1.bf16.msra.mxu0 0
    %441 = vmatprep.subr.bf16.mxu0 0
    %442 = vmatpush1.bf16.msra.mxu0 0
    %443 = vmatprep.mubr.bf16.mxu0 0
    %444 = vmatmul.mubr.bf16.gmra.mrb[0].mxu0 %v400
    %v445 = vpop.f32.mrb[0].mxu0
    %v446 = vadd.f32 0.0, %v445
    %v447 = vpop.f32.mrb[0].mxu0
    %v448 = vadd.f32 0.0, %v447
    %v449 = vpop.f32.mrb[0].mxu0
    %v450 = vadd.f32 0.0, %v449
    %v451 = vpop.f32.mrb[0].mxu0
    %v452 = vadd.f32 0.0, %v451
    %453 = vmatprep.mubr.bf16.mxu0 0
    %454 = vmatmul.mubr.bf16.gmra.mrb[0].mxu0 %v403
    %v455 = vpop.f32.mrb[0].mxu0
    %v456 = vadd.f32 0.0, %v455
    %v457 = vpop.f32.mrb[0].mxu0
    %v458 = vadd.f32 0.0, %v457
    %v459 = vpop.f32.mrb[0].mxu0
    %v460 = vadd.f32 0.0, %v459
    %v461 = vpop.f32.mrb[0].mxu0
    %v462 = vadd.f32 0.0, %v461
    %463 = vmatprep.mubr.bf16.mxu0 0
    %464 = vmatmul.mubr.bf16.gmra.mrb[0].mxu0 %v406
    %v465 = vpop.f32.mrb[0].mxu0
    %v466 = vadd.f32 0.0, %v465
    %v467 = vpop.f32.mrb[0].mxu0
    %v468 = vadd.f32 0.0, %v467
    %v469 = vpop.f32.mrb[0].mxu0
    %v470 = vadd.f32 0.0, %v469
    %v471 = vpop.f32.mrb[0].mxu0
    %v472 = vadd.f32 0.0, %v471
    %473 = vmatprep.mubr.bf16.mxu0 0
    %474 = vmatmul.mubr.bf16.gmra.mrb[0].mxu0 %v409
    %v475 = vpop.f32.mrb[0].mxu0
    %v476 = vadd.f32 0.0, %v475
    %v477 = vpop.f32.mrb[0].mxu0
    %v478 = vadd.f32 0.0, %v477
    %v479 = vpop.f32.mrb[0].mxu0
    %v480 = vadd.f32 0.0, %v479
    %v481 = vpop.f32.mrb[0].mxu0
    %v482 = vadd.f32 0.0, %v481
    %483 = vdwg.mxu0
    %v492 = vunpack.c.l.b16 %v200
    %v493 = vunpack.c.l.b16 %v201
    %v494 = vunpack.c.l.b16 %v202
    %v495 = vunpack.c.l.b16 %v203
    %v496 = vunpack.c.l.b16 %v205
    %v497 = vunpack.c.l.b16 %v206
    %v498 = vunpack.c.l.b16 %v207
    %v499 = vunpack.c.l.b16 %v208
    %v500 = vpack.c.b16 %v493, %v492
    %v501 = vpack.c.b16 %v495, %v494
    %v502 = vpack.c.b16 %v497, %v496
    %v503 = vpack.c.b16 %v499, %v498
    %v516 = vunpack.c.l.b16 %v210
    %v517 = vunpack.c.h.b16 %v210
    %v518 = vunpack.c.l.b16 %v211
    %v519 = vunpack.c.h.b16 %v211
    %v520 = vunpack.c.l.b16 %v212
    %v521 = vunpack.c.h.b16 %v212
    %v522 = vunpack.c.l.b16 %v213
    %v523 = vunpack.c.h.b16 %v213
    %v524 = vunpack.c.l.b16 %v214
    %v525 = vunpack.c.h.b16 %v214
    %v526 = vunpack.c.l.b16 %v215
    %v527 = vunpack.c.h.b16 %v215
    %v528 = vunpack.c.l.b16 %v216
    %v529 = vunpack.c.h.b16 %v216
    %v530 = vunpack.c.l.b16 %v217
    %v531 = vunpack.c.h.b16 %v217
    %v532 = vunpack.c.l.b16 %v218
    %v533 = vunpack.c.h.b16 %v218
    %v534 = vunpack.c.l.b16 %v219
    %v535 = vunpack.c.h.b16 %v219
    %v536 = vunpack.c.l.b16 %v220
    %v537 = vunpack.c.h.b16 %v220
    %v538 = vunpack.c.l.b16 %v221
    %v539 = vunpack.c.h.b16 %v221
    %v540 = vpack.c.b16 %v518, %v516
    %v541 = vpack.c.b16 %v519, %v517
    %v542 = vpack.c.b16 %v522, %v520
    %v543 = vpack.c.b16 %v523, %v521
    %v544 = vpack.c.b16 %v526, %v524
    %v545 = vpack.c.b16 %v527, %v525
    %v546 = vpack.c.b16 %v530, %v528
    %v547 = vpack.c.b16 %v531, %v529
    %v548 = vpack.c.b16 %v534, %v532
    %v549 = vpack.c.b16 %v535, %v533
    %v550 = vpack.c.b16 %v538, %v536
    %v551 = vpack.c.b16 %v539, %v537
    %v565 = vsel %vm398, %v500, 0
    %v568 = vsel %vm398, %v501, 0
    %v571 = vsel %vm398, %v502, 0
    %v574 = vsel %vm398, %v503, 0
    %576 = vmatprep.subr.bf16.mxu0 %v541
    %577 = vmatpush1.bf16.msra.mxu0 %v540
    %578 = vmatprep.subr.bf16.mxu0 %v543
    %579 = vmatpush1.bf16.msra.mxu0 %v542
    %580 = vmatprep.subr.bf16.mxu0 %v545
    %581 = vmatpush1.bf16.msra.mxu0 %v544
    %582 = vmatprep.subr.bf16.mxu0 %v547
    %583 = vmatpush1.bf16.msra.mxu0 %v546
    %584 = vmatprep.subr.bf16.mxu0 %v549
    %585 = vmatpush1.bf16.msra.mxu0 %v548
    %586 = vmatprep.subr.bf16.mxu0 %v551
    %587 = vmatpush1.bf16.msra.mxu0 %v550
    %588 = vmatprep.subr.bf16.mxu0 0
    %589 = vmatpush1.bf16.msra.mxu0 0
    %590 = vmatprep.subr.bf16.mxu0 0
    %591 = vmatpush1.bf16.msra.mxu0 0
    %592 = vmatprep.subr.bf16.mxu0 0
    %593 = vmatpush1.bf16.msra.mxu0 0
    %594 = vmatprep.subr.bf16.mxu0 0
    %595 = vmatpush1.bf16.msra.mxu0 0
    %596 = vmatprep.subr.bf16.mxu0 0
    %597 = vmatpush1.bf16.msra.mxu0 0
    %598 = vmatprep.subr.bf16.mxu0 0
    %599 = vmatpush1.bf16.msra.mxu0 0
    %600 = vmatprep.subr.bf16.mxu0 0
    %601 = vmatpush1.bf16.msra.mxu0 0
    %602 = vmatprep.subr.bf16.mxu0 0
    %603 = vmatpush1.bf16.msra.mxu0 0
    %604 = vmatprep.subr.bf16.mxu0 0
    %605 = vmatpush1.bf16.msra.mxu0 0
    %606 = vmatprep.subr.bf16.mxu0 0
    %607 = vmatpush1.bf16.msra.mxu0 0
    %608 = vmatprep.mubr.bf16.mxu0 0
    %609 = vmatmul.mubr.bf16.gmra.mrb[0].mxu0 %v565
    %v610 = vpop.f32.mrb[0].mxu0
    %v611 = vadd.f32 %v446, %v610
    %v612 = vpop.f32.mrb[0].mxu0
    %v613 = vadd.f32 %v448, %v612
    %v614 = vpop.f32.mrb[0].mxu0
    %v615 = vadd.f32 %v450, %v614
    %v616 = vpop.f32.mrb[0].mxu0
    %v617 = vadd.f32 %v452, %v616
    %618 = vmatprep.mubr.bf16.mxu0 0
    %619 = vmatmul.mubr.bf16.gmra.mrb[0].mxu0 %v568
    %v620 = vpop.f32.mrb[0].mxu0
    %v621 = vadd.f32 %v456, %v620
    %v622 = vpop.f32.mrb[0].mxu0
    %v623 = vadd.f32 %v458, %v622
    %v624 = vpop.f32.mrb[0].mxu0
    %v625 = vadd.f32 %v460, %v624
    %v626 = vpop.f32.mrb[0].mxu0
    %v627 = vadd.f32 %v462, %v626
    %628 = vmatprep.mubr.bf16.mxu0 0
    %629 = vmatmul.mubr.bf16.gmra.mrb[0].mxu0 %v571
    %v630 = vpop.f32.mrb[0].mxu0
    %v631 = vadd.f32 %v466, %v630
    %v632 = vpop.f32.mrb[0].mxu0
    %v633 = vadd.f32 %v468, %v632
    %v634 = vpop.f32.mrb[0].mxu0
    %v635 = vadd.f32 %v470, %v634
    %v636 = vpop.f32.mrb[0].mxu0
    %v637 = vadd.f32 %v472, %v636
    %638 = vmatprep.mubr.bf16.mxu0 0
    %639 = vmatmul.mubr.bf16.gmra.mrb[0].mxu0 %v574
    %v640 = vpop.f32.mrb[0].mxu0
    %v641 = vadd.f32 %v476, %v640
    %v642 = vpop.f32.mrb[0].mxu0
    %v643 = vadd.f32 %v478, %v642
    %v644 = vpop.f32.mrb[0].mxu0
    %v645 = vadd.f32 %v480, %v644
    %v646 = vpop.f32.mrb[0].mxu0
    %v647 = vadd.f32 %v482, %v646
    %648 = vdwg.mxu0
    %vm651 = vcmask 1042432
    %vm652 = vcmask 1046532
    %vm653 = vmor %vm651, %vm652
    %v654 = vrot.slane %v200, 5
    %v655 = vrot.slane %v654, 4
    %v656 = vrot.slane %v201, 5
    %v657 = vsel %vm653, %v655, %v656
    %v658 = vrot.slane %v656, 4
    %v659 = vrot.slane %v202, 5
    %v660 = vsel %vm653, %v658, %v659
    %v661 = vrot.slane %v659, 4
    %v662 = vrot.slane %v203, 5
    %v663 = vsel %vm653, %v661, %v662
    %v664 = vrot.slane %v662, 4
    %v665 = vrot.slane %v204, 5
    %v666 = vsel %vm653, %v664, %v665
    %v667 = vrot.slane %v205, 5
    %v668 = vrot.slane %v667, 4
    %v669 = vrot.slane %v206, 5
    %v670 = vsel %vm653, %v668, %v669
    %v671 = vrot.slane %v669, 4
    %v672 = vrot.slane %v207, 5
    %v673 = vsel %vm653, %v671, %v672
    %v674 = vrot.slane %v672, 4
    %v675 = vrot.slane %v208, 5
    %v676 = vsel %vm653, %v674, %v675
    %v677 = vrot.slane %v675, 4
    %v678 = vrot.slane %v209, 5
    %v679 = vsel %vm653, %v677, %v678
    %s680 = scalar_lea.vmem [#allocation3], 192
    %v681 = vld [vmem:[%s680] sm:$0xff]
    %v682 = vld [vmem:[%s680 + $0x8] sm:$0xff]
    %v683 = vld [vmem:[%s680 + $0x10] sm:$0xff]
    %v684 = vld [vmem:[%s680 + $0x18] sm:$0xff]
    %v685 = vld [vmem:[%s680 + $0x20] sm:$0xff]
    %v686 = vld [vmem:[%s680 + $0x28] sm:$0xff]
    %v687 = vld [vmem:[%s680 + $0x30] sm:$0xff]
    %v688 = vld [vmem:[%s680 + $0x38] sm:$0xff]
    %v689 = vld [vmem:[%s680 + $0x40] sm:$0xff]
    %v690 = vld [vmem:[%s680 + $0x48] sm:$0xff]
    %v691 = vld [vmem:[%s680 + $0x50] sm:$0xff]
    %v692 = vld [vmem:[%s680 + $0x58] sm:$0xff]
    %v693 = vunpack.c.l.b16 %v657
    %v694 = vunpack.c.l.b16 %v660
    %v695 = vunpack.c.l.b16 %v663
    %v696 = vunpack.c.l.b16 %v666
    %v697 = vunpack.c.l.b16 %v670
    %v698 = vunpack.c.l.b16 %v673
    %v699 = vunpack.c.l.b16 %v676
    %v700 = vunpack.c.l.b16 %v679
    %v701 = vpack.c.b16 %v694, %v693
    %v702 = vpack.c.b16 %v696, %v695
    %v703 = vpack.c.b16 %v698, %v697
    %v704 = vpack.c.b16 %v700, %v699
    %v717 = vunpack.c.l.b16 %v681
    %v718 = vunpack.c.h.b16 %v681
    %v719 = vunpack.c.l.b16 %v682
    %v720 = vunpack.c.h.b16 %v682
    %v721 = vunpack.c.l.b16 %v683
    %v722 = vunpack.c.h.b16 %v683
    %v723 = vunpack.c.l.b16 %v684
    %v724 = vunpack.c.h.b16 %v684
    %v725 = vunpack.c.l.b16 %v685
    %v726 = vunpack.c.h.b16 %v685
    %v727 = vunpack.c.l.b16 %v686
    %v728 = vunpack.c.h.b16 %v686
    %v729 = vunpack.c.l.b16 %v687
    %v730 = vunpack.c.h.b16 %v687
    %v731 = vunpack.c.l.b16 %v688
    %v732 = vunpack.c.h.b16 %v688
    %v733 = vunpack.c.l.b16 %v689
    %v734 = vunpack.c.h.b16 %v689
    %v735 = vunpack.c.l.b16 %v690
    %v736 = vunpack.c.h.b16 %v690
    %v737 = vunpack.c.l.b16 %v691
    %v738 = vunpack.c.h.b16 %v691
    %v739 = vunpack.c.l.b16 %v692
    %v740 = vunpack.c.h.b16 %v692
    %v741 = vpack.c.b16 %v719, %v717
    %v742 = vpack.c.b16 %v720, %v718
    %v743 = vpack.c.b16 %v723, %v721
    %v744 = vpack.c.b16 %v724, %v722
    %v745 = vpack.c.b16 %v727, %v725
    %v746 = vpack.c.b16 %v728, %v726
    %v747 = vpack.c.b16 %v731, %v729
    %v748 = vpack.c.b16 %v732, %v730
    %v749 = vpack.c.b16 %v735, %v733
    %v750 = vpack.c.b16 %v736, %v734
    %v751 = vpack.c.b16 %v739, %v737
    %v752 = vpack.c.b16 %v740, %v738
    %v766 = vsel %vm398, %v701, 0
    %v769 = vsel %vm398, %v702, 0
    %v772 = vsel %vm398, %v703, 0
    %v775 = vsel %vm398, %v704, 0
    %777 = vmatprep.subr.bf16.mxu0 %v742
    %778 = vmatpush1.bf16.msra.mxu0 %v741
    %779 = vmatprep.subr.bf16.mxu0 %v744
    %780 = vmatpush1.bf16.msra.mxu0 %v743
    %781 = vmatprep.subr.bf16.mxu0 %v746
    %782 = vmatpush1.bf16.msra.mxu0 %v745
    %783 = vmatprep.subr.bf16.mxu0 %v748
    %784 = vmatpush1.bf16.msra.mxu0 %v747
    %785 = vmatprep.subr.bf16.mxu0 %v750
    %786 = vmatpush1.bf16.msra.mxu0 %v749
    %787 = vmatprep.subr.bf16.mxu0 %v752
    %788 = vmatpush1.bf16.msra.mxu0 %v751
    %789 = vmatprep.subr.bf16.mxu0 0
    %790 = vmatpush1.bf16.msra.mxu0 0
    %791 = vmatprep.subr.bf16.mxu0 0
    %792 = vmatpush1.bf16.msra.mxu0 0
    %793 = vmatprep.subr.bf16.mxu0 0
    %794 = vmatpush1.bf16.msra.mxu0 0
    %795 = vmatprep.subr.bf16.mxu0 0
    %796 = vmatpush1.bf16.msra.mxu0 0
    %797 = vmatprep.subr.bf16.mxu0 0
    %798 = vmatpush1.bf16.msra.mxu0 0
    %799 = vmatprep.subr.bf16.mxu0 0
    %800 = vmatpush1.bf16.msra.mxu0 0
    %801 = vmatprep.subr.bf16.mxu0 0
    %802 = vmatpush1.bf16.msra.mxu0 0
    %803 = vmatprep.subr.bf16.mxu0 0
    %804 = vmatpush1.bf16.msra.mxu0 0
    %805 = vmatprep.subr.bf16.mxu0 0
    %806 = vmatpush1.bf16.msra.mxu0 0
    %807 = vmatprep.subr.bf16.mxu0 0
    %808 = vmatpush1.bf16.msra.mxu0 0
    %809 = vmatprep.mubr.bf16.mxu0 0
    %810 = vmatmul.mubr.bf16.gmra.mrb[0].mxu0 %v766
    %v811 = vpop.f32.mrb[0].mxu0
    %v812 = vadd.f32 0.0, %v811
    %v813 = vpop.f32.mrb[0].mxu0
    %v814 = vadd.f32 0.0, %v813
    %v815 = vpop.f32.mrb[0].mxu0
    %v816 = vadd.f32 0.0, %v815
    %v817 = vpop.f32.mrb[0].mxu0
    %v818 = vadd.f32 0.0, %v817
    %819 = vmatprep.mubr.bf16.mxu0 0
    %820 = vmatmul.mubr.bf16.gmra.mrb[0].mxu0 %v769
    %v821 = vpop.f32.mrb[0].mxu0
    %v822 = vadd.f32 0.0, %v821
    %v823 = vpop.f32.mrb[0].mxu0
    %v824 = vadd.f32 0.0, %v823
    %v825 = vpop.f32.mrb[0].mxu0
    %v826 = vadd.f32 0.0, %v825
    %v827 = vpop.f32.mrb[0].mxu0
    %v828 = vadd.f32 0.0, %v827
    %829 = vmatprep.mubr.bf16.mxu0 0
    %830 = vmatmul.mubr.bf16.gmra.mrb[0].mxu0 %v772
    %v831 = vpop.f32.mrb[0].mxu0
    %v832 = vadd.f32 0.0, %v831
    %v833 = vpop.f32.mrb[0].mxu0
    %v834 = vadd.f32 0.0, %v833
    %v835 = vpop.f32.mrb[0].mxu0
    %v836 = vadd.f32 0.0, %v835
    %v837 = vpop.f32.mrb[0].mxu0
    %v838 = vadd.f32 0.0, %v837
    %839 = vmatprep.mubr.bf16.mxu0 0
    %840 = vmatmul.mubr.bf16.gmra.mrb[0].mxu0 %v775
    %v841 = vpop.f32.mrb[0].mxu0
    %v842 = vadd.f32 0.0, %v841
    %v843 = vpop.f32.mrb[0].mxu0
    %v844 = vadd.f32 0.0, %v843
    %v845 = vpop.f32.mrb[0].mxu0
    %v846 = vadd.f32 0.0, %v845
    %v847 = vpop.f32.mrb[0].mxu0
    %v848 = vadd.f32 0.0, %v847
    %849 = vdwg.mxu0
    %v850 = vadd.f32 %v611, %v812
    %v851 = vadd.f32 %v613, %v814
    %v852 = vadd.f32 %v615, %v816
    %v853 = vadd.f32 %v617, %v818
    %v854 = vadd.f32 %v621, %v822
    %v855 = vadd.f32 %v623, %v824
    %v856 = vadd.f32 %v625, %v826
    %v857 = vadd.f32 %v627, %v828
    %v858 = vadd.f32 %v631, %v832
    %v859 = vadd.f32 %v633, %v834
    %v860 = vadd.f32 %v635, %v836
    %v861 = vadd.f32 %v637, %v838
    %v862 = vadd.f32 %v641, %v842
    %v863 = vadd.f32 %v643, %v844
    %v864 = vadd.f32 %v645, %v846
    %v865 = vadd.f32 %v647, %v848
    %v866 = vld [vmem:[#allocation6] ss:$4 sm:$0x3]
    %v868 = vlaneseq
    %v869 = vshrl.u32 %v868, 7
    %v870 = vsub.s32 0, %v869
    %v871 = vrot.slane %v866, %v870
    %v872 = vlaneseq
    %v873 = vshrl.u32 %v872, 7
    %v874 = vsub.s32 1, %v873
    %v875 = vrot.slane %v866, %v874
    %v878 = vadd.f32 %v850, %v871
    %v879 = vadd.f32 %v851, %v875
    %v880 = vadd.f32 %v852, %v871
    %v881 = vadd.f32 %v853, %v875
    %v882 = vadd.f32 %v854, %v871
    %v883 = vadd.f32 %v855, %v875
    %v884 = vadd.f32 %v856, %v871
    %v885 = vadd.f32 %v857, %v875
    %v886 = vadd.f32 %v858, %v871
    %v887 = vadd.f32 %v859, %v875
    %v888 = vadd.f32 %v860, %v871
    %v889 = vadd.f32 %v861, %v875
    %v890 = vadd.f32 %v862, %v871
    %v891 = vadd.f32 %v863, %v875
    %v892 = vadd.f32 %v864, %v871
    %v893 = vadd.f32 %v865, %v875
    %v894 = vmax.f32 %v878, 0.0
    %v895 = vmax.f32 %v879, 0.0
    %v896 = vmax.f32 %v880, 0.0
    %v897 = vmax.f32 %v881, 0.0
    %v898 = vmax.f32 %v882, 0.0
    %v899 = vmax.f32 %v883, 0.0
    %v900 = vmax.f32 %v884, 0.0
    %v901 = vmax.f32 %v885, 0.0
    %v902 = vmax.f32 %v886, 0.0
    %v903 = vmax.f32 %v887, 0.0
    %v904 = vmax.f32 %v888, 0.0
    %v905 = vmax.f32 %v889, 0.0
    %v906 = vmax.f32 %v890, 0.0
    %v907 = vmax.f32 %v891, 0.0
    %v908 = vmax.f32 %v892, 0.0
    %v909 = vmax.f32 %v893, 0.0
    %s910 = scalar_lea.vmem [#allocation6], 1
    %v911 = vld [vmem:[%s910] ss:$4 sm:$0x3]
    %v913 = vlaneseq
    %v914 = vshrl.u32 %v913, 7
    %v915 = vsub.s32 0, %v914
    %v916 = vrot.slane %v911, %v915
    %v917 = vlaneseq
    %v918 = vshrl.u32 %v917, 7
    %v919 = vsub.s32 1, %v918
    %v920 = vrot.slane %v911, %v919
    %v923 = vmul.f32 %v894, %v916
    %v924 = vmul.f32 %v895, %v920
    %v925 = vmul.f32 %v896, %v916
    %v926 = vmul.f32 %v897, %v920
    %v927 = vmul.f32 %v898, %v916
    %v928 = vmul.f32 %v899, %v920
    %v929 = vmul.f32 %v900, %v916
    %v930 = vmul.f32 %v901, %v920
    %v931 = vmul.f32 %v902, %v916
    %v932 = vmul.f32 %v903, %v920
    %v933 = vmul.f32 %v904, %v916
    %v934 = vmul.f32 %v905, %v920
    %v935 = vmul.f32 %v906, %v916
    %v936 = vmul.f32 %v907, %v920
    %v937 = vmul.f32 %v908, %v916
    %v938 = vmul.f32 %v909, %v920
    %s939 = scalar_lea.vmem [#allocation6], 2
    %v940 = vld [vmem:[%s939] ss:$4 sm:$0x3]
    %v942 = vlaneseq
    %v943 = vshrl.u32 %v942, 7
    %v944 = vsub.s32 0, %v943
    %v945 = vrot.slane %v940, %v944
    %v946 = vlaneseq
    %v947 = vshrl.u32 %v946, 7
    %v948 = vsub.s32 1, %v947
    %v949 = vrot.slane %v940, %v948
    %v952 = vadd.f32 %v923, %v945
    %v953 = vadd.f32 %v924, %v949
    %v954 = vadd.f32 %v925, %v945
    %v955 = vadd.f32 %v926, %v949
    %v956 = vadd.f32 %v927, %v945
    %v957 = vadd.f32 %v928, %v949
    %v958 = vadd.f32 %v929, %v945
    %v959 = vadd.f32 %v930, %v949
    %v960 = vadd.f32 %v931, %v945
    %v961 = vadd.f32 %v932, %v949
    %v962 = vadd.f32 %v933, %v945
    %v963 = vadd.f32 %v934, %v949
    %v964 = vadd.f32 %v935, %v945
    %v965 = vadd.f32 %v936, %v949
    %v966 = vadd.f32 %v937, %v945
    %v967 = vadd.f32 %v938, %v949
    %v984 = vcombine.low %v952, %v953
    %v985 = vcombine.high %v952, %v953
    %v987 = vunpack.c.l.s4 1983009808
    %v988 = vunpack.c.0.s8 %v987
    %v989 = vlaneseq
    %v990 = vshrl.u32 %v989, 7
    %v991 = vsub.s32 %v988, %v990
    %v992 = vrot.slane %v984, %v991
    %v994 = vunpack.c.l.s4 1983009808
    %v995 = vunpack.c.0.s8 %v994
    %v996 = vlaneseq
    %v997 = vshrl.u32 %v996, 7
    %v998 = vsub.s32 %v995, %v997
    %v999 = vrot.slane %v985, %v998
    %v1000 = vcombine.high %v992, %v992
    %v1001 = vcombine.high %v999, %v999
    %v1002 = vcombine.low %v954, %v955
    %v1003 = vcombine.high %v954, %v955
    %v1005 = vunpack.c.l.s4 1983009808
    %v1006 = vunpack.c.0.s8 %v1005
    %v1007 = vlaneseq
    %v1008 = vshrl.u32 %v1007, 7
    %v1009 = vsub.s32 %v1006, %v1008
    %v1010 = vrot.slane %v1002, %v1009
    %v1012 = vunpack.c.l.s4 1983009808
    %v1013 = vunpack.c.0.s8 %v1012
    %v1014 = vlaneseq
    %v1015 = vshrl.u32 %v1014, 7
    %v1016 = vsub.s32 %v1013, %v1015
    %v1017 = vrot.slane %v1003, %v1016
    %v1018 = vcombine.high %v1010, %v1010
    %v1019 = vcombine.high %v1017, %v1017
    %v1020 = vcombine.low %v956, %v957
    %v1021 = vcombine.high %v956, %v957
    %v1023 = vunpack.c.l.s4 1983009808
    %v1024 = vunpack.c.0.s8 %v1023
    %v1025 = vlaneseq
    %v1026 = vshrl.u32 %v1025, 7
    %v1027 = vsub.s32 %v1024, %v1026
    %v1028 = vrot.slane %v1020, %v1027
    %v1030 = vunpack.c.l.s4 1983009808
    %v1031 = vunpack.c.0.s8 %v1030
    %v1032 = vlaneseq
    %v1033 = vshrl.u32 %v1032, 7
    %v1034 = vsub.s32 %v1031, %v1033
    %v1035 = vrot.slane %v1021, %v1034
    %v1036 = vcombine.high %v1028, %v1028
    %v1037 = vcombine.high %v1035, %v1035
    %v1038 = vcombine.low %v958, %v959
    %v1039 = vcombine.high %v958, %v959
    %v1041 = vunpack.c.l.s4 1983009808
    %v1042 = vunpack.c.0.s8 %v1041
    %v1043 = vlaneseq
    %v1044 = vshrl.u32 %v1043, 7
    %v1045 = vsub.s32 %v1042, %v1044
    %v1046 = vrot.slane %v1038, %v1045
    %v1048 = vunpack.c.l.s4 1983009808
    %v1049 = vunpack.c.0.s8 %v1048
    %v1050 = vlaneseq
    %v1051 = vshrl.u32 %v1050, 7
    %v1052 = vsub.s32 %v1049, %v1051
    %v1053 = vrot.slane %v1039, %v1052
    %v1054 = vcombine.high %v1046, %v1046
    %v1055 = vcombine.high %v1053, %v1053
    %v1056 = vcombine.low %v960, %v961
    %v1057 = vcombine.high %v960, %v961
    %v1059 = vunpack.c.l.s4 1983009808
    %v1060 = vunpack.c.0.s8 %v1059
    %v1061 = vlaneseq
    %v1062 = vshrl.u32 %v1061, 7
    %v1063 = vsub.s32 %v1060, %v1062
    %v1064 = vrot.slane %v1056, %v1063
    %v1066 = vunpack.c.l.s4 1983009808
    %v1067 = vunpack.c.0.s8 %v1066
    %v1068 = vlaneseq
    %v1069 = vshrl.u32 %v1068, 7
    %v1070 = vsub.s32 %v1067, %v1069
    %v1071 = vrot.slane %v1057, %v1070
    %v1072 = vcombine.high %v1064, %v1064
    %v1073 = vcombine.high %v1071, %v1071
    %v1074 = vcombine.low %v962, %v963
    %v1075 = vcombine.high %v962, %v963
    %v1077 = vunpack.c.l.s4 1983009808
    %v1078 = vunpack.c.0.s8 %v1077
    %v1079 = vlaneseq
    %v1080 = vshrl.u32 %v1079, 7
    %v1081 = vsub.s32 %v1078, %v1080
    %v1082 = vrot.slane %v1074, %v1081
    %v1084 = vunpack.c.l.s4 1983009808
    %v1085 = vunpack.c.0.s8 %v1084
    %v1086 = vlaneseq
    %v1087 = vshrl.u32 %v1086, 7
    %v1088 = vsub.s32 %v1085, %v1087
    %v1089 = vrot.slane %v1075, %v1088
    %v1090 = vcombine.high %v1082, %v1082
    %v1091 = vcombine.high %v1089, %v1089
    %v1092 = vcombine.low %v964, %v965
    %v1093 = vcombine.high %v964, %v965
    %v1095 = vunpack.c.l.s4 1983009808
    %v1096 = vunpack.c.0.s8 %v1095
    %v1097 = vlaneseq
    %v1098 = vshrl.u32 %v1097, 7
    %v1099 = vsub.s32 %v1096, %v1098
    %v1100 = vrot.slane %v1092, %v1099
    %v1102 = vunpack.c.l.s4 1983009808
    %v1103 = vunpack.c.0.s8 %v1102
    %v1104 = vlaneseq
    %v1105 = vshrl.u32 %v1104, 7
    %v1106 = vsub.s32 %v1103, %v1105
    %v1107 = vrot.slane %v1093, %v1106
    %v1108 = vcombine.high %v1100, %v1100
    %v1109 = vcombine.high %v1107, %v1107
    %v1110 = vcombine.low %v966, %v967
    %v1111 = vcombine.high %v966, %v967
    %v1113 = vunpack.c.l.s4 1983009808
    %v1114 = vunpack.c.0.s8 %v1113
    %v1115 = vlaneseq
    %v1116 = vshrl.u32 %v1115, 7
    %v1117 = vsub.s32 %v1114, %v1116
    %v1118 = vrot.slane %v1110, %v1117
    %v1120 = vunpack.c.l.s4 1983009808
    %v1121 = vunpack.c.0.s8 %v1120
    %v1122 = vlaneseq
    %v1123 = vshrl.u32 %v1122, 7
    %v1124 = vsub.s32 %v1121, %v1123
    %v1125 = vrot.slane %v1111, %v1124
    %v1126 = vcombine.high %v1118, %v1118
    %v1127 = vcombine.high %v1125, %v1125
    %v1160 = vrot.slane %v992, 7
    %v1161 = vrot.slane %v1160, 2
    %v1162 = vrot.slane %v1000, 7
    %v1163 = vrot.slane %v1162, 2
    %v1164 = vrot.slane %v999, 7
    %v1165 = vrot.slane %v1164, 2
    %v1166 = vrot.slane %v1001, 7
    %v1167 = vrot.slane %v1166, 2
    %v1168 = vrot.slane %v1010, 7
    %v1169 = vrot.slane %v1168, 2
    %v1170 = vrot.slane %v1018, 7
    %v1171 = vrot.slane %v1170, 2
    %v1172 = vrot.slane %v1017, 7
    %v1173 = vrot.slane %v1172, 2
    %v1174 = vrot.slane %v1019, 7
    %v1175 = vrot.slane %v1174, 2
    %v1176 = vrot.slane %v1028, 7
    %v1177 = vrot.slane %v1176, 2
    %v1178 = vrot.slane %v1036, 7
    %v1179 = vrot.slane %v1178, 2
    %v1180 = vrot.slane %v1035, 7
    %v1181 = vrot.slane %v1180, 2
    %v1182 = vrot.slane %v1037, 7
    %v1183 = vrot.slane %v1182, 2
    %v1184 = vrot.slane %v1046, 7
    %v1185 = vrot.slane %v1184, 2
    %v1186 = vrot.slane %v1054, 7
    %v1187 = vrot.slane %v1186, 2
    %v1188 = vrot.slane %v1053, 7
    %v1189 = vrot.slane %v1188, 2
    %v1190 = vrot.slane %v1055, 7
    %v1191 = vrot.slane %v1190, 2
    %v1192 = vrot.slane %v1064, 7
    %v1193 = vrot.slane %v1192, 2
    %v1194 = vrot.slane %v1072, 7
    %v1195 = vrot.slane %v1194, 2
    %v1196 = vrot.slane %v1071, 7
    %v1197 = vrot.slane %v1196, 2
    %v1198 = vrot.slane %v1073, 7
    %v1199 = vrot.slane %v1198, 2
    %v1200 = vrot.slane %v1082, 7
    %v1201 = vrot.slane %v1200, 2
    %v1202 = vrot.slane %v1090, 7
    %v1203 = vrot.slane %v1202, 2
    %v1204 = vrot.slane %v1089, 7
    %v1205 = vrot.slane %v1204, 2
    %v1206 = vrot.slane %v1091, 7
    %v1207 = vrot.slane %v1206, 2
    %v1208 = vrot.slane %v1100, 7
    %v1209 = vrot.slane %v1208, 2
    %v1210 = vrot.slane %v1108, 7
    %v1211 = vrot.slane %v1210, 2
    %v1212 = vrot.slane %v1107, 7
    %v1213 = vrot.slane %v1212, 2
    %v1214 = vrot.slane %v1109, 7
    %v1215 = vrot.slane %v1214, 2
    %v1216 = vrot.slane %v1118, 7
    %v1217 = vrot.slane %v1216, 2
    %v1218 = vrot.slane %v1126, 7
    %v1219 = vrot.slane %v1218, 2
    %v1220 = vrot.slane %v1125, 7
    %v1221 = vrot.slane %v1220, 2
    %v1222 = vrot.slane %v1127, 7
    %v1223 = vrot.slane %v1222, 2
    %v1256 = vmax.f32 %v992, %v1161
    %v1257 = vmax.f32 %v1000, %v1163
    %v1258 = vmax.f32 %v999, %v1165
    %v1259 = vmax.f32 %v1001, %v1167
    %v1260 = vmax.f32 %v1010, %v1169
    %v1261 = vmax.f32 %v1018, %v1171
    %v1262 = vmax.f32 %v1017, %v1173
    %v1263 = vmax.f32 %v1019, %v1175
    %v1264 = vmax.f32 %v1028, %v1177
    %v1265 = vmax.f32 %v1036, %v1179
    %v1266 = vmax.f32 %v1035, %v1181
    %v1267 = vmax.f32 %v1037, %v1183
    %v1268 = vmax.f32 %v1046, %v1185
    %v1269 = vmax.f32 %v1054, %v1187
    %v1270 = vmax.f32 %v1053, %v1189
    %v1271 = vmax.f32 %v1055, %v1191
    %v1272 = vmax.f32 %v1064, %v1193
    %v1273 = vmax.f32 %v1072, %v1195
    %v1274 = vmax.f32 %v1071, %v1197
    %v1275 = vmax.f32 %v1073, %v1199
    %v1276 = vmax.f32 %v1082, %v1201
    %v1277 = vmax.f32 %v1090, %v1203
    %v1278 = vmax.f32 %v1089, %v1205
    %v1279 = vmax.f32 %v1091, %v1207
    %v1280 = vmax.f32 %v1100, %v1209
    %v1281 = vmax.f32 %v1108, %v1211
    %v1282 = vmax.f32 %v1107, %v1213
    %v1283 = vmax.f32 %v1109, %v1215
    %v1284 = vmax.f32 %v1118, %v1217
    %v1285 = vmax.f32 %v1126, %v1219
    %v1286 = vmax.f32 %v1125, %v1221
    %v1287 = vmax.f32 %v1127, %v1223
    %v1320 = vrot.slane %v1256, 2
    %v1321 = vrot.slane %v1257, 2
    %v1322 = vrot.slane %v1258, 2
    %v1323 = vrot.slane %v1259, 2
    %v1324 = vrot.slane %v1260, 2
    %v1325 = vrot.slane %v1261, 2
    %v1326 = vrot.slane %v1262, 2
    %v1327 = vrot.slane %v1263, 2
    %v1328 = vrot.slane %v1264, 2
    %v1329 = vrot.slane %v1265, 2
    %v1330 = vrot.slane %v1266, 2
    %v1331 = vrot.slane %v1267, 2
    %v1332 = vrot.slane %v1268, 2
    %v1333 = vrot.slane %v1269, 2
    %v1334 = vrot.slane %v1270, 2
    %v1335 = vrot.slane %v1271, 2
    %v1336 = vrot.slane %v1272, 2
    %v1337 = vrot.slane %v1273, 2
    %v1338 = vrot.slane %v1274, 2
    %v1339 = vrot.slane %v1275, 2
    %v1340 = vrot.slane %v1276, 2
    %v1341 = vrot.slane %v1277, 2
    %v1342 = vrot.slane %v1278, 2
    %v1343 = vrot.slane %v1279, 2
    %v1344 = vrot.slane %v1280, 2
    %v1345 = vrot.slane %v1281, 2
    %v1346 = vrot.slane %v1282, 2
    %v1347 = vrot.slane %v1283, 2
    %v1348 = vrot.slane %v1284, 2
    %v1349 = vrot.slane %v1285, 2
    %v1350 = vrot.slane %v1286, 2
    %v1351 = vrot.slane %v1287, 2
    %v1384 = vmax.f32 %v1256, %v1320
    %v1385 = vmax.f32 %v1257, %v1321
    %v1386 = vmax.f32 %v1258, %v1322
    %v1387 = vmax.f32 %v1259, %v1323
    %v1388 = vmax.f32 %v1260, %v1324
    %v1389 = vmax.f32 %v1261, %v1325
    %v1390 = vmax.f32 %v1262, %v1326
    %v1391 = vmax.f32 %v1263, %v1327
    %v1392 = vmax.f32 %v1264, %v1328
    %v1393 = vmax.f32 %v1265, %v1329
    %v1394 = vmax.f32 %v1266, %v1330
    %v1395 = vmax.f32 %v1267, %v1331
    %v1396 = vmax.f32 %v1268, %v1332
    %v1397 = vmax.f32 %v1269, %v1333
    %v1398 = vmax.f32 %v1270, %v1334
    %v1399 = vmax.f32 %v1271, %v1335
    %v1400 = vmax.f32 %v1272, %v1336
    %v1401 = vmax.f32 %v1273, %v1337
    %v1402 = vmax.f32 %v1274, %v1338
    %v1403 = vmax.f32 %v1275, %v1339
    %v1404 = vmax.f32 %v1276, %v1340
    %v1405 = vmax.f32 %v1277, %v1341
    %v1406 = vmax.f32 %v1278, %v1342
    %v1407 = vmax.f32 %v1279, %v1343
    %v1408 = vmax.f32 %v1280, %v1344
    %v1409 = vmax.f32 %v1281, %v1345
    %v1410 = vmax.f32 %v1282, %v1346
    %v1411 = vmax.f32 %v1283, %v1347
    %v1412 = vmax.f32 %v1284, %v1348
    %v1413 = vmax.f32 %v1285, %v1349
    %v1414 = vmax.f32 %v1286, %v1350
    %v1415 = vmax.f32 %v1287, %v1351
    %v1416 = vpack.c.bf16 %v1384, %v1384
    %v1417 = vpack.c.bf16 %v1385, %v1385
    %v1418 = vpack.c.bf16 %v1386, %v1386
    %v1419 = vpack.c.bf16 %v1387, %v1387
    %v1420 = vpack.c.bf16 %v1388, %v1388
    %v1421 = vpack.c.bf16 %v1389, %v1389
    %v1422 = vpack.c.bf16 %v1390, %v1390
    %v1423 = vpack.c.bf16 %v1391, %v1391
    %v1424 = vpack.c.bf16 %v1392, %v1392
    %v1425 = vpack.c.bf16 %v1393, %v1393
    %v1426 = vpack.c.bf16 %v1394, %v1394
    %v1427 = vpack.c.bf16 %v1395, %v1395
    %v1428 = vpack.c.bf16 %v1396, %v1396
    %v1429 = vpack.c.bf16 %v1397, %v1397
    %v1430 = vpack.c.bf16 %v1398, %v1398
    %v1431 = vpack.c.bf16 %v1399, %v1399
    %v1432 = vpack.c.bf16 %v1400, %v1400
    %v1433 = vpack.c.bf16 %v1401, %v1401
    %v1434 = vpack.c.bf16 %v1402, %v1402
    %v1435 = vpack.c.bf16 %v1403, %v1403
    %v1436 = vpack.c.bf16 %v1404, %v1404
    %v1437 = vpack.c.bf16 %v1405, %v1405
    %v1438 = vpack.c.bf16 %v1406, %v1406
    %v1439 = vpack.c.bf16 %v1407, %v1407
    %v1440 = vpack.c.bf16 %v1408, %v1408
    %v1441 = vpack.c.bf16 %v1409, %v1409
    %v1442 = vpack.c.bf16 %v1410, %v1410
    %v1443 = vpack.c.bf16 %v1411, %v1411
    %v1444 = vpack.c.bf16 %v1412, %v1412
    %v1445 = vpack.c.bf16 %v1413, %v1413
    %v1446 = vpack.c.bf16 %v1414, %v1414
    %v1447 = vpack.c.bf16 %v1415, %v1415
    %vm1448 = vcmask 1040384
    %vm1449 = vsmask.f32 256
    %vm1450 = vmand %vm1448, %vm1449
    %v1451 = vld [vmem:[#allocation2] sm:$0x1]
    %v1452 = vsel %vm1450, 0, %v1451
    %1453 = vst [vmem:[#allocation2] sm:$0x1] %v1452
    %v1454 = vld [vmem:[#allocation2 + $0xc] sm:$0x1]
    %v1455 = vsel %vm1450, 0, %v1454
    %1456 = vst [vmem:[#allocation2 + $0xc] sm:$0x1] %v1455
    %vm1457 = vsmask.f32 7938
    %vm1458 = vmand %vm1448, %vm1457
    %v1459 = vld [vmem:[#allocation2 + $0x8] sm:$0x1]
    %v1460 = vsel %vm1458, 0, %v1459
    %1461 = vst [vmem:[#allocation2 + $0x8] sm:$0x1] %v1460
    %v1462 = vld [vmem:[#allocation2 + $0x14] sm:$0x1]
    %v1463 = vsel %vm1458, 0, %v1462
    %1464 = vst [vmem:[#allocation2 + $0x14] sm:$0x1] %v1463
    %v1497 = vunpack.c.l.b16 %v1416
    %v1498 = vunpack.c.l.b16 %v1417
    %v1499 = vunpack.c.l.b16 %v1418
    %v1500 = vunpack.c.l.b16 %v1419
    %v1501 = vunpack.c.l.b16 %v1420
    %v1502 = vunpack.c.l.b16 %v1421
    %v1503 = vunpack.c.l.b16 %v1422
    %v1504 = vunpack.c.l.b16 %v1423
    %v1505 = vunpack.c.l.b16 %v1424
    %v1506 = vunpack.c.l.b16 %v1425
    %v1507 = vunpack.c.l.b16 %v1426
    %v1508 = vunpack.c.l.b16 %v1427
    %v1509 = vunpack.c.l.b16 %v1428
    %v1510 = vunpack.c.l.b16 %v1429
    %v1511 = vunpack.c.l.b16 %v1430
    %v1512 = vunpack.c.l.b16 %v1431
    %v1513 = vunpack.c.l.b16 %v1432
    %v1514 = vunpack.c.l.b16 %v1433
    %v1515 = vunpack.c.l.b16 %v1434
    %v1516 = vunpack.c.l.b16 %v1435
    %v1517 = vunpack.c.l.b16 %v1436
    %v1518 = vunpack.c.l.b16 %v1437
    %v1519 = vunpack.c.l.b16 %v1438
    %v1520 = vunpack.c.l.b16 %v1439
    %v1521 = vunpack.c.l.b16 %v1440
    %v1522 = vunpack.c.l.b16 %v1441
    %v1523 = vunpack.c.l.b16 %v1442
    %v1524 = vunpack.c.l.b16 %v1443
    %v1525 = vunpack.c.l.b16 %v1444
    %v1526 = vunpack.c.l.b16 %v1445
    %v1527 = vunpack.c.l.b16 %v1446
    %v1528 = vunpack.c.l.b16 %v1447
    %v1529 = vpack.c.b16 %v1497, %v1497
    %v1530 = vpack.c.b16 %v1498, %v1498
    %v1531 = vpack.c.b16 %v1499, %v1499
    %v1532 = vpack.c.b16 %v1500, %v1500
    %v1533 = vpack.c.b16 %v1501, %v1501
    %v1534 = vpack.c.b16 %v1502, %v1502
    %v1535 = vpack.c.b16 %v1503, %v1503
    %v1536 = vpack.c.b16 %v1504, %v1504
    %v1537 = vpack.c.b16 %v1505, %v1505
    %v1538 = vpack.c.b16 %v1506, %v1506
    %v1539 = vpack.c.b16 %v1507, %v1507
    %v1540 = vpack.c.b16 %v1508, %v1508
    %v1541 = vpack.c.b16 %v1509, %v1509
    %v1542 = vpack.c.b16 %v1510, %v1510
    %v1543 = vpack.c.b16 %v1511, %v1511
    %v1544 = vpack.c.b16 %v1512, %v1512
    %v1545 = vpack.c.b16 %v1513, %v1513
    %v1546 = vpack.c.b16 %v1514, %v1514
    %v1547 = vpack.c.b16 %v1515, %v1515
    %v1548 = vpack.c.b16 %v1516, %v1516
    %v1549 = vpack.c.b16 %v1517, %v1517
    %v1550 = vpack.c.b16 %v1518, %v1518
    %v1551 = vpack.c.b16 %v1519, %v1519
    %v1552 = vpack.c.b16 %v1520, %v1520
    %v1553 = vpack.c.b16 %v1521, %v1521
    %v1554 = vpack.c.b16 %v1522, %v1522
    %v1555 = vpack.c.b16 %v1523, %v1523
    %v1556 = vpack.c.b16 %v1524, %v1524
    %v1557 = vpack.c.b16 %v1525, %v1525
    %v1558 = vpack.c.b16 %v1526, %v1526
    %v1559 = vpack.c.b16 %v1527, %v1527
    %v1560 = vpack.c.b16 %v1528, %v1528
    %v1561 = vunpack.c.l.b16 %v1529
    %v1562 = vunpack.c.l.b16 %v1530
    %v1563 = vunpack.c.l.b16 %v1531
    %v1564 = vunpack.c.l.b16 %v1532
    %v1565 = vunpack.c.l.b16 %v1533
    %v1566 = vunpack.c.l.b16 %v1534
    %v1567 = vunpack.c.l.b16 %v1535
    %v1568 = vunpack.c.l.b16 %v1536
    %v1569 = vunpack.c.l.b16 %v1537
    %v1570 = vunpack.c.l.b16 %v1538
    %v1571 = vunpack.c.l.b16 %v1539
    %v1572 = vunpack.c.l.b16 %v1540
    %v1573 = vunpack.c.l.b16 %v1541
    %v1574 = vunpack.c.l.b16 %v1542
    %v1575 = vunpack.c.l.b16 %v1543
    %v1576 = vunpack.c.l.b16 %v1544
    %v1577 = vunpack.c.l.b16 %v1545
    %v1578 = vunpack.c.l.b16 %v1546
    %v1579 = vunpack.c.l.b16 %v1547
    %v1580 = vunpack.c.l.b16 %v1548
    %v1581 = vunpack.c.l.b16 %v1549
    %v1582 = vunpack.c.l.b16 %v1550
    %v1583 = vunpack.c.l.b16 %v1551
    %v1584 = vunpack.c.l.b16 %v1552
    %v1585 = vunpack.c.l.b16 %v1553
    %v1586 = vunpack.c.l.b16 %v1554
    %v1587 = vunpack.c.l.b16 %v1555
    %v1588 = vunpack.c.l.b16 %v1556
    %v1589 = vunpack.c.l.b16 %v1557
    %v1590 = vunpack.c.l.b16 %v1558
    %v1591 = vunpack.c.l.b16 %v1559
    %v1592 = vunpack.c.l.b16 %v1560
    %v1593 = vrot.slane %v1561, 7
    %v1594 = vrot.slane %v1562, 6
    %vm1595 = vcmask 1042434
    %v1596 = vsel %vm1595, %v1594, %v1593
    %v1597 = vrot.slane %v1563, 5
    %vm1598 = vcmask 1043459
    %v1599 = vsel %vm1598, %v1597, %v1596
    %v1600 = vrot.slane %v1564, 4
    %vm1601 = vcmask 1044484
    %v1602 = vsel %vm1601, %v1600, %v1599
    %v1603 = vrot.slane %v1565, 3
    %vm1604 = vcmask 1045509
    %v1605 = vsel %vm1604, %v1603, %v1602
    %v1606 = vrot.slane %v1566, 2
    %vm1607 = vcmask 1046534
    %v1608 = vsel %vm1607, %v1606, %v1605
    %v1609 = vrot.slane %v1567, 1
    %vm1610 = vcmask 1047559
    %v1611 = vsel %vm1610, %v1609, %v1608
    %v1612 = vrot.slane %v1569, 7
    %vm1613 = vcmask 1041409
    %v1614 = vsel %vm1613, %v1612, %v1568
    %v1615 = vrot.slane %v1570, 6
    %v1616 = vsel %vm1595, %v1615, %v1614
    %v1617 = vrot.slane %v1571, 5
    %v1618 = vsel %vm1598, %v1617, %v1616
    %v1619 = vrot.slane %v1572, 4
    %v1620 = vsel %vm1601, %v1619, %v1618
    %v1621 = vrot.slane %v1573, 3
    %v1622 = vsel %vm1604, %v1621, %v1620
    %v1623 = vrot.slane %v1574, 2
    %v1624 = vsel %vm1607, %v1623, %v1622
    %v1625 = vrot.slane %v1575, 1
    %v1626 = vsel %vm1610, %v1625, %v1624
    %v1627 = vrot.slane %v1577, 7
    %v1628 = vrot.slane %v1578, 6
    %v1629 = vsel %vm1595, %v1628, %v1627
    %v1630 = vrot.slane %v1579, 5
    %v1631 = vsel %vm1598, %v1630, %v1629
    %v1632 = vrot.slane %v1580, 4
    %v1633 = vsel %vm1601, %v1632, %v1631
    %v1634 = vrot.slane %v1581, 3
    %v1635 = vsel %vm1604, %v1634, %v1633
    %v1636 = vrot.slane %v1582, 2
    %v1637 = vsel %vm1607, %v1636, %v1635
    %v1638 = vrot.slane %v1583, 1
    %v1639 = vsel %vm1610, %v1638, %v1637
    %v1640 = vrot.slane %v1585, 7
    %v1641 = vsel %vm1613, %v1640, %v1584
    %v1642 = vrot.slane %v1586, 6
    %v1643 = vsel %vm1595, %v1642, %v1641
    %v1644 = vrot.slane %v1587, 5
    %v1645 = vsel %vm1598, %v1644, %v1643
    %v1646 = vrot.slane %v1588, 4
    %v1647 = vsel %vm1601, %v1646, %v1645
    %v1648 = vrot.slane %v1589, 3
    %v1649 = vsel %vm1604, %v1648, %v1647
    %v1650 = vrot.slane %v1590, 2
    %v1651 = vsel %vm1607, %v1650, %v1649
    %v1652 = vrot.slane %v1591, 1
    %v1653 = vsel %vm1610, %v1652, %v1651
    %v1654 = vpack.c.b16 %v1611, %v1611
    %v1655 = vpack.c.b16 %v1626, %v1626
    %v1656 = vpack.c.b16 %v1576, %v1576
    %v1657 = vpack.c.b16 %v1639, %v1639
    %v1658 = vpack.c.b16 %v1653, %v1653
    %v1659 = vpack.c.b16 %v1592, %v1592
    %vm1666 = vcmask 1043456
    %vm1667 = vmand %vm1666, %vm1457
    %v1668 = vld [vmem:[#allocation2] sm:$0xf]
    %v1669 = vsel %vm1667, %v1654, %v1668
    %1670 = vst [vmem:[#allocation2] sm:$0xf] %v1669
    %1671 = vst [vmem:[#allocation2 + $0x4] sm:$0xf] %v1655
    %v1672 = vld [vmem:[#allocation2 + $0x8] sm:$0x1]
    %v1673 = vsel %vm1450, %v1656, %v1672
    %1674 = vst [vmem:[#allocation2 + $0x8] sm:$0x1] %v1673
    %v1675 = vld [vmem:[#allocation2 + $0xc] sm:$0xf]
    %v1676 = vsel %vm1667, %v1657, %v1675
    %1677 = vst [vmem:[#allocation2 + $0xc] sm:$0xf] %v1676
    %1678 = vst [vmem:[#allocation2 + $0x10] sm:$0xf] %v1658
    %v1679 = vld [vmem:[#allocation2 + $0x14] sm:$0x1]
    %v1680 = vsel %vm1450, %v1659, %v1679
    %1681 = vst [vmem:[#allocation2 + $0x14] sm:$0x1] %v1680
    %v1682 = vld [vmem:[#allocation2] sm:$0xf]
    %v1683 = vld [vmem:[#allocation2 + $0x4] sm:$0xf]
    %v1684 = vld [vmem:[#allocation2 + $0x8] sm:$0x1]
    %v1685 = vld [vmem:[#allocation2 + $0xc] sm:$0xf]
    %v1686 = vld [vmem:[#allocation2 + $0x10] sm:$0xf]
    %v1687 = vld [vmem:[#allocation2 + $0x14] sm:$0x1]
    %v1688 = vld [vmem:[#allocation8] sm:$0xff]
    %v1689 = vld [vmem:[#allocation8 + $0x8] sm:$0xff]
    %v1690 = vld [vmem:[#allocation8 + $0x10] sm:$0xff]
    %v1691 = vld [vmem:[#allocation8 + $0x18] sm:$0xff]
    %v1692 = vld [vmem:[#allocation8 + $0x20] sm:$0xff]
    %v1693 = vld [vmem:[#allocation8 + $0x28] sm:$0xff]
    %v1694 = vld [vmem:[#allocation8 + $0x30] sm:$0xff]
    %v1695 = vld [vmem:[#allocation8 + $0x38] sm:$0xff]
    %v1696 = vld [vmem:[#allocation8 + $0x40] sm:$0xff]
    %v1697 = vld [vmem:[#allocation8 + $0x48] sm:$0xff]
    %v1698 = vld [vmem:[#allocation8 + $0x50] sm:$0xff]
    %v1699 = vld [vmem:[#allocation8 + $0x58] sm:$0xff]
    %v1700 = vld [vmem:[#allocation8 + $0x60] sm:$0xff]
    %v1701 = vld [vmem:[#allocation8 + $0x68] sm:$0xff]
    %v1702 = vld [vmem:[#allocation8 + $0x70] sm:$0xff]
    %v1703 = vld [vmem:[#allocation8 + $0x78] sm:$0xff]
    %v1705 = vshrl.u32 %v1682, 16
    %v1707 = vrot.slane %v1705, 4
    %v1708 = vshll.u32 %v1682, 16
    %v1710 = vrot.slane %v1708, 5
    %v1711 = vor.u32 %v1707, %v1710
    %v1712 = vrot.slane %v1711, 4
    %v1714 = vshll.u32 %v1683, 16
    %v1716 = vrot.slane %v1714, 5
    %v1717 = vsel %vm224, %v1712, %v1716
    %v1718 = vshrl.u32 %v1683, 16
    %v1720 = vrot.slane %v1718, 4
    %v1721 = vor.u32 %v1720, %v1716
    %v1722 = vrot.slane %v1721, 4
    %v1724 = vshll.u32 %v1684, 16
    %v1726 = vrot.slane %v1724, 5
    %v1727 = vsel %vm224, %v1722, %v1726
    %v1729 = vshrl.u32 %v1685, 16
    %v1731 = vrot.slane %v1729, 4
    %v1732 = vshll.u32 %v1685, 16
    %v1734 = vrot.slane %v1732, 5
    %v1735 = vor.u32 %v1731, %v1734
    %v1736 = vrot.slane %v1735, 4
    %v1738 = vshll.u32 %v1686, 16
    %v1740 = vrot.slane %v1738, 5
    %v1741 = vsel %vm224, %v1736, %v1740
    %v1742 = vshrl.u32 %v1686, 16
    %v1744 = vrot.slane %v1742, 4
    %v1745 = vor.u32 %v1744, %v1740
    %v1746 = vrot.slane %v1745, 4
    %v1748 = vshll.u32 %v1687, 16
    %v1750 = vrot.slane %v1748, 5
    %v1751 = vsel %vm224, %v1746, %v1750
    %s1752 = scalar_lea.vmem [#allocation8], 128
    %v1753 = vld [vmem:[%s1752] sm:$0xff]
    %v1754 = vld [vmem:[%s1752 + $0x8] sm:$0xff]
    %v1755 = vld [vmem:[%s1752 + $0x10] sm:$0xff]
    %v1756 = vld [vmem:[%s1752 + $0x18] sm:$0xff]
    %v1757 = vld [vmem:[%s1752 + $0x20] sm:$0xff]
    %v1758 = vld [vmem:[%s1752 + $0x28] sm:$0xff]
    %v1759 = vld [vmem:[%s1752 + $0x30] sm:$0xff]
    %v1760 = vld [vmem:[%s1752 + $0x38] sm:$0xff]
    %v1761 = vld [vmem:[%s1752 + $0x40] sm:$0xff]
    %v1762 = vld [vmem:[%s1752 + $0x48] sm:$0xff]
    %v1763 = vld [vmem:[%s1752 + $0x50] sm:$0xff]
    %v1764 = vld [vmem:[%s1752 + $0x58] sm:$0xff]
    %v1765 = vld [vmem:[%s1752 + $0x60] sm:$0xff]
    %v1766 = vld [vmem:[%s1752 + $0x68] sm:$0xff]
    %v1767 = vld [vmem:[%s1752 + $0x70] sm:$0xff]
    %v1768 = vld [vmem:[%s1752 + $0x78] sm:$0xff]
    %v1769 = vunpack.c.l.b16 %v1717
    %v1770 = vunpack.c.l.b16 %v1727
    %v1771 = vunpack.c.l.b16 %v1741
    %v1772 = vunpack.c.l.b16 %v1751
    %v1773 = vpack.c.b16 %v1770, %v1769
    %v1774 = vpack.c.b16 %v1772, %v1771
    %v1793 = vunpack.c.l.b16 %v1753
    %v1794 = vunpack.c.h.b16 %v1753
    %v1795 = vunpack.c.l.b16 %v1754
    %v1796 = vunpack.c.h.b16 %v1754
    %v1797 = vunpack.c.l.b16 %v1755
    %v1798 = vunpack.c.h.b16 %v1755
    %v1799 = vunpack.c.l.b16 %v1756
    %v1800 = vunpack.c.h.b16 %v1756
    %v1801 = vunpack.c.l.b16 %v1757
    %v1802 = vunpack.c.h.b16 %v1757
    %v1803 = vunpack.c.l.b16 %v1758
    %v1804 = vunpack.c.h.b16 %v1758
    %v1805 = vunpack.c.l.b16 %v1759
    %v1806 = vunpack.c.h.b16 %v1759
    %v1807 = vunpack.c.l.b16 %v1760
    %v1808 = vunpack.c.h.b16 %v1760
    %v1809 = vunpack.c.l.b16 %v1761
    %v1810 = vunpack.c.h.b16 %v1761
    %v1811 = vunpack.c.l.b16 %v1762
    %v1812 = vunpack.c.h.b16 %v1762
    %v1813 = vunpack.c.l.b16 %v1763
    %v1814 = vunpack.c.h.b16 %v1763
    %v1815 = vunpack.c.l.b16 %v1764
    %v1816 = vunpack.c.h.b16 %v1764
    %v1817 = vunpack.c.l.b16 %v1765
    %v1818 = vunpack.c.h.b16 %v1765
    %v1819 = vunpack.c.l.b16 %v1766
    %v1820 = vunpack.c.h.b16 %v1766
    %v1821 = vunpack.c.l.b16 %v1767
    %v1822 = vunpack.c.h.b16 %v1767
    %v1823 = vunpack.c.l.b16 %v1768
    %v1824 = vunpack.c.h.b16 %v1768
    %v1825 = vpack.c.b16 %v1795, %v1793
    %v1826 = vpack.c.b16 %v1796, %v1794
    %v1827 = vpack.c.b16 %v1799, %v1797
    %v1828 = vpack.c.b16 %v1800, %v1798
    %v1829 = vpack.c.b16 %v1803, %v1801
    %v1830 = vpack.c.b16 %v1804, %v1802
    %v1831 = vpack.c.b16 %v1807, %v1805
    %v1832 = vpack.c.b16 %v1808, %v1806
    %v1833 = vpack.c.b16 %v1811, %v1809
    %v1834 = vpack.c.b16 %v1812, %v1810
    %v1835 = vpack.c.b16 %v1815, %v1813
    %v1836 = vpack.c.b16 %v1816, %v1814
    %v1837 = vpack.c.b16 %v1819, %v1817
    %v1838 = vpack.c.b16 %v1820, %v1818
    %v1839 = vpack.c.b16 %v1823, %v1821
    %v1840 = vpack.c.b16 %v1824, %v1822
    %1857 = vmatprep.subr.bf16.mxu0 %v1826
    %1858 = vmatpush1.bf16.msra.mxu0 %v1825
    %1859 = vmatprep.subr.bf16.mxu0 %v1828
    %1860 = vmatpush1.bf16.msra.mxu0 %v1827
    %1861 = vmatprep.subr.bf16.mxu0 %v1830
    %1862 = vmatpush1.bf16.msra.mxu0 %v1829
    %1863 = vmatprep.subr.bf16.mxu0 %v1832
    %1864 = vmatpush1.bf16.msra.mxu0 %v1831
    %1865 = vmatprep.subr.bf16.mxu0 %v1834
    %1866 = vmatpush1.bf16.msra.mxu0 %v1833
    %1867 = vmatprep.subr.bf16.mxu0 %v1836
    %1868 = vmatpush1.bf16.msra.mxu0 %v1835
    %1869 = vmatprep.subr.bf16.mxu0 %v1838
    %1870 = vmatpush1.bf16.msra.mxu0 %v1837
    %1871 = vmatprep.subr.bf16.mxu0 %v1840
    %1872 = vmatpush1.bf16.msra.mxu0 %v1839
    %1873 = vmatprep.subr.bf16.mxu0 0
    %1874 = vmatpush1.bf16.msra.mxu0 0
    %1875 = vmatprep.subr.bf16.mxu0 0
    %1876 = vmatpush1.bf16.msra.mxu0 0
    %1877 = vmatprep.subr.bf16.mxu0 0
    %1878 = vmatpush1.bf16.msra.mxu0 0
    %1879 = vmatprep.subr.bf16.mxu0 0
    %1880 = vmatpush1.bf16.msra.mxu0 0
    %1881 = vmatprep.subr.bf16.mxu0 0
    %1882 = vmatpush1.bf16.msra.mxu0 0
    %1883 = vmatprep.subr.bf16.mxu0 0
    %1884 = vmatpush1.bf16.msra.mxu0 0
    %1885 = vmatprep.subr.bf16.mxu0 0
    %1886 = vmatpush1.bf16.msra.mxu0 0
    %1887 = vmatprep.subr.bf16.mxu0 0
    %1888 = vmatpush1.bf16.msra.mxu0 0
    %1889 = vmatprep.mubr.bf16.mxu0 0
    %1890 = vmatmul.mubr.bf16.gmra.mrb[0].mxu0 %v1773
    %v1891 = vpop.f32.mrb[0].mxu0
    %v1892 = vadd.f32 0.0, %v1891
    %v1893 = vpop.f32.mrb[0].mxu0
    %v1894 = vadd.f32 0.0, %v1893
    %v1895 = vpop.f32.mrb[0].mxu0
    %v1896 = vadd.f32 0.0, %v1895
    %v1897 = vpop.f32.mrb[0].mxu0
    %v1898 = vadd.f32 0.0, %v1897
    %1899 = vmatprep.mubr.bf16.mxu0 0
    %1900 = vmatmul.mubr.bf16.gmra.mrb[0].mxu0 %v1774
    %v1901 = vpop.f32.mrb[0].mxu0
    %v1902 = vadd.f32 0.0, %v1901
    %v1903 = vpop.f32.mrb[0].mxu0
    %v1904 = vadd.f32 0.0, %v1903
    %v1905 = vpop.f32.mrb[0].mxu0
    %v1906 = vadd.f32 0.0, %v1905
    %v1907 = vpop.f32.mrb[0].mxu0
    %v1908 = vadd.f32 0.0, %v1907
    %1909 = vdwg.mxu0
    %v1914 = vunpack.c.l.b16 %v1682
    %v1915 = vunpack.c.l.b16 %v1683
    %v1916 = vunpack.c.l.b16 %v1685
    %v1917 = vunpack.c.l.b16 %v1686
    %v1918 = vpack.c.b16 %v1915, %v1914
    %v1919 = vpack.c.b16 %v1917, %v1916
    %v1938 = vunpack.c.l.b16 %v1688
    %v1939 = vunpack.c.h.b16 %v1688
    %v1940 = vunpack.c.l.b16 %v1689
    %v1941 = vunpack.c.h.b16 %v1689
    %v1942 = vunpack.c.l.b16 %v1690
    %v1943 = vunpack.c.h.b16 %v1690
    %v1944 = vunpack.c.l.b16 %v1691
    %v1945 = vunpack.c.h.b16 %v1691
    %v1946 = vunpack.c.l.b16 %v1692
    %v1947 = vunpack.c.h.b16 %v1692
    %v1948 = vunpack.c.l.b16 %v1693
    %v1949 = vunpack.c.h.b16 %v1693
    %v1950 = vunpack.c.l.b16 %v1694
    %v1951 = vunpack.c.h.b16 %v1694
    %v1952 = vunpack.c.l.b16 %v1695
    %v1953 = vunpack.c.h.b16 %v1695
    %v1954 = vunpack.c.l.b16 %v1696
    %v1955 = vunpack.c.h.b16 %v1696
    %v1956 = vunpack.c.l.b16 %v1697
    %v1957 = vunpack.c.h.b16 %v1697
    %v1958 = vunpack.c.l.b16 %v1698
    %v1959 = vunpack.c.h.b16 %v1698
    %v1960 = vunpack.c.l.b16 %v1699
    %v1961 = vunpack.c.h.b16 %v1699
    %v1962 = vunpack.c.l.b16 %v1700
    %v1963 = vunpack.c.h.b16 %v1700
    %v1964 = vunpack.c.l.b16 %v1701
    %v1965 = vunpack.c.h.b16 %v1701
    %v1966 = vunpack.c.l.b16 %v1702
    %v1967 = vunpack.c.h.b16 %v1702
    %v1968 = vunpack.c.l.b16 %v1703
    %v1969 = vunpack.c.h.b16 %v1703
    %v1970 = vpack.c.b16 %v1940, %v1938
    %v1971 = vpack.c.b16 %v1941, %v1939
    %v1972 = vpack.c.b16 %v1944, %v1942
    %v1973 = vpack.c.b16 %v1945, %v1943
    %v1974 = vpack.c.b16 %v1948, %v1946
    %v1975 = vpack.c.b16 %v1949, %v1947
    %v1976 = vpack.c.b16 %v1952, %v1950
    %v1977 = vpack.c.b16 %v1953, %v1951
    %v1978 = vpack.c.b16 %v1956, %v1954
    %v1979 = vpack.c.b16 %v1957, %v1955
    %v1980 = vpack.c.b16 %v1960, %v1958
    %v1981 = vpack.c.b16 %v1961, %v1959
    %v1982 = vpack.c.b16 %v1964, %v1962
    %v1983 = vpack.c.b16 %v1965, %v1963
    %v1984 = vpack.c.b16 %v1968, %v1966
    %v1985 = vpack.c.b16 %v1969, %v1967
    %2002 = vmatprep.subr.bf16.mxu0 %v1971
    %2003 = vmatpush1.bf16.msra.mxu0 %v1970
    %2004 = vmatprep.subr.bf16.mxu0 %v1973
    %2005 = vmatpush1.bf16.msra.mxu0 %v1972
    %2006 = vmatprep.subr.bf16.mxu0 %v1975
    %2007 = vmatpush1.bf16.msra.mxu0 %v1974
    %2008 = vmatprep.subr.bf16.mxu0 %v1977
    %2009 = vmatpush1.bf16.msra.mxu0 %v1976
    %2010 = vmatprep.subr.bf16.mxu0 %v1979
    %2011 = vmatpush1.bf16.msra.mxu0 %v1978
    %2012 = vmatprep.subr.bf16.mxu0 %v1981
    %2013 = vmatpush1.bf16.msra.mxu0 %v1980
    %2014 = vmatprep.subr.bf16.mxu0 %v1983
    %2015 = vmatpush1.bf16.msra.mxu0 %v1982
    %2016 = vmatprep.subr.bf16.mxu0 %v1985
    %2017 = vmatpush1.bf16.msra.mxu0 %v1984
    %2018 = vmatprep.subr.bf16.mxu0 0
    %2019 = vmatpush1.bf16.msra.mxu0 0
    %2020 = vmatprep.subr.bf16.mxu0 0
    %2021 = vmatpush1.bf16.msra.mxu0 0
    %2022 = vmatprep.subr.bf16.mxu0 0
    %2023 = vmatpush1.bf16.msra.mxu0 0
    %2024 = vmatprep.subr.bf16.mxu0 0
    %2025 = vmatpush1.bf16.msra.mxu0 0
    %2026 = vmatprep.subr.bf16.mxu0 0
    %2027 = vmatpush1.bf16.msra.mxu0 0
    %2028 = vmatprep.subr.bf16.mxu0 0
    %2029 = vmatpush1.bf16.msra.mxu0 0
    %2030 = vmatprep.subr.bf16.mxu0 0
    %2031 = vmatpush1.bf16.msra.mxu0 0
    %2032 = vmatprep.subr.bf16.mxu0 0
    %2033 = vmatpush1.bf16.msra.mxu0 0
    %2034 = vmatprep.mubr.bf16.mxu0 0
    %2035 = vmatmul.mubr.bf16.gmra.mrb[0].mxu0 %v1918
    %v2036 = vpop.f32.mrb[0].mxu0
    %v2037 = vadd.f32 %v1892, %v2036
    %v2038 = vpop.f32.mrb[0].mxu0
    %v2039 = vadd.f32 %v1894, %v2038
    %v2040 = vpop.f32.mrb[0].mxu0
    %v2041 = vadd.f32 %v1896, %v2040
    %v2042 = vpop.f32.mrb[0].mxu0
    %v2043 = vadd.f32 %v1898, %v2042
    %2044 = vmatprep.mubr.bf16.mxu0 0
    %2045 = vmatmul.mubr.bf16.gmra.mrb[0].mxu0 %v1919
    %v2046 = vpop.f32.mrb[0].mxu0
    %v2047 = vadd.f32 %v1902, %v2046
    %v2048 = vpop.f32.mrb[0].mxu0
    %v2049 = vadd.f32 %v1904, %v2048
    %v2050 = vpop.f32.mrb[0].mxu0
    %v2051 = vadd.f32 %v1906, %v2050
    %v2052 = vpop.f32.mrb[0].mxu0
    %v2053 = vadd.f32 %v1908, %v2052
    %2054 = vdwg.mxu0
    %v2057 = vrot.slane %v1682, 5
    %v2058 = vrot.slane %v2057, 4
    %v2059 = vrot.slane %v1683, 5
    %v2060 = vsel %vm653, %v2058, %v2059
    %v2061 = vrot.slane %v2059, 4
    %v2062 = vrot.slane %v1684, 5
    %v2063 = vsel %vm653, %v2061, %v2062
    %v2064 = vrot.slane %v1685, 5
    %v2065 = vrot.slane %v2064, 4
    %v2066 = vrot.slane %v1686, 5
    %v2067 = vsel %vm653, %v2065, %v2066
    %v2068 = vrot.slane %v2066, 4
    %v2069 = vrot.slane %v1687, 5
    %v2070 = vsel %vm653, %v2068, %v2069
    %s2071 = scalar_lea.vmem [#allocation8], 256
    %v2072 = vld [vmem:[%s2071] sm:$0xff]
    %v2073 = vld [vmem:[%s2071 + $0x8] sm:$0xff]
    %v2074 = vld [vmem:[%s2071 + $0x10] sm:$0xff]
    %v2075 = vld [vmem:[%s2071 + $0x18] sm:$0xff]
    %v2076 = vld [vmem:[%s2071 + $0x20] sm:$0xff]
    %v2077 = vld [vmem:[%s2071 + $0x28] sm:$0xff]
    %v2078 = vld [vmem:[%s2071 + $0x30] sm:$0xff]
    %v2079 = vld [vmem:[%s2071 + $0x38] sm:$0xff]
    %v2080 = vld [vmem:[%s2071 + $0x40] sm:$0xff]
    %v2081 = vld [vmem:[%s2071 + $0x48] sm:$0xff]
    %v2082 = vld [vmem:[%s2071 + $0x50] sm:$0xff]
    %v2083 = vld [vmem:[%s2071 + $0x58] sm:$0xff]
    %v2084 = vld [vmem:[%s2071 + $0x60] sm:$0xff]
    %v2085 = vld [vmem:[%s2071 + $0x68] sm:$0xff]
    %v2086 = vld [vmem:[%s2071 + $0x70] sm:$0xff]
    %v2087 = vld [vmem:[%s2071 + $0x78] sm:$0xff]
    %v2088 = vunpack.c.l.b16 %v2060
    %v2089 = vunpack.c.l.b16 %v2063
    %v2090 = vunpack.c.l.b16 %v2067
    %v2091 = vunpack.c.l.b16 %v2070
    %v2092 = vpack.c.b16 %v2089, %v2088
    %v2093 = vpack.c.b16 %v2091, %v2090
    %v2112 = vunpack.c.l.b16 %v2072
    %v2113 = vunpack.c.h.b16 %v2072
    %v2114 = vunpack.c.l.b16 %v2073
    %v2115 = vunpack.c.h.b16 %v2073
    %v2116 = vunpack.c.l.b16 %v2074
    %v2117 = vunpack.c.h.b16 %v2074
    %v2118 = vunpack.c.l.b16 %v2075
    %v2119 = vunpack.c.h.b16 %v2075
    %v2120 = vunpack.c.l.b16 %v2076
    %v2121 = vunpack.c.h.b16 %v2076
    %v2122 = vunpack.c.l.b16 %v2077
    %v2123 = vunpack.c.h.b16 %v2077
    %v2124 = vunpack.c.l.b16 %v2078
    %v2125 = vunpack.c.h.b16 %v2078
    %v2126 = vunpack.c.l.b16 %v2079
    %v2127 = vunpack.c.h.b16 %v2079
    %v2128 = vunpack.c.l.b16 %v2080
    %v2129 = vunpack.c.h.b16 %v2080
    %v2130 = vunpack.c.l.b16 %v2081
    %v2131 = vunpack.c.h.b16 %v2081
    %v2132 = vunpack.c.l.b16 %v2082
    %v2133 = vunpack.c.h.b16 %v2082
    %v2134 = vunpack.c.l.b16 %v2083
    %v2135 = vunpack.c.h.b16 %v2083
    %v2136 = vunpack.c.l.b16 %v2084
    %v2137 = vunpack.c.h.b16 %v2084
    %v2138 = vunpack.c.l.b16 %v2085
    %v2139 = vunpack.c.h.b16 %v2085
    %v2140 = vunpack.c.l.b16 %v2086
    %v2141 = vunpack.c.h.b16 %v2086
    %v2142 = vunpack.c.l.b16 %v2087
    %v2143 = vunpack.c.h.b16 %v2087
    %v2144 = vpack.c.b16 %v2114, %v2112
    %v2145 = vpack.c.b16 %v2115, %v2113
    %v2146 = vpack.c.b16 %v2118, %v2116
    %v2147 = vpack.c.b16 %v2119, %v2117
    %v2148 = vpack.c.b16 %v2122, %v2120
    %v2149 = vpack.c.b16 %v2123, %v2121
    %v2150 = vpack.c.b16 %v2126, %v2124
    %v2151 = vpack.c.b16 %v2127, %v2125
    %v2152 = vpack.c.b16 %v2130, %v2128
    %v2153 = vpack.c.b16 %v2131, %v2129
    %v2154 = vpack.c.b16 %v2134, %v2132
    %v2155 = vpack.c.b16 %v2135, %v2133
    %v2156 = vpack.c.b16 %v2138, %v2136
    %v2157 = vpack.c.b16 %v2139, %v2137
    %v2158 = vpack.c.b16 %v2142, %v2140
    %v2159 = vpack.c.b16 %v2143, %v2141
    %2176 = vmatprep.subr.bf16.mxu0 %v2145
    %2177 = vmatpush1.bf16.msra.mxu0 %v2144
    %2178 = vmatprep.subr.bf16.mxu0 %v2147
    %2179 = vmatpush1.bf16.msra.mxu0 %v2146
    %2180 = vmatprep.subr.bf16.mxu0 %v2149
    %2181 = vmatpush1.bf16.msra.mxu0 %v2148
    %2182 = vmatprep.subr.bf16.mxu0 %v2151
    %2183 = vmatpush1.bf16.msra.mxu0 %v2150
    %2184 = vmatprep.subr.bf16.mxu0 %v2153
    %2185 = vmatpush1.bf16.msra.mxu0 %v2152
    %2186 = vmatprep.subr.bf16.mxu0 %v2155
    %2187 = vmatpush1.bf16.msra.mxu0 %v2154
    %2188 = vmatprep.subr.bf16.mxu0 %v2157
    %2189 = vmatpush1.bf16.msra.mxu0 %v2156
    %2190 = vmatprep.subr.bf16.mxu0 %v2159
    %2191 = vmatpush1.bf16.msra.mxu0 %v2158
    %2192 = vmatprep.subr.bf16.mxu0 0
    %2193 = vmatpush1.bf16.msra.mxu0 0
    %2194 = vmatprep.subr.bf16.mxu0 0
    %2195 = vmatpush1.bf16.msra.mxu0 0
    %2196 = vmatprep.subr.bf16.mxu0 0
    %2197 = vmatpush1.bf16.msra.mxu0 0
    %2198 = vmatprep.subr.bf16.mxu0 0
    %2199 = vmatpush1.bf16.msra.mxu0 0
    %2200 = vmatprep.subr.bf16.mxu0 0
    %2201 = vmatpush1.bf16.msra.mxu0 0
    %2202 = vmatprep.subr.bf16.mxu0 0
    %2203 = vmatpush1.bf16.msra.mxu0 0
    %2204 = vmatprep.subr.bf16.mxu0 0
    %2205 = vmatpush1.bf16.msra.mxu0 0
    %2206 = vmatprep.subr.bf16.mxu0 0
    %2207 = vmatpush1.bf16.msra.mxu0 0
    %2208 = vmatprep.mubr.bf16.mxu0 0
    %2209 = vmatmul.mubr.bf16.gmra.mrb[0].mxu0 %v2092
    %v2210 = vpop.f32.mrb[0].mxu0
    %v2211 = vadd.f32 0.0, %v2210
    %v2212 = vpop.f32.mrb[0].mxu0
    %v2213 = vadd.f32 0.0, %v2212
    %v2214 = vpop.f32.mrb[0].mxu0
    %v2215 = vadd.f32 0.0, %v2214
    %v2216 = vpop.f32.mrb[0].mxu0
    %v2217 = vadd.f32 0.0, %v2216
    %2218 = vmatprep.mubr.bf16.mxu0 0
    %2219 = vmatmul.mubr.bf16.gmra.mrb[0].mxu0 %v2093
    %v2220 = vpop.f32.mrb[0].mxu0
    %v2221 = vadd.f32 0.0, %v2220
    %v2222 = vpop.f32.mrb[0].mxu0
    %v2223 = vadd.f32 0.0, %v2222
    %v2224 = vpop.f32.mrb[0].mxu0
    %v2225 = vadd.f32 0.0, %v2224
    %v2226 = vpop.f32.mrb[0].mxu0
    %v2227 = vadd.f32 0.0, %v2226
    %2228 = vdwg.mxu0
    %v2229 = vadd.f32 %v2037, %v2211
    %v2230 = vadd.f32 %v2039, %v2213
    %v2231 = vadd.f32 %v2041, %v2215
    %v2232 = vadd.f32 %v2043, %v2217
    %v2233 = vadd.f32 %v2047, %v2221
    %v2234 = vadd.f32 %v2049, %v2223
    %v2235 = vadd.f32 %v2051, %v2225
    %v2236 = vadd.f32 %v2053, %v2227
    %v2237 = vld [vmem:[#allocation9] ss:$4 sm:$0x3]
    %v2239 = vlaneseq
    %v2240 = vshrl.u32 %v2239, 7
    %v2241 = vsub.s32 0, %v2240
    %v2242 = vrot.slane %v2237, %v2241
    %v2243 = vlaneseq
    %v2244 = vshrl.u32 %v2243, 7
    %v2245 = vsub.s32 1, %v2244
    %v2246 = vrot.slane %v2237, %v2245
    %v2249 = vadd.f32 %v2229, %v2242
    %v2250 = vadd.f32 %v2230, %v2246
    %v2251 = vadd.f32 %v2231, %v2242
    %v2252 = vadd.f32 %v2232, %v2246
    %v2253 = vadd.f32 %v2233, %v2242
    %v2254 = vadd.f32 %v2234, %v2246
    %v2255 = vadd.f32 %v2235, %v2242
    %v2256 = vadd.f32 %v2236, %v2246
    %v2257 = vmax.f32 %v2249, 0.0
    %v2258 = vmax.f32 %v2250, 0.0
    %v2259 = vmax.f32 %v2251, 0.0
    %v2260 = vmax.f32 %v2252, 0.0
    %v2261 = vmax.f32 %v2253, 0.0
    %v2262 = vmax.f32 %v2254, 0.0
    %v2263 = vmax.f32 %v2255, 0.0
    %v2264 = vmax.f32 %v2256, 0.0
    %s2265 = scalar_lea.vmem [#allocation9], 1
    %v2266 = vld [vmem:[%s2265] ss:$4 sm:$0x3]
    %v2268 = vlaneseq
    %v2269 = vshrl.u32 %v2268, 7
    %v2270 = vsub.s32 0, %v2269
    %v2271 = vrot.slane %v2266, %v2270
    %v2272 = vlaneseq
    %v2273 = vshrl.u32 %v2272, 7
    %v2274 = vsub.s32 1, %v2273
    %v2275 = vrot.slane %v2266, %v2274
    %v2278 = vmul.f32 %v2257, %v2271
    %v2279 = vmul.f32 %v2258, %v2275
    %v2280 = vmul.f32 %v2259, %v2271
    %v2281 = vmul.f32 %v2260, %v2275
    %v2282 = vmul.f32 %v2261, %v2271
    %v2283 = vmul.f32 %v2262, %v2275
    %v2284 = vmul.f32 %v2263, %v2271
    %v2285 = vmul.f32 %v2264, %v2275
    %s2286 = scalar_lea.vmem [#allocation9], 2
    %v2287 = vld [vmem:[%s2286] ss:$4 sm:$0x3]
    %v2289 = vlaneseq
    %v2290 = vshrl.u32 %v2289, 7
    %v2291 = vsub.s32 0, %v2290
    %v2292 = vrot.slane %v2287, %v2291
    %v2293 = vlaneseq
    %v2294 = vshrl.u32 %v2293, 7
    %v2295 = vsub.s32 1, %v2294
    %v2296 = vrot.slane %v2287, %v2295
    %v2299 = vadd.f32 %v2278, %v2292
    %v2300 = vadd.f32 %v2279, %v2296
    %v2301 = vadd.f32 %v2280, %v2292
    %v2302 = vadd.f32 %v2281, %v2296
    %v2303 = vadd.f32 %v2282, %v2292
    %v2304 = vadd.f32 %v2283, %v2296
    %v2305 = vadd.f32 %v2284, %v2292
    %v2306 = vadd.f32 %v2285, %v2296
    %v2315 = vcombine.low %v2299, %v2300
    %v2316 = vcombine.high %v2299, %v2300
    %v2318 = vunpack.c.l.s4 1983009808
    %v2319 = vunpack.c.0.s8 %v2318
    %v2320 = vlaneseq
    %v2321 = vshrl.u32 %v2320, 7
    %v2322 = vsub.s32 %v2319, %v2321
    %v2323 = vrot.slane %v2315, %v2322
    %v2325 = vunpack.c.l.s4 1983009808
    %v2326 = vunpack.c.0.s8 %v2325
    %v2327 = vlaneseq
    %v2328 = vshrl.u32 %v2327, 7
    %v2329 = vsub.s32 %v2326, %v2328
    %v2330 = vrot.slane %v2316, %v2329
    %v2331 = vcombine.high %v2323, %v2323
    %v2332 = vcombine.high %v2330, %v2330
    %v2333 = vcombine.low %v2301, %v2302
    %v2334 = vcombine.high %v2301, %v2302
    %v2336 = vunpack.c.l.s4 1983009808
    %v2337 = vunpack.c.0.s8 %v2336
    %v2338 = vlaneseq
    %v2339 = vshrl.u32 %v2338, 7
    %v2340 = vsub.s32 %v2337, %v2339
    %v2341 = vrot.slane %v2333, %v2340
    %v2343 = vunpack.c.l.s4 1983009808
    %v2344 = vunpack.c.0.s8 %v2343
    %v2345 = vlaneseq
    %v2346 = vshrl.u32 %v2345, 7
    %v2347 = vsub.s32 %v2344, %v2346
    %v2348 = vrot.slane %v2334, %v2347
    %v2349 = vcombine.high %v2341, %v2341
    %v2350 = vcombine.high %v2348, %v2348
    %v2351 = vcombine.low %v2303, %v2304
    %v2352 = vcombine.high %v2303, %v2304
    %v2354 = vunpack.c.l.s4 1983009808
    %v2355 = vunpack.c.0.s8 %v2354
    %v2356 = vlaneseq
    %v2357 = vshrl.u32 %v2356, 7
    %v2358 = vsub.s32 %v2355, %v2357
    %v2359 = vrot.slane %v2351, %v2358
    %v2361 = vunpack.c.l.s4 1983009808
    %v2362 = vunpack.c.0.s8 %v2361
    %v2363 = vlaneseq
    %v2364 = vshrl.u32 %v2363, 7
    %v2365 = vsub.s32 %v2362, %v2364
    %v2366 = vrot.slane %v2352, %v2365
    %v2367 = vcombine.high %v2359, %v2359
    %v2368 = vcombine.high %v2366, %v2366
    %v2369 = vcombine.low %v2305, %v2306
    %v2370 = vcombine.high %v2305, %v2306
    %v2372 = vunpack.c.l.s4 1983009808
    %v2373 = vunpack.c.0.s8 %v2372
    %v2374 = vlaneseq
    %v2375 = vshrl.u32 %v2374, 7
    %v2376 = vsub.s32 %v2373, %v2375
    %v2377 = vrot.slane %v2369, %v2376
    %v2379 = vunpack.c.l.s4 1983009808
    %v2380 = vunpack.c.0.s8 %v2379
    %v2381 = vlaneseq
    %v2382 = vshrl.u32 %v2381, 7
    %v2383 = vsub.s32 %v2380, %v2382
    %v2384 = vrot.slane %v2370, %v2383
    %v2385 = vcombine.high %v2377, %v2377
    %v2386 = vcombine.high %v2384, %v2384
    %v2403 = vrot.slane %v2323, 7
    %v2404 = vrot.slane %v2403, 2
    %v2405 = vrot.slane %v2331, 7
    %v2406 = vrot.slane %v2405, 2
    %v2407 = vrot.slane %v2330, 7
    %v2408 = vrot.slane %v2407, 2
    %v2409 = vrot.slane %v2332, 7
    %v2410 = vrot.slane %v2409, 2
    %v2411 = vrot.slane %v2341, 7
    %v2412 = vrot.slane %v2411, 2
    %v2413 = vrot.slane %v2349, 7
    %v2414 = vrot.slane %v2413, 2
    %v2415 = vrot.slane %v2348, 7
    %v2416 = vrot.slane %v2415, 2
    %v2417 = vrot.slane %v2350, 7
    %v2418 = vrot.slane %v2417, 2
    %v2419 = vrot.slane %v2359, 7
    %v2420 = vrot.slane %v2419, 2
    %v2421 = vrot.slane %v2367, 7
    %v2422 = vrot.slane %v2421, 2
    %v2423 = vrot.slane %v2366, 7
    %v2424 = vrot.slane %v2423, 2
    %v2425 = vrot.slane %v2368, 7
    %v2426 = vrot.slane %v2425, 2
    %v2427 = vrot.slane %v2377, 7
    %v2428 = vrot.slane %v2427, 2
    %v2429 = vrot.slane %v2385, 7
    %v2430 = vrot.slane %v2429, 2
    %v2431 = vrot.slane %v2384, 7
    %v2432 = vrot.slane %v2431, 2
    %v2433 = vrot.slane %v2386, 7
    %v2434 = vrot.slane %v2433, 2
    %v2451 = vmax.f32 %v2323, %v2404
    %v2452 = vmax.f32 %v2331, %v2406
    %v2453 = vmax.f32 %v2330, %v2408
    %v2454 = vmax.f32 %v2332, %v2410
    %v2455 = vmax.f32 %v2341, %v2412
    %v2456 = vmax.f32 %v2349, %v2414
    %v2457 = vmax.f32 %v2348, %v2416
    %v2458 = vmax.f32 %v2350, %v2418
    %v2459 = vmax.f32 %v2359, %v2420
    %v2460 = vmax.f32 %v2367, %v2422
    %v2461 = vmax.f32 %v2366, %v2424
    %v2462 = vmax.f32 %v2368, %v2426
    %v2463 = vmax.f32 %v2377, %v2428
    %v2464 = vmax.f32 %v2385, %v2430
    %v2465 = vmax.f32 %v2384, %v2432
    %v2466 = vmax.f32 %v2386, %v2434
    %v2483 = vrot.slane %v2451, 2
    %v2484 = vrot.slane %v2452, 2
    %v2485 = vrot.slane %v2453, 2
    %v2486 = vrot.slane %v2454, 2
    %v2487 = vrot.slane %v2455, 2
    %v2488 = vrot.slane %v2456, 2
    %v2489 = vrot.slane %v2457, 2
    %v2490 = vrot.slane %v2458, 2
    %v2491 = vrot.slane %v2459, 2
    %v2492 = vrot.slane %v2460, 2
    %v2493 = vrot.slane %v2461, 2
    %v2494 = vrot.slane %v2462, 2
    %v2495 = vrot.slane %v2463, 2
    %v2496 = vrot.slane %v2464, 2
    %v2497 = vrot.slane %v2465, 2
    %v2498 = vrot.slane %v2466, 2
    %v2515 = vmax.f32 %v2451, %v2483
    %v2516 = vmax.f32 %v2452, %v2484
    %v2517 = vmax.f32 %v2453, %v2485
    %v2518 = vmax.f32 %v2454, %v2486
    %v2519 = vmax.f32 %v2455, %v2487
    %v2520 = vmax.f32 %v2456, %v2488
    %v2521 = vmax.f32 %v2457, %v2489
    %v2522 = vmax.f32 %v2458, %v2490
    %v2523 = vmax.f32 %v2459, %v2491
    %v2524 = vmax.f32 %v2460, %v2492
    %v2525 = vmax.f32 %v2461, %v2493
    %v2526 = vmax.f32 %v2462, %v2494
    %v2527 = vmax.f32 %v2463, %v2495
    %v2528 = vmax.f32 %v2464, %v2496
    %v2529 = vmax.f32 %v2465, %v2497
    %v2530 = vmax.f32 %v2466, %v2498
    %v2531 = vpack.c.bf16 %v2515, %v2515
    %v2532 = vpack.c.bf16 %v2516, %v2516
    %v2533 = vpack.c.bf16 %v2517, %v2517
    %v2534 = vpack.c.bf16 %v2518, %v2518
    %v2535 = vpack.c.bf16 %v2519, %v2519
    %v2536 = vpack.c.bf16 %v2520, %v2520
    %v2537 = vpack.c.bf16 %v2521, %v2521
    %v2538 = vpack.c.bf16 %v2522, %v2522
    %v2539 = vpack.c.bf16 %v2523, %v2523
    %v2540 = vpack.c.bf16 %v2524, %v2524
    %v2541 = vpack.c.bf16 %v2525, %v2525
    %v2542 = vpack.c.bf16 %v2526, %v2526
    %v2543 = vpack.c.bf16 %v2527, %v2527
    %v2544 = vpack.c.bf16 %v2528, %v2528
    %v2545 = vpack.c.bf16 %v2529, %v2529
    %v2546 = vpack.c.bf16 %v2530, %v2530
    %v2547 = vld [vmem:[#allocation11] sm:$0xff]
    %v2548 = vld [vmem:[#allocation11 + $0x8] sm:$0xff]
    %v2549 = vld [vmem:[#allocation11 + $0x10] sm:$0xff]
    %v2550 = vld [vmem:[#allocation11 + $0x18] sm:$0xff]
    %v2551 = vld [vmem:[#allocation11 + $0x20] sm:$0xff]
    %v2552 = vld [vmem:[#allocation11 + $0x28] sm:$0xff]
    %v2553 = vld [vmem:[#allocation11 + $0x30] sm:$0xff]
    %v2554 = vld [vmem:[#allocation11 + $0x38] sm:$0xff]
    %v2555 = vld [vmem:[#allocation11 + $0x40] sm:$0xff]
    %v2556 = vld [vmem:[#allocation11 + $0x48] sm:$0xff]
    %v2557 = vld [vmem:[#allocation11 + $0x50] sm:$0xff]
    %v2558 = vld [vmem:[#allocation11 + $0x58] sm:$0xff]
    %v2559 = vld [vmem:[#allocation11 + $0x60] sm:$0xff]
    %v2560 = vld [vmem:[#allocation11 + $0x68] sm:$0xff]
    %v2561 = vld [vmem:[#allocation11 + $0x70] sm:$0xff]
    %v2562 = vld [vmem:[#allocation11 + $0x78] sm:$0xff]
    %v2563 = vld [vmem:[#allocation11 + $0x80] sm:$0xff]
    %v2564 = vld [vmem:[#allocation11 + $0x88] sm:$0xff]
    %v2565 = vld [vmem:[#allocation11 + $0x90] sm:$0xff]
    %v2566 = vld [vmem:[#allocation11 + $0x98] sm:$0xff]
    %v2567 = vld [vmem:[#allocation11 + $0xa0] sm:$0xff]
    %v2568 = vld [vmem:[#allocation11 + $0xa8] sm:$0xff]
    %v2569 = vld [vmem:[#allocation11 + $0xb0] sm:$0xff]
    %v2570 = vld [vmem:[#allocation11 + $0xb8] sm:$0xff]
    %v2571 = vld [vmem:[#allocation11 + $0xc0] sm:$0xff]
    %v2572 = vld [vmem:[#allocation11 + $0xc8] sm:$0xff]
    %v2573 = vld [vmem:[#allocation11 + $0xd0] sm:$0xff]
    %v2574 = vld [vmem:[#allocation11 + $0xd8] sm:$0xff]
    %v2575 = vld [vmem:[#allocation11 + $0xe0] sm:$0xff]
    %v2576 = vld [vmem:[#allocation11 + $0xe8] sm:$0xff]
    %v2577 = vld [vmem:[#allocation11 + $0xf0] sm:$0xff]
    %v2578 = vld [vmem:[#allocation11 + $0xf8] sm:$0xff]
    %s2579 = scalar_lea.vmem [#allocation11], 256
    %v2580 = vld [vmem:[%s2579] sm:$0xff]
    %v2581 = vld [vmem:[%s2579 + $0x8] sm:$0xff]
    %v2582 = vld [vmem:[%s2579 + $0x10] sm:$0xff]
    %v2583 = vld [vmem:[%s2579 + $0x18] sm:$0xff]
    %v2584 = vld [vmem:[%s2579 + $0x20] sm:$0xff]
    %v2585 = vld [vmem:[%s2579 + $0x28] sm:$0xff]
    %v2586 = vld [vmem:[%s2579 + $0x30] sm:$0xff]
    %v2587 = vld [vmem:[%s2579 + $0x38] sm:$0xff]
    %v2588 = vld [vmem:[%s2579 + $0x40] sm:$0xff]
    %v2589 = vld [vmem:[%s2579 + $0x48] sm:$0xff]
    %v2590 = vld [vmem:[%s2579 + $0x50] sm:$0xff]
    %v2591 = vld [vmem:[%s2579 + $0x58] sm:$0xff]
    %v2592 = vld [vmem:[%s2579 + $0x60] sm:$0xff]
    %v2593 = vld [vmem:[%s2579 + $0x68] sm:$0xff]
    %v2594 = vld [vmem:[%s2579 + $0x70] sm:$0xff]
    %v2595 = vld [vmem:[%s2579 + $0x78] sm:$0xff]
    %v2596 = vld [vmem:[%s2579 + $0x80] sm:$0xff]
    %v2597 = vld [vmem:[%s2579 + $0x88] sm:$0xff]
    %v2598 = vld [vmem:[%s2579 + $0x90] sm:$0xff]
    %v2599 = vld [vmem:[%s2579 + $0x98] sm:$0xff]
    %v2600 = vld [vmem:[%s2579 + $0xa0] sm:$0xff]
    %v2601 = vld [vmem:[%s2579 + $0xa8] sm:$0xff]
    %v2602 = vld [vmem:[%s2579 + $0xb0] sm:$0xff]
    %v2603 = vld [vmem:[%s2579 + $0xb8] sm:$0xff]
    %v2604 = vld [vmem:[%s2579 + $0xc0] sm:$0xff]
    %v2605 = vld [vmem:[%s2579 + $0xc8] sm:$0xff]
    %v2606 = vld [vmem:[%s2579 + $0xd0] sm:$0xff]
    %v2607 = vld [vmem:[%s2579 + $0xd8] sm:$0xff]
    %v2608 = vld [vmem:[%s2579 + $0xe0] sm:$0xff]
    %v2609 = vld [vmem:[%s2579 + $0xe8] sm:$0xff]
    %v2610 = vld [vmem:[%s2579 + $0xf0] sm:$0xff]
    %v2611 = vld [vmem:[%s2579 + $0xf8] sm:$0xff]
    %v2620 = vunpack.c.l.b16 %v2532
    %v2621 = vunpack.c.l.b16 %v2533
    %v2622 = vunpack.c.l.b16 %v2534
    %v2623 = vunpack.c.l.b16 %v2535
    %v2624 = vunpack.c.l.b16 %v2540
    %v2625 = vunpack.c.l.b16 %v2541
    %v2626 = vunpack.c.l.b16 %v2542
    %v2627 = vunpack.c.l.b16 %v2543
    %v2628 = vrot.slane %v2621, 7
    %v2629 = vsel %vm1613, %v2628, %v2620
    %v2630 = vrot.slane %v2622, 6
    %v2631 = vsel %vm1595, %v2630, %v2629
    %v2632 = vrot.slane %v2623, 5
    %v2633 = vsel %vm1598, %v2632, %v2631
    %v2634 = vrot.slane %v2624, 4
    %v2635 = vsel %vm1601, %v2634, %v2633
    %v2636 = vrot.slane %v2625, 3
    %v2637 = vsel %vm1604, %v2636, %v2635
    %v2638 = vrot.slane %v2626, 2
    %v2639 = vsel %vm1607, %v2638, %v2637
    %v2640 = vrot.slane %v2627, 1
    %v2641 = vsel %vm1610, %v2640, %v2639
    %v2642 = vpack.c.b16 %v2641, %v2641
    %v2676 = vunpack.c.l.b16 %v2580
    %v2677 = vunpack.c.h.b16 %v2580
    %v2678 = vunpack.c.l.b16 %v2581
    %v2679 = vunpack.c.h.b16 %v2581
    %v2680 = vunpack.c.l.b16 %v2582
    %v2681 = vunpack.c.h.b16 %v2582
    %v2682 = vunpack.c.l.b16 %v2583
    %v2683 = vunpack.c.h.b16 %v2583
    %v2684 = vunpack.c.l.b16 %v2584
    %v2685 = vunpack.c.h.b16 %v2584
    %v2686 = vunpack.c.l.b16 %v2585
    %v2687 = vunpack.c.h.b16 %v2585
    %v2688 = vunpack.c.l.b16 %v2586
    %v2689 = vunpack.c.h.b16 %v2586
    %v2690 = vunpack.c.l.b16 %v2587
    %v2691 = vunpack.c.h.b16 %v2587
    %v2692 = vunpack.c.l.b16 %v2588
    %v2693 = vunpack.c.h.b16 %v2588
    %v2694 = vunpack.c.l.b16 %v2589
    %v2695 = vunpack.c.h.b16 %v2589
    %v2696 = vunpack.c.l.b16 %v2590
    %v2697 = vunpack.c.h.b16 %v2590
    %v2698 = vunpack.c.l.b16 %v2591
    %v2699 = vunpack.c.h.b16 %v2591
    %v2700 = vunpack.c.l.b16 %v2592
    %v2701 = vunpack.c.h.b16 %v2592
    %v2702 = vunpack.c.l.b16 %v2593
    %v2703 = vunpack.c.h.b16 %v2593
    %v2704 = vunpack.c.l.b16 %v2594
    %v2705 = vunpack.c.h.b16 %v2594
    %v2706 = vunpack.c.l.b16 %v2595
    %v2707 = vunpack.c.h.b16 %v2595
    %v2708 = vunpack.c.l.b16 %v2596
    %v2709 = vunpack.c.h.b16 %v2596
    %v2710 = vunpack.c.l.b16 %v2597
    %v2711 = vunpack.c.h.b16 %v2597
    %v2712 = vunpack.c.l.b16 %v2598
    %v2713 = vunpack.c.h.b16 %v2598
    %v2714 = vunpack.c.l.b16 %v2599
    %v2715 = vunpack.c.h.b16 %v2599
    %v2716 = vunpack.c.l.b16 %v2600
    %v2717 = vunpack.c.h.b16 %v2600
    %v2718 = vunpack.c.l.b16 %v2601
    %v2719 = vunpack.c.h.b16 %v2601
    %v2720 = vunpack.c.l.b16 %v2602
    %v2721 = vunpack.c.h.b16 %v2602
    %v2722 = vunpack.c.l.b16 %v2603
    %v2723 = vunpack.c.h.b16 %v2603
    %v2724 = vunpack.c.l.b16 %v2604
    %v2725 = vunpack.c.h.b16 %v2604
    %v2726 = vunpack.c.l.b16 %v2605
    %v2727 = vunpack.c.h.b16 %v2605
    %v2728 = vunpack.c.l.b16 %v2606
    %v2729 = vunpack.c.h.b16 %v2606
    %v2730 = vunpack.c.l.b16 %v2607
    %v2731 = vunpack.c.h.b16 %v2607
    %v2732 = vunpack.c.l.b16 %v2608
    %v2733 = vunpack.c.h.b16 %v2608
    %v2734 = vunpack.c.l.b16 %v2609
    %v2735 = vunpack.c.h.b16 %v2609
    %v2736 = vunpack.c.l.b16 %v2610
    %v2737 = vunpack.c.h.b16 %v2610
    %v2738 = vunpack.c.l.b16 %v2611
    %v2739 = vunpack.c.h.b16 %v2611
    %v2740 = vpack.c.b16 %v2680, %v2676
    %v2741 = vpack.c.b16 %v2681, %v2677
    %v2742 = vpack.c.b16 %v2682, %v2678
    %v2743 = vpack.c.b16 %v2683, %v2679
    %v2744 = vpack.c.b16 %v2688, %v2684
    %v2745 = vpack.c.b16 %v2689, %v2685
    %v2746 = vpack.c.b16 %v2690, %v2686
    %v2747 = vpack.c.b16 %v2691, %v2687
    %v2748 = vpack.c.b16 %v2696, %v2692
    %v2749 = vpack.c.b16 %v2697, %v2693
    %v2750 = vpack.c.b16 %v2698, %v2694
    %v2751 = vpack.c.b16 %v2699, %v2695
    %v2752 = vpack.c.b16 %v2704, %v2700
    %v2753 = vpack.c.b16 %v2705, %v2701
    %v2754 = vpack.c.b16 %v2706, %v2702
    %v2755 = vpack.c.b16 %v2707, %v2703
    %v2756 = vpack.c.b16 %v2712, %v2708
    %v2757 = vpack.c.b16 %v2713, %v2709
    %v2758 = vpack.c.b16 %v2714, %v2710
    %v2759 = vpack.c.b16 %v2715, %v2711
    %v2760 = vpack.c.b16 %v2720, %v2716
    %v2761 = vpack.c.b16 %v2721, %v2717
    %v2762 = vpack.c.b16 %v2722, %v2718
    %v2763 = vpack.c.b16 %v2723, %v2719
    %v2764 = vpack.c.b16 %v2728, %v2724
    %v2765 = vpack.c.b16 %v2729, %v2725
    %v2766 = vpack.c.b16 %v2730, %v2726
    %v2767 = vpack.c.b16 %v2731, %v2727
    %v2768 = vpack.c.b16 %v2736, %v2732
    %v2769 = vpack.c.b16 %v2737, %v2733
    %v2770 = vpack.c.b16 %v2738, %v2734
    %v2771 = vpack.c.b16 %v2739, %v2735
    %2804 = vmatprep.subr.bf16.mxu0 %v2741
    %2805 = vmatpush1.bf16.msra.mxu0 %v2740
    %2806 = vmatprep.subr.bf16.mxu0 %v2745
    %2807 = vmatpush1.bf16.msra.mxu0 %v2744
    %2808 = vmatprep.subr.bf16.mxu0 %v2749
    %2809 = vmatpush1.bf16.msra.mxu0 %v2748
    %2810 = vmatprep.subr.bf16.mxu0 %v2753
    %2811 = vmatpush1.bf16.msra.mxu0 %v2752
    %2812 = vmatprep.subr.bf16.mxu0 %v2757
    %2813 = vmatpush1.bf16.msra.mxu0 %v2756
    %2814 = vmatprep.subr.bf16.mxu0 %v2761
    %2815 = vmatpush1.bf16.msra.mxu0 %v2760
    %2816 = vmatprep.subr.bf16.mxu0 %v2765
    %2817 = vmatpush1.bf16.msra.mxu0 %v2764
    %2818 = vmatprep.subr.bf16.mxu0 %v2769
    %2819 = vmatpush1.bf16.msra.mxu0 %v2768
    %2820 = vmatprep.subr.bf16.mxu0 0
    %2821 = vmatpush1.bf16.msra.mxu0 0
    %2822 = vmatprep.subr.bf16.mxu0 0
    %2823 = vmatpush1.bf16.msra.mxu0 0
    %2824 = vmatprep.subr.bf16.mxu0 0
    %2825 = vmatpush1.bf16.msra.mxu0 0
    %2826 = vmatprep.subr.bf16.mxu0 0
    %2827 = vmatpush1.bf16.msra.mxu0 0
    %2828 = vmatprep.subr.bf16.mxu0 0
    %2829 = vmatpush1.bf16.msra.mxu0 0
    %2830 = vmatprep.subr.bf16.mxu0 0
    %2831 = vmatpush1.bf16.msra.mxu0 0
    %2832 = vmatprep.subr.bf16.mxu0 0
    %2833 = vmatpush1.bf16.msra.mxu0 0
    %2834 = vmatprep.subr.bf16.mxu0 0
    %2835 = vmatpush1.bf16.msra.mxu0 0
    %2836 = vmatprep.mubr.bf16.mxu0 0
    %2837 = vmatmul.mubr.bf16.gmra.mrb[0].mxu0 %v2642
    %v2838 = vpop.f32.mrb[0].mxu0
    %v2839 = vadd.f32 0.0, %v2838
    %v2840 = vpop.f32.mrb[0].mxu0
    %v2841 = vadd.f32 0.0, %v2840
    %v2842 = vpop.f32.mrb[0].mxu0
    %v2843 = vpop.f32.mrb[0].mxu0
    %2844 = vdwg.mxu0
    %2845 = vmatprep.subr.bf16.mxu0 %v2743
    %2846 = vmatpush1.bf16.msra.mxu0 %v2742
    %2847 = vmatprep.subr.bf16.mxu0 %v2747
    %2848 = vmatpush1.bf16.msra.mxu0 %v2746
    %2849 = vmatprep.subr.bf16.mxu0 %v2751
    %2850 = vmatpush1.bf16.msra.mxu0 %v2750
    %2851 = vmatprep.subr.bf16.mxu0 %v2755
    %2852 = vmatpush1.bf16.msra.mxu0 %v2754
    %2853 = vmatprep.subr.bf16.mxu0 %v2759
    %2854 = vmatpush1.bf16.msra.mxu0 %v2758
    %2855 = vmatprep.subr.bf16.mxu0 %v2763
    %2856 = vmatpush1.bf16.msra.mxu0 %v2762
    %2857 = vmatprep.subr.bf16.mxu0 %v2767
    %2858 = vmatpush1.bf16.msra.mxu0 %v2766
    %2859 = vmatprep.subr.bf16.mxu0 %v2771
    %2860 = vmatpush1.bf16.msra.mxu0 %v2770
    %2861 = vmatprep.subr.bf16.mxu0 0
    %2862 = vmatpush1.bf16.msra.mxu0 0
    %2863 = vmatprep.subr.bf16.mxu0 0
    %2864 = vmatpush1.bf16.msra.mxu0 0
    %2865 = vmatprep.subr.bf16.mxu0 0
    %2866 = vmatpush1.bf16.msra.mxu0 0
    %2867 = vmatprep.subr.bf16.mxu0 0
    %2868 = vmatpush1.bf16.msra.mxu0 0
    %2869 = vmatprep.subr.bf16.mxu0 0
    %2870 = vmatpush1.bf16.msra.mxu0 0
    %2871 = vmatprep.subr.bf16.mxu0 0
    %2872 = vmatpush1.bf16.msra.mxu0 0
    %2873 = vmatprep.subr.bf16.mxu0 0
    %2874 = vmatpush1.bf16.msra.mxu0 0
    %2875 = vmatprep.subr.bf16.mxu0 0
    %2876 = vmatpush1.bf16.msra.mxu0 0
    %2877 = vmatprep.mubr.bf16.mxu0 0
    %2878 = vmatmul.mubr.bf16.gmra.mrb[0].mxu0 %v2642
    %v2879 = vpop.f32.mrb[0].mxu0
    %v2880 = vadd.f32 0.0, %v2879
    %v2881 = vpop.f32.mrb[0].mxu0
    %v2882 = vadd.f32 0.0, %v2881
    %v2883 = vpop.f32.mrb[0].mxu0
    %v2884 = vpop.f32.mrb[0].mxu0
    %2885 = vdwg.mxu0
    %v2888 = vunpack.c.l.b16 %v2531
    %v2889 = vunpack.c.l.b16 %v2539
    %v2890 = vrot.slane %v2620, 7
    %v2891 = vsel %vm1613, %v2890, %v2888
    %v2892 = vrot.slane %v2621, 6
    %v2893 = vsel %vm1595, %v2892, %v2891
    %v2894 = vrot.slane %v2622, 5
    %v2895 = vsel %vm1598, %v2894, %v2893
    %v2896 = vrot.slane %v2889, 4
    %v2897 = vsel %vm1601, %v2896, %v2895
    %v2898 = vrot.slane %v2624, 3
    %v2899 = vsel %vm1604, %v2898, %v2897
    %v2900 = vrot.slane %v2625, 2
    %v2901 = vsel %vm1607, %v2900, %v2899
    %v2902 = vrot.slane %v2626, 1
    %v2903 = vsel %vm1610, %v2902, %v2901
    %v2904 = vpack.c.b16 %v2903, %v2903
    %v2938 = vunpack.c.l.b16 %v2547
    %v2939 = vunpack.c.h.b16 %v2547
    %v2940 = vunpack.c.l.b16 %v2548
    %v2941 = vunpack.c.h.b16 %v2548
    %v2942 = vunpack.c.l.b16 %v2549
    %v2943 = vunpack.c.h.b16 %v2549
    %v2944 = vunpack.c.l.b16 %v2550
    %v2945 = vunpack.c.h.b16 %v2550
    %v2946 = vunpack.c.l.b16 %v2551
    %v2947 = vunpack.c.h.b16 %v2551
    %v2948 = vunpack.c.l.b16 %v2552
    %v2949 = vunpack.c.h.b16 %v2552
    %v2950 = vunpack.c.l.b16 %v2553
    %v2951 = vunpack.c.h.b16 %v2553
    %v2952 = vunpack.c.l.b16 %v2554
    %v2953 = vunpack.c.h.b16 %v2554
    %v2954 = vunpack.c.l.b16 %v2555
    %v2955 = vunpack.c.h.b16 %v2555
    %v2956 = vunpack.c.l.b16 %v2556
    %v2957 = vunpack.c.h.b16 %v2556
    %v2958 = vunpack.c.l.b16 %v2557
    %v2959 = vunpack.c.h.b16 %v2557
    %v2960 = vunpack.c.l.b16 %v2558
    %v2961 = vunpack.c.h.b16 %v2558
    %v2962 = vunpack.c.l.b16 %v2559
    %v2963 = vunpack.c.h.b16 %v2559
    %v2964 = vunpack.c.l.b16 %v2560
    %v2965 = vunpack.c.h.b16 %v2560
    %v2966 = vunpack.c.l.b16 %v2561
    %v2967 = vunpack.c.h.b16 %v2561
    %v2968 = vunpack.c.l.b16 %v2562
    %v2969 = vunpack.c.h.b16 %v2562
    %v2970 = vunpack.c.l.b16 %v2563
    %v2971 = vunpack.c.h.b16 %v2563
    %v2972 = vunpack.c.l.b16 %v2564
    %v2973 = vunpack.c.h.b16 %v2564
    %v2974 = vunpack.c.l.b16 %v2565
    %v2975 = vunpack.c.h.b16 %v2565
    %v2976 = vunpack.c.l.b16 %v2566
    %v2977 = vunpack.c.h.b16 %v2566
    %v2978 = vunpack.c.l.b16 %v2567
    %v2979 = vunpack.c.h.b16 %v2567
    %v2980 = vunpack.c.l.b16 %v2568
    %v2981 = vunpack.c.h.b16 %v2568
    %v2982 = vunpack.c.l.b16 %v2569
    %v2983 = vunpack.c.h.b16 %v2569
    %v2984 = vunpack.c.l.b16 %v2570
    %v2985 = vunpack.c.h.b16 %v2570
    %v2986 = vunpack.c.l.b16 %v2571
    %v2987 = vunpack.c.h.b16 %v2571
    %v2988 = vunpack.c.l.b16 %v2572
    %v2989 = vunpack.c.h.b16 %v2572
    %v2990 = vunpack.c.l.b16 %v2573
    %v2991 = vunpack.c.h.b16 %v2573
    %v2992 = vunpack.c.l.b16 %v2574
    %v2993 = vunpack.c.h.b16 %v2574
    %v2994 = vunpack.c.l.b16 %v2575
    %v2995 = vunpack.c.h.b16 %v2575
    %v2996 = vunpack.c.l.b16 %v2576
    %v2997 = vunpack.c.h.b16 %v2576
    %v2998 = vunpack.c.l.b16 %v2577
    %v2999 = vunpack.c.h.b16 %v2577
    %v3000 = vunpack.c.l.b16 %v2578
    %v3001 = vunpack.c.h.b16 %v2578
    %v3002 = vpack.c.b16 %v2942, %v2938
    %v3003 = vpack.c.b16 %v2943, %v2939
    %v3004 = vpack.c.b16 %v2944, %v2940
    %v3005 = vpack.c.b16 %v2945, %v2941
    %v3006 = vpack.c.b16 %v2950, %v2946
    %v3007 = vpack.c.b16 %v2951, %v2947
    %v3008 = vpack.c.b16 %v2952, %v2948
    %v3009 = vpack.c.b16 %v2953, %v2949
    %v3010 = vpack.c.b16 %v2958, %v2954
    %v3011 = vpack.c.b16 %v2959, %v2955
    %v3012 = vpack.c.b16 %v2960, %v2956
    %v3013 = vpack.c.b16 %v2961, %v2957
    %v3014 = vpack.c.b16 %v2966, %v2962
    %v3015 = vpack.c.b16 %v2967, %v2963
    %v3016 = vpack.c.b16 %v2968, %v2964
    %v3017 = vpack.c.b16 %v2969, %v2965
    %v3018 = vpack.c.b16 %v2974, %v2970
    %v3019 = vpack.c.b16 %v2975, %v2971
    %v3020 = vpack.c.b16 %v2976, %v2972
    %v3021 = vpack.c.b16 %v2977, %v2973
    %v3022 = vpack.c.b16 %v2982, %v2978
    %v3023 = vpack.c.b16 %v2983, %v2979
    %v3024 = vpack.c.b16 %v2984, %v2980
    %v3025 = vpack.c.b16 %v2985, %v2981
    %v3026 = vpack.c.b16 %v2990, %v2986
    %v3027 = vpack.c.b16 %v2991, %v2987
    %v3028 = vpack.c.b16 %v2992, %v2988
    %v3029 = vpack.c.b16 %v2993, %v2989
    %v3030 = vpack.c.b16 %v2998, %v2994
    %v3031 = vpack.c.b16 %v2999, %v2995
    %v3032 = vpack.c.b16 %v3000, %v2996
    %v3033 = vpack.c.b16 %v3001, %v2997
    %3066 = vmatprep.subr.bf16.mxu0 %v3003
    %3067 = vmatpush1.bf16.msra.mxu0 %v3002
    %3068 = vmatprep.subr.bf16.mxu0 %v3007
    %3069 = vmatpush1.bf16.msra.mxu0 %v3006
    %3070 = vmatprep.subr.bf16.mxu0 %v3011
    %3071 = vmatpush1.bf16.msra.mxu0 %v3010
    %3072 = vmatprep.subr.bf16.mxu0 %v3015
    %3073 = vmatpush1.bf16.msra.mxu0 %v3014
    %3074 = vmatprep.subr.bf16.mxu0 %v3019
    %3075 = vmatpush1.bf16.msra.mxu0 %v3018
    %3076 = vmatprep.subr.bf16.mxu0 %v3023
    %3077 = vmatpush1.bf16.msra.mxu0 %v3022
    %3078 = vmatprep.subr.bf16.mxu0 %v3027
    %3079 = vmatpush1.bf16.msra.mxu0 %v3026
    %3080 = vmatprep.subr.bf16.mxu0 %v3031
    %3081 = vmatpush1.bf16.msra.mxu0 %v3030
    %3082 = vmatprep.subr.bf16.mxu0 0
    %3083 = vmatpush1.bf16.msra.mxu0 0
    %3084 = vmatprep.subr.bf16.mxu0 0
    %3085 = vmatpush1.bf16.msra.mxu0 0
    %3086 = vmatprep.subr.bf16.mxu0 0
    %3087 = vmatpush1.bf16.msra.mxu0 0
    %3088 = vmatprep.subr.bf16.mxu0 0
    %3089 = vmatpush1.bf16.msra.mxu0 0
    %3090 = vmatprep.subr.bf16.mxu0 0
    %3091 = vmatpush1.bf16.msra.mxu0 0
    %3092 = vmatprep.subr.bf16.mxu0 0
    %3093 = vmatpush1.bf16.msra.mxu0 0
    %3094 = vmatprep.subr.bf16.mxu0 0
    %3095 = vmatpush1.bf16.msra.mxu0 0
    %3096 = vmatprep.subr.bf16.mxu0 0
    %3097 = vmatpush1.bf16.msra.mxu0 0
    %3098 = vmatprep.mubr.bf16.mxu0 0
    %3099 = vmatmul.mubr.bf16.gmra.mrb[0].mxu0 %v2904
    %v3100 = vpop.f32.mrb[0].mxu0
    %v3101 = vadd.f32 %v2839, %v3100
    %v3102 = vpop.f32.mrb[0].mxu0
    %v3103 = vadd.f32 %v2841, %v3102
    %v3104 = vpop.f32.mrb[0].mxu0
    %v3105 = vpop.f32.mrb[0].mxu0
    %3106 = vdwg.mxu0
    %3107 = vmatprep.subr.bf16.mxu0 %v3005
    %3108 = vmatpush1.bf16.msra.mxu0 %v3004
    %3109 = vmatprep.subr.bf16.mxu0 %v3009
    %3110 = vmatpush1.bf16.msra.mxu0 %v3008
    %3111 = vmatprep.subr.bf16.mxu0 %v3013
    %3112 = vmatpush1.bf16.msra.mxu0 %v3012
    %3113 = vmatprep.subr.bf16.mxu0 %v3017
    %3114 = vmatpush1.bf16.msra.mxu0 %v3016
    %3115 = vmatprep.subr.bf16.mxu0 %v3021
    %3116 = vmatpush1.bf16.msra.mxu0 %v3020
    %3117 = vmatprep.subr.bf16.mxu0 %v3025
    %3118 = vmatpush1.bf16.msra.mxu0 %v3024
    %3119 = vmatprep.subr.bf16.mxu0 %v3029
    %3120 = vmatpush1.bf16.msra.mxu0 %v3028
    %3121 = vmatprep.subr.bf16.mxu0 %v3033
    %3122 = vmatpush1.bf16.msra.mxu0 %v3032
    %3123 = vmatprep.subr.bf16.mxu0 0
    %3124 = vmatpush1.bf16.msra.mxu0 0
    %3125 = vmatprep.subr.bf16.mxu0 0
    %3126 = vmatpush1.bf16.msra.mxu0 0
    %3127 = vmatprep.subr.bf16.mxu0 0
    %3128 = vmatpush1.bf16.msra.mxu0 0
    %3129 = vmatprep.subr.bf16.mxu0 0
    %3130 = vmatpush1.bf16.msra.mxu0 0
    %3131 = vmatprep.subr.bf16.mxu0 0
    %3132 = vmatpush1.bf16.msra.mxu0 0
    %3133 = vmatprep.subr.bf16.mxu0 0
    %3134 = vmatpush1.bf16.msra.mxu0 0
    %3135 = vmatprep.subr.bf16.mxu0 0
    %3136 = vmatpush1.bf16.msra.mxu0 0
    %3137 = vmatprep.subr.bf16.mxu0 0
    %3138 = vmatpush1.bf16.msra.mxu0 0
    %3139 = vmatprep.mubr.bf16.mxu0 0
    %3140 = vmatmul.mubr.bf16.gmra.mrb[0].mxu0 %v2904
    %v3141 = vpop.f32.mrb[0].mxu0
    %v3142 = vadd.f32 %v2880, %v3141
    %v3143 = vpop.f32.mrb[0].mxu0
    %v3144 = vadd.f32 %v2882, %v3143
    %v3145 = vpop.f32.mrb[0].mxu0
    %v3146 = vpop.f32.mrb[0].mxu0
    %3147 = vdwg.mxu0
    %s3148 = scalar_lea.vmem [#allocation11], 512
    %v3149 = vld [vmem:[%s3148] sm:$0xff]
    %v3150 = vld [vmem:[%s3148 + $0x8] sm:$0xff]
    %v3151 = vld [vmem:[%s3148 + $0x10] sm:$0xff]
    %v3152 = vld [vmem:[%s3148 + $0x18] sm:$0xff]
    %v3153 = vld [vmem:[%s3148 + $0x20] sm:$0xff]
    %v3154 = vld [vmem:[%s3148 + $0x28] sm:$0xff]
    %v3155 = vld [vmem:[%s3148 + $0x30] sm:$0xff]
    %v3156 = vld [vmem:[%s3148 + $0x38] sm:$0xff]
    %v3157 = vld [vmem:[%s3148 + $0x40] sm:$0xff]
    %v3158 = vld [vmem:[%s3148 + $0x48] sm:$0xff]
    %v3159 = vld [vmem:[%s3148 + $0x50] sm:$0xff]
    %v3160 = vld [vmem:[%s3148 + $0x58] sm:$0xff]
    %v3161 = vld [vmem:[%s3148 + $0x60] sm:$0xff]
    %v3162 = vld [vmem:[%s3148 + $0x68] sm:$0xff]
    %v3163 = vld [vmem:[%s3148 + $0x70] sm:$0xff]
    %v3164 = vld [vmem:[%s3148 + $0x78] sm:$0xff]
    %v3165 = vld [vmem:[%s3148 + $0x80] sm:$0xff]
    %v3166 = vld [vmem:[%s3148 + $0x88] sm:$0xff]
    %v3167 = vld [vmem:[%s3148 + $0x90] sm:$0xff]
    %v3168 = vld [vmem:[%s3148 + $0x98] sm:$0xff]
    %v3169 = vld [vmem:[%s3148 + $0xa0] sm:$0xff]
    %v3170 = vld [vmem:[%s3148 + $0xa8] sm:$0xff]
    %v3171 = vld [vmem:[%s3148 + $0xb0] sm:$0xff]
    %v3172 = vld [vmem:[%s3148 + $0xb8] sm:$0xff]
    %v3173 = vld [vmem:[%s3148 + $0xc0] sm:$0xff]
    %v3174 = vld [vmem:[%s3148 + $0xc8] sm:$0xff]
    %v3175 = vld [vmem:[%s3148 + $0xd0] sm:$0xff]
    %v3176 = vld [vmem:[%s3148 + $0xd8] sm:$0xff]
    %v3177 = vld [vmem:[%s3148 + $0xe0] sm:$0xff]
    %v3178 = vld [vmem:[%s3148 + $0xe8] sm:$0xff]
    %v3179 = vld [vmem:[%s3148 + $0xf0] sm:$0xff]
    %v3180 = vld [vmem:[%s3148 + $0xf8] sm:$0xff]
    %v3183 = vunpack.c.l.b16 %v2536
    %v3184 = vunpack.c.l.b16 %v2544
    %v3185 = vrot.slane %v2622, 7
    %v3186 = vsel %vm1613, %v3185, %v2621
    %v3187 = vrot.slane %v2623, 6
    %v3188 = vsel %vm1595, %v3187, %v3186
    %v3189 = vrot.slane %v3183, 5
    %v3190 = vsel %vm1598, %v3189, %v3188
    %v3191 = vrot.slane %v2625, 4
    %v3192 = vsel %vm1601, %v3191, %v3190
    %v3193 = vrot.slane %v2626, 3
    %v3194 = vsel %vm1604, %v3193, %v3192
    %v3195 = vrot.slane %v2627, 2
    %v3196 = vsel %vm1607, %v3195, %v3194
    %v3197 = vrot.slane %v3184, 1
    %v3198 = vsel %vm1610, %v3197, %v3196
    %v3199 = vpack.c.b16 %v3198, %v3198
    %v3233 = vunpack.c.l.b16 %v3149
    %v3234 = vunpack.c.h.b16 %v3149
    %v3235 = vunpack.c.l.b16 %v3150
    %v3236 = vunpack.c.h.b16 %v3150
    %v3237 = vunpack.c.l.b16 %v3151
    %v3238 = vunpack.c.h.b16 %v3151
    %v3239 = vunpack.c.l.b16 %v3152
    %v3240 = vunpack.c.h.b16 %v3152
    %v3241 = vunpack.c.l.b16 %v3153
    %v3242 = vunpack.c.h.b16 %v3153
    %v3243 = vunpack.c.l.b16 %v3154
    %v3244 = vunpack.c.h.b16 %v3154
    %v3245 = vunpack.c.l.b16 %v3155
    %v3246 = vunpack.c.h.b16 %v3155
    %v3247 = vunpack.c.l.b16 %v3156
    %v3248 = vunpack.c.h.b16 %v3156
    %v3249 = vunpack.c.l.b16 %v3157
    %v3250 = vunpack.c.h.b16 %v3157
    %v3251 = vunpack.c.l.b16 %v3158
    %v3252 = vunpack.c.h.b16 %v3158
    %v3253 = vunpack.c.l.b16 %v3159
    %v3254 = vunpack.c.h.b16 %v3159
    %v3255 = vunpack.c.l.b16 %v3160
    %v3256 = vunpack.c.h.b16 %v3160
    %v3257 = vunpack.c.l.b16 %v3161
    %v3258 = vunpack.c.h.b16 %v3161
    %v3259 = vunpack.c.l.b16 %v3162
    %v3260 = vunpack.c.h.b16 %v3162
    %v3261 = vunpack.c.l.b16 %v3163
    %v3262 = vunpack.c.h.b16 %v3163
    %v3263 = vunpack.c.l.b16 %v3164
    %v3264 = vunpack.c.h.b16 %v3164
    %v3265 = vunpack.c.l.b16 %v3165
    %v3266 = vunpack.c.h.b16 %v3165
    %v3267 = vunpack.c.l.b16 %v3166
    %v3268 = vunpack.c.h.b16 %v3166
    %v3269 = vunpack.c.l.b16 %v3167
    %v3270 = vunpack.c.h.b16 %v3167
    %v3271 = vunpack.c.l.b16 %v3168
    %v3272 = vunpack.c.h.b16 %v3168
    %v3273 = vunpack.c.l.b16 %v3169
    %v3274 = vunpack.c.h.b16 %v3169
    %v3275 = vunpack.c.l.b16 %v3170
    %v3276 = vunpack.c.h.b16 %v3170
    %v3277 = vunpack.c.l.b16 %v3171
    %v3278 = vunpack.c.h.b16 %v3171
    %v3279 = vunpack.c.l.b16 %v3172
    %v3280 = vunpack.c.h.b16 %v3172
    %v3281 = vunpack.c.l.b16 %v3173
    %v3282 = vunpack.c.h.b16 %v3173
    %v3283 = vunpack.c.l.b16 %v3174
    %v3284 = vunpack.c.h.b16 %v3174
    %v3285 = vunpack.c.l.b16 %v3175
    %v3286 = vunpack.c.h.b16 %v3175
    %v3287 = vunpack.c.l.b16 %v3176
    %v3288 = vunpack.c.h.b16 %v3176
    %v3289 = vunpack.c.l.b16 %v3177
    %v3290 = vunpack.c.h.b16 %v3177
    %v3291 = vunpack.c.l.b16 %v3178
    %v3292 = vunpack.c.h.b16 %v3178
    %v3293 = vunpack.c.l.b16 %v3179
    %v3294 = vunpack.c.h.b16 %v3179
    %v3295 = vunpack.c.l.b16 %v3180
    %v3296 = vunpack.c.h.b16 %v3180
    %v3297 = vpack.c.b16 %v3237, %v3233
    %v3298 = vpack.c.b16 %v3238, %v3234
    %v3299 = vpack.c.b16 %v3239, %v3235
    %v3300 = vpack.c.b16 %v3240, %v3236
    %v3301 = vpack.c.b16 %v3245, %v3241
    %v3302 = vpack.c.b16 %v3246, %v3242
    %v3303 = vpack.c.b16 %v3247, %v3243
    %v3304 = vpack.c.b16 %v3248, %v3244
    %v3305 = vpack.c.b16 %v3253, %v3249
    %v3306 = vpack.c.b16 %v3254, %v3250
    %v3307 = vpack.c.b16 %v3255, %v3251
    %v3308 = vpack.c.b16 %v3256, %v3252
    %v3309 = vpack.c.b16 %v3261, %v3257
    %v3310 = vpack.c.b16 %v3262, %v3258
    %v3311 = vpack.c.b16 %v3263, %v3259
    %v3312 = vpack.c.b16 %v3264, %v3260
    %v3313 = vpack.c.b16 %v3269, %v3265
    %v3314 = vpack.c.b16 %v3270, %v3266
    %v3315 = vpack.c.b16 %v3271, %v3267
    %v3316 = vpack.c.b16 %v3272, %v3268
    %v3317 = vpack.c.b16 %v3277, %v3273
    %v3318 = vpack.c.b16 %v3278, %v3274
    %v3319 = vpack.c.b16 %v3279, %v3275
    %v3320 = vpack.c.b16 %v3280, %v3276
    %v3321 = vpack.c.b16 %v3285, %v3281
    %v3322 = vpack.c.b16 %v3286, %v3282
    %v3323 = vpack.c.b16 %v3287, %v3283
    %v3324 = vpack.c.b16 %v3288, %v3284
    %v3325 = vpack.c.b16 %v3293, %v3289
    %v3326 = vpack.c.b16 %v3294, %v3290
    %v3327 = vpack.c.b16 %v3295, %v3291
    %v3328 = vpack.c.b16 %v3296, %v3292
    %3361 = vmatprep.subr.bf16.mxu0 %v3298
    %3362 = vmatpush1.bf16.msra.mxu0 %v3297
    %3363 = vmatprep.subr.bf16.mxu0 %v3302
    %3364 = vmatpush1.bf16.msra.mxu0 %v3301
    %3365 = vmatprep.subr.bf16.mxu0 %v3306
    %3366 = vmatpush1.bf16.msra.mxu0 %v3305
    %3367 = vmatprep.subr.bf16.mxu0 %v3310
    %3368 = vmatpush1.bf16.msra.mxu0 %v3309
    %3369 = vmatprep.subr.bf16.mxu0 %v3314
    %3370 = vmatpush1.bf16.msra.mxu0 %v3313
    %3371 = vmatprep.subr.bf16.mxu0 %v3318
    %3372 = vmatpush1.bf16.msra.mxu0 %v3317
    %3373 = vmatprep.subr.bf16.mxu0 %v3322
    %3374 = vmatpush1.bf16.msra.mxu0 %v3321
    %3375 = vmatprep.subr.bf16.mxu0 %v3326
    %3376 = vmatpush1.bf16.msra.mxu0 %v3325
    %3377 = vmatprep.subr.bf16.mxu0 0
    %3378 = vmatpush1.bf16.msra.mxu0 0
    %3379 = vmatprep.subr.bf16.mxu0 0
    %3380 = vmatpush1.bf16.msra.mxu0 0
    %3381 = vmatprep.subr.bf16.mxu0 0
    %3382 = vmatpush1.bf16.msra.mxu0 0
    %3383 = vmatprep.subr.bf16.mxu0 0
    %3384 = vmatpush1.bf16.msra.mxu0 0
    %3385 = vmatprep.subr.bf16.mxu0 0
    %3386 = vmatpush1.bf16.msra.mxu0 0
    %3387 = vmatprep.subr.bf16.mxu0 0
    %3388 = vmatpush1.bf16.msra.mxu0 0
    %3389 = vmatprep.subr.bf16.mxu0 0
    %3390 = vmatpush1.bf16.msra.mxu0 0
    %3391 = vmatprep.subr.bf16.mxu0 0
    %3392 = vmatpush1.bf16.msra.mxu0 0
    %3393 = vmatprep.mubr.bf16.mxu0 0
    %3394 = vmatmul.mubr.bf16.gmra.mrb[0].mxu0 %v3199
    %v3395 = vpop.f32.mrb[0].mxu0
    %v3396 = vadd.f32 0.0, %v3395
    %v3397 = vpop.f32.mrb[0].mxu0
    %v3398 = vadd.f32 0.0, %v3397
    %v3399 = vpop.f32.mrb[0].mxu0
    %v3400 = vpop.f32.mrb[0].mxu0
    %3401 = vdwg.mxu0
    %3402 = vmatprep.subr.bf16.mxu0 %v3300
    %3403 = vmatpush1.bf16.msra.mxu0 %v3299
    %3404 = vmatprep.subr.bf16.mxu0 %v3304
    %3405 = vmatpush1.bf16.msra.mxu0 %v3303
    %3406 = vmatprep.subr.bf16.mxu0 %v3308
    %3407 = vmatpush1.bf16.msra.mxu0 %v3307
    %3408 = vmatprep.subr.bf16.mxu0 %v3312
    %3409 = vmatpush1.bf16.msra.mxu0 %v3311
    %3410 = vmatprep.subr.bf16.mxu0 %v3316
    %3411 = vmatpush1.bf16.msra.mxu0 %v3315
    %3412 = vmatprep.subr.bf16.mxu0 %v3320
    %3413 = vmatpush1.bf16.msra.mxu0 %v3319
    %3414 = vmatprep.subr.bf16.mxu0 %v3324
    %3415 = vmatpush1.bf16.msra.mxu0 %v3323
    %3416 = vmatprep.subr.bf16.mxu0 %v3328
    %3417 = vmatpush1.bf16.msra.mxu0 %v3327
    %3418 = vmatprep.subr.bf16.mxu0 0
    %3419 = vmatpush1.bf16.msra.mxu0 0
    %3420 = vmatprep.subr.bf16.mxu0 0
    %3421 = vmatpush1.bf16.msra.mxu0 0
    %3422 = vmatprep.subr.bf16.mxu0 0
    %3423 = vmatpush1.bf16.msra.mxu0 0
    %3424 = vmatprep.subr.bf16.mxu0 0
    %3425 = vmatpush1.bf16.msra.mxu0 0
    %3426 = vmatprep.subr.bf16.mxu0 0
    %3427 = vmatpush1.bf16.msra.mxu0 0
    %3428 = vmatprep.subr.bf16.mxu0 0
    %3429 = vmatpush1.bf16.msra.mxu0 0
    %3430 = vmatprep.subr.bf16.mxu0 0
    %3431 = vmatpush1.bf16.msra.mxu0 0
    %3432 = vmatprep.subr.bf16.mxu0 0
    %3433 = vmatpush1.bf16.msra.mxu0 0
    %3434 = vmatprep.mubr.bf16.mxu0 0
    %3435 = vmatmul.mubr.bf16.gmra.mrb[0].mxu0 %v3199
    %v3436 = vpop.f32.mrb[0].mxu0
    %v3437 = vadd.f32 0.0, %v3436
    %v3438 = vpop.f32.mrb[0].mxu0
    %v3439 = vadd.f32 0.0, %v3438
    %v3440 = vpop.f32.mrb[0].mxu0
    %v3441 = vpop.f32.mrb[0].mxu0
    %3442 = vdwg.mxu0
    %v3443 = vadd.f32 %v3101, %v3396
    %v3444 = vadd.f32 %v3103, %v3398
    %v3445 = vadd.f32 %v3142, %v3437
    %v3446 = vadd.f32 %v3144, %v3439
    %s3447 = scalar_lea.vmem [#allocation11], 768
    %v3448 = vld [vmem:[%s3447] sm:$0xff]
    %v3449 = vld [vmem:[%s3447 + $0x8] sm:$0xff]
    %v3450 = vld [vmem:[%s3447 + $0x10] sm:$0xff]
    %v3451 = vld [vmem:[%s3447 + $0x18] sm:$0xff]
    %v3452 = vld [vmem:[%s3447 + $0x20] sm:$0xff]
    %v3453 = vld [vmem:[%s3447 + $0x28] sm:$0xff]
    %v3454 = vld [vmem:[%s3447 + $0x30] sm:$0xff]
    %v3455 = vld [vmem:[%s3447 + $0x38] sm:$0xff]
    %v3456 = vld [vmem:[%s3447 + $0x40] sm:$0xff]
    %v3457 = vld [vmem:[%s3447 + $0x48] sm:$0xff]
    %v3458 = vld [vmem:[%s3447 + $0x50] sm:$0xff]
    %v3459 = vld [vmem:[%s3447 + $0x58] sm:$0xff]
    %v3460 = vld [vmem:[%s3447 + $0x60] sm:$0xff]
    %v3461 = vld [vmem:[%s3447 + $0x68] sm:$0xff]
    %v3462 = vld [vmem:[%s3447 + $0x70] sm:$0xff]
    %v3463 = vld [vmem:[%s3447 + $0x78] sm:$0xff]
    %v3464 = vld [vmem:[%s3447 + $0x80] sm:$0xff]
    %v3465 = vld [vmem:[%s3447 + $0x88] sm:$0xff]
    %v3466 = vld [vmem:[%s3447 + $0x90] sm:$0xff]
    %v3467 = vld [vmem:[%s3447 + $0x98] sm:$0xff]
    %v3468 = vld [vmem:[%s3447 + $0xa0] sm:$0xff]
    %v3469 = vld [vmem:[%s3447 + $0xa8] sm:$0xff]
    %v3470 = vld [vmem:[%s3447 + $0xb0] sm:$0xff]
    %v3471 = vld [vmem:[%s3447 + $0xb8] sm:$0xff]
    %v3472 = vld [vmem:[%s3447 + $0xc0] sm:$0xff]
    %v3473 = vld [vmem:[%s3447 + $0xc8] sm:$0xff]
    %v3474 = vld [vmem:[%s3447 + $0xd0] sm:$0xff]
    %v3475 = vld [vmem:[%s3447 + $0xd8] sm:$0xff]
    %v3476 = vld [vmem:[%s3447 + $0xe0] sm:$0xff]
    %v3477 = vld [vmem:[%s3447 + $0xe8] sm:$0xff]
    %v3478 = vld [vmem:[%s3447 + $0xf0] sm:$0xff]
    %v3479 = vld [vmem:[%s3447 + $0xf8] sm:$0xff]
    %v3482 = vunpack.c.l.b16 %v2537
    %v3483 = vunpack.c.l.b16 %v2545
    %v3484 = vrot.slane %v2623, 7
    %v3485 = vsel %vm1613, %v3484, %v2622
    %v3486 = vrot.slane %v3183, 6
    %v3487 = vsel %vm1595, %v3486, %v3485
    %v3488 = vrot.slane %v3482, 5
    %v3489 = vsel %vm1598, %v3488, %v3487
    %v3490 = vrot.slane %v2626, 4
    %v3491 = vsel %vm1601, %v3490, %v3489
    %v3492 = vrot.slane %v2627, 3
    %v3493 = vsel %vm1604, %v3492, %v3491
    %v3494 = vrot.slane %v3184, 2
    %v3495 = vsel %vm1607, %v3494, %v3493
    %v3496 = vrot.slane %v3483, 1
    %v3497 = vsel %vm1610, %v3496, %v3495
    %v3498 = vpack.c.b16 %v3497, %v3497
    %v3532 = vunpack.c.l.b16 %v3448
    %v3533 = vunpack.c.h.b16 %v3448
    %v3534 = vunpack.c.l.b16 %v3449
    %v3535 = vunpack.c.h.b16 %v3449
    %v3536 = vunpack.c.l.b16 %v3450
    %v3537 = vunpack.c.h.b16 %v3450
    %v3538 = vunpack.c.l.b16 %v3451
    %v3539 = vunpack.c.h.b16 %v3451
    %v3540 = vunpack.c.l.b16 %v3452
    %v3541 = vunpack.c.h.b16 %v3452
    %v3542 = vunpack.c.l.b16 %v3453
    %v3543 = vunpack.c.h.b16 %v3453
    %v3544 = vunpack.c.l.b16 %v3454
    %v3545 = vunpack.c.h.b16 %v3454
    %v3546 = vunpack.c.l.b16 %v3455
    %v3547 = vunpack.c.h.b16 %v3455
    %v3548 = vunpack.c.l.b16 %v3456
    %v3549 = vunpack.c.h.b16 %v3456
    %v3550 = vunpack.c.l.b16 %v3457
    %v3551 = vunpack.c.h.b16 %v3457
    %v3552 = vunpack.c.l.b16 %v3458
    %v3553 = vunpack.c.h.b16 %v3458
    %v3554 = vunpack.c.l.b16 %v3459
    %v3555 = vunpack.c.h.b16 %v3459
    %v3556 = vunpack.c.l.b16 %v3460
    %v3557 = vunpack.c.h.b16 %v3460
    %v3558 = vunpack.c.l.b16 %v3461
    %v3559 = vunpack.c.h.b16 %v3461
    %v3560 = vunpack.c.l.b16 %v3462
    %v3561 = vunpack.c.h.b16 %v3462
    %v3562 = vunpack.c.l.b16 %v3463
    %v3563 = vunpack.c.h.b16 %v3463
    %v3564 = vunpack.c.l.b16 %v3464
    %v3565 = vunpack.c.h.b16 %v3464
    %v3566 = vunpack.c.l.b16 %v3465
    %v3567 = vunpack.c.h.b16 %v3465
    %v3568 = vunpack.c.l.b16 %v3466
    %v3569 = vunpack.c.h.b16 %v3466
    %v3570 = vunpack.c.l.b16 %v3467
    %v3571 = vunpack.c.h.b16 %v3467
    %v3572 = vunpack.c.l.b16 %v3468
    %v3573 = vunpack.c.h.b16 %v3468
    %v3574 = vunpack.c.l.b16 %v3469
    %v3575 = vunpack.c.h.b16 %v3469
    %v3576 = vunpack.c.l.b16 %v3470
    %v3577 = vunpack.c.h.b16 %v3470
    %v3578 = vunpack.c.l.b16 %v3471
    %v3579 = vunpack.c.h.b16 %v3471
    %v3580 = vunpack.c.l.b16 %v3472
    %v3581 = vunpack.c.h.b16 %v3472
    %v3582 = vunpack.c.l.b16 %v3473
    %v3583 = vunpack.c.h.b16 %v3473
    %v3584 = vunpack.c.l.b16 %v3474
    %v3585 = vunpack.c.h.b16 %v3474
    %v3586 = vunpack.c.l.b16 %v3475
    %v3587 = vunpack.c.h.b16 %v3475
    %v3588 = vunpack.c.l.b16 %v3476
    %v3589 = vunpack.c.h.b16 %v3476
    %v3590 = vunpack.c.l.b16 %v3477
    %v3591 = vunpack.c.h.b16 %v3477
    %v3592 = vunpack.c.l.b16 %v3478
    %v3593 = vunpack.c.h.b16 %v3478
    %v3594 = vunpack.c.l.b16 %v3479
    %v3595 = vunpack.c.h.b16 %v3479
    %v3596 = vpack.c.b16 %v3536, %v3532
    %v3597 = vpack.c.b16 %v3537, %v3533
    %v3598 = vpack.c.b16 %v3538, %v3534
    %v3599 = vpack.c.b16 %v3539, %v3535
    %v3600 = vpack.c.b16 %v3544, %v3540
    %v3601 = vpack.c.b16 %v3545, %v3541
    %v3602 = vpack.c.b16 %v3546, %v3542
    %v3603 = vpack.c.b16 %v3547, %v3543
    %v3604 = vpack.c.b16 %v3552, %v3548
    %v3605 = vpack.c.b16 %v3553, %v3549
    %v3606 = vpack.c.b16 %v3554, %v3550
    %v3607 = vpack.c.b16 %v3555, %v3551
    %v3608 = vpack.c.b16 %v3560, %v3556
    %v3609 = vpack.c.b16 %v3561, %v3557
    %v3610 = vpack.c.b16 %v3562, %v3558
    %v3611 = vpack.c.b16 %v3563, %v3559
    %v3612 = vpack.c.b16 %v3568, %v3564
    %v3613 = vpack.c.b16 %v3569, %v3565
    %v3614 = vpack.c.b16 %v3570, %v3566
    %v3615 = vpack.c.b16 %v3571, %v3567
    %v3616 = vpack.c.b16 %v3576, %v3572
    %v3617 = vpack.c.b16 %v3577, %v3573
    %v3618 = vpack.c.b16 %v3578, %v3574
    %v3619 = vpack.c.b16 %v3579, %v3575
    %v3620 = vpack.c.b16 %v3584, %v3580
    %v3621 = vpack.c.b16 %v3585, %v3581
    %v3622 = vpack.c.b16 %v3586, %v3582
    %v3623 = vpack.c.b16 %v3587, %v3583
    %v3624 = vpack.c.b16 %v3592, %v3588
    %v3625 = vpack.c.b16 %v3593, %v3589
    %v3626 = vpack.c.b16 %v3594, %v3590
    %v3627 = vpack.c.b16 %v3595, %v3591
    %3660 = vmatprep.subr.bf16.mxu0 %v3597
    %3661 = vmatpush1.bf16.msra.mxu0 %v3596
    %3662 = vmatprep.subr.bf16.mxu0 %v3601
    %3663 = vmatpush1.bf16.msra.mxu0 %v3600
    %3664 = vmatprep.subr.bf16.mxu0 %v3605
    %3665 = vmatpush1.bf16.msra.mxu0 %v3604
    %3666 = vmatprep.subr.bf16.mxu0 %v3609
    %3667 = vmatpush1.bf16.msra.mxu0 %v3608
    %3668 = vmatprep.subr.bf16.mxu0 %v3613
    %3669 = vmatpush1.bf16.msra.mxu0 %v3612
    %3670 = vmatprep.subr.bf16.mxu0 %v3617
    %3671 = vmatpush1.bf16.msra.mxu0 %v3616
    %3672 = vmatprep.subr.bf16.mxu0 %v3621
    %3673 = vmatpush1.bf16.msra.mxu0 %v3620
    %3674 = vmatprep.subr.bf16.mxu0 %v3625
    %3675 = vmatpush1.bf16.msra.mxu0 %v3624
    %3676 = vmatprep.subr.bf16.mxu0 0
    %3677 = vmatpush1.bf16.msra.mxu0 0
    %3678 = vmatprep.subr.bf16.mxu0 0
    %3679 = vmatpush1.bf16.msra.mxu0 0
    %3680 = vmatprep.subr.bf16.mxu0 0
    %3681 = vmatpush1.bf16.msra.mxu0 0
    %3682 = vmatprep.subr.bf16.mxu0 0
    %3683 = vmatpush1.bf16.msra.mxu0 0
    %3684 = vmatprep.subr.bf16.mxu0 0
    %3685 = vmatpush1.bf16.msra.mxu0 0
    %3686 = vmatprep.subr.bf16.mxu0 0
    %3687 = vmatpush1.bf16.msra.mxu0 0
    %3688 = vmatprep.subr.bf16.mxu0 0
    %3689 = vmatpush1.bf16.msra.mxu0 0
    %3690 = vmatprep.subr.bf16.mxu0 0
    %3691 = vmatpush1.bf16.msra.mxu0 0
    %3692 = vmatprep.mubr.bf16.mxu0 0
    %3693 = vmatmul.mubr.bf16.gmra.mrb[0].mxu0 %v3498
    %v3694 = vpop.f32.mrb[0].mxu0
    %v3695 = vadd.f32 0.0, %v3694
    %v3696 = vpop.f32.mrb[0].mxu0
    %v3697 = vadd.f32 0.0, %v3696
    %v3698 = vpop.f32.mrb[0].mxu0
    %v3699 = vpop.f32.mrb[0].mxu0
    %3700 = vdwg.mxu0
    %3701 = vmatprep.subr.bf16.mxu0 %v3599
    %3702 = vmatpush1.bf16.msra.mxu0 %v3598
    %3703 = vmatprep.subr.bf16.mxu0 %v3603
    %3704 = vmatpush1.bf16.msra.mxu0 %v3602
    %3705 = vmatprep.subr.bf16.mxu0 %v3607
    %3706 = vmatpush1.bf16.msra.mxu0 %v3606
    %3707 = vmatprep.subr.bf16.mxu0 %v3611
    %3708 = vmatpush1.bf16.msra.mxu0 %v3610
    %3709 = vmatprep.subr.bf16.mxu0 %v3615
    %3710 = vmatpush1.bf16.msra.mxu0 %v3614
    %3711 = vmatprep.subr.bf16.mxu0 %v3619
    %3712 = vmatpush1.bf16.msra.mxu0 %v3618
    %3713 = vmatprep.subr.bf16.mxu0 %v3623
    %3714 = vmatpush1.bf16.msra.mxu0 %v3622
    %3715 = vmatprep.subr.bf16.mxu0 %v3627
    %3716 = vmatpush1.bf16.msra.mxu0 %v3626
    %3717 = vmatprep.subr.bf16.mxu0 0
    %3718 = vmatpush1.bf16.msra.mxu0 0
    %3719 = vmatprep.subr.bf16.mxu0 0
    %3720 = vmatpush1.bf16.msra.mxu0 0
    %3721 = vmatprep.subr.bf16.mxu0 0
    %3722 = vmatpush1.bf16.msra.mxu0 0
    %3723 = vmatprep.subr.bf16.mxu0 0
    %3724 = vmatpush1.bf16.msra.mxu0 0
    %3725 = vmatprep.subr.bf16.mxu0 0
    %3726 = vmatpush1.bf16.msra.mxu0 0
    %3727 = vmatprep.subr.bf16.mxu0 0
    %3728 = vmatpush1.bf16.msra.mxu0 0
    %3729 = vmatprep.subr.bf16.mxu0 0
    %3730 = vmatpush1.bf16.msra.mxu0 0
    %3731 = vmatprep.subr.bf16.mxu0 0
    %3732 = vmatpush1.bf16.msra.mxu0 0
    %3733 = vmatprep.mubr.bf16.mxu0 0
    %3734 = vmatmul.mubr.bf16.gmra.mrb[0].mxu0 %v3498
    %v3735 = vpop.f32.mrb[0].mxu0
    %v3736 = vadd.f32 0.0, %v3735
    %v3737 = vpop.f32.mrb[0].mxu0
    %v3738 = vadd.f32 0.0, %v3737
    %v3739 = vpop.f32.mrb[0].mxu0
    %v3740 = vpop.f32.mrb[0].mxu0
    %3741 = vdwg.mxu0
    %v3742 = vadd.f32 %v3443, %v3695
    %v3743 = vadd.f32 %v3444, %v3697
    %v3744 = vadd.f32 %v3445, %v3736
    %v3745 = vadd.f32 %v3446, %v3738
    %s3746 = scalar_lea.vmem [#allocation11], 1024
    %v3747 = vld [vmem:[%s3746] sm:$0xff]
    %v3748 = vld [vmem:[%s3746 + $0x8] sm:$0xff]
    %v3749 = vld [vmem:[%s3746 + $0x10] sm:$0xff]
    %v3750 = vld [vmem:[%s3746 + $0x18] sm:$0xff]
    %v3751 = vld [vmem:[%s3746 + $0x20] sm:$0xff]
    %v3752 = vld [vmem:[%s3746 + $0x28] sm:$0xff]
    %v3753 = vld [vmem:[%s3746 + $0x30] sm:$0xff]
    %v3754 = vld [vmem:[%s3746 + $0x38] sm:$0xff]
    %v3755 = vld [vmem:[%s3746 + $0x40] sm:$0xff]
    %v3756 = vld [vmem:[%s3746 + $0x48] sm:$0xff]
    %v3757 = vld [vmem:[%s3746 + $0x50] sm:$0xff]
    %v3758 = vld [vmem:[%s3746 + $0x58] sm:$0xff]
    %v3759 = vld [vmem:[%s3746 + $0x60] sm:$0xff]
    %v3760 = vld [vmem:[%s3746 + $0x68] sm:$0xff]
    %v3761 = vld [vmem:[%s3746 + $0x70] sm:$0xff]
    %v3762 = vld [vmem:[%s3746 + $0x78] sm:$0xff]
    %v3763 = vld [vmem:[%s3746 + $0x80] sm:$0xff]
    %v3764 = vld [vmem:[%s3746 + $0x88] sm:$0xff]
    %v3765 = vld [vmem:[%s3746 + $0x90] sm:$0xff]
    %v3766 = vld [vmem:[%s3746 + $0x98] sm:$0xff]
    %v3767 = vld [vmem:[%s3746 + $0xa0] sm:$0xff]
    %v3768 = vld [vmem:[%s3746 + $0xa8] sm:$0xff]
    %v3769 = vld [vmem:[%s3746 + $0xb0] sm:$0xff]
    %v3770 = vld [vmem:[%s3746 + $0xb8] sm:$0xff]
    %v3771 = vld [vmem:[%s3746 + $0xc0] sm:$0xff]
    %v3772 = vld [vmem:[%s3746 + $0xc8] sm:$0xff]
    %v3773 = vld [vmem:[%s3746 + $0xd0] sm:$0xff]
    %v3774 = vld [vmem:[%s3746 + $0xd8] sm:$0xff]
    %v3775 = vld [vmem:[%s3746 + $0xe0] sm:$0xff]
    %v3776 = vld [vmem:[%s3746 + $0xe8] sm:$0xff]
    %v3777 = vld [vmem:[%s3746 + $0xf0] sm:$0xff]
    %v3778 = vld [vmem:[%s3746 + $0xf8] sm:$0xff]
    %v3781 = vunpack.c.l.b16 %v2538
    %v3782 = vunpack.c.l.b16 %v2546
    %v3783 = vrot.slane %v3183, 7
    %v3784 = vsel %vm1613, %v3783, %v2623
    %v3785 = vrot.slane %v3482, 6
    %v3786 = vsel %vm1595, %v3785, %v3784
    %v3787 = vrot.slane %v3781, 5
    %v3788 = vsel %vm1598, %v3787, %v3786
    %v3789 = vrot.slane %v2627, 4
    %v3790 = vsel %vm1601, %v3789, %v3788
    %v3791 = vrot.slane %v3184, 3
    %v3792 = vsel %vm1604, %v3791, %v3790
    %v3793 = vrot.slane %v3483, 2
    %v3794 = vsel %vm1607, %v3793, %v3792
    %v3795 = vrot.slane %v3782, 1
    %v3796 = vsel %vm1610, %v3795, %v3794
    %v3797 = vpack.c.b16 %v3796, %v3796
    %v3831 = vunpack.c.l.b16 %v3747
    %v3832 = vunpack.c.h.b16 %v3747
    %v3833 = vunpack.c.l.b16 %v3748
    %v3834 = vunpack.c.h.b16 %v3748
    %v3835 = vunpack.c.l.b16 %v3749
    %v3836 = vunpack.c.h.b16 %v3749
    %v3837 = vunpack.c.l.b16 %v3750
    %v3838 = vunpack.c.h.b16 %v3750
    %v3839 = vunpack.c.l.b16 %v3751
    %v3840 = vunpack.c.h.b16 %v3751
    %v3841 = vunpack.c.l.b16 %v3752
    %v3842 = vunpack.c.h.b16 %v3752
    %v3843 = vunpack.c.l.b16 %v3753
    %v3844 = vunpack.c.h.b16 %v3753
    %v3845 = vunpack.c.l.b16 %v3754
    %v3846 = vunpack.c.h.b16 %v3754
    %v3847 = vunpack.c.l.b16 %v3755
    %v3848 = vunpack.c.h.b16 %v3755
    %v3849 = vunpack.c.l.b16 %v3756
    %v3850 = vunpack.c.h.b16 %v3756
    %v3851 = vunpack.c.l.b16 %v3757
    %v3852 = vunpack.c.h.b16 %v3757
    %v3853 = vunpack.c.l.b16 %v3758
    %v3854 = vunpack.c.h.b16 %v3758
    %v3855 = vunpack.c.l.b16 %v3759
    %v3856 = vunpack.c.h.b16 %v3759
    %v3857 = vunpack.c.l.b16 %v3760
    %v3858 = vunpack.c.h.b16 %v3760
    %v3859 = vunpack.c.l.b16 %v3761
    %v3860 = vunpack.c.h.b16 %v3761
    %v3861 = vunpack.c.l.b16 %v3762
    %v3862 = vunpack.c.h.b16 %v3762
    %v3863 = vunpack.c.l.b16 %v3763
    %v3864 = vunpack.c.h.b16 %v3763
    %v3865 = vunpack.c.l.b16 %v3764
    %v3866 = vunpack.c.h.b16 %v3764
    %v3867 = vunpack.c.l.b16 %v3765
    %v3868 = vunpack.c.h.b16 %v3765
    %v3869 = vunpack.c.l.b16 %v3766
    %v3870 = vunpack.c.h.b16 %v3766
    %v3871 = vunpack.c.l.b16 %v3767
    %v3872 = vunpack.c.h.b16 %v3767
    %v3873 = vunpack.c.l.b16 %v3768
    %v3874 = vunpack.c.h.b16 %v3768
    %v3875 = vunpack.c.l.b16 %v3769
    %v3876 = vunpack.c.h.b16 %v3769
    %v3877 = vunpack.c.l.b16 %v3770
    %v3878 = vunpack.c.h.b16 %v3770
    %v3879 = vunpack.c.l.b16 %v3771
    %v3880 = vunpack.c.h.b16 %v3771
    %v3881 = vunpack.c.l.b16 %v3772
    %v3882 = vunpack.c.h.b16 %v3772
    %v3883 = vunpack.c.l.b16 %v3773
    %v3884 = vunpack.c.h.b16 %v3773
    %v3885 = vunpack.c.l.b16 %v3774
    %v3886 = vunpack.c.h.b16 %v3774
    %v3887 = vunpack.c.l.b16 %v3775
    %v3888 = vunpack.c.h.b16 %v3775
    %v3889 = vunpack.c.l.b16 %v3776
    %v3890 = vunpack.c.h.b16 %v3776
    %v3891 = vunpack.c.l.b16 %v3777
    %v3892 = vunpack.c.h.b16 %v3777
    %v3893 = vunpack.c.l.b16 %v3778
    %v3894 = vunpack.c.h.b16 %v3778
    %v3895 = vpack.c.b16 %v3835, %v3831
    %v3896 = vpack.c.b16 %v3836, %v3832
    %v3897 = vpack.c.b16 %v3837, %v3833
    %v3898 = vpack.c.b16 %v3838, %v3834
    %v3899 = vpack.c.b16 %v3843, %v3839
    %v3900 = vpack.c.b16 %v3844, %v3840
    %v3901 = vpack.c.b16 %v3845, %v3841
    %v3902 = vpack.c.b16 %v3846, %v3842
    %v3903 = vpack.c.b16 %v3851, %v3847
    %v3904 = vpack.c.b16 %v3852, %v3848
    %v3905 = vpack.c.b16 %v3853, %v3849
    %v3906 = vpack.c.b16 %v3854, %v3850
    %v3907 = vpack.c.b16 %v3859, %v3855
    %v3908 = vpack.c.b16 %v3860, %v3856
    %v3909 = vpack.c.b16 %v3861, %v3857
    %v3910 = vpack.c.b16 %v3862, %v3858
    %v3911 = vpack.c.b16 %v3867, %v3863
    %v3912 = vpack.c.b16 %v3868, %v3864
    %v3913 = vpack.c.b16 %v3869, %v3865
    %v3914 = vpack.c.b16 %v3870, %v3866
    %v3915 = vpack.c.b16 %v3875, %v3871
    %v3916 = vpack.c.b16 %v3876, %v3872
    %v3917 = vpack.c.b16 %v3877, %v3873
    %v3918 = vpack.c.b16 %v3878, %v3874
    %v3919 = vpack.c.b16 %v3883, %v3879
    %v3920 = vpack.c.b16 %v3884, %v3880
    %v3921 = vpack.c.b16 %v3885, %v3881
    %v3922 = vpack.c.b16 %v3886, %v3882
    %v3923 = vpack.c.b16 %v3891, %v3887
    %v3924 = vpack.c.b16 %v3892, %v3888
    %v3925 = vpack.c.b16 %v3893, %v3889
    %v3926 = vpack.c.b16 %v3894, %v3890
    %3959 = vmatprep.subr.bf16.mxu0 %v3896
    %3960 = vmatpush1.bf16.msra.mxu0 %v3895
    %3961 = vmatprep.subr.bf16.mxu0 %v3900
    %3962 = vmatpush1.bf16.msra.mxu0 %v3899
    %3963 = vmatprep.subr.bf16.mxu0 %v3904
    %3964 = vmatpush1.bf16.msra.mxu0 %v3903
    %3965 = vmatprep.subr.bf16.mxu0 %v3908
    %3966 = vmatpush1.bf16.msra.mxu0 %v3907
    %3967 = vmatprep.subr.bf16.mxu0 %v3912
    %3968 = vmatpush1.bf16.msra.mxu0 %v3911
    %3969 = vmatprep.subr.bf16.mxu0 %v3916
    %3970 = vmatpush1.bf16.msra.mxu0 %v3915
    %3971 = vmatprep.subr.bf16.mxu0 %v3920
    %3972 = vmatpush1.bf16.msra.mxu0 %v3919
    %3973 = vmatprep.subr.bf16.mxu0 %v3924
    %3974 = vmatpush1.bf16.msra.mxu0 %v3923
    %3975 = vmatprep.subr.bf16.mxu0 0
    %3976 = vmatpush1.bf16.msra.mxu0 0
    %3977 = vmatprep.subr.bf16.mxu0 0
    %3978 = vmatpush1.bf16.msra.mxu0 0
    %3979 = vmatprep.subr.bf16.mxu0 0
    %3980 = vmatpush1.bf16.msra.mxu0 0
    %3981 = vmatprep.subr.bf16.mxu0 0
    %3982 = vmatpush1.bf16.msra.mxu0 0
    %3983 = vmatprep.subr.bf16.mxu0 0
    %3984 = vmatpush1.bf16.msra.mxu0 0
    %3985 = vmatprep.subr.bf16.mxu0 0
    %3986 = vmatpush1.bf16.msra.mxu0 0
    %3987 = vmatprep.subr.bf16.mxu0 0
    %3988 = vmatpush1.bf16.msra.mxu0 0
    %3989 = vmatprep.subr.bf16.mxu0 0
    %3990 = vmatpush1.bf16.msra.mxu0 0
    %3991 = vmatprep.mubr.bf16.mxu0 0
    %3992 = vmatmul.mubr.bf16.gmra.mrb[0].mxu0 %v3797
    %v3993 = vpop.f32.mrb[0].mxu0
    %v3994 = vadd.f32 0.0, %v3993
    %v3995 = vpop.f32.mrb[0].mxu0
    %v3996 = vadd.f32 0.0, %v3995
    %v3997 = vpop.f32.mrb[0].mxu0
    %v3998 = vpop.f32.mrb[0].mxu0
    %3999 = vdwg.mxu0
    %4000 = vmatprep.subr.bf16.mxu0 %v3898
    %4001 = vmatpush1.bf16.msra.mxu0 %v3897
    %4002 = vmatprep.subr.bf16.mxu0 %v3902
    %4003 = vmatpush1.bf16.msra.mxu0 %v3901
    %4004 = vmatprep.subr.bf16.mxu0 %v3906
    %4005 = vmatpush1.bf16.msra.mxu0 %v3905
    %4006 = vmatprep.subr.bf16.mxu0 %v3910
    %4007 = vmatpush1.bf16.msra.mxu0 %v3909
    %4008 = vmatprep.subr.bf16.mxu0 %v3914
    %4009 = vmatpush1.bf16.msra.mxu0 %v3913
    %4010 = vmatprep.subr.bf16.mxu0 %v3918
    %4011 = vmatpush1.bf16.msra.mxu0 %v3917
    %4012 = vmatprep.subr.bf16.mxu0 %v3922
    %4013 = vmatpush1.bf16.msra.mxu0 %v3921
    %4014 = vmatprep.subr.bf16.mxu0 %v3926
    %4015 = vmatpush1.bf16.msra.mxu0 %v3925
    %4016 = vmatprep.subr.bf16.mxu0 0
    %4017 = vmatpush1.bf16.msra.mxu0 0
    %4018 = vmatprep.subr.bf16.mxu0 0
    %4019 = vmatpush1.bf16.msra.mxu0 0
    %4020 = vmatprep.subr.bf16.mxu0 0
    %4021 = vmatpush1.bf16.msra.mxu0 0
    %4022 = vmatprep.subr.bf16.mxu0 0
    %4023 = vmatpush1.bf16.msra.mxu0 0
    %4024 = vmatprep.subr.bf16.mxu0 0
    %4025 = vmatpush1.bf16.msra.mxu0 0
    %4026 = vmatprep.subr.bf16.mxu0 0
    %4027 = vmatpush1.bf16.msra.mxu0 0
    %4028 = vmatprep.subr.bf16.mxu0 0
    %4029 = vmatpush1.bf16.msra.mxu0 0
    %4030 = vmatprep.subr.bf16.mxu0 0
    %4031 = vmatpush1.bf16.msra.mxu0 0
    %4032 = vmatprep.mubr.bf16.mxu0 0
    %4033 = vmatmul.mubr.bf16.gmra.mrb[0].mxu0 %v3797
    %v4034 = vpop.f32.mrb[0].mxu0
    %v4035 = vadd.f32 0.0, %v4034
    %v4036 = vpop.f32.mrb[0].mxu0
    %v4037 = vadd.f32 0.0, %v4036
    %v4038 = vpop.f32.mrb[0].mxu0
    %v4039 = vpop.f32.mrb[0].mxu0
    %4040 = vdwg.mxu0
    %v4041 = vadd.f32 %v3742, %v3994
    %v4042 = vadd.f32 %v3743, %v3996
    %v4043 = vadd.f32 %v3744, %v4035
    %v4044 = vadd.f32 %v3745, %v4037
    %v4045 = vld [vmem:[#allocation12] ss:$4 sm:$0xf]
    %v4047 = vlaneseq
    %v4048 = vshrl.u32 %v4047, 7
    %v4049 = vsub.s32 0, %v4048
    %v4050 = vrot.slane %v4045, %v4049
    %v4051 = vlaneseq
    %v4052 = vshrl.u32 %v4051, 7
    %v4053 = vsub.s32 1, %v4052
    %v4054 = vrot.slane %v4045, %v4053
    %v4055 = vlaneseq
    %v4056 = vshrl.u32 %v4055, 7
    %v4057 = vsub.s32 2, %v4056
    %v4058 = vrot.slane %v4045, %v4057
    %v4059 = vlaneseq
    %v4060 = vshrl.u32 %v4059, 7
    %v4061 = vsub.s32 3, %v4060
    %v4062 = vrot.slane %v4045, %v4061
    %v4067 = vadd.f32 %v4041, %v4050
    %v4068 = vadd.f32 %v4042, %v4054
    %v4069 = vadd.f32 %v4043, %v4058
    %v4070 = vadd.f32 %v4044, %v4062
    %v4071 = vmax.f32 %v4067, 0.0
    %v4072 = vmax.f32 %v4068, 0.0
    %v4073 = vmax.f32 %v4069, 0.0
    %v4074 = vmax.f32 %v4070, 0.0
    %s4075 = scalar_lea.vmem [#allocation12], 1
    %v4076 = vld [vmem:[%s4075] ss:$4 sm:$0xf]
    %v4078 = vlaneseq
    %v4079 = vshrl.u32 %v4078, 7
    %v4080 = vsub.s32 0, %v4079
    %v4081 = vrot.slane %v4076, %v4080
    %v4082 = vlaneseq
    %v4083 = vshrl.u32 %v4082, 7
    %v4084 = vsub.s32 1, %v4083
    %v4085 = vrot.slane %v4076, %v4084
    %v4086 = vlaneseq
    %v4087 = vshrl.u32 %v4086, 7
    %v4088 = vsub.s32 2, %v4087
    %v4089 = vrot.slane %v4076, %v4088
    %v4090 = vlaneseq
    %v4091 = vshrl.u32 %v4090, 7
    %v4092 = vsub.s32 3, %v4091
    %v4093 = vrot.slane %v4076, %v4092
    %v4098 = vmul.f32 %v4071, %v4081
    %v4099 = vmul.f32 %v4072, %v4085
    %v4100 = vmul.f32 %v4073, %v4089
    %v4101 = vmul.f32 %v4074, %v4093
    %s4102 = scalar_lea.vmem [#allocation12], 2
    %v4103 = vld [vmem:[%s4102] ss:$4 sm:$0xf]
    %v4105 = vlaneseq
    %v4106 = vshrl.u32 %v4105, 7
    %v4107 = vsub.s32 0, %v4106
    %v4108 = vrot.slane %v4103, %v4107
    %v4109 = vlaneseq
    %v4110 = vshrl.u32 %v4109, 7
    %v4111 = vsub.s32 1, %v4110
    %v4112 = vrot.slane %v4103, %v4111
    %v4113 = vlaneseq
    %v4114 = vshrl.u32 %v4113, 7
    %v4115 = vsub.s32 2, %v4114
    %v4116 = vrot.slane %v4103, %v4115
    %v4117 = vlaneseq
    %v4118 = vshrl.u32 %v4117, 7
    %v4119 = vsub.s32 3, %v4118
    %v4120 = vrot.slane %v4103, %v4119
    %v4125 = vadd.f32 %v4098, %v4108
    %v4126 = vadd.f32 %v4099, %v4112
    %v4127 = vadd.f32 %v4100, %v4116
    %v4128 = vadd.f32 %v4101, %v4120
    %v4133 = vcombine.low %v4125, %v4126
    %v4134 = vcombine.high %v4125, %v4126
    %v4135 = vcombine.low %v4127, %v4128
    %v4136 = vcombine.high %v4127, %v4128
    %v4141 = vcombine.high %v4133, %v4133
    %v4142 = vcombine.high %v4135, %v4135
    %v4143 = vcombine.high %v4134, %v4134
    %v4144 = vcombine.high %v4136, %v4136
    %v4149 = vpack.c.bf16 %v4133, %v4133
    %v4150 = vpack.c.bf16 %v4141, %v4141
    %v4151 = vpack.c.bf16 %v4135, %v4135
    %v4152 = vpack.c.bf16 %v4142, %v4142
    %v4153 = vpack.c.bf16 %v4134, %v4134
    %v4154 = vpack.c.bf16 %v4143, %v4143
    %v4155 = vpack.c.bf16 %v4136, %v4136
    %v4156 = vpack.c.bf16 %v4144, %v4144
    %v4157 = vld [vmem:[#allocation14] sm:$0xff]
    %v4158 = vld [vmem:[#allocation14 + $0x8] sm:$0xff]
    %v4159 = vld [vmem:[#allocation14 + $0x10] sm:$0xff]
    %v4160 = vld [vmem:[#allocation14 + $0x18] sm:$0xff]
    %v4161 = vld [vmem:[#allocation14 + $0x20] sm:$0xff]
    %v4162 = vld [vmem:[#allocation14 + $0x28] sm:$0xff]
    %v4163 = vld [vmem:[#allocation14 + $0x30] sm:$0xff]
    %v4164 = vld [vmem:[#allocation14 + $0x38] sm:$0xff]
    %v4165 = vld [vmem:[#allocation14 + $0x40] sm:$0xff]
    %v4166 = vld [vmem:[#allocation14 + $0x48] sm:$0xff]
    %v4167 = vld [vmem:[#allocation14 + $0x50] sm:$0xff]
    %v4168 = vld [vmem:[#allocation14 + $0x58] sm:$0xff]
    %v4169 = vld [vmem:[#allocation14 + $0x60] sm:$0xff]
    %v4170 = vld [vmem:[#allocation14 + $0x68] sm:$0xff]
    %v4171 = vld [vmem:[#allocation14 + $0x70] sm:$0xff]
    %v4172 = vld [vmem:[#allocation14 + $0x78] sm:$0xff]
    %v4173 = vld [vmem:[#allocation14 + $0x80] sm:$0xff]
    %v4174 = vld [vmem:[#allocation14 + $0x88] sm:$0xff]
    %v4175 = vld [vmem:[#allocation14 + $0x90] sm:$0xff]
    %v4176 = vld [vmem:[#allocation14 + $0x98] sm:$0xff]
    %v4177 = vld [vmem:[#allocation14 + $0xa0] sm:$0xff]
    %v4178 = vld [vmem:[#allocation14 + $0xa8] sm:$0xff]
    %v4179 = vld [vmem:[#allocation14 + $0xb0] sm:$0xff]
    %v4180 = vld [vmem:[#allocation14 + $0xb8] sm:$0xff]
    %v4181 = vld [vmem:[#allocation14 + $0xc0] sm:$0xff]
    %v4182 = vld [vmem:[#allocation14 + $0xc8] sm:$0xff]
    %v4183 = vld [vmem:[#allocation14 + $0xd0] sm:$0xff]
    %v4184 = vld [vmem:[#allocation14 + $0xd8] sm:$0xff]
    %v4185 = vld [vmem:[#allocation14 + $0xe0] sm:$0xff]
    %v4186 = vld [vmem:[#allocation14 + $0xe8] sm:$0xff]
    %v4187 = vld [vmem:[#allocation14 + $0xf0] sm:$0xff]
    %v4188 = vld [vmem:[#allocation14 + $0xf8] sm:$0xff]
    %v4189 = vld [vmem:[#allocation14 + $0x100] sm:$0xff]
    %v4190 = vld [vmem:[#allocation14 + $0x108] sm:$0xff]
    %v4191 = vld [vmem:[#allocation14 + $0x110] sm:$0xff]
    %v4192 = vld [vmem:[#allocation14 + $0x118] sm:$0xff]
    %v4193 = vld [vmem:[#allocation14 + $0x120] sm:$0xff]
    %v4194 = vld [vmem:[#allocation14 + $0x128] sm:$0xff]
    %v4195 = vld [vmem:[#allocation14 + $0x130] sm:$0xff]
    %v4196 = vld [vmem:[#allocation14 + $0x138] sm:$0xff]
    %v4197 = vld [vmem:[#allocation14 + $0x140] sm:$0xff]
    %v4198 = vld [vmem:[#allocation14 + $0x148] sm:$0xff]
    %v4199 = vld [vmem:[#allocation14 + $0x150] sm:$0xff]
    %v4200 = vld [vmem:[#allocation14 + $0x158] sm:$0xff]
    %v4201 = vld [vmem:[#allocation14 + $0x160] sm:$0xff]
    %v4202 = vld [vmem:[#allocation14 + $0x168] sm:$0xff]
    %v4203 = vld [vmem:[#allocation14 + $0x170] sm:$0xff]
    %v4204 = vld [vmem:[#allocation14 + $0x178] sm:$0xff]
    %v4205 = vld [vmem:[#allocation14 + $0x180] sm:$0xff]
    %v4206 = vld [vmem:[#allocation14 + $0x188] sm:$0xff]
    %v4207 = vld [vmem:[#allocation14 + $0x190] sm:$0xff]
    %v4208 = vld [vmem:[#allocation14 + $0x198] sm:$0xff]
    %v4209 = vld [vmem:[#allocation14 + $0x1a0] sm:$0xff]
    %v4210 = vld [vmem:[#allocation14 + $0x1a8] sm:$0xff]
    %v4211 = vld [vmem:[#allocation14 + $0x1b0] sm:$0xff]
    %v4212 = vld [vmem:[#allocation14 + $0x1b8] sm:$0xff]
    %v4213 = vld [vmem:[#allocation14 + $0x1c0] sm:$0xff]
    %v4214 = vld [vmem:[#allocation14 + $0x1c8] sm:$0xff]
    %v4215 = vld [vmem:[#allocation14 + $0x1d0] sm:$0xff]
    %v4216 = vld [vmem:[#allocation14 + $0x1d8] sm:$0xff]
    %v4217 = vld [vmem:[#allocation14 + $0x1e0] sm:$0xff]
    %v4218 = vld [vmem:[#allocation14 + $0x1e8] sm:$0xff]
    %v4219 = vld [vmem:[#allocation14 + $0x1f0] sm:$0xff]
    %v4220 = vld [vmem:[#allocation14 + $0x1f8] sm:$0xff]
    %v4221 = vld [vmem:[#allocation14 + $0x200] sm:$0xff]
    %v4222 = vld [vmem:[#allocation14 + $0x208] sm:$0xff]
    %v4223 = vld [vmem:[#allocation14 + $0x210] sm:$0xff]
    %v4224 = vld [vmem:[#allocation14 + $0x218] sm:$0xff]
    %v4225 = vld [vmem:[#allocation14 + $0x220] sm:$0xff]
    %v4226 = vld [vmem:[#allocation14 + $0x228] sm:$0xff]
    %v4227 = vld [vmem:[#allocation14 + $0x230] sm:$0xff]
    %v4228 = vld [vmem:[#allocation14 + $0x238] sm:$0xff]
    %v4229 = vld [vmem:[#allocation14 + $0x240] sm:$0xff]
    %v4230 = vld [vmem:[#allocation14 + $0x248] sm:$0xff]
    %v4231 = vld [vmem:[#allocation14 + $0x250] sm:$0xff]
    %v4232 = vld [vmem:[#allocation14 + $0x258] sm:$0xff]
    %v4233 = vld [vmem:[#allocation14 + $0x260] sm:$0xff]
    %v4234 = vld [vmem:[#allocation14 + $0x268] sm:$0xff]
    %v4235 = vld [vmem:[#allocation14 + $0x270] sm:$0xff]
    %v4236 = vld [vmem:[#allocation14 + $0x278] sm:$0xff]
    %v4237 = vld [vmem:[#allocation14 + $0x280] sm:$0xff]
    %v4238 = vld [vmem:[#allocation14 + $0x288] sm:$0xff]
    %v4239 = vld [vmem:[#allocation14 + $0x290] sm:$0xff]
    %v4240 = vld [vmem:[#allocation14 + $0x298] sm:$0xff]
    %v4241 = vld [vmem:[#allocation14 + $0x2a0] sm:$0xff]
    %v4242 = vld [vmem:[#allocation14 + $0x2a8] sm:$0xff]
    %v4243 = vld [vmem:[#allocation14 + $0x2b0] sm:$0xff]
    %v4244 = vld [vmem:[#allocation14 + $0x2b8] sm:$0xff]
    %v4245 = vld [vmem:[#allocation14 + $0x2c0] sm:$0xff]
    %v4246 = vld [vmem:[#allocation14 + $0x2c8] sm:$0xff]
    %v4247 = vld [vmem:[#allocation14 + $0x2d0] sm:$0xff]
    %v4248 = vld [vmem:[#allocation14 + $0x2d8] sm:$0xff]
    %v4249 = vld [vmem:[#allocation14 + $0x2e0] sm:$0xff]
    %v4250 = vld [vmem:[#allocation14 + $0x2e8] sm:$0xff]
    %v4251 = vld [vmem:[#allocation14 + $0x2f0] sm:$0xff]
    %v4252 = vld [vmem:[#allocation14 + $0x2f8] sm:$0xff]
    %v4253 = vld [vmem:[#allocation14 + $0x300] sm:$0xff]
    %v4254 = vld [vmem:[#allocation14 + $0x308] sm:$0xff]
    %v4255 = vld [vmem:[#allocation14 + $0x310] sm:$0xff]
    %v4256 = vld [vmem:[#allocation14 + $0x318] sm:$0xff]
    %v4257 = vld [vmem:[#allocation14 + $0x320] sm:$0xff]
    %v4258 = vld [vmem:[#allocation14 + $0x328] sm:$0xff]
    %v4259 = vld [vmem:[#allocation14 + $0x330] sm:$0xff]
    %v4260 = vld [vmem:[#allocation14 + $0x338] sm:$0xff]
    %v4261 = vld [vmem:[#allocation14 + $0x340] sm:$0xff]
    %v4262 = vld [vmem:[#allocation14 + $0x348] sm:$0xff]
    %v4263 = vld [vmem:[#allocation14 + $0x350] sm:$0xff]
    %v4264 = vld [vmem:[#allocation14 + $0x358] sm:$0xff]
    %v4265 = vld [vmem:[#allocation14 + $0x360] sm:$0xff]
    %v4266 = vld [vmem:[#allocation14 + $0x368] sm:$0xff]
    %v4267 = vld [vmem:[#allocation14 + $0x370] sm:$0xff]
    %v4268 = vld [vmem:[#allocation14 + $0x378] sm:$0xff]
    %v4269 = vld [vmem:[#allocation14 + $0x380] sm:$0xff]
    %v4270 = vld [vmem:[#allocation14 + $0x388] sm:$0xff]
    %v4271 = vld [vmem:[#allocation14 + $0x390] sm:$0xff]
    %v4272 = vld [vmem:[#allocation14 + $0x398] sm:$0xff]
    %v4273 = vld [vmem:[#allocation14 + $0x3a0] sm:$0xff]
    %v4274 = vld [vmem:[#allocation14 + $0x3a8] sm:$0xff]
    %v4275 = vld [vmem:[#allocation14 + $0x3b0] sm:$0xff]
    %v4276 = vld [vmem:[#allocation14 + $0x3b8] sm:$0xff]
    %v4277 = vld [vmem:[#allocation14 + $0x3c0] sm:$0xff]
    %v4278 = vld [vmem:[#allocation14 + $0x3c8] sm:$0xff]
    %v4279 = vld [vmem:[#allocation14 + $0x3d0] sm:$0xff]
    %v4280 = vld [vmem:[#allocation14 + $0x3d8] sm:$0xff]
    %v4281 = vld [vmem:[#allocation14 + $0x3e0] sm:$0xff]
    %v4282 = vld [vmem:[#allocation14 + $0x3e8] sm:$0xff]
    %v4283 = vld [vmem:[#allocation14 + $0x3f0] sm:$0xff]
    %v4284 = vld [vmem:[#allocation14 + $0x3f8] sm:$0xff]
    %s4285 = scalar_lea.vmem [#allocation14], 1024
    %v4286 = vld [vmem:[%s4285] sm:$0xff]
    %v4287 = vld [vmem:[%s4285 + $0x8] sm:$0xff]
    %v4288 = vld [vmem:[%s4285 + $0x10] sm:$0xff]
    %v4289 = vld [vmem:[%s4285 + $0x18] sm:$0xff]
    %v4290 = vld [vmem:[%s4285 + $0x20] sm:$0xff]
    %v4291 = vld [vmem:[%s4285 + $0x28] sm:$0xff]
    %v4292 = vld [vmem:[%s4285 + $0x30] sm:$0xff]
    %v4293 = vld [vmem:[%s4285 + $0x38] sm:$0xff]
    %v4294 = vld [vmem:[%s4285 + $0x40] sm:$0xff]
    %v4295 = vld [vmem:[%s4285 + $0x48] sm:$0xff]
    %v4296 = vld [vmem:[%s4285 + $0x50] sm:$0xff]
    %v4297 = vld [vmem:[%s4285 + $0x58] sm:$0xff]
    %v4298 = vld [vmem:[%s4285 + $0x60] sm:$0xff]
    %v4299 = vld [vmem:[%s4285 + $0x68] sm:$0xff]
    %v4300 = vld [vmem:[%s4285 + $0x70] sm:$0xff]
    %v4301 = vld [vmem:[%s4285 + $0x78] sm:$0xff]
    %v4302 = vld [vmem:[%s4285 + $0x80] sm:$0xff]
    %v4303 = vld [vmem:[%s4285 + $0x88] sm:$0xff]
    %v4304 = vld [vmem:[%s4285 + $0x90] sm:$0xff]
    %v4305 = vld [vmem:[%s4285 + $0x98] sm:$0xff]
    %v4306 = vld [vmem:[%s4285 + $0xa0] sm:$0xff]
    %v4307 = vld [vmem:[%s4285 + $0xa8] sm:$0xff]
    %v4308 = vld [vmem:[%s4285 + $0xb0] sm:$0xff]
    %v4309 = vld [vmem:[%s4285 + $0xb8] sm:$0xff]
    %v4310 = vld [vmem:[%s4285 + $0xc0] sm:$0xff]
    %v4311 = vld [vmem:[%s4285 + $0xc8] sm:$0xff]
    %v4312 = vld [vmem:[%s4285 + $0xd0] sm:$0xff]
    %v4313 = vld [vmem:[%s4285 + $0xd8] sm:$0xff]
    %v4314 = vld [vmem:[%s4285 + $0xe0] sm:$0xff]
    %v4315 = vld [vmem:[%s4285 + $0xe8] sm:$0xff]
    %v4316 = vld [vmem:[%s4285 + $0xf0] sm:$0xff]
    %v4317 = vld [vmem:[%s4285 + $0xf8] sm:$0xff]
    %v4318 = vld [vmem:[%s4285 + $0x100] sm:$0xff]
    %v4319 = vld [vmem:[%s4285 + $0x108] sm:$0xff]
    %v4320 = vld [vmem:[%s4285 + $0x110] sm:$0xff]
    %v4321 = vld [vmem:[%s4285 + $0x118] sm:$0xff]
    %v4322 = vld [vmem:[%s4285 + $0x120] sm:$0xff]
    %v4323 = vld [vmem:[%s4285 + $0x128] sm:$0xff]
    %v4324 = vld [vmem:[%s4285 + $0x130] sm:$0xff]
    %v4325 = vld [vmem:[%s4285 + $0x138] sm:$0xff]
    %v4326 = vld [vmem:[%s4285 + $0x140] sm:$0xff]
    %v4327 = vld [vmem:[%s4285 + $0x148] sm:$0xff]
    %v4328 = vld [vmem:[%s4285 + $0x150] sm:$0xff]
    %v4329 = vld [vmem:[%s4285 + $0x158] sm:$0xff]
    %v4330 = vld [vmem:[%s4285 + $0x160] sm:$0xff]
    %v4331 = vld [vmem:[%s4285 + $0x168] sm:$0xff]
    %v4332 = vld [vmem:[%s4285 + $0x170] sm:$0xff]
    %v4333 = vld [vmem:[%s4285 + $0x178] sm:$0xff]
    %v4334 = vld [vmem:[%s4285 + $0x180] sm:$0xff]
    %v4335 = vld [vmem:[%s4285 + $0x188] sm:$0xff]
    %v4336 = vld [vmem:[%s4285 + $0x190] sm:$0xff]
    %v4337 = vld [vmem:[%s4285 + $0x198] sm:$0xff]
    %v4338 = vld [vmem:[%s4285 + $0x1a0] sm:$0xff]
    %v4339 = vld [vmem:[%s4285 + $0x1a8] sm:$0xff]
    %v4340 = vld [vmem:[%s4285 + $0x1b0] sm:$0xff]
    %v4341 = vld [vmem:[%s4285 + $0x1b8] sm:$0xff]
    %v4342 = vld [vmem:[%s4285 + $0x1c0] sm:$0xff]
    %v4343 = vld [vmem:[%s4285 + $0x1c8] sm:$0xff]
    %v4344 = vld [vmem:[%s4285 + $0x1d0] sm:$0xff]
    %v4345 = vld [vmem:[%s4285 + $0x1d8] sm:$0xff]
    %v4346 = vld [vmem:[%s4285 + $0x1e0] sm:$0xff]
    %v4347 = vld [vmem:[%s4285 + $0x1e8] sm:$0xff]
    %v4348 = vld [vmem:[%s4285 + $0x1f0] sm:$0xff]
    %v4349 = vld [vmem:[%s4285 + $0x1f8] sm:$0xff]
    %v4350 = vld [vmem:[%s4285 + $0x200] sm:$0xff]
    %v4351 = vld [vmem:[%s4285 + $0x208] sm:$0xff]
    %v4352 = vld [vmem:[%s4285 + $0x210] sm:$0xff]
    %v4353 = vld [vmem:[%s4285 + $0x218] sm:$0xff]
    %v4354 = vld [vmem:[%s4285 + $0x220] sm:$0xff]
    %v4355 = vld [vmem:[%s4285 + $0x228] sm:$0xff]
    %v4356 = vld [vmem:[%s4285 + $0x230] sm:$0xff]
    %v4357 = vld [vmem:[%s4285 + $0x238] sm:$0xff]
    %v4358 = vld [vmem:[%s4285 + $0x240] sm:$0xff]
    %v4359 = vld [vmem:[%s4285 + $0x248] sm:$0xff]
    %v4360 = vld [vmem:[%s4285 + $0x250] sm:$0xff]
    %v4361 = vld [vmem:[%s4285 + $0x258] sm:$0xff]
    %v4362 = vld [vmem:[%s4285 + $0x260] sm:$0xff]
    %v4363 = vld [vmem:[%s4285 + $0x268] sm:$0xff]
    %v4364 = vld [vmem:[%s4285 + $0x270] sm:$0xff]
    %v4365 = vld [vmem:[%s4285 + $0x278] sm:$0xff]
    %v4366 = vld [vmem:[%s4285 + $0x280] sm:$0xff]
    %v4367 = vld [vmem:[%s4285 + $0x288] sm:$0xff]
    %v4368 = vld [vmem:[%s4285 + $0x290] sm:$0xff]
    %v4369 = vld [vmem:[%s4285 + $0x298] sm:$0xff]
    %v4370 = vld [vmem:[%s4285 + $0x2a0] sm:$0xff]
    %v4371 = vld [vmem:[%s4285 + $0x2a8] sm:$0xff]
    %v4372 = vld [vmem:[%s4285 + $0x2b0] sm:$0xff]
    %v4373 = vld [vmem:[%s4285 + $0x2b8] sm:$0xff]
    %v4374 = vld [vmem:[%s4285 + $0x2c0] sm:$0xff]
    %v4375 = vld [vmem:[%s4285 + $0x2c8] sm:$0xff]
    %v4376 = vld [vmem:[%s4285 + $0x2d0] sm:$0xff]
    %v4377 = vld [vmem:[%s4285 + $0x2d8] sm:$0xff]
    %v4378 = vld [vmem:[%s4285 + $0x2e0] sm:$0xff]
    %v4379 = vld [vmem:[%s4285 + $0x2e8] sm:$0xff]
    %v4380 = vld [vmem:[%s4285 + $0x2f0] sm:$0xff]
    %v4381 = vld [vmem:[%s4285 + $0x2f8] sm:$0xff]
    %v4382 = vld [vmem:[%s4285 + $0x300] sm:$0xff]
    %v4383 = vld [vmem:[%s4285 + $0x308] sm:$0xff]
    %v4384 = vld [vmem:[%s4285 + $0x310] sm:$0xff]
    %v4385 = vld [vmem:[%s4285 + $0x318] sm:$0xff]
    %v4386 = vld [vmem:[%s4285 + $0x320] sm:$0xff]
    %v4387 = vld [vmem:[%s4285 + $0x328] sm:$0xff]
    %v4388 = vld [vmem:[%s4285 + $0x330] sm:$0xff]
    %v4389 = vld [vmem:[%s4285 + $0x338] sm:$0xff]
    %v4390 = vld [vmem:[%s4285 + $0x340] sm:$0xff]
    %v4391 = vld [vmem:[%s4285 + $0x348] sm:$0xff]
    %v4392 = vld [vmem:[%s4285 + $0x350] sm:$0xff]
    %v4393 = vld [vmem:[%s4285 + $0x358] sm:$0xff]
    %v4394 = vld [vmem:[%s4285 + $0x360] sm:$0xff]
    %v4395 = vld [vmem:[%s4285 + $0x368] sm:$0xff]
    %v4396 = vld [vmem:[%s4285 + $0x370] sm:$0xff]
    %v4397 = vld [vmem:[%s4285 + $0x378] sm:$0xff]
    %v4398 = vld [vmem:[%s4285 + $0x380] sm:$0xff]
    %v4399 = vld [vmem:[%s4285 + $0x388] sm:$0xff]
    %v4400 = vld [vmem:[%s4285 + $0x390] sm:$0xff]
    %v4401 = vld [vmem:[%s4285 + $0x398] sm:$0xff]
    %v4402 = vld [vmem:[%s4285 + $0x3a0] sm:$0xff]
    %v4403 = vld [vmem:[%s4285 + $0x3a8] sm:$0xff]
    %v4404 = vld [vmem:[%s4285 + $0x3b0] sm:$0xff]
    %v4405 = vld [vmem:[%s4285 + $0x3b8] sm:$0xff]
    %v4406 = vld [vmem:[%s4285 + $0x3c0] sm:$0xff]
    %v4407 = vld [vmem:[%s4285 + $0x3c8] sm:$0xff]
    %v4408 = vld [vmem:[%s4285 + $0x3d0] sm:$0xff]
    %v4409 = vld [vmem:[%s4285 + $0x3d8] sm:$0xff]
    %v4410 = vld [vmem:[%s4285 + $0x3e0] sm:$0xff]
    %v4411 = vld [vmem:[%s4285 + $0x3e8] sm:$0xff]
    %v4412 = vld [vmem:[%s4285 + $0x3f0] sm:$0xff]
    %v4413 = vld [vmem:[%s4285 + $0x3f8] sm:$0xff]
    %v4422 = vunpack.c.l.b16 %v4149
    %v4423 = vunpack.c.l.b16 %v4150
    %v4424 = vunpack.c.l.b16 %v4151
    %v4425 = vunpack.c.l.b16 %v4152
    %v4426 = vunpack.c.l.b16 %v4153
    %v4427 = vunpack.c.l.b16 %v4154
    %v4428 = vunpack.c.l.b16 %v4155
    %v4429 = vunpack.c.l.b16 %v4156
    %v4430 = vrot.slane %v4422, 1
    %v4431 = vsel %vm1613, %v4426, %v4430
    %v4432 = vrot.slane %v4423, 1
    %v4433 = vsel %vm1613, %v4427, %v4432
    %v4434 = vrot.slane %v4424, 1
    %v4435 = vsel %vm1613, %v4428, %v4434
    %v4436 = vrot.slane %v4425, 1
    %v4437 = vsel %vm1613, %v4429, %v4436
    %v4438 = vpack.c.b16 %v4431, %v4431
    %v4439 = vpack.c.b16 %v4433, %v4433
    %v4440 = vpack.c.b16 %v4435, %v4435
    %v4441 = vpack.c.b16 %v4437, %v4437
    %v4574 = vunpack.c.l.b16 %v4286
    %v4575 = vunpack.c.h.b16 %v4286
    %v4576 = vunpack.c.l.b16 %v4287
    %v4577 = vunpack.c.h.b16 %v4287
    %v4578 = vunpack.c.l.b16 %v4288
    %v4579 = vunpack.c.h.b16 %v4288
    %v4580 = vunpack.c.l.b16 %v4289
    %v4581 = vunpack.c.h.b16 %v4289
    %v4582 = vunpack.c.l.b16 %v4290
    %v4583 = vunpack.c.h.b16 %v4290
    %v4584 = vunpack.c.l.b16 %v4291
    %v4585 = vunpack.c.h.b16 %v4291
    %v4586 = vunpack.c.l.b16 %v4292
    %v4587 = vunpack.c.h.b16 %v4292
    %v4588 = vunpack.c.l.b16 %v4293
    %v4589 = vunpack.c.h.b16 %v4293
    %v4590 = vunpack.c.l.b16 %v4294
    %v4591 = vunpack.c.h.b16 %v4294
    %v4592 = vunpack.c.l.b16 %v4295
    %v4593 = vunpack.c.h.b16 %v4295
    %v4594 = vunpack.c.l.b16 %v4296
    %v4595 = vunpack.c.h.b16 %v4296
    %v4596 = vunpack.c.l.b16 %v4297
    %v4597 = vunpack.c.h.b16 %v4297
    %v4598 = vunpack.c.l.b16 %v4298
    %v4599 = vunpack.c.h.b16 %v4298
    %v4600 = vunpack.c.l.b16 %v4299
    %v4601 = vunpack.c.h.b16 %v4299
    %v4602 = vunpack.c.l.b16 %v4300
    %v4603 = vunpack.c.h.b16 %v4300
    %v4604 = vunpack.c.l.b16 %v4301
    %v4605 = vunpack.c.h.b16 %v4301
    %v4606 = vunpack.c.l.b16 %v4302
    %v4607 = vunpack.c.h.b16 %v4302
    %v4608 = vunpack.c.l.b16 %v4303
    %v4609 = vunpack.c.h.b16 %v4303
    %v4610 = vunpack.c.l.b16 %v4304
    %v4611 = vunpack.c.h.b16 %v4304
    %v4612 = vunpack.c.l.b16 %v4305
    %v4613 = vunpack.c.h.b16 %v4305
    %v4614 = vunpack.c.l.b16 %v4306
    %v4615 = vunpack.c.h.b16 %v4306
    %v4616 = vunpack.c.l.b16 %v4307
    %v4617 = vunpack.c.h.b16 %v4307
    %v4618 = vunpack.c.l.b16 %v4308
    %v4619 = vunpack.c.h.b16 %v4308
    %v4620 = vunpack.c.l.b16 %v4309
    %v4621 = vunpack.c.h.b16 %v4309
    %v4622 = vunpack.c.l.b16 %v4310
    %v4623 = vunpack.c.h.b16 %v4310
    %v4624 = vunpack.c.l.b16 %v4311
    %v4625 = vunpack.c.h.b16 %v4311
    %v4626 = vunpack.c.l.b16 %v4312
    %v4627 = vunpack.c.h.b16 %v4312
    %v4628 = vunpack.c.l.b16 %v4313
    %v4629 = vunpack.c.h.b16 %v4313
    %v4630 = vunpack.c.l.b16 %v4314
    %v4631 = vunpack.c.h.b16 %v4314
    %v4632 = vunpack.c.l.b16 %v4315
    %v4633 = vunpack.c.h.b16 %v4315
    %v4634 = vunpack.c.l.b16 %v4316
    %v4635 = vunpack.c.h.b16 %v4316
    %v4636 = vunpack.c.l.b16 %v4317
    %v4637 = vunpack.c.h.b16 %v4317
    %v4638 = vunpack.c.l.b16 %v4318
    %v4639 = vunpack.c.h.b16 %v4318
    %v4640 = vunpack.c.l.b16 %v4319
    %v4641 = vunpack.c.h.b16 %v4319
    %v4642 = vunpack.c.l.b16 %v4320
    %v4643 = vunpack.c.h.b16 %v4320
    %v4644 = vunpack.c.l.b16 %v4321
    %v4645 = vunpack.c.h.b16 %v4321
    %v4646 = vunpack.c.l.b16 %v4322
    %v4647 = vunpack.c.h.b16 %v4322
    %v4648 = vunpack.c.l.b16 %v4323
    %v4649 = vunpack.c.h.b16 %v4323
    %v4650 = vunpack.c.l.b16 %v4324
    %v4651 = vunpack.c.h.b16 %v4324
    %v4652 = vunpack.c.l.b16 %v4325
    %v4653 = vunpack.c.h.b16 %v4325
    %v4654 = vunpack.c.l.b16 %v4326
    %v4655 = vunpack.c.h.b16 %v4326
    %v4656 = vunpack.c.l.b16 %v4327
    %v4657 = vunpack.c.h.b16 %v4327
    %v4658 = vunpack.c.l.b16 %v4328
    %v4659 = vunpack.c.h.b16 %v4328
    %v4660 = vunpack.c.l.b16 %v4329
    %v4661 = vunpack.c.h.b16 %v4329
    %v4662 = vunpack.c.l.b16 %v4330
    %v4663 = vunpack.c.h.b16 %v4330
    %v4664 = vunpack.c.l.b16 %v4331
    %v4665 = vunpack.c.h.b16 %v4331
    %v4666 = vunpack.c.l.b16 %v4332
    %v4667 = vunpack.c.h.b16 %v4332
    %v4668 = vunpack.c.l.b16 %v4333
    %v4669 = vunpack.c.h.b16 %v4333
    %v4670 = vunpack.c.l.b16 %v4334
    %v4671 = vunpack.c.h.b16 %v4334
    %v4672 = vunpack.c.l.b16 %v4335
    %v4673 = vunpack.c.h.b16 %v4335
    %v4674 = vunpack.c.l.b16 %v4336
    %v4675 = vunpack.c.h.b16 %v4336
    %v4676 = vunpack.c.l.b16 %v4337
    %v4677 = vunpack.c.h.b16 %v4337
    %v4678 = vunpack.c.l.b16 %v4338
    %v4679 = vunpack.c.h.b16 %v4338
    %v4680 = vunpack.c.l.b16 %v4339
    %v4681 = vunpack.c.h.b16 %v4339
    %v4682 = vunpack.c.l.b16 %v4340
    %v4683 = vunpack.c.h.b16 %v4340
    %v4684 = vunpack.c.l.b16 %v4341
    %v4685 = vunpack.c.h.b16 %v4341
    %v4686 = vunpack.c.l.b16 %v4342
    %v4687 = vunpack.c.h.b16 %v4342
    %v4688 = vunpack.c.l.b16 %v4343
    %v4689 = vunpack.c.h.b16 %v4343
    %v4690 = vunpack.c.l.b16 %v4344
    %v4691 = vunpack.c.h.b16 %v4344
    %v4692 = vunpack.c.l.b16 %v4345
    %v4693 = vunpack.c.h.b16 %v4345
    %v4694 = vunpack.c.l.b16 %v4346
    %v4695 = vunpack.c.h.b16 %v4346
    %v4696 = vunpack.c.l.b16 %v4347
    %v4697 = vunpack.c.h.b16 %v4347
    %v4698 = vunpack.c.l.b16 %v4348
    %v4699 = vunpack.c.h.b16 %v4348
    %v4700 = vunpack.c.l.b16 %v4349
    %v4701 = vunpack.c.h.b16 %v4349
    %v4702 = vunpack.c.l.b16 %v4350
    %v4703 = vunpack.c.h.b16 %v4350
    %v4704 = vunpack.c.l.b16 %v4351
    %v4705 = vunpack.c.h.b16 %v4351
    %v4706 = vunpack.c.l.b16 %v4352
    %v4707 = vunpack.c.h.b16 %v4352
    %v4708 = vunpack.c.l.b16 %v4353
    %v4709 = vunpack.c.h.b16 %v4353
    %v4710 = vunpack.c.l.b16 %v4354
    %v4711 = vunpack.c.h.b16 %v4354
    %v4712 = vunpack.c.l.b16 %v4355
    %v4713 = vunpack.c.h.b16 %v4355
    %v4714 = vunpack.c.l.b16 %v4356
    %v4715 = vunpack.c.h.b16 %v4356
    %v4716 = vunpack.c.l.b16 %v4357
    %v4717 = vunpack.c.h.b16 %v4357
    %v4718 = vunpack.c.l.b16 %v4358
    %v4719 = vunpack.c.h.b16 %v4358
    %v4720 = vunpack.c.l.b16 %v4359
    %v4721 = vunpack.c.h.b16 %v4359
    %v4722 = vunpack.c.l.b16 %v4360
    %v4723 = vunpack.c.h.b16 %v4360
    %v4724 = vunpack.c.l.b16 %v4361
    %v4725 = vunpack.c.h.b16 %v4361
    %v4726 = vunpack.c.l.b16 %v4362
    %v4727 = vunpack.c.h.b16 %v4362
    %v4728 = vunpack.c.l.b16 %v4363
    %v4729 = vunpack.c.h.b16 %v4363
    %v4730 = vunpack.c.l.b16 %v4364
    %v4731 = vunpack.c.h.b16 %v4364
    %v4732 = vunpack.c.l.b16 %v4365
    %v4733 = vunpack.c.h.b16 %v4365
    %v4734 = vunpack.c.l.b16 %v4366
    %v4735 = vunpack.c.h.b16 %v4366
    %v4736 = vunpack.c.l.b16 %v4367
    %v4737 = vunpack.c.h.b16 %v4367
    %v4738 = vunpack.c.l.b16 %v4368
    %v4739 = vunpack.c.h.b16 %v4368
    %v4740 = vunpack.c.l.b16 %v4369
    %v4741 = vunpack.c.h.b16 %v4369
    %v4742 = vunpack.c.l.b16 %v4370
    %v4743 = vunpack.c.h.b16 %v4370
    %v4744 = vunpack.c.l.b16 %v4371
    %v4745 = vunpack.c.h.b16 %v4371
    %v4746 = vunpack.c.l.b16 %v4372
    %v4747 = vunpack.c.h.b16 %v4372
    %v4748 = vunpack.c.l.b16 %v4373
    %v4749 = vunpack.c.h.b16 %v4373
    %v4750 = vunpack.c.l.b16 %v4374
    %v4751 = vunpack.c.h.b16 %v4374
    %v4752 = vunpack.c.l.b16 %v4375
    %v4753 = vunpack.c.h.b16 %v4375
    %v4754 = vunpack.c.l.b16 %v4376
    %v4755 = vunpack.c.h.b16 %v4376
    %v4756 = vunpack.c.l.b16 %v4377
    %v4757 = vunpack.c.h.b16 %v4377
    %v4758 = vunpack.c.l.b16 %v4378
    %v4759 = vunpack.c.h.b16 %v4378
    %v4760 = vunpack.c.l.b16 %v4379
    %v4761 = vunpack.c.h.b16 %v4379
    %v4762 = vunpack.c.l.b16 %v4380
    %v4763 = vunpack.c.h.b16 %v4380
    %v4764 = vunpack.c.l.b16 %v4381
    %v4765 = vunpack.c.h.b16 %v4381
    %v4766 = vunpack.c.l.b16 %v4382
    %v4767 = vunpack.c.h.b16 %v4382
    %v4768 = vunpack.c.l.b16 %v4383
    %v4769 = vunpack.c.h.b16 %v4383
    %v4770 = vunpack.c.l.b16 %v4384
    %v4771 = vunpack.c.h.b16 %v4384
    %v4772 = vunpack.c.l.b16 %v4385
    %v4773 = vunpack.c.h.b16 %v4385
    %v4774 = vunpack.c.l.b16 %v4386
    %v4775 = vunpack.c.h.b16 %v4386
    %v4776 = vunpack.c.l.b16 %v4387
    %v4777 = vunpack.c.h.b16 %v4387
    %v4778 = vunpack.c.l.b16 %v4388
    %v4779 = vunpack.c.h.b16 %v4388
    %v4780 = vunpack.c.l.b16 %v4389
    %v4781 = vunpack.c.h.b16 %v4389
    %v4782 = vunpack.c.l.b16 %v4390
    %v4783 = vunpack.c.h.b16 %v4390
    %v4784 = vunpack.c.l.b16 %v4391
    %v4785 = vunpack.c.h.b16 %v4391
    %v4786 = vunpack.c.l.b16 %v4392
    %v4787 = vunpack.c.h.b16 %v4392
    %v4788 = vunpack.c.l.b16 %v4393
    %v4789 = vunpack.c.h.b16 %v4393
    %v4790 = vunpack.c.l.b16 %v4394
    %v4791 = vunpack.c.h.b16 %v4394
    %v4792 = vunpack.c.l.b16 %v4395
    %v4793 = vunpack.c.h.b16 %v4395
    %v4794 = vunpack.c.l.b16 %v4396
    %v4795 = vunpack.c.h.b16 %v4396
    %v4796 = vunpack.c.l.b16 %v4397
    %v4797 = vunpack.c.h.b16 %v4397
    %v4798 = vunpack.c.l.b16 %v4398
    %v4799 = vunpack.c.h.b16 %v4398
    %v4800 = vunpack.c.l.b16 %v4399
    %v4801 = vunpack.c.h.b16 %v4399
    %v4802 = vunpack.c.l.b16 %v4400
    %v4803 = vunpack.c.h.b16 %v4400
    %v4804 = vunpack.c.l.b16 %v4401
    %v4805 = vunpack.c.h.b16 %v4401
    %v4806 = vunpack.c.l.b16 %v4402
    %v4807 = vunpack.c.h.b16 %v4402
    %v4808 = vunpack.c.l.b16 %v4403
    %v4809 = vunpack.c.h.b16 %v4403
    %v4810 = vunpack.c.l.b16 %v4404
    %v4811 = vunpack.c.h.b16 %v4404
    %v4812 = vunpack.c.l.b16 %v4405
    %v4813 = vunpack.c.h.b16 %v4405
    %v4814 = vunpack.c.l.b16 %v4406
    %v4815 = vunpack.c.h.b16 %v4406
    %v4816 = vunpack.c.l.b16 %v4407
    %v4817 = vunpack.c.h.b16 %v4407
    %v4818 = vunpack.c.l.b16 %v4408
    %v4819 = vunpack.c.h.b16 %v4408
    %v4820 = vunpack.c.l.b16 %v4409
    %v4821 = vunpack.c.h.b16 %v4409
    %v4822 = vunpack.c.l.b16 %v4410
    %v4823 = vunpack.c.h.b16 %v4410
    %v4824 = vunpack.c.l.b16 %v4411
    %v4825 = vunpack.c.h.b16 %v4411
    %v4826 = vunpack.c.l.b16 %v4412
    %v4827 = vunpack.c.h.b16 %v4412
    %v4828 = vunpack.c.l.b16 %v4413
    %v4829 = vunpack.c.h.b16 %v4413
    %v4830 = vpack.c.b16 %v4578, %v4574
    %v4831 = vpack.c.b16 %v4579, %v4575
    %v4832 = vpack.c.b16 %v4580, %v4576
    %v4833 = vpack.c.b16 %v4581, %v4577
    %v4834 = vpack.c.b16 %v4586, %v4582
    %v4835 = vpack.c.b16 %v4587, %v4583
    %v4836 = vpack.c.b16 %v4588, %v4584
    %v4837 = vpack.c.b16 %v4589, %v4585
    %v4838 = vpack.c.b16 %v4594, %v4590
    %v4839 = vpack.c.b16 %v4595, %v4591
    %v4840 = vpack.c.b16 %v4596, %v4592
    %v4841 = vpack.c.b16 %v4597, %v4593
    %v4842 = vpack.c.b16 %v4602, %v4598
    %v4843 = vpack.c.b16 %v4603, %v4599
    %v4844 = vpack.c.b16 %v4604, %v4600
    %v4845 = vpack.c.b16 %v4605, %v4601
    %v4846 = vpack.c.b16 %v4610, %v4606
    %v4847 = vpack.c.b16 %v4611, %v4607
    %v4848 = vpack.c.b16 %v4612, %v4608
    %v4849 = vpack.c.b16 %v4613, %v4609
    %v4850 = vpack.c.b16 %v4618, %v4614
    %v4851 = vpack.c.b16 %v4619, %v4615
    %v4852 = vpack.c.b16 %v4620, %v4616
    %v4853 = vpack.c.b16 %v4621, %v4617
    %v4854 = vpack.c.b16 %v4626, %v4622
    %v4855 = vpack.c.b16 %v4627, %v4623
    %v4856 = vpack.c.b16 %v4628, %v4624
    %v4857 = vpack.c.b16 %v4629, %v4625
    %v4858 = vpack.c.b16 %v4634, %v4630
    %v4859 = vpack.c.b16 %v4635, %v4631
    %v4860 = vpack.c.b16 %v4636, %v4632
    %v4861 = vpack.c.b16 %v4637, %v4633
    %v4862 = vpack.c.b16 %v4642, %v4638
    %v4863 = vpack.c.b16 %v4643, %v4639
    %v4864 = vpack.c.b16 %v4644, %v4640
    %v4865 = vpack.c.b16 %v4645, %v4641
    %v4866 = vpack.c.b16 %v4650, %v4646
    %v4867 = vpack.c.b16 %v4651, %v4647
    %v4868 = vpack.c.b16 %v4652, %v4648
    %v4869 = vpack.c.b16 %v4653, %v4649
    %v4870 = vpack.c.b16 %v4658, %v4654
    %v4871 = vpack.c.b16 %v4659, %v4655
    %v4872 = vpack.c.b16 %v4660, %v4656
    %v4873 = vpack.c.b16 %v4661, %v4657
    %v4874 = vpack.c.b16 %v4666, %v4662
    %v4875 = vpack.c.b16 %v4667, %v4663
    %v4876 = vpack.c.b16 %v4668, %v4664
    %v4877 = vpack.c.b16 %v4669, %v4665
    %v4878 = vpack.c.b16 %v4674, %v4670
    %v4879 = vpack.c.b16 %v4675, %v4671
    %v4880 = vpack.c.b16 %v4676, %v4672
    %v4881 = vpack.c.b16 %v4677, %v4673
    %v4882 = vpack.c.b16 %v4682, %v4678
    %v4883 = vpack.c.b16 %v4683, %v4679
    %v4884 = vpack.c.b16 %v4684, %v4680
    %v4885 = vpack.c.b16 %v4685, %v4681
    %v4886 = vpack.c.b16 %v4690, %v4686
    %v4887 = vpack.c.b16 %v4691, %v4687
    %v4888 = vpack.c.b16 %v4692, %v4688
    %v4889 = vpack.c.b16 %v4693, %v4689
    %v4890 = vpack.c.b16 %v4698, %v4694
    %v4891 = vpack.c.b16 %v4699, %v4695
    %v4892 = vpack.c.b16 %v4700, %v4696
    %v4893 = vpack.c.b16 %v4701, %v4697
    %v4894 = vpack.c.b16 %v4706, %v4702
    %v4895 = vpack.c.b16 %v4707, %v4703
    %v4896 = vpack.c.b16 %v4708, %v4704
    %v4897 = vpack.c.b16 %v4709, %v4705
    %v4898 = vpack.c.b16 %v4714, %v4710
    %v4899 = vpack.c.b16 %v4715, %v4711
    %v4900 = vpack.c.b16 %v4716, %v4712
    %v4901 = vpack.c.b16 %v4717, %v4713
    %v4902 = vpack.c.b16 %v4722, %v4718
    %v4903 = vpack.c.b16 %v4723, %v4719
    %v4904 = vpack.c.b16 %v4724, %v4720
    %v4905 = vpack.c.b16 %v4725, %v4721
    %v4906 = vpack.c.b16 %v4730, %v4726
    %v4907 = vpack.c.b16 %v4731, %v4727
    %v4908 = vpack.c.b16 %v4732, %v4728
    %v4909 = vpack.c.b16 %v4733, %v4729
    %v4910 = vpack.c.b16 %v4738, %v4734
    %v4911 = vpack.c.b16 %v4739, %v4735
    %v4912 = vpack.c.b16 %v4740, %v4736
    %v4913 = vpack.c.b16 %v4741, %v4737
    %v4914 = vpack.c.b16 %v4746, %v4742
    %v4915 = vpack.c.b16 %v4747, %v4743
    %v4916 = vpack.c.b16 %v4748, %v4744
    %v4917 = vpack.c.b16 %v4749, %v4745
    %v4918 = vpack.c.b16 %v4754, %v4750
    %v4919 = vpack.c.b16 %v4755, %v4751
    %v4920 = vpack.c.b16 %v4756, %v4752
    %v4921 = vpack.c.b16 %v4757, %v4753
    %v4922 = vpack.c.b16 %v4762, %v4758
    %v4923 = vpack.c.b16 %v4763, %v4759
    %v4924 = vpack.c.b16 %v4764, %v4760
    %v4925 = vpack.c.b16 %v4765, %v4761
    %v4926 = vpack.c.b16 %v4770, %v4766
    %v4927 = vpack.c.b16 %v4771, %v4767
    %v4928 = vpack.c.b16 %v4772, %v4768
    %v4929 = vpack.c.b16 %v4773, %v4769
    %v4930 = vpack.c.b16 %v4778, %v4774
    %v4931 = vpack.c.b16 %v4779, %v4775
    %v4932 = vpack.c.b16 %v4780, %v4776
    %v4933 = vpack.c.b16 %v4781, %v4777
    %v4934 = vpack.c.b16 %v4786, %v4782
    %v4935 = vpack.c.b16 %v4787, %v4783
    %v4936 = vpack.c.b16 %v4788, %v4784
    %v4937 = vpack.c.b16 %v4789, %v4785
    %v4938 = vpack.c.b16 %v4794, %v4790
    %v4939 = vpack.c.b16 %v4795, %v4791
    %v4940 = vpack.c.b16 %v4796, %v4792
    %v4941 = vpack.c.b16 %v4797, %v4793
    %v4942 = vpack.c.b16 %v4802, %v4798
    %v4943 = vpack.c.b16 %v4803, %v4799
    %v4944 = vpack.c.b16 %v4804, %v4800
    %v4945 = vpack.c.b16 %v4805, %v4801
    %v4946 = vpack.c.b16 %v4810, %v4806
    %v4947 = vpack.c.b16 %v4811, %v4807
    %v4948 = vpack.c.b16 %v4812, %v4808
    %v4949 = vpack.c.b16 %v4813, %v4809
    %v4950 = vpack.c.b16 %v4818, %v4814
    %v4951 = vpack.c.b16 %v4819, %v4815
    %v4952 = vpack.c.b16 %v4820, %v4816
    %v4953 = vpack.c.b16 %v4821, %v4817
    %v4954 = vpack.c.b16 %v4826, %v4822
    %v4955 = vpack.c.b16 %v4827, %v4823
    %v4956 = vpack.c.b16 %v4828, %v4824
    %v4957 = vpack.c.b16 %v4829, %v4825
    %5086 = vmatprep.subr.bf16.mxu0 %v4831
    %5087 = vmatpush1.bf16.msra.mxu0 %v4830
    %5088 = vmatprep.subr.bf16.mxu0 %v4835
    %5089 = vmatpush1.bf16.msra.mxu0 %v4834
    %5090 = vmatprep.subr.bf16.mxu0 %v4839
    %5091 = vmatpush1.bf16.msra.mxu0 %v4838
    %5092 = vmatprep.subr.bf16.mxu0 %v4843
    %5093 = vmatpush1.bf16.msra.mxu0 %v4842
    %5094 = vmatprep.subr.bf16.mxu0 %v4847
    %5095 = vmatpush1.bf16.msra.mxu0 %v4846
    %5096 = vmatprep.subr.bf16.mxu0 %v4851
    %5097 = vmatpush1.bf16.msra.mxu0 %v4850
    %5098 = vmatprep.subr.bf16.mxu0 %v4855
    %5099 = vmatpush1.bf16.msra.mxu0 %v4854
    %5100 = vmatprep.subr.bf16.mxu0 %v4859
    %5101 = vmatpush1.bf16.msra.mxu0 %v4858
    %5102 = vmatprep.subr.bf16.mxu0 %v4863
    %5103 = vmatpush1.bf16.msra.mxu0 %v4862
    %5104 = vmatprep.subr.bf16.mxu0 %v4867
    %5105 = vmatpush1.bf16.msra.mxu0 %v4866
    %5106 = vmatprep.subr.bf16.mxu0 %v4871
    %5107 = vmatpush1.bf16.msra.mxu0 %v4870
    %5108 = vmatprep.subr.bf16.mxu0 %v4875
    %5109 = vmatpush1.bf16.msra.mxu0 %v4874
    %5110 = vmatprep.subr.bf16.mxu0 %v4879
    %5111 = vmatpush1.bf16.msra.mxu0 %v4878
    %5112 = vmatprep.subr.bf16.mxu0 %v4883
    %5113 = vmatpush1.bf16.msra.mxu0 %v4882
    %5114 = vmatprep.subr.bf16.mxu0 %v4887
    %5115 = vmatpush1.bf16.msra.mxu0 %v4886
    %5116 = vmatprep.subr.bf16.mxu0 %v4891
    %5117 = vmatpush1.bf16.msra.mxu0 %v4890
    %5118 = vmatprep.mubr.bf16.mxu0 %v4439
    %5119 = vmatmul.mubr.bf16.gmra.mrb[0].mxu0 %v4438
    %v5120 = vpop.f32.mrb[0].mxu0
    %v5121 = vadd.f32 0.0, %v5120
    %v5122 = vpop.f32.mrb[0].mxu0
    %v5123 = vadd.f32 0.0, %v5122
    %v5124 = vpop.f32.mrb[0].mxu0
    %v5125 = vpop.f32.mrb[0].mxu0
    %5126 = vdwg.mxu0
    %5127 = vmatprep.subr.bf16.mxu0 %v4895
    %5128 = vmatpush1.bf16.msra.mxu0 %v4894
    %5129 = vmatprep.subr.bf16.mxu0 %v4899
    %5130 = vmatpush1.bf16.msra.mxu0 %v4898
    %5131 = vmatprep.subr.bf16.mxu0 %v4903
    %5132 = vmatpush1.bf16.msra.mxu0 %v4902
    %5133 = vmatprep.subr.bf16.mxu0 %v4907
    %5134 = vmatpush1.bf16.msra.mxu0 %v4906
    %5135 = vmatprep.subr.bf16.mxu0 %v4911
    %5136 = vmatpush1.bf16.msra.mxu0 %v4910
    %5137 = vmatprep.subr.bf16.mxu0 %v4915
    %5138 = vmatpush1.bf16.msra.mxu0 %v4914
    %5139 = vmatprep.subr.bf16.mxu0 %v4919
    %5140 = vmatpush1.bf16.msra.mxu0 %v4918
    %5141 = vmatprep.subr.bf16.mxu0 %v4923
    %5142 = vmatpush1.bf16.msra.mxu0 %v4922
    %5143 = vmatprep.subr.bf16.mxu0 %v4927
    %5144 = vmatpush1.bf16.msra.mxu0 %v4926
    %5145 = vmatprep.subr.bf16.mxu0 %v4931
    %5146 = vmatpush1.bf16.msra.mxu0 %v4930
    %5147 = vmatprep.subr.bf16.mxu0 %v4935
    %5148 = vmatpush1.bf16.msra.mxu0 %v4934
    %5149 = vmatprep.subr.bf16.mxu0 %v4939
    %5150 = vmatpush1.bf16.msra.mxu0 %v4938
    %5151 = vmatprep.subr.bf16.mxu0 %v4943
    %5152 = vmatpush1.bf16.msra.mxu0 %v4942
    %5153 = vmatprep.subr.bf16.mxu0 %v4947
    %5154 = vmatpush1.bf16.msra.mxu0 %v4946
    %5155 = vmatprep.subr.bf16.mxu0 %v4951
    %5156 = vmatpush1.bf16.msra.mxu0 %v4950
    %5157 = vmatprep.subr.bf16.mxu0 %v4955
    %5158 = vmatpush1.bf16.msra.mxu0 %v4954
    %5159 = vmatprep.mubr.bf16.mxu0 %v4441
    %5160 = vmatmul.mubr.bf16.gmra.mrb[0].mxu0 %v4440
    %v5161 = vpop.f32.mrb[0].mxu0
    %v5162 = vadd.f32 %v5121, %v5161
    %v5163 = vpop.f32.mrb[0].mxu0
    %v5164 = vadd.f32 %v5123, %v5163
    %v5165 = vpop.f32.mrb[0].mxu0
    %v5166 = vpop.f32.mrb[0].mxu0
    %5167 = vdwg.mxu0
    %5168 = vmatprep.subr.bf16.mxu0 %v4833
    %5169 = vmatpush1.bf16.msra.mxu0 %v4832
    %5170 = vmatprep.subr.bf16.mxu0 %v4837
    %5171 = vmatpush1.bf16.msra.mxu0 %v4836
    %5172 = vmatprep.subr.bf16.mxu0 %v4841
    %5173 = vmatpush1.bf16.msra.mxu0 %v4840
    %5174 = vmatprep.subr.bf16.mxu0 %v4845
    %5175 = vmatpush1.bf16.msra.mxu0 %v4844
    %5176 = vmatprep.subr.bf16.mxu0 %v4849
    %5177 = vmatpush1.bf16.msra.mxu0 %v4848
    %5178 = vmatprep.subr.bf16.mxu0 %v4853
    %5179 = vmatpush1.bf16.msra.mxu0 %v4852
    %5180 = vmatprep.subr.bf16.mxu0 %v4857
    %5181 = vmatpush1.bf16.msra.mxu0 %v4856
    %5182 = vmatprep.subr.bf16.mxu0 %v4861
    %5183 = vmatpush1.bf16.msra.mxu0 %v4860
    %5184 = vmatprep.subr.bf16.mxu0 %v4865
    %5185 = vmatpush1.bf16.msra.mxu0 %v4864
    %5186 = vmatprep.subr.bf16.mxu0 %v4869
    %5187 = vmatpush1.bf16.msra.mxu0 %v4868
    %5188 = vmatprep.subr.bf16.mxu0 %v4873
    %5189 = vmatpush1.bf16.msra.mxu0 %v4872
    %5190 = vmatprep.subr.bf16.mxu0 %v4877
    %5191 = vmatpush1.bf16.msra.mxu0 %v4876
    %5192 = vmatprep.subr.bf16.mxu0 %v4881
    %5193 = vmatpush1.bf16.msra.mxu0 %v4880
    %5194 = vmatprep.subr.bf16.mxu0 %v4885
    %5195 = vmatpush1.bf16.msra.mxu0 %v4884
    %5196 = vmatprep.subr.bf16.mxu0 %v4889
    %5197 = vmatpush1.bf16.msra.mxu0 %v4888
    %5198 = vmatprep.subr.bf16.mxu0 %v4893
    %5199 = vmatpush1.bf16.msra.mxu0 %v4892
    %5200 = vmatprep.mubr.bf16.mxu0 %v4439
    %5201 = vmatmul.mubr.bf16.gmra.mrb[0].mxu0 %v4438
    %v5202 = vpop.f32.mrb[0].mxu0
    %v5203 = vadd.f32 0.0, %v5202
    %v5204 = vpop.f32.mrb[0].mxu0
    %v5205 = vadd.f32 0.0, %v5204
    %v5206 = vpop.f32.mrb[0].mxu0
    %v5207 = vpop.f32.mrb[0].mxu0
    %5208 = vdwg.mxu0
    %5209 = vmatprep.subr.bf16.mxu0 %v4897
    %5210 = vmatpush1.bf16.msra.mxu0 %v4896
    %5211 = vmatprep.subr.bf16.mxu0 %v4901
    %5212 = vmatpush1.bf16.msra.mxu0 %v4900
    %5213 = vmatprep.subr.bf16.mxu0 %v4905
    %5214 = vmatpush1.bf16.msra.mxu0 %v4904
    %5215 = vmatprep.subr.bf16.mxu0 %v4909
    %5216 = vmatpush1.bf16.msra.mxu0 %v4908
    %5217 = vmatprep.subr.bf16.mxu0 %v4913
    %5218 = vmatpush1.bf16.msra.mxu0 %v4912
    %5219 = vmatprep.subr.bf16.mxu0 %v4917
    %5220 = vmatpush1.bf16.msra.mxu0 %v4916
    %5221 = vmatprep.subr.bf16.mxu0 %v4921
    %5222 = vmatpush1.bf16.msra.mxu0 %v4920
    %5223 = vmatprep.subr.bf16.mxu0 %v4925
    %5224 = vmatpush1.bf16.msra.mxu0 %v4924
    %5225 = vmatprep.subr.bf16.mxu0 %v4929
    %5226 = vmatpush1.bf16.msra.mxu0 %v4928
    %5227 = vmatprep.subr.bf16.mxu0 %v4933
    %5228 = vmatpush1.bf16.msra.mxu0 %v4932
    %5229 = vmatprep.subr.bf16.mxu0 %v4937
    %5230 = vmatpush1.bf16.msra.mxu0 %v4936
    %5231 = vmatprep.subr.bf16.mxu0 %v4941
    %5232 = vmatpush1.bf16.msra.mxu0 %v4940
    %5233 = vmatprep.subr.bf16.mxu0 %v4945
    %5234 = vmatpush1.bf16.msra.mxu0 %v4944
    %5235 = vmatprep.subr.bf16.mxu0 %v4949
    %5236 = vmatpush1.bf16.msra.mxu0 %v4948
    %5237 = vmatprep.subr.bf16.mxu0 %v4953
    %5238 = vmatpush1.bf16.msra.mxu0 %v4952
    %5239 = vmatprep.subr.bf16.mxu0 %v4957
    %5240 = vmatpush1.bf16.msra.mxu0 %v4956
    %5241 = vmatprep.mubr.bf16.mxu0 %v4441
    %5242 = vmatmul.mubr.bf16.gmra.mrb[0].mxu0 %v4440
    %v5243 = vpop.f32.mrb[0].mxu0
    %v5244 = vadd.f32 %v5203, %v5243
    %v5245 = vpop.f32.mrb[0].mxu0
    %v5246 = vadd.f32 %v5205, %v5245
    %v5247 = vpop.f32.mrb[0].mxu0
    %v5248 = vpop.f32.mrb[0].mxu0
    %5249 = vdwg.mxu0
    %v5250 = vrot.slane %v4426, 7
    %v5251 = vsel %vm1613, %v5250, %v4422
    %v5252 = vrot.slane %v4427, 7
    %v5253 = vsel %vm1613, %v5252, %v4423
    %v5254 = vrot.slane %v4428, 7
    %v5255 = vsel %vm1613, %v5254, %v4424
    %v5256 = vrot.slane %v4429, 7
    %v5257 = vsel %vm1613, %v5256, %v4425
    %v5258 = vpack.c.b16 %v5251, %v5251
    %v5259 = vpack.c.b16 %v5253, %v5253
    %v5260 = vpack.c.b16 %v5255, %v5255
    %v5261 = vpack.c.b16 %v5257, %v5257
    %v5394 = vunpack.c.l.b16 %v4157
    %v5395 = vunpack.c.h.b16 %v4157
    %v5396 = vunpack.c.l.b16 %v4158
    %v5397 = vunpack.c.h.b16 %v4158
    %v5398 = vunpack.c.l.b16 %v4159
    %v5399 = vunpack.c.h.b16 %v4159
    %v5400 = vunpack.c.l.b16 %v4160
    %v5401 = vunpack.c.h.b16 %v4160
    %v5402 = vunpack.c.l.b16 %v4161
    %v5403 = vunpack.c.h.b16 %v4161
    %v5404 = vunpack.c.l.b16 %v4162
    %v5405 = vunpack.c.h.b16 %v4162
    %v5406 = vunpack.c.l.b16 %v4163
    %v5407 = vunpack.c.h.b16 %v4163
    %v5408 = vunpack.c.l.b16 %v4164
    %v5409 = vunpack.c.h.b16 %v4164
    %v5410 = vunpack.c.l.b16 %v4165
    %v5411 = vunpack.c.h.b16 %v4165
    %v5412 = vunpack.c.l.b16 %v4166
    %v5413 = vunpack.c.h.b16 %v4166
    %v5414 = vunpack.c.l.b16 %v4167
    %v5415 = vunpack.c.h.b16 %v4167
    %v5416 = vunpack.c.l.b16 %v4168
    %v5417 = vunpack.c.h.b16 %v4168
    %v5418 = vunpack.c.l.b16 %v4169
    %v5419 = vunpack.c.h.b16 %v4169
    %v5420 = vunpack.c.l.b16 %v4170
    %v5421 = vunpack.c.h.b16 %v4170
    %v5422 = vunpack.c.l.b16 %v4171
    %v5423 = vunpack.c.h.b16 %v4171
    %v5424 = vunpack.c.l.b16 %v4172
    %v5425 = vunpack.c.h.b16 %v4172
    %v5426 = vunpack.c.l.b16 %v4173
    %v5427 = vunpack.c.h.b16 %v4173
    %v5428 = vunpack.c.l.b16 %v4174
    %v5429 = vunpack.c.h.b16 %v4174
    %v5430 = vunpack.c.l.b16 %v4175
    %v5431 = vunpack.c.h.b16 %v4175
    %v5432 = vunpack.c.l.b16 %v4176
    %v5433 = vunpack.c.h.b16 %v4176
    %v5434 = vunpack.c.l.b16 %v4177
    %v5435 = vunpack.c.h.b16 %v4177
    %v5436 = vunpack.c.l.b16 %v4178
    %v5437 = vunpack.c.h.b16 %v4178
    %v5438 = vunpack.c.l.b16 %v4179
    %v5439 = vunpack.c.h.b16 %v4179
    %v5440 = vunpack.c.l.b16 %v4180
    %v5441 = vunpack.c.h.b16 %v4180
    %v5442 = vunpack.c.l.b16 %v4181
    %v5443 = vunpack.c.h.b16 %v4181
    %v5444 = vunpack.c.l.b16 %v4182
    %v5445 = vunpack.c.h.b16 %v4182
    %v5446 = vunpack.c.l.b16 %v4183
    %v5447 = vunpack.c.h.b16 %v4183
    %v5448 = vunpack.c.l.b16 %v4184
    %v5449 = vunpack.c.h.b16 %v4184
    %v5450 = vunpack.c.l.b16 %v4185
    %v5451 = vunpack.c.h.b16 %v4185
    %v5452 = vunpack.c.l.b16 %v4186
    %v5453 = vunpack.c.h.b16 %v4186
    %v5454 = vunpack.c.l.b16 %v4187
    %v5455 = vunpack.c.h.b16 %v4187
    %v5456 = vunpack.c.l.b16 %v4188
    %v5457 = vunpack.c.h.b16 %v4188
    %v5458 = vunpack.c.l.b16 %v4189
    %v5459 = vunpack.c.h.b16 %v4189
    %v5460 = vunpack.c.l.b16 %v4190
    %v5461 = vunpack.c.h.b16 %v4190
    %v5462 = vunpack.c.l.b16 %v4191
    %v5463 = vunpack.c.h.b16 %v4191
    %v5464 = vunpack.c.l.b16 %v4192
    %v5465 = vunpack.c.h.b16 %v4192
    %v5466 = vunpack.c.l.b16 %v4193
    %v5467 = vunpack.c.h.b16 %v4193
    %v5468 = vunpack.c.l.b16 %v4194
    %v5469 = vunpack.c.h.b16 %v4194
    %v5470 = vunpack.c.l.b16 %v4195
    %v5471 = vunpack.c.h.b16 %v4195
    %v5472 = vunpack.c.l.b16 %v4196
    %v5473 = vunpack.c.h.b16 %v4196
    %v5474 = vunpack.c.l.b16 %v4197
    %v5475 = vunpack.c.h.b16 %v4197
    %v5476 = vunpack.c.l.b16 %v4198
    %v5477 = vunpack.c.h.b16 %v4198
    %v5478 = vunpack.c.l.b16 %v4199
    %v5479 = vunpack.c.h.b16 %v4199
    %v5480 = vunpack.c.l.b16 %v4200
    %v5481 = vunpack.c.h.b16 %v4200
    %v5482 = vunpack.c.l.b16 %v4201
    %v5483 = vunpack.c.h.b16 %v4201
    %v5484 = vunpack.c.l.b16 %v4202
    %v5485 = vunpack.c.h.b16 %v4202
    %v5486 = vunpack.c.l.b16 %v4203
    %v5487 = vunpack.c.h.b16 %v4203
    %v5488 = vunpack.c.l.b16 %v4204
    %v5489 = vunpack.c.h.b16 %v4204
    %v5490 = vunpack.c.l.b16 %v4205
    %v5491 = vunpack.c.h.b16 %v4205
    %v5492 = vunpack.c.l.b16 %v4206
    %v5493 = vunpack.c.h.b16 %v4206
    %v5494 = vunpack.c.l.b16 %v4207
    %v5495 = vunpack.c.h.b16 %v4207
    %v5496 = vunpack.c.l.b16 %v4208
    %v5497 = vunpack.c.h.b16 %v4208
    %v5498 = vunpack.c.l.b16 %v4209
    %v5499 = vunpack.c.h.b16 %v4209
    %v5500 = vunpack.c.l.b16 %v4210
    %v5501 = vunpack.c.h.b16 %v4210
    %v5502 = vunpack.c.l.b16 %v4211
    %v5503 = vunpack.c.h.b16 %v4211
    %v5504 = vunpack.c.l.b16 %v4212
    %v5505 = vunpack.c.h.b16 %v4212
    %v5506 = vunpack.c.l.b16 %v4213
    %v5507 = vunpack.c.h.b16 %v4213
    %v5508 = vunpack.c.l.b16 %v4214
    %v5509 = vunpack.c.h.b16 %v4214
    %v5510 = vunpack.c.l.b16 %v4215
    %v5511 = vunpack.c.h.b16 %v4215
    %v5512 = vunpack.c.l.b16 %v4216
    %v5513 = vunpack.c.h.b16 %v4216
    %v5514 = vunpack.c.l.b16 %v4217
    %v5515 = vunpack.c.h.b16 %v4217
    %v5516 = vunpack.c.l.b16 %v4218
    %v5517 = vunpack.c.h.b16 %v4218
    %v5518 = vunpack.c.l.b16 %v4219
    %v5519 = vunpack.c.h.b16 %v4219
    %v5520 = vunpack.c.l.b16 %v4220
    %v5521 = vunpack.c.h.b16 %v4220
    %v5522 = vunpack.c.l.b16 %v4221
    %v5523 = vunpack.c.h.b16 %v4221
    %v5524 = vunpack.c.l.b16 %v4222
    %v5525 = vunpack.c.h.b16 %v4222
    %v5526 = vunpack.c.l.b16 %v4223
    %v5527 = vunpack.c.h.b16 %v4223
    %v5528 = vunpack.c.l.b16 %v4224
    %v5529 = vunpack.c.h.b16 %v4224
    %v5530 = vunpack.c.l.b16 %v4225
    %v5531 = vunpack.c.h.b16 %v4225
    %v5532 = vunpack.c.l.b16 %v4226
    %v5533 = vunpack.c.h.b16 %v4226
    %v5534 = vunpack.c.l.b16 %v4227
    %v5535 = vunpack.c.h.b16 %v4227
    %v5536 = vunpack.c.l.b16 %v4228
    %v5537 = vunpack.c.h.b16 %v4228
    %v5538 = vunpack.c.l.b16 %v4229
    %v5539 = vunpack.c.h.b16 %v4229
    %v5540 = vunpack.c.l.b16 %v4230
    %v5541 = vunpack.c.h.b16 %v4230
    %v5542 = vunpack.c.l.b16 %v4231
    %v5543 = vunpack.c.h.b16 %v4231
    %v5544 = vunpack.c.l.b16 %v4232
    %v5545 = vunpack.c.h.b16 %v4232
    %v5546 = vunpack.c.l.b16 %v4233
    %v5547 = vunpack.c.h.b16 %v4233
    %v5548 = vunpack.c.l.b16 %v4234
    %v5549 = vunpack.c.h.b16 %v4234
    %v5550 = vunpack.c.l.b16 %v4235
    %v5551 = vunpack.c.h.b16 %v4235
    %v5552 = vunpack.c.l.b16 %v4236
    %v5553 = vunpack.c.h.b16 %v4236
    %v5554 = vunpack.c.l.b16 %v4237
    %v5555 = vunpack.c.h.b16 %v4237
    %v5556 = vunpack.c.l.b16 %v4238
    %v5557 = vunpack.c.h.b16 %v4238
    %v5558 = vunpack.c.l.b16 %v4239
    %v5559 = vunpack.c.h.b16 %v4239
    %v5560 = vunpack.c.l.b16 %v4240
    %v5561 = vunpack.c.h.b16 %v4240
    %v5562 = vunpack.c.l.b16 %v4241
    %v5563 = vunpack.c.h.b16 %v4241
    %v5564 = vunpack.c.l.b16 %v4242
    %v5565 = vunpack.c.h.b16 %v4242
    %v5566 = vunpack.c.l.b16 %v4243
    %v5567 = vunpack.c.h.b16 %v4243
    %v5568 = vunpack.c.l.b16 %v4244
    %v5569 = vunpack.c.h.b16 %v4244
    %v5570 = vunpack.c.l.b16 %v4245
    %v5571 = vunpack.c.h.b16 %v4245
    %v5572 = vunpack.c.l.b16 %v4246
    %v5573 = vunpack.c.h.b16 %v4246
    %v5574 = vunpack.c.l.b16 %v4247
    %v5575 = vunpack.c.h.b16 %v4247
    %v5576 = vunpack.c.l.b16 %v4248
    %v5577 = vunpack.c.h.b16 %v4248
    %v5578 = vunpack.c.l.b16 %v4249
    %v5579 = vunpack.c.h.b16 %v4249
    %v5580 = vunpack.c.l.b16 %v4250
    %v5581 = vunpack.c.h.b16 %v4250
    %v5582 = vunpack.c.l.b16 %v4251
    %v5583 = vunpack.c.h.b16 %v4251
    %v5584 = vunpack.c.l.b16 %v4252
    %v5585 = vunpack.c.h.b16 %v4252
    %v5586 = vunpack.c.l.b16 %v4253
    %v5587 = vunpack.c.h.b16 %v4253
    %v5588 = vunpack.c.l.b16 %v4254
    %v5589 = vunpack.c.h.b16 %v4254
    %v5590 = vunpack.c.l.b16 %v4255
    %v5591 = vunpack.c.h.b16 %v4255
    %v5592 = vunpack.c.l.b16 %v4256
    %v5593 = vunpack.c.h.b16 %v4256
    %v5594 = vunpack.c.l.b16 %v4257
    %v5595 = vunpack.c.h.b16 %v4257
    %v5596 = vunpack.c.l.b16 %v4258
    %v5597 = vunpack.c.h.b16 %v4258
    %v5598 = vunpack.c.l.b16 %v4259
    %v5599 = vunpack.c.h.b16 %v4259
    %v5600 = vunpack.c.l.b16 %v4260
    %v5601 = vunpack.c.h.b16 %v4260
    %v5602 = vunpack.c.l.b16 %v4261
    %v5603 = vunpack.c.h.b16 %v4261
    %v5604 = vunpack.c.l.b16 %v4262
    %v5605 = vunpack.c.h.b16 %v4262
    %v5606 = vunpack.c.l.b16 %v4263
    %v5607 = vunpack.c.h.b16 %v4263
    %v5608 = vunpack.c.l.b16 %v4264
    %v5609 = vunpack.c.h.b16 %v4264
    %v5610 = vunpack.c.l.b16 %v4265
    %v5611 = vunpack.c.h.b16 %v4265
    %v5612 = vunpack.c.l.b16 %v4266
    %v5613 = vunpack.c.h.b16 %v4266
    %v5614 = vunpack.c.l.b16 %v4267
    %v5615 = vunpack.c.h.b16 %v4267
    %v5616 = vunpack.c.l.b16 %v4268
    %v5617 = vunpack.c.h.b16 %v4268
    %v5618 = vunpack.c.l.b16 %v4269
    %v5619 = vunpack.c.h.b16 %v4269
    %v5620 = vunpack.c.l.b16 %v4270
    %v5621 = vunpack.c.h.b16 %v4270
    %v5622 = vunpack.c.l.b16 %v4271
    %v5623 = vunpack.c.h.b16 %v4271
    %v5624 = vunpack.c.l.b16 %v4272
    %v5625 = vunpack.c.h.b16 %v4272
    %v5626 = vunpack.c.l.b16 %v4273
    %v5627 = vunpack.c.h.b16 %v4273
    %v5628 = vunpack.c.l.b16 %v4274
    %v5629 = vunpack.c.h.b16 %v4274
    %v5630 = vunpack.c.l.b16 %v4275
    %v5631 = vunpack.c.h.b16 %v4275
    %v5632 = vunpack.c.l.b16 %v4276
    %v5633 = vunpack.c.h.b16 %v4276
    %v5634 = vunpack.c.l.b16 %v4277
    %v5635 = vunpack.c.h.b16 %v4277
    %v5636 = vunpack.c.l.b16 %v4278
    %v5637 = vunpack.c.h.b16 %v4278
    %v5638 = vunpack.c.l.b16 %v4279
    %v5639 = vunpack.c.h.b16 %v4279
    %v5640 = vunpack.c.l.b16 %v4280
    %v5641 = vunpack.c.h.b16 %v4280
    %v5642 = vunpack.c.l.b16 %v4281
    %v5643 = vunpack.c.h.b16 %v4281
    %v5644 = vunpack.c.l.b16 %v4282
    %v5645 = vunpack.c.h.b16 %v4282
    %v5646 = vunpack.c.l.b16 %v4283
    %v5647 = vunpack.c.h.b16 %v4283
    %v5648 = vunpack.c.l.b16 %v4284
    %v5649 = vunpack.c.h.b16 %v4284
    %v5650 = vpack.c.b16 %v5398, %v5394
    %v5651 = vpack.c.b16 %v5399, %v5395
    %v5652 = vpack.c.b16 %v5400, %v5396
    %v5653 = vpack.c.b16 %v5401, %v5397
    %v5654 = vpack.c.b16 %v5406, %v5402
    %v5655 = vpack.c.b16 %v5407, %v5403
    %v5656 = vpack.c.b16 %v5408, %v5404
    %v5657 = vpack.c.b16 %v5409, %v5405
    %v5658 = vpack.c.b16 %v5414, %v5410
    %v5659 = vpack.c.b16 %v5415, %v5411
    %v5660 = vpack.c.b16 %v5416, %v5412
    %v5661 = vpack.c.b16 %v5417, %v5413
    %v5662 = vpack.c.b16 %v5422, %v5418
    %v5663 = vpack.c.b16 %v5423, %v5419
    %v5664 = vpack.c.b16 %v5424, %v5420
    %v5665 = vpack.c.b16 %v5425, %v5421
    %v5666 = vpack.c.b16 %v5430, %v5426
    %v5667 = vpack.c.b16 %v5431, %v5427
    %v5668 = vpack.c.b16 %v5432, %v5428
    %v5669 = vpack.c.b16 %v5433, %v5429
    %v5670 = vpack.c.b16 %v5438, %v5434
    %v5671 = vpack.c.b16 %v5439, %v5435
    %v5672 = vpack.c.b16 %v5440, %v5436
    %v5673 = vpack.c.b16 %v5441, %v5437
    %v5674 = vpack.c.b16 %v5446, %v5442
    %v5675 = vpack.c.b16 %v5447, %v5443
    %v5676 = vpack.c.b16 %v5448, %v5444
    %v5677 = vpack.c.b16 %v5449, %v5445
    %v5678 = vpack.c.b16 %v5454, %v5450
    %v5679 = vpack.c.b16 %v5455, %v5451
    %v5680 = vpack.c.b16 %v5456, %v5452
    %v5681 = vpack.c.b16 %v5457, %v5453
    %v5682 = vpack.c.b16 %v5462, %v5458
    %v5683 = vpack.c.b16 %v5463, %v5459
    %v5684 = vpack.c.b16 %v5464, %v5460
    %v5685 = vpack.c.b16 %v5465, %v5461
    %v5686 = vpack.c.b16 %v5470, %v5466
    %v5687 = vpack.c.b16 %v5471, %v5467
    %v5688 = vpack.c.b16 %v5472, %v5468
    %v5689 = vpack.c.b16 %v5473, %v5469
    %v5690 = vpack.c.b16 %v5478, %v5474
    %v5691 = vpack.c.b16 %v5479, %v5475
    %v5692 = vpack.c.b16 %v5480, %v5476
    %v5693 = vpack.c.b16 %v5481, %v5477
    %v5694 = vpack.c.b16 %v5486, %v5482
    %v5695 = vpack.c.b16 %v5487, %v5483
    %v5696 = vpack.c.b16 %v5488, %v5484
    %v5697 = vpack.c.b16 %v5489, %v5485
    %v5698 = vpack.c.b16 %v5494, %v5490
    %v5699 = vpack.c.b16 %v5495, %v5491
    %v5700 = vpack.c.b16 %v5496, %v5492
    %v5701 = vpack.c.b16 %v5497, %v5493
    %v5702 = vpack.c.b16 %v5502, %v5498
    %v5703 = vpack.c.b16 %v5503, %v5499
    %v5704 = vpack.c.b16 %v5504, %v5500
    %v5705 = vpack.c.b16 %v5505, %v5501
    %v5706 = vpack.c.b16 %v5510, %v5506
    %v5707 = vpack.c.b16 %v5511, %v5507
    %v5708 = vpack.c.b16 %v5512, %v5508
    %v5709 = vpack.c.b16 %v5513, %v5509
    %v5710 = vpack.c.b16 %v5518, %v5514
    %v5711 = vpack.c.b16 %v5519, %v5515
    %v5712 = vpack.c.b16 %v5520, %v5516
    %v5713 = vpack.c.b16 %v5521, %v5517
    %v5714 = vpack.c.b16 %v5526, %v5522
    %v5715 = vpack.c.b16 %v5527, %v5523
    %v5716 = vpack.c.b16 %v5528, %v5524
    %v5717 = vpack.c.b16 %v5529, %v5525
    %v5718 = vpack.c.b16 %v5534, %v5530
    %v5719 = vpack.c.b16 %v5535, %v5531
    %v5720 = vpack.c.b16 %v5536, %v5532
    %v5721 = vpack.c.b16 %v5537, %v5533
    %v5722 = vpack.c.b16 %v5542, %v5538
    %v5723 = vpack.c.b16 %v5543, %v5539
    %v5724 = vpack.c.b16 %v5544, %v5540
    %v5725 = vpack.c.b16 %v5545, %v5541
    %v5726 = vpack.c.b16 %v5550, %v5546
    %v5727 = vpack.c.b16 %v5551, %v5547
    %v5728 = vpack.c.b16 %v5552, %v5548
    %v5729 = vpack.c.b16 %v5553, %v5549
    %v5730 = vpack.c.b16 %v5558, %v5554
    %v5731 = vpack.c.b16 %v5559, %v5555
    %v5732 = vpack.c.b16 %v5560, %v5556
    %v5733 = vpack.c.b16 %v5561, %v5557
    %v5734 = vpack.c.b16 %v5566, %v5562
    %v5735 = vpack.c.b16 %v5567, %v5563
    %v5736 = vpack.c.b16 %v5568, %v5564
    %v5737 = vpack.c.b16 %v5569, %v5565
    %v5738 = vpack.c.b16 %v5574, %v5570
    %v5739 = vpack.c.b16 %v5575, %v5571
    %v5740 = vpack.c.b16 %v5576, %v5572
    %v5741 = vpack.c.b16 %v5577, %v5573
    %v5742 = vpack.c.b16 %v5582, %v5578
    %v5743 = vpack.c.b16 %v5583, %v5579
    %v5744 = vpack.c.b16 %v5584, %v5580
    %v5745 = vpack.c.b16 %v5585, %v5581
    %v5746 = vpack.c.b16 %v5590, %v5586
    %v5747 = vpack.c.b16 %v5591, %v5587
    %v5748 = vpack.c.b16 %v5592, %v5588
    %v5749 = vpack.c.b16 %v5593, %v5589
    %v5750 = vpack.c.b16 %v5598, %v5594
    %v5751 = vpack.c.b16 %v5599, %v5595
    %v5752 = vpack.c.b16 %v5600, %v5596
    %v5753 = vpack.c.b16 %v5601, %v5597
    %v5754 = vpack.c.b16 %v5606, %v5602
    %v5755 = vpack.c.b16 %v5607, %v5603
    %v5756 = vpack.c.b16 %v5608, %v5604
    %v5757 = vpack.c.b16 %v5609, %v5605
    %v5758 = vpack.c.b16 %v5614, %v5610
    %v5759 = vpack.c.b16 %v5615, %v5611
    %v5760 = vpack.c.b16 %v5616, %v5612
    %v5761 = vpack.c.b16 %v5617, %v5613
    %v5762 = vpack.c.b16 %v5622, %v5618
    %v5763 = vpack.c.b16 %v5623, %v5619
    %v5764 = vpack.c.b16 %v5624, %v5620
    %v5765 = vpack.c.b16 %v5625, %v5621
    %v5766 = vpack.c.b16 %v5630, %v5626
    %v5767 = vpack.c.b16 %v5631, %v5627
    %v5768 = vpack.c.b16 %v5632, %v5628
    %v5769 = vpack.c.b16 %v5633, %v5629
    %v5770 = vpack.c.b16 %v5638, %v5634
    %v5771 = vpack.c.b16 %v5639, %v5635
    %v5772 = vpack.c.b16 %v5640, %v5636
    %v5773 = vpack.c.b16 %v5641, %v5637
    %v5774 = vpack.c.b16 %v5646, %v5642
    %v5775 = vpack.c.b16 %v5647, %v5643
    %v5776 = vpack.c.b16 %v5648, %v5644
    %v5777 = vpack.c.b16 %v5649, %v5645
    %5906 = vmatprep.subr.bf16.mxu0 %v5651
    %5907 = vmatpush1.bf16.msra.mxu0 %v5650
    %5908 = vmatprep.subr.bf16.mxu0 %v5655
    %5909 = vmatpush1.bf16.msra.mxu0 %v5654
    %5910 = vmatprep.subr.bf16.mxu0 %v5659
    %5911 = vmatpush1.bf16.msra.mxu0 %v5658
    %5912 = vmatprep.subr.bf16.mxu0 %v5663
    %5913 = vmatpush1.bf16.msra.mxu0 %v5662
    %5914 = vmatprep.subr.bf16.mxu0 %v5667
    %5915 = vmatpush1.bf16.msra.mxu0 %v5666
    %5916 = vmatprep.subr.bf16.mxu0 %v5671
    %5917 = vmatpush1.bf16.msra.mxu0 %v5670
    %5918 = vmatprep.subr.bf16.mxu0 %v5675
    %5919 = vmatpush1.bf16.msra.mxu0 %v5674
    %5920 = vmatprep.subr.bf16.mxu0 %v5679
    %5921 = vmatpush1.bf16.msra.mxu0 %v5678
    %5922 = vmatprep.subr.bf16.mxu0 %v5683
    %5923 = vmatpush1.bf16.msra.mxu0 %v5682
    %5924 = vmatprep.subr.bf16.mxu0 %v5687
    %5925 = vmatpush1.bf16.msra.mxu0 %v5686
    %5926 = vmatprep.subr.bf16.mxu0 %v5691
    %5927 = vmatpush1.bf16.msra.mxu0 %v5690
    %5928 = vmatprep.subr.bf16.mxu0 %v5695
    %5929 = vmatpush1.bf16.msra.mxu0 %v5694
    %5930 = vmatprep.subr.bf16.mxu0 %v5699
    %5931 = vmatpush1.bf16.msra.mxu0 %v5698
    %5932 = vmatprep.subr.bf16.mxu0 %v5703
    %5933 = vmatpush1.bf16.msra.mxu0 %v5702
    %5934 = vmatprep.subr.bf16.mxu0 %v5707
    %5935 = vmatpush1.bf16.msra.mxu0 %v5706
    %5936 = vmatprep.subr.bf16.mxu0 %v5711
    %5937 = vmatpush1.bf16.msra.mxu0 %v5710
    %5938 = vmatprep.mubr.bf16.mxu0 %v5259
    %5939 = vmatmul.mubr.bf16.gmra.mrb[0].mxu0 %v5258
    %v5940 = vpop.f32.mrb[0].mxu0
    %v5941 = vadd.f32 %v5162, %v5940
    %v5942 = vpop.f32.mrb[0].mxu0
    %v5943 = vadd.f32 %v5164, %v5942
    %v5944 = vpop.f32.mrb[0].mxu0
    %v5945 = vpop.f32.mrb[0].mxu0
    %5946 = vdwg.mxu0
    %5947 = vmatprep.subr.bf16.mxu0 %v5715
    %5948 = vmatpush1.bf16.msra.mxu0 %v5714
    %5949 = vmatprep.subr.bf16.mxu0 %v5719
    %5950 = vmatpush1.bf16.msra.mxu0 %v5718
    %5951 = vmatprep.subr.bf16.mxu0 %v5723
    %5952 = vmatpush1.bf16.msra.mxu0 %v5722
    %5953 = vmatprep.subr.bf16.mxu0 %v5727
    %5954 = vmatpush1.bf16.msra.mxu0 %v5726
    %5955 = vmatprep.subr.bf16.mxu0 %v5731
    %5956 = vmatpush1.bf16.msra.mxu0 %v5730
    %5957 = vmatprep.subr.bf16.mxu0 %v5735
    %5958 = vmatpush1.bf16.msra.mxu0 %v5734
    %5959 = vmatprep.subr.bf16.mxu0 %v5739
    %5960 = vmatpush1.bf16.msra.mxu0 %v5738
    %5961 = vmatprep.subr.bf16.mxu0 %v5743
    %5962 = vmatpush1.bf16.msra.mxu0 %v5742
    %5963 = vmatprep.subr.bf16.mxu0 %v5747
    %5964 = vmatpush1.bf16.msra.mxu0 %v5746
    %5965 = vmatprep.subr.bf16.mxu0 %v5751
    %5966 = vmatpush1.bf16.msra.mxu0 %v5750
    %5967 = vmatprep.subr.bf16.mxu0 %v5755
    %5968 = vmatpush1.bf16.msra.mxu0 %v5754
    %5969 = vmatprep.subr.bf16.mxu0 %v5759
    %5970 = vmatpush1.bf16.msra.mxu0 %v5758
    %5971 = vmatprep.subr.bf16.mxu0 %v5763
    %5972 = vmatpush1.bf16.msra.mxu0 %v5762
    %5973 = vmatprep.subr.bf16.mxu0 %v5767
    %5974 = vmatpush1.bf16.msra.mxu0 %v5766
    %5975 = vmatprep.subr.bf16.mxu0 %v5771
    %5976 = vmatpush1.bf16.msra.mxu0 %v5770
    %5977 = vmatprep.subr.bf16.mxu0 %v5775
    %5978 = vmatpush1.bf16.msra.mxu0 %v5774
    %5979 = vmatprep.mubr.bf16.mxu0 %v5261
    %5980 = vmatmul.mubr.bf16.gmra.mrb[0].mxu0 %v5260
    %v5981 = vpop.f32.mrb[0].mxu0
    %v5982 = vadd.f32 %v5941, %v5981
    %v5983 = vpop.f32.mrb[0].mxu0
    %v5984 = vadd.f32 %v5943, %v5983
    %v5985 = vpop.f32.mrb[0].mxu0
    %v5986 = vpop.f32.mrb[0].mxu0
    %5987 = vdwg.mxu0
    %5988 = vmatprep.subr.bf16.mxu0 %v5653
    %5989 = vmatpush1.bf16.msra.mxu0 %v5652
    %5990 = vmatprep.subr.bf16.mxu0 %v5657
    %5991 = vmatpush1.bf16.msra.mxu0 %v5656
    %5992 = vmatprep.subr.bf16.mxu0 %v5661
    %5993 = vmatpush1.bf16.msra.mxu0 %v5660
    %5994 = vmatprep.subr.bf16.mxu0 %v5665
    %5995 = vmatpush1.bf16.msra.mxu0 %v5664
    %5996 = vmatprep.subr.bf16.mxu0 %v5669
    %5997 = vmatpush1.bf16.msra.mxu0 %v5668
    %5998 = vmatprep.subr.bf16.mxu0 %v5673
    %5999 = vmatpush1.bf16.msra.mxu0 %v5672
    %6000 = vmatprep.subr.bf16.mxu0 %v5677
    %6001 = vmatpush1.bf16.msra.mxu0 %v5676
    %6002 = vmatprep.subr.bf16.mxu0 %v5681
    %6003 = vmatpush1.bf16.msra.mxu0 %v5680
    %6004 = vmatprep.subr.bf16.mxu0 %v5685
    %6005 = vmatpush1.bf16.msra.mxu0 %v5684
    %6006 = vmatprep.subr.bf16.mxu0 %v5689
    %6007 = vmatpush1.bf16.msra.mxu0 %v5688
    %6008 = vmatprep.subr.bf16.mxu0 %v5693
    %6009 = vmatpush1.bf16.msra.mxu0 %v5692
    %6010 = vmatprep.subr.bf16.mxu0 %v5697
    %6011 = vmatpush1.bf16.msra.mxu0 %v5696
    %6012 = vmatprep.subr.bf16.mxu0 %v5701
    %6013 = vmatpush1.bf16.msra.mxu0 %v5700
    %6014 = vmatprep.subr.bf16.mxu0 %v5705
    %6015 = vmatpush1.bf16.msra.mxu0 %v5704
    %6016 = vmatprep.subr.bf16.mxu0 %v5709
    %6017 = vmatpush1.bf16.msra.mxu0 %v5708
    %6018 = vmatprep.subr.bf16.mxu0 %v5713
    %6019 = vmatpush1.bf16.msra.mxu0 %v5712
    %6020 = vmatprep.mubr.bf16.mxu0 %v5259
    %6021 = vmatmul.mubr.bf16.gmra.mrb[0].mxu0 %v5258
    %v6022 = vpop.f32.mrb[0].mxu0
    %v6023 = vadd.f32 %v5244, %v6022
    %v6024 = vpop.f32.mrb[0].mxu0
    %v6025 = vadd.f32 %v5246, %v6024
    %v6026 = vpop.f32.mrb[0].mxu0
    %v6027 = vpop.f32.mrb[0].mxu0
    %6028 = vdwg.mxu0
    %6029 = vmatprep.subr.bf16.mxu0 %v5717
    %6030 = vmatpush1.bf16.msra.mxu0 %v5716
    %6031 = vmatprep.subr.bf16.mxu0 %v5721
    %6032 = vmatpush1.bf16.msra.mxu0 %v5720
    %6033 = vmatprep.subr.bf16.mxu0 %v5725
    %6034 = vmatpush1.bf16.msra.mxu0 %v5724
    %6035 = vmatprep.subr.bf16.mxu0 %v5729
    %6036 = vmatpush1.bf16.msra.mxu0 %v5728
    %6037 = vmatprep.subr.bf16.mxu0 %v5733
    %6038 = vmatpush1.bf16.msra.mxu0 %v5732
    %6039 = vmatprep.subr.bf16.mxu0 %v5737
    %6040 = vmatpush1.bf16.msra.mxu0 %v5736
    %6041 = vmatprep.subr.bf16.mxu0 %v5741
    %6042 = vmatpush1.bf16.msra.mxu0 %v5740
    %6043 = vmatprep.subr.bf16.mxu0 %v5745
    %6044 = vmatpush1.bf16.msra.mxu0 %v5744
    %6045 = vmatprep.subr.bf16.mxu0 %v5749
    %6046 = vmatpush1.bf16.msra.mxu0 %v5748
    %6047 = vmatprep.subr.bf16.mxu0 %v5753
    %6048 = vmatpush1.bf16.msra.mxu0 %v5752
    %6049 = vmatprep.subr.bf16.mxu0 %v5757
    %6050 = vmatpush1.bf16.msra.mxu0 %v5756
    %6051 = vmatprep.subr.bf16.mxu0 %v5761
    %6052 = vmatpush1.bf16.msra.mxu0 %v5760
    %6053 = vmatprep.subr.bf16.mxu0 %v5765
    %6054 = vmatpush1.bf16.msra.mxu0 %v5764
    %6055 = vmatprep.subr.bf16.mxu0 %v5769
    %6056 = vmatpush1.bf16.msra.mxu0 %v5768
    %6057 = vmatprep.subr.bf16.mxu0 %v5773
    %6058 = vmatpush1.bf16.msra.mxu0 %v5772
    %6059 = vmatprep.subr.bf16.mxu0 %v5777
    %6060 = vmatpush1.bf16.msra.mxu0 %v5776
    %6061 = vmatprep.mubr.bf16.mxu0 %v5261
    %6062 = vmatmul.mubr.bf16.gmra.mrb[0].mxu0 %v5260
    %v6063 = vpop.f32.mrb[0].mxu0
    %v6064 = vadd.f32 %v6023, %v6063
    %v6065 = vpop.f32.mrb[0].mxu0
    %v6066 = vadd.f32 %v6025, %v6065
    %v6067 = vpop.f32.mrb[0].mxu0
    %v6068 = vpop.f32.mrb[0].mxu0
    %6069 = vdwg.mxu0
    %s6070 = scalar_lea.vmem [#allocation14], 2048
    %v6071 = vld [vmem:[%s6070] sm:$0xff]
    %v6072 = vld [vmem:[%s6070 + $0x8] sm:$0xff]
    %v6073 = vld [vmem:[%s6070 + $0x10] sm:$0xff]
    %v6074 = vld [vmem:[%s6070 + $0x18] sm:$0xff]
    %v6075 = vld [vmem:[%s6070 + $0x20] sm:$0xff]
    %v6076 = vld [vmem:[%s6070 + $0x28] sm:$0xff]
    %v6077 = vld [vmem:[%s6070 + $0x30] sm:$0xff]
    %v6078 = vld [vmem:[%s6070 + $0x38] sm:$0xff]
    %v6079 = vld [vmem:[%s6070 + $0x40] sm:$0xff]
    %v6080 = vld [vmem:[%s6070 + $0x48] sm:$0xff]
    %v6081 = vld [vmem:[%s6070 + $0x50] sm:$0xff]
    %v6082 = vld [vmem:[%s6070 + $0x58] sm:$0xff]
    %v6083 = vld [vmem:[%s6070 + $0x60] sm:$0xff]
    %v6084 = vld [vmem:[%s6070 + $0x68] sm:$0xff]
    %v6085 = vld [vmem:[%s6070 + $0x70] sm:$0xff]
    %v6086 = vld [vmem:[%s6070 + $0x78] sm:$0xff]
    %v6087 = vld [vmem:[%s6070 + $0x80] sm:$0xff]
    %v6088 = vld [vmem:[%s6070 + $0x88] sm:$0xff]
    %v6089 = vld [vmem:[%s6070 + $0x90] sm:$0xff]
    %v6090 = vld [vmem:[%s6070 + $0x98] sm:$0xff]
    %v6091 = vld [vmem:[%s6070 + $0xa0] sm:$0xff]
    %v6092 = vld [vmem:[%s6070 + $0xa8] sm:$0xff]
    %v6093 = vld [vmem:[%s6070 + $0xb0] sm:$0xff]
    %v6094 = vld [vmem:[%s6070 + $0xb8] sm:$0xff]
    %v6095 = vld [vmem:[%s6070 + $0xc0] sm:$0xff]
    %v6096 = vld [vmem:[%s6070 + $0xc8] sm:$0xff]
    %v6097 = vld [vmem:[%s6070 + $0xd0] sm:$0xff]
    %v6098 = vld [vmem:[%s6070 + $0xd8] sm:$0xff]
    %v6099 = vld [vmem:[%s6070 + $0xe0] sm:$0xff]
    %v6100 = vld [vmem:[%s6070 + $0xe8] sm:$0xff]
    %v6101 = vld [vmem:[%s6070 + $0xf0] sm:$0xff]
    %v6102 = vld [vmem:[%s6070 + $0xf8] sm:$0xff]
    %v6103 = vld [vmem:[%s6070 + $0x100] sm:$0xff]
    %v6104 = vld [vmem:[%s6070 + $0x108] sm:$0xff]
    %v6105 = vld [vmem:[%s6070 + $0x110] sm:$0xff]
    %v6106 = vld [vmem:[%s6070 + $0x118] sm:$0xff]
    %v6107 = vld [vmem:[%s6070 + $0x120] sm:$0xff]
    %v6108 = vld [vmem:[%s6070 + $0x128] sm:$0xff]
    %v6109 = vld [vmem:[%s6070 + $0x130] sm:$0xff]
    %v6110 = vld [vmem:[%s6070 + $0x138] sm:$0xff]
    %v6111 = vld [vmem:[%s6070 + $0x140] sm:$0xff]
    %v6112 = vld [vmem:[%s6070 + $0x148] sm:$0xff]
    %v6113 = vld [vmem:[%s6070 + $0x150] sm:$0xff]
    %v6114 = vld [vmem:[%s6070 + $0x158] sm:$0xff]
    %v6115 = vld [vmem:[%s6070 + $0x160] sm:$0xff]
    %v6116 = vld [vmem:[%s6070 + $0x168] sm:$0xff]
    %v6117 = vld [vmem:[%s6070 + $0x170] sm:$0xff]
    %v6118 = vld [vmem:[%s6070 + $0x178] sm:$0xff]
    %v6119 = vld [vmem:[%s6070 + $0x180] sm:$0xff]
    %v6120 = vld [vmem:[%s6070 + $0x188] sm:$0xff]
    %v6121 = vld [vmem:[%s6070 + $0x190] sm:$0xff]
    %v6122 = vld [vmem:[%s6070 + $0x198] sm:$0xff]
    %v6123 = vld [vmem:[%s6070 + $0x1a0] sm:$0xff]
    %v6124 = vld [vmem:[%s6070 + $0x1a8] sm:$0xff]
    %v6125 = vld [vmem:[%s6070 + $0x1b0] sm:$0xff]
    %v6126 = vld [vmem:[%s6070 + $0x1b8] sm:$0xff]
    %v6127 = vld [vmem:[%s6070 + $0x1c0] sm:$0xff]
    %v6128 = vld [vmem:[%s6070 + $0x1c8] sm:$0xff]
    %v6129 = vld [vmem:[%s6070 + $0x1d0] sm:$0xff]
    %v6130 = vld [vmem:[%s6070 + $0x1d8] sm:$0xff]
    %v6131 = vld [vmem:[%s6070 + $0x1e0] sm:$0xff]
    %v6132 = vld [vmem:[%s6070 + $0x1e8] sm:$0xff]
    %v6133 = vld [vmem:[%s6070 + $0x1f0] sm:$0xff]
    %v6134 = vld [vmem:[%s6070 + $0x1f8] sm:$0xff]
    %v6135 = vld [vmem:[%s6070 + $0x200] sm:$0xff]
    %v6136 = vld [vmem:[%s6070 + $0x208] sm:$0xff]
    %v6137 = vld [vmem:[%s6070 + $0x210] sm:$0xff]
    %v6138 = vld [vmem:[%s6070 + $0x218] sm:$0xff]
    %v6139 = vld [vmem:[%s6070 + $0x220] sm:$0xff]
    %v6140 = vld [vmem:[%s6070 + $0x228] sm:$0xff]
    %v6141 = vld [vmem:[%s6070 + $0x230] sm:$0xff]
    %v6142 = vld [vmem:[%s6070 + $0x238] sm:$0xff]
    %v6143 = vld [vmem:[%s6070 + $0x240] sm:$0xff]
    %v6144 = vld [vmem:[%s6070 + $0x248] sm:$0xff]
    %v6145 = vld [vmem:[%s6070 + $0x250] sm:$0xff]
    %v6146 = vld [vmem:[%s6070 + $0x258] sm:$0xff]
    %v6147 = vld [vmem:[%s6070 + $0x260] sm:$0xff]
    %v6148 = vld [vmem:[%s6070 + $0x268] sm:$0xff]
    %v6149 = vld [vmem:[%s6070 + $0x270] sm:$0xff]
    %v6150 = vld [vmem:[%s6070 + $0x278] sm:$0xff]
    %v6151 = vld [vmem:[%s6070 + $0x280] sm:$0xff]
    %v6152 = vld [vmem:[%s6070 + $0x288] sm:$0xff]
    %v6153 = vld [vmem:[%s6070 + $0x290] sm:$0xff]
    %v6154 = vld [vmem:[%s6070 + $0x298] sm:$0xff]
    %v6155 = vld [vmem:[%s6070 + $0x2a0] sm:$0xff]
    %v6156 = vld [vmem:[%s6070 + $0x2a8] sm:$0xff]
    %v6157 = vld [vmem:[%s6070 + $0x2b0] sm:$0xff]
    %v6158 = vld [vmem:[%s6070 + $0x2b8] sm:$0xff]
    %v6159 = vld [vmem:[%s6070 + $0x2c0] sm:$0xff]
    %v6160 = vld [vmem:[%s6070 + $0x2c8] sm:$0xff]
    %v6161 = vld [vmem:[%s6070 + $0x2d0] sm:$0xff]
    %v6162 = vld [vmem:[%s6070 + $0x2d8] sm:$0xff]
    %v6163 = vld [vmem:[%s6070 + $0x2e0] sm:$0xff]
    %v6164 = vld [vmem:[%s6070 + $0x2e8] sm:$0xff]
    %v6165 = vld [vmem:[%s6070 + $0x2f0] sm:$0xff]
    %v6166 = vld [vmem:[%s6070 + $0x2f8] sm:$0xff]
    %v6167 = vld [vmem:[%s6070 + $0x300] sm:$0xff]
    %v6168 = vld [vmem:[%s6070 + $0x308] sm:$0xff]
    %v6169 = vld [vmem:[%s6070 + $0x310] sm:$0xff]
    %v6170 = vld [vmem:[%s6070 + $0x318] sm:$0xff]
    %v6171 = vld [vmem:[%s6070 + $0x320] sm:$0xff]
    %v6172 = vld [vmem:[%s6070 + $0x328] sm:$0xff]
    %v6173 = vld [vmem:[%s6070 + $0x330] sm:$0xff]
    %v6174 = vld [vmem:[%s6070 + $0x338] sm:$0xff]
    %v6175 = vld [vmem:[%s6070 + $0x340] sm:$0xff]
    %v6176 = vld [vmem:[%s6070 + $0x348] sm:$0xff]
    %v6177 = vld [vmem:[%s6070 + $0x350] sm:$0xff]
    %v6178 = vld [vmem:[%s6070 + $0x358] sm:$0xff]
    %v6179 = vld [vmem:[%s6070 + $0x360] sm:$0xff]
    %v6180 = vld [vmem:[%s6070 + $0x368] sm:$0xff]
    %v6181 = vld [vmem:[%s6070 + $0x370] sm:$0xff]
    %v6182 = vld [vmem:[%s6070 + $0x378] sm:$0xff]
    %v6183 = vld [vmem:[%s6070 + $0x380] sm:$0xff]
    %v6184 = vld [vmem:[%s6070 + $0x388] sm:$0xff]
    %v6185 = vld [vmem:[%s6070 + $0x390] sm:$0xff]
    %v6186 = vld [vmem:[%s6070 + $0x398] sm:$0xff]
    %v6187 = vld [vmem:[%s6070 + $0x3a0] sm:$0xff]
    %v6188 = vld [vmem:[%s6070 + $0x3a8] sm:$0xff]
    %v6189 = vld [vmem:[%s6070 + $0x3b0] sm:$0xff]
    %v6190 = vld [vmem:[%s6070 + $0x3b8] sm:$0xff]
    %v6191 = vld [vmem:[%s6070 + $0x3c0] sm:$0xff]
    %v6192 = vld [vmem:[%s6070 + $0x3c8] sm:$0xff]
    %v6193 = vld [vmem:[%s6070 + $0x3d0] sm:$0xff]
    %v6194 = vld [vmem:[%s6070 + $0x3d8] sm:$0xff]
    %v6195 = vld [vmem:[%s6070 + $0x3e0] sm:$0xff]
    %v6196 = vld [vmem:[%s6070 + $0x3e8] sm:$0xff]
    %v6197 = vld [vmem:[%s6070 + $0x3f0] sm:$0xff]
    %v6198 = vld [vmem:[%s6070 + $0x3f8] sm:$0xff]
    %v6199 = vrot.slane %v4422, 2
    %v6200 = vrot.slane %v4426, 1
    %v6201 = vsel %vm1613, %v6200, %v6199
    %v6202 = vrot.slane %v4423, 2
    %v6203 = vrot.slane %v4427, 1
    %v6204 = vsel %vm1613, %v6203, %v6202
    %v6205 = vrot.slane %v4424, 2
    %v6206 = vrot.slane %v4428, 1
    %v6207 = vsel %vm1613, %v6206, %v6205
    %v6208 = vrot.slane %v4425, 2
    %v6209 = vrot.slane %v4429, 1
    %v6210 = vsel %vm1613, %v6209, %v6208
    %v6211 = vpack.c.b16 %v6201, %v6201
    %v6212 = vpack.c.b16 %v6204, %v6204
    %v6213 = vpack.c.b16 %v6207, %v6207
    %v6214 = vpack.c.b16 %v6210, %v6210
    %v6347 = vunpack.c.l.b16 %v6071
    %v6348 = vunpack.c.h.b16 %v6071
    %v6349 = vunpack.c.l.b16 %v6072
    %v6350 = vunpack.c.h.b16 %v6072
    %v6351 = vunpack.c.l.b16 %v6073
    %v6352 = vunpack.c.h.b16 %v6073
    %v6353 = vunpack.c.l.b16 %v6074
    %v6354 = vunpack.c.h.b16 %v6074
    %v6355 = vunpack.c.l.b16 %v6075
    %v6356 = vunpack.c.h.b16 %v6075
    %v6357 = vunpack.c.l.b16 %v6076
    %v6358 = vunpack.c.h.b16 %v6076
    %v6359 = vunpack.c.l.b16 %v6077
    %v6360 = vunpack.c.h.b16 %v6077
    %v6361 = vunpack.c.l.b16 %v6078
    %v6362 = vunpack.c.h.b16 %v6078
    %v6363 = vunpack.c.l.b16 %v6079
    %v6364 = vunpack.c.h.b16 %v6079
    %v6365 = vunpack.c.l.b16 %v6080
    %v6366 = vunpack.c.h.b16 %v6080
    %v6367 = vunpack.c.l.b16 %v6081
    %v6368 = vunpack.c.h.b16 %v6081
    %v6369 = vunpack.c.l.b16 %v6082
    %v6370 = vunpack.c.h.b16 %v6082
    %v6371 = vunpack.c.l.b16 %v6083
    %v6372 = vunpack.c.h.b16 %v6083
    %v6373 = vunpack.c.l.b16 %v6084
    %v6374 = vunpack.c.h.b16 %v6084
    %v6375 = vunpack.c.l.b16 %v6085
    %v6376 = vunpack.c.h.b16 %v6085
    %v6377 = vunpack.c.l.b16 %v6086
    %v6378 = vunpack.c.h.b16 %v6086
    %v6379 = vunpack.c.l.b16 %v6087
    %v6380 = vunpack.c.h.b16 %v6087
    %v6381 = vunpack.c.l.b16 %v6088
    %v6382 = vunpack.c.h.b16 %v6088
    %v6383 = vunpack.c.l.b16 %v6089
    %v6384 = vunpack.c.h.b16 %v6089
    %v6385 = vunpack.c.l.b16 %v6090
    %v6386 = vunpack.c.h.b16 %v6090
    %v6387 = vunpack.c.l.b16 %v6091
    %v6388 = vunpack.c.h.b16 %v6091
    %v6389 = vunpack.c.l.b16 %v6092
    %v6390 = vunpack.c.h.b16 %v6092
    %v6391 = vunpack.c.l.b16 %v6093
    %v6392 = vunpack.c.h.b16 %v6093
    %v6393 = vunpack.c.l.b16 %v6094
    %v6394 = vunpack.c.h.b16 %v6094
    %v6395 = vunpack.c.l.b16 %v6095
    %v6396 = vunpack.c.h.b16 %v6095
    %v6397 = vunpack.c.l.b16 %v6096
    %v6398 = vunpack.c.h.b16 %v6096
    %v6399 = vunpack.c.l.b16 %v6097
    %v6400 = vunpack.c.h.b16 %v6097
    %v6401 = vunpack.c.l.b16 %v6098
    %v6402 = vunpack.c.h.b16 %v6098
    %v6403 = vunpack.c.l.b16 %v6099
    %v6404 = vunpack.c.h.b16 %v6099
    %v6405 = vunpack.c.l.b16 %v6100
    %v6406 = vunpack.c.h.b16 %v6100
    %v6407 = vunpack.c.l.b16 %v6101
    %v6408 = vunpack.c.h.b16 %v6101
    %v6409 = vunpack.c.l.b16 %v6102
    %v6410 = vunpack.c.h.b16 %v6102
    %v6411 = vunpack.c.l.b16 %v6103
    %v6412 = vunpack.c.h.b16 %v6103
    %v6413 = vunpack.c.l.b16 %v6104
    %v6414 = vunpack.c.h.b16 %v6104
    %v6415 = vunpack.c.l.b16 %v6105
    %v6416 = vunpack.c.h.b16 %v6105
    %v6417 = vunpack.c.l.b16 %v6106
    %v6418 = vunpack.c.h.b16 %v6106
    %v6419 = vunpack.c.l.b16 %v6107
    %v6420 = vunpack.c.h.b16 %v6107
    %v6421 = vunpack.c.l.b16 %v6108
    %v6422 = vunpack.c.h.b16 %v6108
    %v6423 = vunpack.c.l.b16 %v6109
    %v6424 = vunpack.c.h.b16 %v6109
    %v6425 = vunpack.c.l.b16 %v6110
    %v6426 = vunpack.c.h.b16 %v6110
    %v6427 = vunpack.c.l.b16 %v6111
    %v6428 = vunpack.c.h.b16 %v6111
    %v6429 = vunpack.c.l.b16 %v6112
    %v6430 = vunpack.c.h.b16 %v6112
    %v6431 = vunpack.c.l.b16 %v6113
    %v6432 = vunpack.c.h.b16 %v6113
    %v6433 = vunpack.c.l.b16 %v6114
    %v6434 = vunpack.c.h.b16 %v6114
    %v6435 = vunpack.c.l.b16 %v6115
    %v6436 = vunpack.c.h.b16 %v6115
    %v6437 = vunpack.c.l.b16 %v6116
    %v6438 = vunpack.c.h.b16 %v6116
    %v6439 = vunpack.c.l.b16 %v6117
    %v6440 = vunpack.c.h.b16 %v6117
    %v6441 = vunpack.c.l.b16 %v6118
    %v6442 = vunpack.c.h.b16 %v6118
    %v6443 = vunpack.c.l.b16 %v6119
    %v6444 = vunpack.c.h.b16 %v6119
    %v6445 = vunpack.c.l.b16 %v6120
    %v6446 = vunpack.c.h.b16 %v6120
    %v6447 = vunpack.c.l.b16 %v6121
    %v6448 = vunpack.c.h.b16 %v6121
    %v6449 = vunpack.c.l.b16 %v6122
    %v6450 = vunpack.c.h.b16 %v6122
    %v6451 = vunpack.c.l.b16 %v6123
    %v6452 = vunpack.c.h.b16 %v6123
    %v6453 = vunpack.c.l.b16 %v6124
    %v6454 = vunpack.c.h.b16 %v6124
    %v6455 = vunpack.c.l.b16 %v6125
    %v6456 = vunpack.c.h.b16 %v6125
    %v6457 = vunpack.c.l.b16 %v6126
    %v6458 = vunpack.c.h.b16 %v6126
    %v6459 = vunpack.c.l.b16 %v6127
    %v6460 = vunpack.c.h.b16 %v6127
    %v6461 = vunpack.c.l.b16 %v6128
    %v6462 = vunpack.c.h.b16 %v6128
    %v6463 = vunpack.c.l.b16 %v6129
    %v6464 = vunpack.c.h.b16 %v6129
    %v6465 = vunpack.c.l.b16 %v6130
    %v6466 = vunpack.c.h.b16 %v6130
    %v6467 = vunpack.c.l.b16 %v6131
    %v6468 = vunpack.c.h.b16 %v6131
    %v6469 = vunpack.c.l.b16 %v6132
    %v6470 = vunpack.c.h.b16 %v6132
    %v6471 = vunpack.c.l.b16 %v6133
    %v6472 = vunpack.c.h.b16 %v6133
    %v6473 = vunpack.c.l.b16 %v6134
    %v6474 = vunpack.c.h.b16 %v6134
    %v6475 = vunpack.c.l.b16 %v6135
    %v6476 = vunpack.c.h.b16 %v6135
    %v6477 = vunpack.c.l.b16 %v6136
    %v6478 = vunpack.c.h.b16 %v6136
    %v6479 = vunpack.c.l.b16 %v6137
    %v6480 = vunpack.c.h.b16 %v6137
    %v6481 = vunpack.c.l.b16 %v6138
    %v6482 = vunpack.c.h.b16 %v6138
    %v6483 = vunpack.c.l.b16 %v6139
    %v6484 = vunpack.c.h.b16 %v6139
    %v6485 = vunpack.c.l.b16 %v6140
    %v6486 = vunpack.c.h.b16 %v6140
    %v6487 = vunpack.c.l.b16 %v6141
    %v6488 = vunpack.c.h.b16 %v6141
    %v6489 = vunpack.c.l.b16 %v6142
    %v6490 = vunpack.c.h.b16 %v6142
    %v6491 = vunpack.c.l.b16 %v6143
    %v6492 = vunpack.c.h.b16 %v6143
    %v6493 = vunpack.c.l.b16 %v6144
    %v6494 = vunpack.c.h.b16 %v6144
    %v6495 = vunpack.c.l.b16 %v6145
    %v6496 = vunpack.c.h.b16 %v6145
    %v6497 = vunpack.c.l.b16 %v6146
    %v6498 = vunpack.c.h.b16 %v6146
    %v6499 = vunpack.c.l.b16 %v6147
    %v6500 = vunpack.c.h.b16 %v6147
    %v6501 = vunpack.c.l.b16 %v6148
    %v6502 = vunpack.c.h.b16 %v6148
    %v6503 = vunpack.c.l.b16 %v6149
    %v6504 = vunpack.c.h.b16 %v6149
    %v6505 = vunpack.c.l.b16 %v6150
    %v6506 = vunpack.c.h.b16 %v6150
    %v6507 = vunpack.c.l.b16 %v6151
    %v6508 = vunpack.c.h.b16 %v6151
    %v6509 = vunpack.c.l.b16 %v6152
    %v6510 = vunpack.c.h.b16 %v6152
    %v6511 = vunpack.c.l.b16 %v6153
    %v6512 = vunpack.c.h.b16 %v6153
    %v6513 = vunpack.c.l.b16 %v6154
    %v6514 = vunpack.c.h.b16 %v6154
    %v6515 = vunpack.c.l.b16 %v6155
    %v6516 = vunpack.c.h.b16 %v6155
    %v6517 = vunpack.c.l.b16 %v6156
    %v6518 = vunpack.c.h.b16 %v6156
    %v6519 = vunpack.c.l.b16 %v6157
    %v6520 = vunpack.c.h.b16 %v6157
    %v6521 = vunpack.c.l.b16 %v6158
    %v6522 = vunpack.c.h.b16 %v6158
    %v6523 = vunpack.c.l.b16 %v6159
    %v6524 = vunpack.c.h.b16 %v6159
    %v6525 = vunpack.c.l.b16 %v6160
    %v6526 = vunpack.c.h.b16 %v6160
    %v6527 = vunpack.c.l.b16 %v6161
    %v6528 = vunpack.c.h.b16 %v6161
    %v6529 = vunpack.c.l.b16 %v6162
    %v6530 = vunpack.c.h.b16 %v6162
    %v6531 = vunpack.c.l.b16 %v6163
    %v6532 = vunpack.c.h.b16 %v6163
    %v6533 = vunpack.c.l.b16 %v6164
    %v6534 = vunpack.c.h.b16 %v6164
    %v6535 = vunpack.c.l.b16 %v6165
    %v6536 = vunpack.c.h.b16 %v6165
    %v6537 = vunpack.c.l.b16 %v6166
    %v6538 = vunpack.c.h.b16 %v6166
    %v6539 = vunpack.c.l.b16 %v6167
    %v6540 = vunpack.c.h.b16 %v6167
    %v6541 = vunpack.c.l.b16 %v6168
    %v6542 = vunpack.c.h.b16 %v6168
    %v6543 = vunpack.c.l.b16 %v6169
    %v6544 = vunpack.c.h.b16 %v6169
    %v6545 = vunpack.c.l.b16 %v6170
    %v6546 = vunpack.c.h.b16 %v6170
    %v6547 = vunpack.c.l.b16 %v6171
    %v6548 = vunpack.c.h.b16 %v6171
    %v6549 = vunpack.c.l.b16 %v6172
    %v6550 = vunpack.c.h.b16 %v6172
    %v6551 = vunpack.c.l.b16 %v6173
    %v6552 = vunpack.c.h.b16 %v6173
    %v6553 = vunpack.c.l.b16 %v6174
    %v6554 = vunpack.c.h.b16 %v6174
    %v6555 = vunpack.c.l.b16 %v6175
    %v6556 = vunpack.c.h.b16 %v6175
    %v6557 = vunpack.c.l.b16 %v6176
    %v6558 = vunpack.c.h.b16 %v6176
    %v6559 = vunpack.c.l.b16 %v6177
    %v6560 = vunpack.c.h.b16 %v6177
    %v6561 = vunpack.c.l.b16 %v6178
    %v6562 = vunpack.c.h.b16 %v6178
    %v6563 = vunpack.c.l.b16 %v6179
    %v6564 = vunpack.c.h.b16 %v6179
    %v6565 = vunpack.c.l.b16 %v6180
    %v6566 = vunpack.c.h.b16 %v6180
    %v6567 = vunpack.c.l.b16 %v6181
    %v6568 = vunpack.c.h.b16 %v6181
    %v6569 = vunpack.c.l.b16 %v6182
    %v6570 = vunpack.c.h.b16 %v6182
    %v6571 = vunpack.c.l.b16 %v6183
    %v6572 = vunpack.c.h.b16 %v6183
    %v6573 = vunpack.c.l.b16 %v6184
    %v6574 = vunpack.c.h.b16 %v6184
    %v6575 = vunpack.c.l.b16 %v6185
    %v6576 = vunpack.c.h.b16 %v6185
    %v6577 = vunpack.c.l.b16 %v6186
    %v6578 = vunpack.c.h.b16 %v6186
    %v6579 = vunpack.c.l.b16 %v6187
    %v6580 = vunpack.c.h.b16 %v6187
    %v6581 = vunpack.c.l.b16 %v6188
    %v6582 = vunpack.c.h.b16 %v6188
    %v6583 = vunpack.c.l.b16 %v6189
    %v6584 = vunpack.c.h.b16 %v6189
    %v6585 = vunpack.c.l.b16 %v6190
    %v6586 = vunpack.c.h.b16 %v6190
    %v6587 = vunpack.c.l.b16 %v6191
    %v6588 = vunpack.c.h.b16 %v6191
    %v6589 = vunpack.c.l.b16 %v6192
    %v6590 = vunpack.c.h.b16 %v6192
    %v6591 = vunpack.c.l.b16 %v6193
    %v6592 = vunpack.c.h.b16 %v6193
    %v6593 = vunpack.c.l.b16 %v6194
    %v6594 = vunpack.c.h.b16 %v6194
    %v6595 = vunpack.c.l.b16 %v6195
    %v6596 = vunpack.c.h.b16 %v6195
    %v6597 = vunpack.c.l.b16 %v6196
    %v6598 = vunpack.c.h.b16 %v6196
    %v6599 = vunpack.c.l.b16 %v6197
    %v6600 = vunpack.c.h.b16 %v6197
    %v6601 = vunpack.c.l.b16 %v6198
    %v6602 = vunpack.c.h.b16 %v6198
    %v6603 = vpack.c.b16 %v6351, %v6347
    %v6604 = vpack.c.b16 %v6352, %v6348
    %v6605 = vpack.c.b16 %v6353, %v6349
    %v6606 = vpack.c.b16 %v6354, %v6350
    %v6607 = vpack.c.b16 %v6359, %v6355
    %v6608 = vpack.c.b16 %v6360, %v6356
    %v6609 = vpack.c.b16 %v6361, %v6357
    %v6610 = vpack.c.b16 %v6362, %v6358
    %v6611 = vpack.c.b16 %v6367, %v6363
    %v6612 = vpack.c.b16 %v6368, %v6364
    %v6613 = vpack.c.b16 %v6369, %v6365
    %v6614 = vpack.c.b16 %v6370, %v6366
    %v6615 = vpack.c.b16 %v6375, %v6371
    %v6616 = vpack.c.b16 %v6376, %v6372
    %v6617 = vpack.c.b16 %v6377, %v6373
    %v6618 = vpack.c.b16 %v6378, %v6374
    %v6619 = vpack.c.b16 %v6383, %v6379
    %v6620 = vpack.c.b16 %v6384, %v6380
    %v6621 = vpack.c.b16 %v6385, %v6381
    %v6622 = vpack.c.b16 %v6386, %v6382
    %v6623 = vpack.c.b16 %v6391, %v6387
    %v6624 = vpack.c.b16 %v6392, %v6388
    %v6625 = vpack.c.b16 %v6393, %v6389
    %v6626 = vpack.c.b16 %v6394, %v6390
    %v6627 = vpack.c.b16 %v6399, %v6395
    %v6628 = vpack.c.b16 %v6400, %v6396
    %v6629 = vpack.c.b16 %v6401, %v6397
    %v6630 = vpack.c.b16 %v6402, %v6398
    %v6631 = vpack.c.b16 %v6407, %v6403
    %v6632 = vpack.c.b16 %v6408, %v6404
    %v6633 = vpack.c.b16 %v6409, %v6405
    %v6634 = vpack.c.b16 %v6410, %v6406
    %v6635 = vpack.c.b16 %v6415, %v6411
    %v6636 = vpack.c.b16 %v6416, %v6412
    %v6637 = vpack.c.b16 %v6417, %v6413
    %v6638 = vpack.c.b16 %v6418, %v6414
    %v6639 = vpack.c.b16 %v6423, %v6419
    %v6640 = vpack.c.b16 %v6424, %v6420
    %v6641 = vpack.c.b16 %v6425, %v6421
    %v6642 = vpack.c.b16 %v6426, %v6422
    %v6643 = vpack.c.b16 %v6431, %v6427
    %v6644 = vpack.c.b16 %v6432, %v6428
    %v6645 = vpack.c.b16 %v6433, %v6429
    %v6646 = vpack.c.b16 %v6434, %v6430
    %v6647 = vpack.c.b16 %v6439, %v6435
    %v6648 = vpack.c.b16 %v6440, %v6436
    %v6649 = vpack.c.b16 %v6441, %v6437
    %v6650 = vpack.c.b16 %v6442, %v6438
    %v6651 = vpack.c.b16 %v6447, %v6443
    %v6652 = vpack.c.b16 %v6448, %v6444
    %v6653 = vpack.c.b16 %v6449, %v6445
    %v6654 = vpack.c.b16 %v6450, %v6446
    %v6655 = vpack.c.b16 %v6455, %v6451
    %v6656 = vpack.c.b16 %v6456, %v6452
    %v6657 = vpack.c.b16 %v6457, %v6453
    %v6658 = vpack.c.b16 %v6458, %v6454
    %v6659 = vpack.c.b16 %v6463, %v6459
    %v6660 = vpack.c.b16 %v6464, %v6460
    %v6661 = vpack.c.b16 %v6465, %v6461
    %v6662 = vpack.c.b16 %v6466, %v6462
    %v6663 = vpack.c.b16 %v6471, %v6467
    %v6664 = vpack.c.b16 %v6472, %v6468
    %v6665 = vpack.c.b16 %v6473, %v6469
    %v6666 = vpack.c.b16 %v6474, %v6470
    %v6667 = vpack.c.b16 %v6479, %v6475
    %v6668 = vpack.c.b16 %v6480, %v6476
    %v6669 = vpack.c.b16 %v6481, %v6477
    %v6670 = vpack.c.b16 %v6482, %v6478
    %v6671 = vpack.c.b16 %v6487, %v6483
    %v6672 = vpack.c.b16 %v6488, %v6484
    %v6673 = vpack.c.b16 %v6489, %v6485
    %v6674 = vpack.c.b16 %v6490, %v6486
    %v6675 = vpack.c.b16 %v6495, %v6491
    %v6676 = vpack.c.b16 %v6496, %v6492
    %v6677 = vpack.c.b16 %v6497, %v6493
    %v6678 = vpack.c.b16 %v6498, %v6494
    %v6679 = vpack.c.b16 %v6503, %v6499
    %v6680 = vpack.c.b16 %v6504, %v6500
    %v6681 = vpack.c.b16 %v6505, %v6501
    %v6682 = vpack.c.b16 %v6506, %v6502
    %v6683 = vpack.c.b16 %v6511, %v6507
    %v6684 = vpack.c.b16 %v6512, %v6508
    %v6685 = vpack.c.b16 %v6513, %v6509
    %v6686 = vpack.c.b16 %v6514, %v6510
    %v6687 = vpack.c.b16 %v6519, %v6515
    %v6688 = vpack.c.b16 %v6520, %v6516
    %v6689 = vpack.c.b16 %v6521, %v6517
    %v6690 = vpack.c.b16 %v6522, %v6518
    %v6691 = vpack.c.b16 %v6527, %v6523
    %v6692 = vpack.c.b16 %v6528, %v6524
    %v6693 = vpack.c.b16 %v6529, %v6525
    %v6694 = vpack.c.b16 %v6530, %v6526
    %v6695 = vpack.c.b16 %v6535, %v6531
    %v6696 = vpack.c.b16 %v6536, %v6532
    %v6697 = vpack.c.b16 %v6537, %v6533
    %v6698 = vpack.c.b16 %v6538, %v6534
    %v6699 = vpack.c.b16 %v6543, %v6539
    %v6700 = vpack.c.b16 %v6544, %v6540
    %v6701 = vpack.c.b16 %v6545, %v6541
    %v6702 = vpack.c.b16 %v6546, %v6542
    %v6703 = vpack.c.b16 %v6551, %v6547
    %v6704 = vpack.c.b16 %v6552, %v6548
    %v6705 = vpack.c.b16 %v6553, %v6549
    %v6706 = vpack.c.b16 %v6554, %v6550
    %v6707 = vpack.c.b16 %v6559, %v6555
    %v6708 = vpack.c.b16 %v6560, %v6556
    %v6709 = vpack.c.b16 %v6561, %v6557
    %v6710 = vpack.c.b16 %v6562, %v6558
    %v6711 = vpack.c.b16 %v6567, %v6563
    %v6712 = vpack.c.b16 %v6568, %v6564
    %v6713 = vpack.c.b16 %v6569, %v6565
    %v6714 = vpack.c.b16 %v6570, %v6566
    %v6715 = vpack.c.b16 %v6575, %v6571
    %v6716 = vpack.c.b16 %v6576, %v6572
    %v6717 = vpack.c.b16 %v6577, %v6573
    %v6718 = vpack.c.b16 %v6578, %v6574
    %v6719 = vpack.c.b16 %v6583, %v6579
    %v6720 = vpack.c.b16 %v6584, %v6580
    %v6721 = vpack.c.b16 %v6585, %v6581
    %v6722 = vpack.c.b16 %v6586, %v6582
    %v6723 = vpack.c.b16 %v6591, %v6587
    %v6724 = vpack.c.b16 %v6592, %v6588
    %v6725 = vpack.c.b16 %v6593, %v6589
    %v6726 = vpack.c.b16 %v6594, %v6590
    %v6727 = vpack.c.b16 %v6599, %v6595
    %v6728 = vpack.c.b16 %v6600, %v6596
    %v6729 = vpack.c.b16 %v6601, %v6597
    %v6730 = vpack.c.b16 %v6602, %v6598
    %6859 = vmatprep.subr.bf16.mxu0 %v6604
    %6860 = vmatpush1.bf16.msra.mxu0 %v6603
    %6861 = vmatprep.subr.bf16.mxu0 %v6608
    %6862 = vmatpush1.bf16.msra.mxu0 %v6607
    %6863 = vmatprep.subr.bf16.mxu0 %v6612
    %6864 = vmatpush1.bf16.msra.mxu0 %v6611
    %6865 = vmatprep.subr.bf16.mxu0 %v6616
    %6866 = vmatpush1.bf16.msra.mxu0 %v6615
    %6867 = vmatprep.subr.bf16.mxu0 %v6620
    %6868 = vmatpush1.bf16.msra.mxu0 %v6619
    %6869 = vmatprep.subr.bf16.mxu0 %v6624
    %6870 = vmatpush1.bf16.msra.mxu0 %v6623
    %6871 = vmatprep.subr.bf16.mxu0 %v6628
    %6872 = vmatpush1.bf16.msra.mxu0 %v6627
    %6873 = vmatprep.subr.bf16.mxu0 %v6632
    %6874 = vmatpush1.bf16.msra.mxu0 %v6631
    %6875 = vmatprep.subr.bf16.mxu0 %v6636
    %6876 = vmatpush1.bf16.msra.mxu0 %v6635
    %6877 = vmatprep.subr.bf16.mxu0 %v6640
    %6878 = vmatpush1.bf16.msra.mxu0 %v6639
    %6879 = vmatprep.subr.bf16.mxu0 %v6644
    %6880 = vmatpush1.bf16.msra.mxu0 %v6643
    %6881 = vmatprep.subr.bf16.mxu0 %v6648
    %6882 = vmatpush1.bf16.msra.mxu0 %v6647
    %6883 = vmatprep.subr.bf16.mxu0 %v6652
    %6884 = vmatpush1.bf16.msra.mxu0 %v6651
    %6885 = vmatprep.subr.bf16.mxu0 %v6656
    %6886 = vmatpush1.bf16.msra.mxu0 %v6655
    %6887 = vmatprep.subr.bf16.mxu0 %v6660
    %6888 = vmatpush1.bf16.msra.mxu0 %v6659
    %6889 = vmatprep.subr.bf16.mxu0 %v6664
    %6890 = vmatpush1.bf16.msra.mxu0 %v6663
    %6891 = vmatprep.mubr.bf16.mxu0 %v6212
    %6892 = vmatmul.mubr.bf16.gmra.mrb[0].mxu0 %v6211
    %v6893 = vpop.f32.mrb[0].mxu0
    %v6894 = vadd.f32 0.0, %v6893
    %v6895 = vpop.f32.mrb[0].mxu0
    %v6896 = vadd.f32 0.0, %v6895
    %v6897 = vpop.f32.mrb[0].mxu0
    %v6898 = vpop.f32.mrb[0].mxu0
    %6899 = vdwg.mxu0
    %6900 = vmatprep.subr.bf16.mxu0 %v6668
    %6901 = vmatpush1.bf16.msra.mxu0 %v6667
    %6902 = vmatprep.subr.bf16.mxu0 %v6672
    %6903 = vmatpush1.bf16.msra.mxu0 %v6671
    %6904 = vmatprep.subr.bf16.mxu0 %v6676
    %6905 = vmatpush1.bf16.msra.mxu0 %v6675
    %6906 = vmatprep.subr.bf16.mxu0 %v6680
    %6907 = vmatpush1.bf16.msra.mxu0 %v6679
    %6908 = vmatprep.subr.bf16.mxu0 %v6684
    %6909 = vmatpush1.bf16.msra.mxu0 %v6683
    %6910 = vmatprep.subr.bf16.mxu0 %v6688
    %6911 = vmatpush1.bf16.msra.mxu0 %v6687
    %6912 = vmatprep.subr.bf16.mxu0 %v6692
    %6913 = vmatpush1.bf16.msra.mxu0 %v6691
    %6914 = vmatprep.subr.bf16.mxu0 %v6696
    %6915 = vmatpush1.bf16.msra.mxu0 %v6695
    %6916 = vmatprep.subr.bf16.mxu0 %v6700
    %6917 = vmatpush1.bf16.msra.mxu0 %v6699
    %6918 = vmatprep.subr.bf16.mxu0 %v6704
    %6919 = vmatpush1.bf16.msra.mxu0 %v6703
    %6920 = vmatprep.subr.bf16.mxu0 %v6708
    %6921 = vmatpush1.bf16.msra.mxu0 %v6707
    %6922 = vmatprep.subr.bf16.mxu0 %v6712
    %6923 = vmatpush1.bf16.msra.mxu0 %v6711
    %6924 = vmatprep.subr.bf16.mxu0 %v6716
    %6925 = vmatpush1.bf16.msra.mxu0 %v6715
    %6926 = vmatprep.subr.bf16.mxu0 %v6720
    %6927 = vmatpush1.bf16.msra.mxu0 %v6719
    %6928 = vmatprep.subr.bf16.mxu0 %v6724
    %6929 = vmatpush1.bf16.msra.mxu0 %v6723
    %6930 = vmatprep.subr.bf16.mxu0 %v6728
    %6931 = vmatpush1.bf16.msra.mxu0 %v6727
    %6932 = vmatprep.mubr.bf16.mxu0 %v6214
    %6933 = vmatmul.mubr.bf16.gmra.mrb[0].mxu0 %v6213
    %v6934 = vpop.f32.mrb[0].mxu0
    %v6935 = vadd.f32 %v6894, %v6934
    %v6936 = vpop.f32.mrb[0].mxu0
    %v6937 = vadd.f32 %v6896, %v6936
    %v6938 = vpop.f32.mrb[0].mxu0
    %v6939 = vpop.f32.mrb[0].mxu0
    %6940 = vdwg.mxu0
    %6941 = vmatprep.subr.bf16.mxu0 %v6606
    %6942 = vmatpush1.bf16.msra.mxu0 %v6605
    %6943 = vmatprep.subr.bf16.mxu0 %v6610
    %6944 = vmatpush1.bf16.msra.mxu0 %v6609
    %6945 = vmatprep.subr.bf16.mxu0 %v6614
    %6946 = vmatpush1.bf16.msra.mxu0 %v6613
    %6947 = vmatprep.subr.bf16.mxu0 %v6618
    %6948 = vmatpush1.bf16.msra.mxu0 %v6617
    %6949 = vmatprep.subr.bf16.mxu0 %v6622
    %6950 = vmatpush1.bf16.msra.mxu0 %v6621
    %6951 = vmatprep.subr.bf16.mxu0 %v6626
    %6952 = vmatpush1.bf16.msra.mxu0 %v6625
    %6953 = vmatprep.subr.bf16.mxu0 %v6630
    %6954 = vmatpush1.bf16.msra.mxu0 %v6629
    %6955 = vmatprep.subr.bf16.mxu0 %v6634
    %6956 = vmatpush1.bf16.msra.mxu0 %v6633
    %6957 = vmatprep.subr.bf16.mxu0 %v6638
    %6958 = vmatpush1.bf16.msra.mxu0 %v6637
    %6959 = vmatprep.subr.bf16.mxu0 %v6642
    %6960 = vmatpush1.bf16.msra.mxu0 %v6641
    %6961 = vmatprep.subr.bf16.mxu0 %v6646
    %6962 = vmatpush1.bf16.msra.mxu0 %v6645
    %6963 = vmatprep.subr.bf16.mxu0 %v6650
    %6964 = vmatpush1.bf16.msra.mxu0 %v6649
    %6965 = vmatprep.subr.bf16.mxu0 %v6654
    %6966 = vmatpush1.bf16.msra.mxu0 %v6653
    %6967 = vmatprep.subr.bf16.mxu0 %v6658
    %6968 = vmatpush1.bf16.msra.mxu0 %v6657
    %6969 = vmatprep.subr.bf16.mxu0 %v6662
    %6970 = vmatpush1.bf16.msra.mxu0 %v6661
    %6971 = vmatprep.subr.bf16.mxu0 %v6666
    %6972 = vmatpush1.bf16.msra.mxu0 %v6665
    %6973 = vmatprep.mubr.bf16.mxu0 %v6212
    %6974 = vmatmul.mubr.bf16.gmra.mrb[0].mxu0 %v6211
    %v6975 = vpop.f32.mrb[0].mxu0
    %v6976 = vadd.f32 0.0, %v6975
    %v6977 = vpop.f32.mrb[0].mxu0
    %v6978 = vadd.f32 0.0, %v6977
    %v6979 = vpop.f32.mrb[0].mxu0
    %v6980 = vpop.f32.mrb[0].mxu0
    %6981 = vdwg.mxu0
    %6982 = vmatprep.subr.bf16.mxu0 %v6670
    %6983 = vmatpush1.bf16.msra.mxu0 %v6669
    %6984 = vmatprep.subr.bf16.mxu0 %v6674
    %6985 = vmatpush1.bf16.msra.mxu0 %v6673
    %6986 = vmatprep.subr.bf16.mxu0 %v6678
    %6987 = vmatpush1.bf16.msra.mxu0 %v6677
    %6988 = vmatprep.subr.bf16.mxu0 %v6682
    %6989 = vmatpush1.bf16.msra.mxu0 %v6681
    %6990 = vmatprep.subr.bf16.mxu0 %v6686
    %6991 = vmatpush1.bf16.msra.mxu0 %v6685
    %6992 = vmatprep.subr.bf16.mxu0 %v6690
    %6993 = vmatpush1.bf16.msra.mxu0 %v6689
    %6994 = vmatprep.subr.bf16.mxu0 %v6694
    %6995 = vmatpush1.bf16.msra.mxu0 %v6693
    %6996 = vmatprep.subr.bf16.mxu0 %v6698
    %6997 = vmatpush1.bf16.msra.mxu0 %v6697
    %6998 = vmatprep.subr.bf16.mxu0 %v6702
    %6999 = vmatpush1.bf16.msra.mxu0 %v6701
    %7000 = vmatprep.subr.bf16.mxu0 %v6706
    %7001 = vmatpush1.bf16.msra.mxu0 %v6705
    %7002 = vmatprep.subr.bf16.mxu0 %v6710
    %7003 = vmatpush1.bf16.msra.mxu0 %v6709
    %7004 = vmatprep.subr.bf16.mxu0 %v6714
    %7005 = vmatpush1.bf16.msra.mxu0 %v6713
    %7006 = vmatprep.subr.bf16.mxu0 %v6718
    %7007 = vmatpush1.bf16.msra.mxu0 %v6717
    %7008 = vmatprep.subr.bf16.mxu0 %v6722
    %7009 = vmatpush1.bf16.msra.mxu0 %v6721
    %7010 = vmatprep.subr.bf16.mxu0 %v6726
    %7011 = vmatpush1.bf16.msra.mxu0 %v6725
    %7012 = vmatprep.subr.bf16.mxu0 %v6730
    %7013 = vmatpush1.bf16.msra.mxu0 %v6729
    %7014 = vmatprep.mubr.bf16.mxu0 %v6214
    %7015 = vmatmul.mubr.bf16.gmra.mrb[0].mxu0 %v6213
    %v7016 = vpop.f32.mrb[0].mxu0
    %v7017 = vadd.f32 %v6976, %v7016
    %v7018 = vpop.f32.mrb[0].mxu0
    %v7019 = vadd.f32 %v6978, %v7018
    %v7020 = vpop.f32.mrb[0].mxu0
    %v7021 = vpop.f32.mrb[0].mxu0
    %7022 = vdwg.mxu0
    %v7023 = vadd.f32 %v5982, %v6935
    %v7024 = vadd.f32 %v5984, %v6937
    %v7025 = vadd.f32 %v6064, %v7017
    %v7026 = vadd.f32 %v6066, %v7019
    %s7027 = scalar_lea.vmem [#allocation14], 3072
    %v7028 = vld [vmem:[%s7027] sm:$0xff]
    %v7029 = vld [vmem:[%s7027 + $0x8] sm:$0xff]
    %v7030 = vld [vmem:[%s7027 + $0x10] sm:$0xff]
    %v7031 = vld [vmem:[%s7027 + $0x18] sm:$0xff]
    %v7032 = vld [vmem:[%s7027 + $0x20] sm:$0xff]
    %v7033 = vld [vmem:[%s7027 + $0x28] sm:$0xff]
    %v7034 = vld [vmem:[%s7027 + $0x30] sm:$0xff]
    %v7035 = vld [vmem:[%s7027 + $0x38] sm:$0xff]
    %v7036 = vld [vmem:[%s7027 + $0x40] sm:$0xff]
    %v7037 = vld [vmem:[%s7027 + $0x48] sm:$0xff]
    %v7038 = vld [vmem:[%s7027 + $0x50] sm:$0xff]
    %v7039 = vld [vmem:[%s7027 + $0x58] sm:$0xff]
    %v7040 = vld [vmem:[%s7027 + $0x60] sm:$0xff]
    %v7041 = vld [vmem:[%s7027 + $0x68] sm:$0xff]
    %v7042 = vld [vmem:[%s7027 + $0x70] sm:$0xff]
    %v7043 = vld [vmem:[%s7027 + $0x78] sm:$0xff]
    %v7044 = vld [vmem:[%s7027 + $0x80] sm:$0xff]
    %v7045 = vld [vmem:[%s7027 + $0x88] sm:$0xff]
    %v7046 = vld [vmem:[%s7027 + $0x90] sm:$0xff]
    %v7047 = vld [vmem:[%s7027 + $0x98] sm:$0xff]
    %v7048 = vld [vmem:[%s7027 + $0xa0] sm:$0xff]
    %v7049 = vld [vmem:[%s7027 + $0xa8] sm:$0xff]
    %v7050 = vld [vmem:[%s7027 + $0xb0] sm:$0xff]
    %v7051 = vld [vmem:[%s7027 + $0xb8] sm:$0xff]
    %v7052 = vld [vmem:[%s7027 + $0xc0] sm:$0xff]
    %v7053 = vld [vmem:[%s7027 + $0xc8] sm:$0xff]
    %v7054 = vld [vmem:[%s7027 + $0xd0] sm:$0xff]
    %v7055 = vld [vmem:[%s7027 + $0xd8] sm:$0xff]
    %v7056 = vld [vmem:[%s7027 + $0xe0] sm:$0xff]
    %v7057 = vld [vmem:[%s7027 + $0xe8] sm:$0xff]
    %v7058 = vld [vmem:[%s7027 + $0xf0] sm:$0xff]
    %v7059 = vld [vmem:[%s7027 + $0xf8] sm:$0xff]
    %v7060 = vld [vmem:[%s7027 + $0x100] sm:$0xff]
    %v7061 = vld [vmem:[%s7027 + $0x108] sm:$0xff]
    %v7062 = vld [vmem:[%s7027 + $0x110] sm:$0xff]
    %v7063 = vld [vmem:[%s7027 + $0x118] sm:$0xff]
    %v7064 = vld [vmem:[%s7027 + $0x120] sm:$0xff]
    %v7065 = vld [vmem:[%s7027 + $0x128] sm:$0xff]
    %v7066 = vld [vmem:[%s7027 + $0x130] sm:$0xff]
    %v7067 = vld [vmem:[%s7027 + $0x138] sm:$0xff]
    %v7068 = vld [vmem:[%s7027 + $0x140] sm:$0xff]
    %v7069 = vld [vmem:[%s7027 + $0x148] sm:$0xff]
    %v7070 = vld [vmem:[%s7027 + $0x150] sm:$0xff]
    %v7071 = vld [vmem:[%s7027 + $0x158] sm:$0xff]
    %v7072 = vld [vmem:[%s7027 + $0x160] sm:$0xff]
    %v7073 = vld [vmem:[%s7027 + $0x168] sm:$0xff]
    %v7074 = vld [vmem:[%s7027 + $0x170] sm:$0xff]
    %v7075 = vld [vmem:[%s7027 + $0x178] sm:$0xff]
    %v7076 = vld [vmem:[%s7027 + $0x180] sm:$0xff]
    %v7077 = vld [vmem:[%s7027 + $0x188] sm:$0xff]
    %v7078 = vld [vmem:[%s7027 + $0x190] sm:$0xff]
    %v7079 = vld [vmem:[%s7027 + $0x198] sm:$0xff]
    %v7080 = vld [vmem:[%s7027 + $0x1a0] sm:$0xff]
    %v7081 = vld [vmem:[%s7027 + $0x1a8] sm:$0xff]
    %v7082 = vld [vmem:[%s7027 + $0x1b0] sm:$0xff]
    %v7083 = vld [vmem:[%s7027 + $0x1b8] sm:$0xff]
    %v7084 = vld [vmem:[%s7027 + $0x1c0] sm:$0xff]
    %v7085 = vld [vmem:[%s7027 + $0x1c8] sm:$0xff]
    %v7086 = vld [vmem:[%s7027 + $0x1d0] sm:$0xff]
    %v7087 = vld [vmem:[%s7027 + $0x1d8] sm:$0xff]
    %v7088 = vld [vmem:[%s7027 + $0x1e0] sm:$0xff]
    %v7089 = vld [vmem:[%s7027 + $0x1e8] sm:$0xff]
    %v7090 = vld [vmem:[%s7027 + $0x1f0] sm:$0xff]
    %v7091 = vld [vmem:[%s7027 + $0x1f8] sm:$0xff]
    %v7092 = vld [vmem:[%s7027 + $0x200] sm:$0xff]
    %v7093 = vld [vmem:[%s7027 + $0x208] sm:$0xff]
    %v7094 = vld [vmem:[%s7027 + $0x210] sm:$0xff]
    %v7095 = vld [vmem:[%s7027 + $0x218] sm:$0xff]
    %v7096 = vld [vmem:[%s7027 + $0x220] sm:$0xff]
    %v7097 = vld [vmem:[%s7027 + $0x228] sm:$0xff]
    %v7098 = vld [vmem:[%s7027 + $0x230] sm:$0xff]
    %v7099 = vld [vmem:[%s7027 + $0x238] sm:$0xff]
    %v7100 = vld [vmem:[%s7027 + $0x240] sm:$0xff]
    %v7101 = vld [vmem:[%s7027 + $0x248] sm:$0xff]
    %v7102 = vld [vmem:[%s7027 + $0x250] sm:$0xff]
    %v7103 = vld [vmem:[%s7027 + $0x258] sm:$0xff]
    %v7104 = vld [vmem:[%s7027 + $0x260] sm:$0xff]
    %v7105 = vld [vmem:[%s7027 + $0x268] sm:$0xff]
    %v7106 = vld [vmem:[%s7027 + $0x270] sm:$0xff]
    %v7107 = vld [vmem:[%s7027 + $0x278] sm:$0xff]
    %v7108 = vld [vmem:[%s7027 + $0x280] sm:$0xff]
    %v7109 = vld [vmem:[%s7027 + $0x288] sm:$0xff]
    %v7110 = vld [vmem:[%s7027 + $0x290] sm:$0xff]
    %v7111 = vld [vmem:[%s7027 + $0x298] sm:$0xff]
    %v7112 = vld [vmem:[%s7027 + $0x2a0] sm:$0xff]
    %v7113 = vld [vmem:[%s7027 + $0x2a8] sm:$0xff]
    %v7114 = vld [vmem:[%s7027 + $0x2b0] sm:$0xff]
    %v7115 = vld [vmem:[%s7027 + $0x2b8] sm:$0xff]
    %v7116 = vld [vmem:[%s7027 + $0x2c0] sm:$0xff]
    %v7117 = vld [vmem:[%s7027 + $0x2c8] sm:$0xff]
    %v7118 = vld [vmem:[%s7027 + $0x2d0] sm:$0xff]
    %v7119 = vld [vmem:[%s7027 + $0x2d8] sm:$0xff]
    %v7120 = vld [vmem:[%s7027 + $0x2e0] sm:$0xff]
    %v7121 = vld [vmem:[%s7027 + $0x2e8] sm:$0xff]
    %v7122 = vld [vmem:[%s7027 + $0x2f0] sm:$0xff]
    %v7123 = vld [vmem:[%s7027 + $0x2f8] sm:$0xff]
    %v7124 = vld [vmem:[%s7027 + $0x300] sm:$0xff]
    %v7125 = vld [vmem:[%s7027 + $0x308] sm:$0xff]
    %v7126 = vld [vmem:[%s7027 + $0x310] sm:$0xff]
    %v7127 = vld [vmem:[%s7027 + $0x318] sm:$0xff]
    %v7128 = vld [vmem:[%s7027 + $0x320] sm:$0xff]
    %v7129 = vld [vmem:[%s7027 + $0x328] sm:$0xff]
    %v7130 = vld [vmem:[%s7027 + $0x330] sm:$0xff]
    %v7131 = vld [vmem:[%s7027 + $0x338] sm:$0xff]
    %v7132 = vld [vmem:[%s7027 + $0x340] sm:$0xff]
    %v7133 = vld [vmem:[%s7027 + $0x348] sm:$0xff]
    %v7134 = vld [vmem:[%s7027 + $0x350] sm:$0xff]
    %v7135 = vld [vmem:[%s7027 + $0x358] sm:$0xff]
    %v7136 = vld [vmem:[%s7027 + $0x360] sm:$0xff]
    %v7137 = vld [vmem:[%s7027 + $0x368] sm:$0xff]
    %v7138 = vld [vmem:[%s7027 + $0x370] sm:$0xff]
    %v7139 = vld [vmem:[%s7027 + $0x378] sm:$0xff]
    %v7140 = vld [vmem:[%s7027 + $0x380] sm:$0xff]
    %v7141 = vld [vmem:[%s7027 + $0x388] sm:$0xff]
    %v7142 = vld [vmem:[%s7027 + $0x390] sm:$0xff]
    %v7143 = vld [vmem:[%s7027 + $0x398] sm:$0xff]
    %v7144 = vld [vmem:[%s7027 + $0x3a0] sm:$0xff]
    %v7145 = vld [vmem:[%s7027 + $0x3a8] sm:$0xff]
    %v7146 = vld [vmem:[%s7027 + $0x3b0] sm:$0xff]
    %v7147 = vld [vmem:[%s7027 + $0x3b8] sm:$0xff]
    %v7148 = vld [vmem:[%s7027 + $0x3c0] sm:$0xff]
    %v7149 = vld [vmem:[%s7027 + $0x3c8] sm:$0xff]
    %v7150 = vld [vmem:[%s7027 + $0x3d0] sm:$0xff]
    %v7151 = vld [vmem:[%s7027 + $0x3d8] sm:$0xff]
    %v7152 = vld [vmem:[%s7027 + $0x3e0] sm:$0xff]
    %v7153 = vld [vmem:[%s7027 + $0x3e8] sm:$0xff]
    %v7154 = vld [vmem:[%s7027 + $0x3f0] sm:$0xff]
    %v7155 = vld [vmem:[%s7027 + $0x3f8] sm:$0xff]
    %v7156 = vrot.slane %v4422, 3
    %v7157 = vrot.slane %v4426, 2
    %v7158 = vsel %vm1613, %v7157, %v7156
    %v7159 = vrot.slane %v4423, 3
    %v7160 = vrot.slane %v4427, 2
    %v7161 = vsel %vm1613, %v7160, %v7159
    %v7162 = vrot.slane %v4424, 3
    %v7163 = vrot.slane %v4428, 2
    %v7164 = vsel %vm1613, %v7163, %v7162
    %v7165 = vrot.slane %v4425, 3
    %v7166 = vrot.slane %v4429, 2
    %v7167 = vsel %vm1613, %v7166, %v7165
    %v7168 = vpack.c.b16 %v7158, %v7158
    %v7169 = vpack.c.b16 %v7161, %v7161
    %v7170 = vpack.c.b16 %v7164, %v7164
    %v7171 = vpack.c.b16 %v7167, %v7167
    %v7304 = vunpack.c.l.b16 %v7028
    %v7305 = vunpack.c.h.b16 %v7028
    %v7306 = vunpack.c.l.b16 %v7029
    %v7307 = vunpack.c.h.b16 %v7029
    %v7308 = vunpack.c.l.b16 %v7030
    %v7309 = vunpack.c.h.b16 %v7030
    %v7310 = vunpack.c.l.b16 %v7031
    %v7311 = vunpack.c.h.b16 %v7031
    %v7312 = vunpack.c.l.b16 %v7032
    %v7313 = vunpack.c.h.b16 %v7032
    %v7314 = vunpack.c.l.b16 %v7033
    %v7315 = vunpack.c.h.b16 %v7033
    %v7316 = vunpack.c.l.b16 %v7034
    %v7317 = vunpack.c.h.b16 %v7034
    %v7318 = vunpack.c.l.b16 %v7035
    %v7319 = vunpack.c.h.b16 %v7035
    %v7320 = vunpack.c.l.b16 %v7036
    %v7321 = vunpack.c.h.b16 %v7036
    %v7322 = vunpack.c.l.b16 %v7037
    %v7323 = vunpack.c.h.b16 %v7037
    %v7324 = vunpack.c.l.b16 %v7038
    %v7325 = vunpack.c.h.b16 %v7038
    %v7326 = vunpack.c.l.b16 %v7039
    %v7327 = vunpack.c.h.b16 %v7039
    %v7328 = vunpack.c.l.b16 %v7040
    %v7329 = vunpack.c.h.b16 %v7040
    %v7330 = vunpack.c.l.b16 %v7041
    %v7331 = vunpack.c.h.b16 %v7041
    %v7332 = vunpack.c.l.b16 %v7042
    %v7333 = vunpack.c.h.b16 %v7042
    %v7334 = vunpack.c.l.b16 %v7043
    %v7335 = vunpack.c.h.b16 %v7043
    %v7336 = vunpack.c.l.b16 %v7044
    %v7337 = vunpack.c.h.b16 %v7044
    %v7338 = vunpack.c.l.b16 %v7045
    %v7339 = vunpack.c.h.b16 %v7045
    %v7340 = vunpack.c.l.b16 %v7046
    %v7341 = vunpack.c.h.b16 %v7046
    %v7342 = vunpack.c.l.b16 %v7047
    %v7343 = vunpack.c.h.b16 %v7047
    %v7344 = vunpack.c.l.b16 %v7048
    %v7345 = vunpack.c.h.b16 %v7048
    %v7346 = vunpack.c.l.b16 %v7049
    %v7347 = vunpack.c.h.b16 %v7049
    %v7348 = vunpack.c.l.b16 %v7050
    %v7349 = vunpack.c.h.b16 %v7050
    %v7350 = vunpack.c.l.b16 %v7051
    %v7351 = vunpack.c.h.b16 %v7051
    %v7352 = vunpack.c.l.b16 %v7052
    %v7353 = vunpack.c.h.b16 %v7052
    %v7354 = vunpack.c.l.b16 %v7053
    %v7355 = vunpack.c.h.b16 %v7053
    %v7356 = vunpack.c.l.b16 %v7054
    %v7357 = vunpack.c.h.b16 %v7054
    %v7358 = vunpack.c.l.b16 %v7055
    %v7359 = vunpack.c.h.b16 %v7055
    %v7360 = vunpack.c.l.b16 %v7056
    %v7361 = vunpack.c.h.b16 %v7056
    %v7362 = vunpack.c.l.b16 %v7057
    %v7363 = vunpack.c.h.b16 %v7057
    %v7364 = vunpack.c.l.b16 %v7058
    %v7365 = vunpack.c.h.b16 %v7058
    %v7366 = vunpack.c.l.b16 %v7059
    %v7367 = vunpack.c.h.b16 %v7059
    %v7368 = vunpack.c.l.b16 %v7060
    %v7369 = vunpack.c.h.b16 %v7060
    %v7370 = vunpack.c.l.b16 %v7061
    %v7371 = vunpack.c.h.b16 %v7061
    %v7372 = vunpack.c.l.b16 %v7062
    %v7373 = vunpack.c.h.b16 %v7062
    %v7374 = vunpack.c.l.b16 %v7063
    %v7375 = vunpack.c.h.b16 %v7063
    %v7376 = vunpack.c.l.b16 %v7064
    %v7377 = vunpack.c.h.b16 %v7064
    %v7378 = vunpack.c.l.b16 %v7065
    %v7379 = vunpack.c.h.b16 %v7065
    %v7380 = vunpack.c.l.b16 %v7066
    %v7381 = vunpack.c.h.b16 %v7066
    %v7382 = vunpack.c.l.b16 %v7067
    %v7383 = vunpack.c.h.b16 %v7067
    %v7384 = vunpack.c.l.b16 %v7068
    %v7385 = vunpack.c.h.b16 %v7068
    %v7386 = vunpack.c.l.b16 %v7069
    %v7387 = vunpack.c.h.b16 %v7069
    %v7388 = vunpack.c.l.b16 %v7070
    %v7389 = vunpack.c.h.b16 %v7070
    %v7390 = vunpack.c.l.b16 %v7071
    %v7391 = vunpack.c.h.b16 %v7071
    %v7392 = vunpack.c.l.b16 %v7072
    %v7393 = vunpack.c.h.b16 %v7072
    %v7394 = vunpack.c.l.b16 %v7073
    %v7395 = vunpack.c.h.b16 %v7073
    %v7396 = vunpack.c.l.b16 %v7074
    %v7397 = vunpack.c.h.b16 %v7074
    %v7398 = vunpack.c.l.b16 %v7075
    %v7399 = vunpack.c.h.b16 %v7075
    %v7400 = vunpack.c.l.b16 %v7076
    %v7401 = vunpack.c.h.b16 %v7076
    %v7402 = vunpack.c.l.b16 %v7077
    %v7403 = vunpack.c.h.b16 %v7077
    %v7404 = vunpack.c.l.b16 %v7078
    %v7405 = vunpack.c.h.b16 %v7078
    %v7406 = vunpack.c.l.b16 %v7079
    %v7407 = vunpack.c.h.b16 %v7079
    %v7408 = vunpack.c.l.b16 %v7080
    %v7409 = vunpack.c.h.b16 %v7080
    %v7410 = vunpack.c.l.b16 %v7081
    %v7411 = vunpack.c.h.b16 %v7081
    %v7412 = vunpack.c.l.b16 %v7082
    %v7413 = vunpack.c.h.b16 %v7082
    %v7414 = vunpack.c.l.b16 %v7083
    %v7415 = vunpack.c.h.b16 %v7083
    %v7416 = vunpack.c.l.b16 %v7084
    %v7417 = vunpack.c.h.b16 %v7084
    %v7418 = vunpack.c.l.b16 %v7085
    %v7419 = vunpack.c.h.b16 %v7085
    %v7420 = vunpack.c.l.b16 %v7086
    %v7421 = vunpack.c.h.b16 %v7086
    %v7422 = vunpack.c.l.b16 %v7087
    %v7423 = vunpack.c.h.b16 %v7087
    %v7424 = vunpack.c.l.b16 %v7088
    %v7425 = vunpack.c.h.b16 %v7088
    %v7426 = vunpack.c.l.b16 %v7089
    %v7427 = vunpack.c.h.b16 %v7089
    %v7428 = vunpack.c.l.b16 %v7090
    %v7429 = vunpack.c.h.b16 %v7090
    %v7430 = vunpack.c.l.b16 %v7091
    %v7431 = vunpack.c.h.b16 %v7091
    %v7432 = vunpack.c.l.b16 %v7092
    %v7433 = vunpack.c.h.b16 %v7092
    %v7434 = vunpack.c.l.b16 %v7093
    %v7435 = vunpack.c.h.b16 %v7093
    %v7436 = vunpack.c.l.b16 %v7094
    %v7437 = vunpack.c.h.b16 %v7094
    %v7438 = vunpack.c.l.b16 %v7095
    %v7439 = vunpack.c.h.b16 %v7095
    %v7440 = vunpack.c.l.b16 %v7096
    %v7441 = vunpack.c.h.b16 %v7096
    %v7442 = vunpack.c.l.b16 %v7097
    %v7443 = vunpack.c.h.b16 %v7097
    %v7444 = vunpack.c.l.b16 %v7098
    %v7445 = vunpack.c.h.b16 %v7098
    %v7446 = vunpack.c.l.b16 %v7099
    %v7447 = vunpack.c.h.b16 %v7099
    %v7448 = vunpack.c.l.b16 %v7100
    %v7449 = vunpack.c.h.b16 %v7100
    %v7450 = vunpack.c.l.b16 %v7101
    %v7451 = vunpack.c.h.b16 %v7101
    %v7452 = vunpack.c.l.b16 %v7102
    %v7453 = vunpack.c.h.b16 %v7102
    %v7454 = vunpack.c.l.b16 %v7103
    %v7455 = vunpack.c.h.b16 %v7103
    %v7456 = vunpack.c.l.b16 %v7104
    %v7457 = vunpack.c.h.b16 %v7104
    %v7458 = vunpack.c.l.b16 %v7105
    %v7459 = vunpack.c.h.b16 %v7105
    %v7460 = vunpack.c.l.b16 %v7106
    %v7461 = vunpack.c.h.b16 %v7106
    %v7462 = vunpack.c.l.b16 %v7107
    %v7463 = vunpack.c.h.b16 %v7107
    %v7464 = vunpack.c.l.b16 %v7108
    %v7465 = vunpack.c.h.b16 %v7108
    %v7466 = vunpack.c.l.b16 %v7109
    %v7467 = vunpack.c.h.b16 %v7109
    %v7468 = vunpack.c.l.b16 %v7110
    %v7469 = vunpack.c.h.b16 %v7110
    %v7470 = vunpack.c.l.b16 %v7111
    %v7471 = vunpack.c.h.b16 %v7111
    %v7472 = vunpack.c.l.b16 %v7112
    %v7473 = vunpack.c.h.b16 %v7112
    %v7474 = vunpack.c.l.b16 %v7113
    %v7475 = vunpack.c.h.b16 %v7113
    %v7476 = vunpack.c.l.b16 %v7114
    %v7477 = vunpack.c.h.b16 %v7114
    %v7478 = vunpack.c.l.b16 %v7115
    %v7479 = vunpack.c.h.b16 %v7115
    %v7480 = vunpack.c.l.b16 %v7116
    %v7481 = vunpack.c.h.b16 %v7116
    %v7482 = vunpack.c.l.b16 %v7117
    %v7483 = vunpack.c.h.b16 %v7117
    %v7484 = vunpack.c.l.b16 %v7118
    %v7485 = vunpack.c.h.b16 %v7118
    %v7486 = vunpack.c.l.b16 %v7119
    %v7487 = vunpack.c.h.b16 %v7119
    %v7488 = vunpack.c.l.b16 %v7120
    %v7489 = vunpack.c.h.b16 %v7120
    %v7490 = vunpack.c.l.b16 %v7121
    %v7491 = vunpack.c.h.b16 %v7121
    %v7492 = vunpack.c.l.b16 %v7122
    %v7493 = vunpack.c.h.b16 %v7122
    %v7494 = vunpack.c.l.b16 %v7123
    %v7495 = vunpack.c.h.b16 %v7123
    %v7496 = vunpack.c.l.b16 %v7124
    %v7497 = vunpack.c.h.b16 %v7124
    %v7498 = vunpack.c.l.b16 %v7125
    %v7499 = vunpack.c.h.b16 %v7125
    %v7500 = vunpack.c.l.b16 %v7126
    %v7501 = vunpack.c.h.b16 %v7126
    %v7502 = vunpack.c.l.b16 %v7127
    %v7503 = vunpack.c.h.b16 %v7127
    %v7504 = vunpack.c.l.b16 %v7128
    %v7505 = vunpack.c.h.b16 %v7128
    %v7506 = vunpack.c.l.b16 %v7129
    %v7507 = vunpack.c.h.b16 %v7129
    %v7508 = vunpack.c.l.b16 %v7130
    %v7509 = vunpack.c.h.b16 %v7130
    %v7510 = vunpack.c.l.b16 %v7131
    %v7511 = vunpack.c.h.b16 %v7131
    %v7512 = vunpack.c.l.b16 %v7132
    %v7513 = vunpack.c.h.b16 %v7132
    %v7514 = vunpack.c.l.b16 %v7133
    %v7515 = vunpack.c.h.b16 %v7133
    %v7516 = vunpack.c.l.b16 %v7134
    %v7517 = vunpack.c.h.b16 %v7134
    %v7518 = vunpack.c.l.b16 %v7135
    %v7519 = vunpack.c.h.b16 %v7135
    %v7520 = vunpack.c.l.b16 %v7136
    %v7521 = vunpack.c.h.b16 %v7136
    %v7522 = vunpack.c.l.b16 %v7137
    %v7523 = vunpack.c.h.b16 %v7137
    %v7524 = vunpack.c.l.b16 %v7138
    %v7525 = vunpack.c.h.b16 %v7138
    %v7526 = vunpack.c.l.b16 %v7139
    %v7527 = vunpack.c.h.b16 %v7139
    %v7528 = vunpack.c.l.b16 %v7140
    %v7529 = vunpack.c.h.b16 %v7140
    %v7530 = vunpack.c.l.b16 %v7141
    %v7531 = vunpack.c.h.b16 %v7141
    %v7532 = vunpack.c.l.b16 %v7142
    %v7533 = vunpack.c.h.b16 %v7142
    %v7534 = vunpack.c.l.b16 %v7143
    %v7535 = vunpack.c.h.b16 %v7143
    %v7536 = vunpack.c.l.b16 %v7144
    %v7537 = vunpack.c.h.b16 %v7144
    %v7538 = vunpack.c.l.b16 %v7145
    %v7539 = vunpack.c.h.b16 %v7145
    %v7540 = vunpack.c.l.b16 %v7146
    %v7541 = vunpack.c.h.b16 %v7146
    %v7542 = vunpack.c.l.b16 %v7147
    %v7543 = vunpack.c.h.b16 %v7147
    %v7544 = vunpack.c.l.b16 %v7148
    %v7545 = vunpack.c.h.b16 %v7148
    %v7546 = vunpack.c.l.b16 %v7149
    %v7547 = vunpack.c.h.b16 %v7149
    %v7548 = vunpack.c.l.b16 %v7150
    %v7549 = vunpack.c.h.b16 %v7150
    %v7550 = vunpack.c.l.b16 %v7151
    %v7551 = vunpack.c.h.b16 %v7151
    %v7552 = vunpack.c.l.b16 %v7152
    %v7553 = vunpack.c.h.b16 %v7152
    %v7554 = vunpack.c.l.b16 %v7153
    %v7555 = vunpack.c.h.b16 %v7153
    %v7556 = vunpack.c.l.b16 %v7154
    %v7557 = vunpack.c.h.b16 %v7154
    %v7558 = vunpack.c.l.b16 %v7155
    %v7559 = vunpack.c.h.b16 %v7155
    %v7560 = vpack.c.b16 %v7308, %v7304
    %v7561 = vpack.c.b16 %v7309, %v7305
    %v7562 = vpack.c.b16 %v7310, %v7306
    %v7563 = vpack.c.b16 %v7311, %v7307
    %v7564 = vpack.c.b16 %v7316, %v7312
    %v7565 = vpack.c.b16 %v7317, %v7313
    %v7566 = vpack.c.b16 %v7318, %v7314
    %v7567 = vpack.c.b16 %v7319, %v7315
    %v7568 = vpack.c.b16 %v7324, %v7320
    %v7569 = vpack.c.b16 %v7325, %v7321
    %v7570 = vpack.c.b16 %v7326, %v7322
    %v7571 = vpack.c.b16 %v7327, %v7323
    %v7572 = vpack.c.b16 %v7332, %v7328
    %v7573 = vpack.c.b16 %v7333, %v7329
    %v7574 = vpack.c.b16 %v7334, %v7330
    %v7575 = vpack.c.b16 %v7335, %v7331
    %v7576 = vpack.c.b16 %v7340, %v7336
    %v7577 = vpack.c.b16 %v7341, %v7337
    %v7578 = vpack.c.b16 %v7342, %v7338
    %v7579 = vpack.c.b16 %v7343, %v7339
    %v7580 = vpack.c.b16 %v7348, %v7344
    %v7581 = vpack.c.b16 %v7349, %v7345
    %v7582 = vpack.c.b16 %v7350, %v7346
    %v7583 = vpack.c.b16 %v7351, %v7347
    %v7584 = vpack.c.b16 %v7356, %v7352
    %v7585 = vpack.c.b16 %v7357, %v7353
    %v7586 = vpack.c.b16 %v7358, %v7354
    %v7587 = vpack.c.b16 %v7359, %v7355
    %v7588 = vpack.c.b16 %v7364, %v7360
    %v7589 = vpack.c.b16 %v7365, %v7361
    %v7590 = vpack.c.b16 %v7366, %v7362
    %v7591 = vpack.c.b16 %v7367, %v7363
    %v7592 = vpack.c.b16 %v7372, %v7368
    %v7593 = vpack.c.b16 %v7373, %v7369
    %v7594 = vpack.c.b16 %v7374, %v7370
    %v7595 = vpack.c.b16 %v7375, %v7371
    %v7596 = vpack.c.b16 %v7380, %v7376
    %v7597 = vpack.c.b16 %v7381, %v7377
    %v7598 = vpack.c.b16 %v7382, %v7378
    %v7599 = vpack.c.b16 %v7383, %v7379
    %v7600 = vpack.c.b16 %v7388, %v7384
    %v7601 = vpack.c.b16 %v7389, %v7385
    %v7602 = vpack.c.b16 %v7390, %v7386
    %v7603 = vpack.c.b16 %v7391, %v7387
    %v7604 = vpack.c.b16 %v7396, %v7392
    %v7605 = vpack.c.b16 %v7397, %v7393
    %v7606 = vpack.c.b16 %v7398, %v7394
    %v7607 = vpack.c.b16 %v7399, %v7395
    %v7608 = vpack.c.b16 %v7404, %v7400
    %v7609 = vpack.c.b16 %v7405, %v7401
    %v7610 = vpack.c.b16 %v7406, %v7402
    %v7611 = vpack.c.b16 %v7407, %v7403
    %v7612 = vpack.c.b16 %v7412, %v7408
    %v7613 = vpack.c.b16 %v7413, %v7409
    %v7614 = vpack.c.b16 %v7414, %v7410
    %v7615 = vpack.c.b16 %v7415, %v7411
    %v7616 = vpack.c.b16 %v7420, %v7416
    %v7617 = vpack.c.b16 %v7421, %v7417
    %v7618 = vpack.c.b16 %v7422, %v7418
    %v7619 = vpack.c.b16 %v7423, %v7419
    %v7620 = vpack.c.b16 %v7428, %v7424
    %v7621 = vpack.c.b16 %v7429, %v7425
    %v7622 = vpack.c.b16 %v7430, %v7426
    %v7623 = vpack.c.b16 %v7431, %v7427
    %v7624 = vpack.c.b16 %v7436, %v7432
    %v7625 = vpack.c.b16 %v7437, %v7433
    %v7626 = vpack.c.b16 %v7438, %v7434
    %v7627 = vpack.c.b16 %v7439, %v7435
    %v7628 = vpack.c.b16 %v7444, %v7440
    %v7629 = vpack.c.b16 %v7445, %v7441
    %v7630 = vpack.c.b16 %v7446, %v7442
    %v7631 = vpack.c.b16 %v7447, %v7443
    %v7632 = vpack.c.b16 %v7452, %v7448
    %v7633 = vpack.c.b16 %v7453, %v7449
    %v7634 = vpack.c.b16 %v7454, %v7450
    %v7635 = vpack.c.b16 %v7455, %v7451
    %v7636 = vpack.c.b16 %v7460, %v7456
    %v7637 = vpack.c.b16 %v7461, %v7457
    %v7638 = vpack.c.b16 %v7462, %v7458
    %v7639 = vpack.c.b16 %v7463, %v7459
    %v7640 = vpack.c.b16 %v7468, %v7464
    %v7641 = vpack.c.b16 %v7469, %v7465
    %v7642 = vpack.c.b16 %v7470, %v7466
    %v7643 = vpack.c.b16 %v7471, %v7467
    %v7644 = vpack.c.b16 %v7476, %v7472
    %v7645 = vpack.c.b16 %v7477, %v7473
    %v7646 = vpack.c.b16 %v7478, %v7474
    %v7647 = vpack.c.b16 %v7479, %v7475
    %v7648 = vpack.c.b16 %v7484, %v7480
    %v7649 = vpack.c.b16 %v7485, %v7481
    %v7650 = vpack.c.b16 %v7486, %v7482
    %v7651 = vpack.c.b16 %v7487, %v7483
    %v7652 = vpack.c.b16 %v7492, %v7488
    %v7653 = vpack.c.b16 %v7493, %v7489
    %v7654 = vpack.c.b16 %v7494, %v7490
    %v7655 = vpack.c.b16 %v7495, %v7491
    %v7656 = vpack.c.b16 %v7500, %v7496
    %v7657 = vpack.c.b16 %v7501, %v7497
    %v7658 = vpack.c.b16 %v7502, %v7498
    %v7659 = vpack.c.b16 %v7503, %v7499
    %v7660 = vpack.c.b16 %v7508, %v7504
    %v7661 = vpack.c.b16 %v7509, %v7505
    %v7662 = vpack.c.b16 %v7510, %v7506
    %v7663 = vpack.c.b16 %v7511, %v7507
    %v7664 = vpack.c.b16 %v7516, %v7512
    %v7665 = vpack.c.b16 %v7517, %v7513
    %v7666 = vpack.c.b16 %v7518, %v7514
    %v7667 = vpack.c.b16 %v7519, %v7515
    %v7668 = vpack.c.b16 %v7524, %v7520
    %v7669 = vpack.c.b16 %v7525, %v7521
    %v7670 = vpack.c.b16 %v7526, %v7522
    %v7671 = vpack.c.b16 %v7527, %v7523
    %v7672 = vpack.c.b16 %v7532, %v7528
    %v7673 = vpack.c.b16 %v7533, %v7529
    %v7674 = vpack.c.b16 %v7534, %v7530
    %v7675 = vpack.c.b16 %v7535, %v7531
    %v7676 = vpack.c.b16 %v7540, %v7536
    %v7677 = vpack.c.b16 %v7541, %v7537
    %v7678 = vpack.c.b16 %v7542, %v7538
    %v7679 = vpack.c.b16 %v7543, %v7539
    %v7680 = vpack.c.b16 %v7548, %v7544
    %v7681 = vpack.c.b16 %v7549, %v7545
    %v7682 = vpack.c.b16 %v7550, %v7546
    %v7683 = vpack.c.b16 %v7551, %v7547
    %v7684 = vpack.c.b16 %v7556, %v7552
    %v7685 = vpack.c.b16 %v7557, %v7553
    %v7686 = vpack.c.b16 %v7558, %v7554
    %v7687 = vpack.c.b16 %v7559, %v7555
    %7816 = vmatprep.subr.bf16.mxu0 %v7561
    %7817 = vmatpush1.bf16.msra.mxu0 %v7560
    %7818 = vmatprep.subr.bf16.mxu0 %v7565
    %7819 = vmatpush1.bf16.msra.mxu0 %v7564
    %7820 = vmatprep.subr.bf16.mxu0 %v7569
    %7821 = vmatpush1.bf16.msra.mxu0 %v7568
    %7822 = vmatprep.subr.bf16.mxu0 %v7573
    %7823 = vmatpush1.bf16.msra.mxu0 %v7572
    %7824 = vmatprep.subr.bf16.mxu0 %v7577
    %7825 = vmatpush1.bf16.msra.mxu0 %v7576
    %7826 = vmatprep.subr.bf16.mxu0 %v7581
    %7827 = vmatpush1.bf16.msra.mxu0 %v7580
    %7828 = vmatprep.subr.bf16.mxu0 %v7585
    %7829 = vmatpush1.bf16.msra.mxu0 %v7584
    %7830 = vmatprep.subr.bf16.mxu0 %v7589
    %7831 = vmatpush1.bf16.msra.mxu0 %v7588
    %7832 = vmatprep.subr.bf16.mxu0 %v7593
    %7833 = vmatpush1.bf16.msra.mxu0 %v7592
    %7834 = vmatprep.subr.bf16.mxu0 %v7597
    %7835 = vmatpush1.bf16.msra.mxu0 %v7596
    %7836 = vmatprep.subr.bf16.mxu0 %v7601
    %7837 = vmatpush1.bf16.msra.mxu0 %v7600
    %7838 = vmatprep.subr.bf16.mxu0 %v7605
    %7839 = vmatpush1.bf16.msra.mxu0 %v7604
    %7840 = vmatprep.subr.bf16.mxu0 %v7609
    %7841 = vmatpush1.bf16.msra.mxu0 %v7608
    %7842 = vmatprep.subr.bf16.mxu0 %v7613
    %7843 = vmatpush1.bf16.msra.mxu0 %v7612
    %7844 = vmatprep.subr.bf16.mxu0 %v7617
    %7845 = vmatpush1.bf16.msra.mxu0 %v7616
    %7846 = vmatprep.subr.bf16.mxu0 %v7621
    %7847 = vmatpush1.bf16.msra.mxu0 %v7620
    %7848 = vmatprep.mubr.bf16.mxu0 %v7169
    %7849 = vmatmul.mubr.bf16.gmra.mrb[0].mxu0 %v7168
    %v7850 = vpop.f32.mrb[0].mxu0
    %v7851 = vadd.f32 0.0, %v7850
    %v7852 = vpop.f32.mrb[0].mxu0
    %v7853 = vadd.f32 0.0, %v7852
    %v7854 = vpop.f32.mrb[0].mxu0
    %v7855 = vpop.f32.mrb[0].mxu0
    %7856 = vdwg.mxu0
    %7857 = vmatprep.subr.bf16.mxu0 %v7625
    %7858 = vmatpush1.bf16.msra.mxu0 %v7624
    %7859 = vmatprep.subr.bf16.mxu0 %v7629
    %7860 = vmatpush1.bf16.msra.mxu0 %v7628
    %7861 = vmatprep.subr.bf16.mxu0 %v7633
    %7862 = vmatpush1.bf16.msra.mxu0 %v7632
    %7863 = vmatprep.subr.bf16.mxu0 %v7637
    %7864 = vmatpush1.bf16.msra.mxu0 %v7636
    %7865 = vmatprep.subr.bf16.mxu0 %v7641
    %7866 = vmatpush1.bf16.msra.mxu0 %v7640
    %7867 = vmatprep.subr.bf16.mxu0 %v7645
    %7868 = vmatpush1.bf16.msra.mxu0 %v7644
    %7869 = vmatprep.subr.bf16.mxu0 %v7649
    %7870 = vmatpush1.bf16.msra.mxu0 %v7648
    %7871 = vmatprep.subr.bf16.mxu0 %v7653
    %7872 = vmatpush1.bf16.msra.mxu0 %v7652
    %7873 = vmatprep.subr.bf16.mxu0 %v7657
    %7874 = vmatpush1.bf16.msra.mxu0 %v7656
    %7875 = vmatprep.subr.bf16.mxu0 %v7661
    %7876 = vmatpush1.bf16.msra.mxu0 %v7660
    %7877 = vmatprep.subr.bf16.mxu0 %v7665
    %7878 = vmatpush1.bf16.msra.mxu0 %v7664
    %7879 = vmatprep.subr.bf16.mxu0 %v7669
    %7880 = vmatpush1.bf16.msra.mxu0 %v7668
    %7881 = vmatprep.subr.bf16.mxu0 %v7673
    %7882 = vmatpush1.bf16.msra.mxu0 %v7672
    %7883 = vmatprep.subr.bf16.mxu0 %v7677
    %7884 = vmatpush1.bf16.msra.mxu0 %v7676
    %7885 = vmatprep.subr.bf16.mxu0 %v7681
    %7886 = vmatpush1.bf16.msra.mxu0 %v7680
    %7887 = vmatprep.subr.bf16.mxu0 %v7685
    %7888 = vmatpush1.bf16.msra.mxu0 %v7684
    %7889 = vmatprep.mubr.bf16.mxu0 %v7171
    %7890 = vmatmul.mubr.bf16.gmra.mrb[0].mxu0 %v7170
    %v7891 = vpop.f32.mrb[0].mxu0
    %v7892 = vadd.f32 %v7851, %v7891
    %v7893 = vpop.f32.mrb[0].mxu0
    %v7894 = vadd.f32 %v7853, %v7893
    %v7895 = vpop.f32.mrb[0].mxu0
    %v7896 = vpop.f32.mrb[0].mxu0
    %7897 = vdwg.mxu0
    %7898 = vmatprep.subr.bf16.mxu0 %v7563
    %7899 = vmatpush1.bf16.msra.mxu0 %v7562
    %7900 = vmatprep.subr.bf16.mxu0 %v7567
    %7901 = vmatpush1.bf16.msra.mxu0 %v7566
    %7902 = vmatprep.subr.bf16.mxu0 %v7571
    %7903 = vmatpush1.bf16.msra.mxu0 %v7570
    %7904 = vmatprep.subr.bf16.mxu0 %v7575
    %7905 = vmatpush1.bf16.msra.mxu0 %v7574
    %7906 = vmatprep.subr.bf16.mxu0 %v7579
    %7907 = vmatpush1.bf16.msra.mxu0 %v7578
    %7908 = vmatprep.subr.bf16.mxu0 %v7583
    %7909 = vmatpush1.bf16.msra.mxu0 %v7582
    %7910 = vmatprep.subr.bf16.mxu0 %v7587
    %7911 = vmatpush1.bf16.msra.mxu0 %v7586
    %7912 = vmatprep.subr.bf16.mxu0 %v7591
    %7913 = vmatpush1.bf16.msra.mxu0 %v7590
    %7914 = vmatprep.subr.bf16.mxu0 %v7595
    %7915 = vmatpush1.bf16.msra.mxu0 %v7594
    %7916 = vmatprep.subr.bf16.mxu0 %v7599
    %7917 = vmatpush1.bf16.msra.mxu0 %v7598
    %7918 = vmatprep.subr.bf16.mxu0 %v7603
    %7919 = vmatpush1.bf16.msra.mxu0 %v7602
    %7920 = vmatprep.subr.bf16.mxu0 %v7607
    %7921 = vmatpush1.bf16.msra.mxu0 %v7606
    %7922 = vmatprep.subr.bf16.mxu0 %v7611
    %7923 = vmatpush1.bf16.msra.mxu0 %v7610
    %7924 = vmatprep.subr.bf16.mxu0 %v7615
    %7925 = vmatpush1.bf16.msra.mxu0 %v7614
    %7926 = vmatprep.subr.bf16.mxu0 %v7619
    %7927 = vmatpush1.bf16.msra.mxu0 %v7618
    %7928 = vmatprep.subr.bf16.mxu0 %v7623
    %7929 = vmatpush1.bf16.msra.mxu0 %v7622
    %7930 = vmatprep.mubr.bf16.mxu0 %v7169
    %7931 = vmatmul.mubr.bf16.gmra.mrb[0].mxu0 %v7168
    %v7932 = vpop.f32.mrb[0].mxu0
    %v7933 = vadd.f32 0.0, %v7932
    %v7934 = vpop.f32.mrb[0].mxu0
    %v7935 = vadd.f32 0.0, %v7934
    %v7936 = vpop.f32.mrb[0].mxu0
    %v7937 = vpop.f32.mrb[0].mxu0
    %7938 = vdwg.mxu0
    %7939 = vmatprep.subr.bf16.mxu0 %v7627
    %7940 = vmatpush1.bf16.msra.mxu0 %v7626
    %7941 = vmatprep.subr.bf16.mxu0 %v7631
    %7942 = vmatpush1.bf16.msra.mxu0 %v7630
    %7943 = vmatprep.subr.bf16.mxu0 %v7635
    %7944 = vmatpush1.bf16.msra.mxu0 %v7634
    %7945 = vmatprep.subr.bf16.mxu0 %v7639
    %7946 = vmatpush1.bf16.msra.mxu0 %v7638
    %7947 = vmatprep.subr.bf16.mxu0 %v7643
    %7948 = vmatpush1.bf16.msra.mxu0 %v7642
    %7949 = vmatprep.subr.bf16.mxu0 %v7647
    %7950 = vmatpush1.bf16.msra.mxu0 %v7646
    %7951 = vmatprep.subr.bf16.mxu0 %v7651
    %7952 = vmatpush1.bf16.msra.mxu0 %v7650
    %7953 = vmatprep.subr.bf16.mxu0 %v7655
    %7954 = vmatpush1.bf16.msra.mxu0 %v7654
    %7955 = vmatprep.subr.bf16.mxu0 %v7659
    %7956 = vmatpush1.bf16.msra.mxu0 %v7658
    %7957 = vmatprep.subr.bf16.mxu0 %v7663
    %7958 = vmatpush1.bf16.msra.mxu0 %v7662
    %7959 = vmatprep.subr.bf16.mxu0 %v7667
    %7960 = vmatpush1.bf16.msra.mxu0 %v7666
    %7961 = vmatprep.subr.bf16.mxu0 %v7671
    %7962 = vmatpush1.bf16.msra.mxu0 %v7670
    %7963 = vmatprep.subr.bf16.mxu0 %v7675
    %7964 = vmatpush1.bf16.msra.mxu0 %v7674
    %7965 = vmatprep.subr.bf16.mxu0 %v7679
    %7966 = vmatpush1.bf16.msra.mxu0 %v7678
    %7967 = vmatprep.subr.bf16.mxu0 %v7683
    %7968 = vmatpush1.bf16.msra.mxu0 %v7682
    %7969 = vmatprep.subr.bf16.mxu0 %v7687
    %7970 = vmatpush1.bf16.msra.mxu0 %v7686
    %7971 = vmatprep.mubr.bf16.mxu0 %v7171
    %7972 = vmatmul.mubr.bf16.gmra.mrb[0].mxu0 %v7170
    %v7973 = vpop.f32.mrb[0].mxu0
    %v7974 = vadd.f32 %v7933, %v7973
    %v7975 = vpop.f32.mrb[0].mxu0
    %v7976 = vadd.f32 %v7935, %v7975
    %v7977 = vpop.f32.mrb[0].mxu0
    %v7978 = vpop.f32.mrb[0].mxu0
    %7979 = vdwg.mxu0
    %v7980 = vadd.f32 %v7023, %v7892
    %v7981 = vadd.f32 %v7024, %v7894
    %v7982 = vadd.f32 %v7025, %v7974
    %v7983 = vadd.f32 %v7026, %v7976
    %v7984 = vld [vmem:[#allocation15] sm:$0xf]
    %v7986 = vlaneseq
    %v7987 = vshrl.u32 %v7986, 7
    %v7988 = vsub.s32 0, %v7987
    %v7989 = vrot.slane %v7984, %v7988
    %v7990 = vlaneseq
    %v7991 = vshrl.u32 %v7990, 7
    %v7992 = vsub.s32 1, %v7991
    %v7993 = vrot.slane %v7984, %v7992
    %v7994 = vlaneseq
    %v7995 = vshrl.u32 %v7994, 7
    %v7996 = vsub.s32 2, %v7995
    %v7997 = vrot.slane %v7984, %v7996
    %v7998 = vlaneseq
    %v7999 = vshrl.u32 %v7998, 7
    %v8000 = vsub.s32 3, %v7999
    %v8001 = vrot.slane %v7984, %v8000
    %v8006 = vadd.f32 %v7980, %v7989
    %v8007 = vadd.f32 %v7981, %v7993
    %v8008 = vadd.f32 %v7982, %v7997
    %v8009 = vadd.f32 %v7983, %v8001
    %v8010 = vmax.f32 %v8006, 0.0
    %v8011 = vmax.f32 %v8007, 0.0
    %v8012 = vmax.f32 %v8008, 0.0
    %v8013 = vmax.f32 %v8009, 0.0
    %v8014 = vpack.c.bf16 %v8010, %v8010
    %v8015 = vpack.c.bf16 %v8011, %v8011
    %v8016 = vpack.c.bf16 %v8012, %v8012
    %v8017 = vpack.c.bf16 %v8013, %v8013
    %v8018 = vld [vmem:[#allocation17] sm:$0xf]
    %v8019 = vld [vmem:[#allocation17 + $0x4] sm:$0xf]
    %v8020 = vld [vmem:[#allocation17 + $0x8] sm:$0xf]
    %v8021 = vld [vmem:[#allocation17 + $0xc] sm:$0xf]
    %v8022 = vld [vmem:[#allocation17 + $0x10] sm:$0xf]
    %v8023 = vld [vmem:[#allocation17 + $0x14] sm:$0xf]
    %v8024 = vld [vmem:[#allocation17 + $0x18] sm:$0xf]
    %v8025 = vld [vmem:[#allocation17 + $0x1c] sm:$0xf]
    %v8026 = vld [vmem:[#allocation17 + $0x20] sm:$0xf]
    %v8027 = vld [vmem:[#allocation17 + $0x24] sm:$0xf]
    %v8028 = vld [vmem:[#allocation17 + $0x28] sm:$0xf]
    %v8029 = vld [vmem:[#allocation17 + $0x2c] sm:$0xf]
    %v8030 = vld [vmem:[#allocation17 + $0x30] sm:$0xf]
    %v8031 = vld [vmem:[#allocation17 + $0x34] sm:$0xf]
    %v8032 = vld [vmem:[#allocation17 + $0x38] sm:$0xf]
    %v8033 = vld [vmem:[#allocation17 + $0x3c] sm:$0xf]
    %v8034 = vld [vmem:[#allocation17 + $0x40] sm:$0xf]
    %v8035 = vld [vmem:[#allocation17 + $0x44] sm:$0xf]
    %v8036 = vld [vmem:[#allocation17 + $0x48] sm:$0xf]
    %v8037 = vld [vmem:[#allocation17 + $0x4c] sm:$0xf]
    %v8038 = vld [vmem:[#allocation17 + $0x50] sm:$0xf]
    %v8039 = vld [vmem:[#allocation17 + $0x54] sm:$0xf]
    %v8040 = vld [vmem:[#allocation17 + $0x58] sm:$0xf]
    %v8041 = vld [vmem:[#allocation17 + $0x5c] sm:$0xf]
    %v8042 = vld [vmem:[#allocation17 + $0x60] sm:$0xf]
    %v8043 = vld [vmem:[#allocation17 + $0x64] sm:$0xf]
    %v8044 = vld [vmem:[#allocation17 + $0x68] sm:$0xf]
    %v8045 = vld [vmem:[#allocation17 + $0x6c] sm:$0xf]
    %v8046 = vld [vmem:[#allocation17 + $0x70] sm:$0xf]
    %v8047 = vld [vmem:[#allocation17 + $0x74] sm:$0xf]
    %v8048 = vld [vmem:[#allocation17 + $0x78] sm:$0xf]
    %v8049 = vld [vmem:[#allocation17 + $0x7c] sm:$0xf]
    %v8050 = vld [vmem:[#allocation17 + $0x80] sm:$0xf]
    %v8051 = vld [vmem:[#allocation17 + $0x84] sm:$0xf]
    %v8052 = vld [vmem:[#allocation17 + $0x88] sm:$0xf]
    %v8053 = vld [vmem:[#allocation17 + $0x8c] sm:$0xf]
    %v8054 = vld [vmem:[#allocation17 + $0x90] sm:$0xf]
    %v8055 = vld [vmem:[#allocation17 + $0x94] sm:$0xf]
    %v8056 = vld [vmem:[#allocation17 + $0x98] sm:$0xf]
    %v8057 = vld [vmem:[#allocation17 + $0x9c] sm:$0xf]
    %v8058 = vld [vmem:[#allocation17 + $0xa0] sm:$0xf]
    %v8059 = vld [vmem:[#allocation17 + $0xa4] sm:$0xf]
    %v8060 = vld [vmem:[#allocation17 + $0xa8] sm:$0xf]
    %v8061 = vld [vmem:[#allocation17 + $0xac] sm:$0xf]
    %v8062 = vld [vmem:[#allocation17 + $0xb0] sm:$0xf]
    %v8063 = vld [vmem:[#allocation17 + $0xb4] sm:$0xf]
    %v8064 = vld [vmem:[#allocation17 + $0xb8] sm:$0xf]
    %v8065 = vld [vmem:[#allocation17 + $0xbc] sm:$0xf]
    %v8066 = vld [vmem:[#allocation17 + $0xc0] sm:$0xf]
    %v8067 = vld [vmem:[#allocation17 + $0xc4] sm:$0xf]
    %v8068 = vld [vmem:[#allocation17 + $0xc8] sm:$0xf]
    %v8069 = vld [vmem:[#allocation17 + $0xcc] sm:$0xf]
    %v8070 = vld [vmem:[#allocation17 + $0xd0] sm:$0xf]
    %v8071 = vld [vmem:[#allocation17 + $0xd4] sm:$0xf]
    %v8072 = vld [vmem:[#allocation17 + $0xd8] sm:$0xf]
    %v8073 = vld [vmem:[#allocation17 + $0xdc] sm:$0xf]
    %v8074 = vld [vmem:[#allocation17 + $0xe0] sm:$0xf]
    %v8075 = vld [vmem:[#allocation17 + $0xe4] sm:$0xf]
    %v8076 = vld [vmem:[#allocation17 + $0xe8] sm:$0xf]
    %v8077 = vld [vmem:[#allocation17 + $0xec] sm:$0xf]
    %v8078 = vld [vmem:[#allocation17 + $0xf0] sm:$0xf]
    %v8079 = vld [vmem:[#allocation17 + $0xf4] sm:$0xf]
    %v8080 = vld [vmem:[#allocation17 + $0xf8] sm:$0xf]
    %v8081 = vld [vmem:[#allocation17 + $0xfc] sm:$0xf]
    %v8082 = vld [vmem:[#allocation18] sm:$0x1]
    %v8084 = vlaneseq
    %v8085 = vshrl.u32 %v8084, 7
    %v8086 = vsub.s32 0, %v8085
    %v8087 = vrot.slane %v8082, %v8086
    %v8153 = vunpack.c.l.b16 %v8018
    %v8154 = vunpack.c.l.b16 %v8019
    %v8155 = vunpack.c.l.b16 %v8020
    %v8156 = vunpack.c.l.b16 %v8021
    %v8157 = vunpack.c.l.b16 %v8022
    %v8158 = vunpack.c.l.b16 %v8023
    %v8159 = vunpack.c.l.b16 %v8024
    %v8160 = vunpack.c.l.b16 %v8025
    %v8161 = vunpack.c.l.b16 %v8026
    %v8162 = vunpack.c.l.b16 %v8027
    %v8163 = vunpack.c.l.b16 %v8028
    %v8164 = vunpack.c.l.b16 %v8029
    %v8165 = vunpack.c.l.b16 %v8030
    %v8166 = vunpack.c.l.b16 %v8031
    %v8167 = vunpack.c.l.b16 %v8032
    %v8168 = vunpack.c.l.b16 %v8033
    %v8169 = vunpack.c.l.b16 %v8034
    %v8170 = vunpack.c.l.b16 %v8035
    %v8171 = vunpack.c.l.b16 %v8036
    %v8172 = vunpack.c.l.b16 %v8037
    %v8173 = vunpack.c.l.b16 %v8038
    %v8174 = vunpack.c.l.b16 %v8039
    %v8175 = vunpack.c.l.b16 %v8040
    %v8176 = vunpack.c.l.b16 %v8041
    %v8177 = vunpack.c.l.b16 %v8042
    %v8178 = vunpack.c.l.b16 %v8043
    %v8179 = vunpack.c.l.b16 %v8044
    %v8180 = vunpack.c.l.b16 %v8045
    %v8181 = vunpack.c.l.b16 %v8046
    %v8182 = vunpack.c.l.b16 %v8047
    %v8183 = vunpack.c.l.b16 %v8048
    %v8184 = vunpack.c.l.b16 %v8049
    %v8185 = vunpack.c.l.b16 %v8050
    %v8186 = vunpack.c.l.b16 %v8051
    %v8187 = vunpack.c.l.b16 %v8052
    %v8188 = vunpack.c.l.b16 %v8053
    %v8189 = vunpack.c.l.b16 %v8054
    %v8190 = vunpack.c.l.b16 %v8055
    %v8191 = vunpack.c.l.b16 %v8056
    %v8192 = vunpack.c.l.b16 %v8057
    %v8193 = vunpack.c.l.b16 %v8058
    %v8194 = vunpack.c.l.b16 %v8059
    %v8195 = vunpack.c.l.b16 %v8060
    %v8196 = vunpack.c.l.b16 %v8061
    %v8197 = vunpack.c.l.b16 %v8062
    %v8198 = vunpack.c.l.b16 %v8063
    %v8199 = vunpack.c.l.b16 %v8064
    %v8200 = vunpack.c.l.b16 %v8065
    %v8201 = vunpack.c.l.b16 %v8066
    %v8202 = vunpack.c.l.b16 %v8067
    %v8203 = vunpack.c.l.b16 %v8068
    %v8204 = vunpack.c.l.b16 %v8069
    %v8205 = vunpack.c.l.b16 %v8070
    %v8206 = vunpack.c.l.b16 %v8071
    %v8207 = vunpack.c.l.b16 %v8072
    %v8208 = vunpack.c.l.b16 %v8073
    %v8209 = vunpack.c.l.b16 %v8074
    %v8210 = vunpack.c.l.b16 %v8075
    %v8211 = vunpack.c.l.b16 %v8076
    %v8212 = vunpack.c.l.b16 %v8077
    %v8213 = vunpack.c.l.b16 %v8078
    %v8214 = vunpack.c.l.b16 %v8079
    %v8215 = vunpack.c.l.b16 %v8080
    %v8216 = vunpack.c.l.b16 %v8081
    %v8217 = vpack.c.b16 %v8154, %v8153
    %v8218 = vpack.c.b16 %v8156, %v8155
    %v8219 = vpack.c.b16 %v8158, %v8157
    %v8220 = vpack.c.b16 %v8160, %v8159
    %v8221 = vpack.c.b16 %v8162, %v8161
    %v8222 = vpack.c.b16 %v8164, %v8163
    %v8223 = vpack.c.b16 %v8166, %v8165
    %v8224 = vpack.c.b16 %v8168, %v8167
    %v8225 = vpack.c.b16 %v8170, %v8169
    %v8226 = vpack.c.b16 %v8172, %v8171
    %v8227 = vpack.c.b16 %v8174, %v8173
    %v8228 = vpack.c.b16 %v8176, %v8175
    %v8229 = vpack.c.b16 %v8178, %v8177
    %v8230 = vpack.c.b16 %v8180, %v8179
    %v8231 = vpack.c.b16 %v8182, %v8181
    %v8232 = vpack.c.b16 %v8184, %v8183
    %v8233 = vpack.c.b16 %v8186, %v8185
    %v8234 = vpack.c.b16 %v8188, %v8187
    %v8235 = vpack.c.b16 %v8190, %v8189
    %v8236 = vpack.c.b16 %v8192, %v8191
    %v8237 = vpack.c.b16 %v8194, %v8193
    %v8238 = vpack.c.b16 %v8196, %v8195
    %v8239 = vpack.c.b16 %v8198, %v8197
    %v8240 = vpack.c.b16 %v8200, %v8199
    %v8241 = vpack.c.b16 %v8202, %v8201
    %v8242 = vpack.c.b16 %v8204, %v8203
    %v8243 = vpack.c.b16 %v8206, %v8205
    %v8244 = vpack.c.b16 %v8208, %v8207
    %v8245 = vpack.c.b16 %v8210, %v8209
    %v8246 = vpack.c.b16 %v8212, %v8211
    %v8247 = vpack.c.b16 %v8214, %v8213
    %v8248 = vpack.c.b16 %v8216, %v8215
    %8281 = vmatprep.subr.bf16.mxu0 0
    %8282 = vmatpush1.bf16.msra.mxu0 %v8217
    %8283 = vmatprep.subr.bf16.mxu0 0
    %8284 = vmatpush1.bf16.msra.mxu0 %v8218
    %8285 = vmatprep.subr.bf16.mxu0 0
    %8286 = vmatpush1.bf16.msra.mxu0 %v8219
    %8287 = vmatprep.subr.bf16.mxu0 0
    %8288 = vmatpush1.bf16.msra.mxu0 %v8220
    %8289 = vmatprep.subr.bf16.mxu0 0
    %8290 = vmatpush1.bf16.msra.mxu0 %v8221
    %8291 = vmatprep.subr.bf16.mxu0 0
    %8292 = vmatpush1.bf16.msra.mxu0 %v8222
    %8293 = vmatprep.subr.bf16.mxu0 0
    %8294 = vmatpush1.bf16.msra.mxu0 %v8223
    %8295 = vmatprep.subr.bf16.mxu0 0
    %8296 = vmatpush1.bf16.msra.mxu0 %v8224
    %8297 = vmatprep.subr.bf16.mxu0 0
    %8298 = vmatpush1.bf16.msra.mxu0 %v8225
    %8299 = vmatprep.subr.bf16.mxu0 0
    %8300 = vmatpush1.bf16.msra.mxu0 %v8226
    %8301 = vmatprep.subr.bf16.mxu0 0
    %8302 = vmatpush1.bf16.msra.mxu0 %v8227
    %8303 = vmatprep.subr.bf16.mxu0 0
    %8304 = vmatpush1.bf16.msra.mxu0 %v8228
    %8305 = vmatprep.subr.bf16.mxu0 0
    %8306 = vmatpush1.bf16.msra.mxu0 %v8229
    %8307 = vmatprep.subr.bf16.mxu0 0
    %8308 = vmatpush1.bf16.msra.mxu0 %v8230
    %8309 = vmatprep.subr.bf16.mxu0 0
    %8310 = vmatpush1.bf16.msra.mxu0 %v8231
    %8311 = vmatprep.subr.bf16.mxu0 0
    %8312 = vmatpush1.bf16.msra.mxu0 %v8232
    %8313 = vmatprep.mubr.bf16.mxu0 %v8015
    %8314 = vmatmul.mubr.bf16.gmra.mrb[0].mxu0 %v8014
    %v8315 = vpop.f32.mrb[0].mxu0
    %v8316 = vadd.f32 %v8087, %v8315
    %v8317 = vpop.f32.mrb[0].mxu0
    %v8318 = vpop.f32.mrb[0].mxu0
    %v8319 = vpop.f32.mrb[0].mxu0
    %8320 = vdwg.mxu0
    %8321 = vmatprep.subr.bf16.mxu0 0
    %8322 = vmatpush1.bf16.msra.mxu0 %v8233
    %8323 = vmatprep.subr.bf16.mxu0 0
    %8324 = vmatpush1.bf16.msra.mxu0 %v8234
    %8325 = vmatprep.subr.bf16.mxu0 0
    %8326 = vmatpush1.bf16.msra.mxu0 %v8235
    %8327 = vmatprep.subr.bf16.mxu0 0
    %8328 = vmatpush1.bf16.msra.mxu0 %v8236
    %8329 = vmatprep.subr.bf16.mxu0 0
    %8330 = vmatpush1.bf16.msra.mxu0 %v8237
    %8331 = vmatprep.subr.bf16.mxu0 0
    %8332 = vmatpush1.bf16.msra.mxu0 %v8238
    %8333 = vmatprep.subr.bf16.mxu0 0
    %8334 = vmatpush1.bf16.msra.mxu0 %v8239
    %8335 = vmatprep.subr.bf16.mxu0 0
    %8336 = vmatpush1.bf16.msra.mxu0 %v8240
    %8337 = vmatprep.subr.bf16.mxu0 0
    %8338 = vmatpush1.bf16.msra.mxu0 %v8241
    %8339 = vmatprep.subr.bf16.mxu0 0
    %8340 = vmatpush1.bf16.msra.mxu0 %v8242
    %8341 = vmatprep.subr.bf16.mxu0 0
    %8342 = vmatpush1.bf16.msra.mxu0 %v8243
    %8343 = vmatprep.subr.bf16.mxu0 0
    %8344 = vmatpush1.bf16.msra.mxu0 %v8244
    %8345 = vmatprep.subr.bf16.mxu0 0
    %8346 = vmatpush1.bf16.msra.mxu0 %v8245
    %8347 = vmatprep.subr.bf16.mxu0 0
    %8348 = vmatpush1.bf16.msra.mxu0 %v8246
    %8349 = vmatprep.subr.bf16.mxu0 0
    %8350 = vmatpush1.bf16.msra.mxu0 %v8247
    %8351 = vmatprep.subr.bf16.mxu0 0
    %8352 = vmatpush1.bf16.msra.mxu0 %v8248
    %8353 = vmatprep.mubr.bf16.mxu0 %v8017
    %8354 = vmatmul.mubr.bf16.gmra.mrb[0].mxu0 %v8016
    %v8355 = vpop.f32.mrb[0].mxu0
    %v8356 = vadd.f32 %v8316, %v8355
    %v8357 = vpop.f32.mrb[0].mxu0
    %v8358 = vpop.f32.mrb[0].mxu0
    %v8359 = vpop.f32.mrb[0].mxu0
    %8360 = vdwg.mxu0
    %v8361 = vmax.f32 %v8356, 0.0
    %8362 = vst [vmem:[#allocation23] sm:$0x3] %v8361
    %v8363 = vpack.c.bf16 %v8361, %v8361
    %v8364 = vld [vmem:[#allocation20] sm:$0xf]
    %v8365 = vld [vmem:[#allocation20 + $0x4] sm:$0xf]
    %v8366 = vld [vmem:[#allocation20 + $0x8] sm:$0xf]
    %v8367 = vld [vmem:[#allocation20 + $0xc] sm:$0xf]
    %v8368 = vld [vmem:[#allocation20 + $0x10] sm:$0xf]
    %v8369 = vld [vmem:[#allocation20 + $0x14] sm:$0xf]
    %v8370 = vld [vmem:[#allocation20 + $0x18] sm:$0xf]
    %v8371 = vld [vmem:[#allocation20 + $0x1c] sm:$0xf]
    %v8372 = vld [vmem:[#allocation20 + $0x20] sm:$0xf]
    %v8373 = vld [vmem:[#allocation20 + $0x24] sm:$0xf]
    %v8374 = vld [vmem:[#allocation20 + $0x28] sm:$0xf]
    %v8375 = vld [vmem:[#allocation20 + $0x2c] sm:$0xf]
    %v8376 = vld [vmem:[#allocation20 + $0x30] sm:$0xf]
    %v8377 = vld [vmem:[#allocation20 + $0x34] sm:$0xf]
    %v8378 = vld [vmem:[#allocation20 + $0x38] sm:$0xf]
    %v8379 = vld [vmem:[#allocation20 + $0x3c] sm:$0xf]
    %v8380 = vld [vmem:[#allocation21] sm:$0x1]
    %v8382 = vlaneseq
    %v8383 = vshrl.u32 %v8382, 7
    %v8384 = vsub.s32 0, %v8383
    %v8385 = vrot.slane %v8380, %v8384
    %v8403 = vunpack.c.l.b16 %v8364
    %v8404 = vunpack.c.l.b16 %v8365
    %v8405 = vunpack.c.l.b16 %v8366
    %v8406 = vunpack.c.l.b16 %v8367
    %v8407 = vunpack.c.l.b16 %v8368
    %v8408 = vunpack.c.l.b16 %v8369
    %v8409 = vunpack.c.l.b16 %v8370
    %v8410 = vunpack.c.l.b16 %v8371
    %v8411 = vunpack.c.l.b16 %v8372
    %v8412 = vunpack.c.l.b16 %v8373
    %v8413 = vunpack.c.l.b16 %v8374
    %v8414 = vunpack.c.l.b16 %v8375
    %v8415 = vunpack.c.l.b16 %v8376
    %v8416 = vunpack.c.l.b16 %v8377
    %v8417 = vunpack.c.l.b16 %v8378
    %v8418 = vunpack.c.l.b16 %v8379
    %v8419 = vpack.c.b16 %v8404, %v8403
    %v8420 = vpack.c.b16 %v8406, %v8405
    %v8421 = vpack.c.b16 %v8408, %v8407
    %v8422 = vpack.c.b16 %v8410, %v8409
    %v8423 = vpack.c.b16 %v8412, %v8411
    %v8424 = vpack.c.b16 %v8414, %v8413
    %v8425 = vpack.c.b16 %v8416, %v8415
    %v8426 = vpack.c.b16 %v8418, %v8417
    %8435 = vmatprep.subr.bf16.mxu0 0
    %8436 = vmatpush1.bf16.msra.mxu0 %v8419
    %8437 = vmatprep.subr.bf16.mxu0 0
    %8438 = vmatpush1.bf16.msra.mxu0 %v8420
    %8439 = vmatprep.subr.bf16.mxu0 0
    %8440 = vmatpush1.bf16.msra.mxu0 %v8421
    %8441 = vmatprep.subr.bf16.mxu0 0
    %8442 = vmatpush1.bf16.msra.mxu0 %v8422
    %8443 = vmatprep.subr.bf16.mxu0 0
    %8444 = vmatpush1.bf16.msra.mxu0 %v8423
    %8445 = vmatprep.subr.bf16.mxu0 0
    %8446 = vmatpush1.bf16.msra.mxu0 %v8424
    %8447 = vmatprep.subr.bf16.mxu0 0
    %8448 = vmatpush1.bf16.msra.mxu0 %v8425
    %8449 = vmatprep.subr.bf16.mxu0 0
    %8450 = vmatpush1.bf16.msra.mxu0 %v8426
    %8451 = vmatprep.subr.bf16.mxu0 0
    %8452 = vmatpush1.bf16.msra.mxu0 0
    %8453 = vmatprep.subr.bf16.mxu0 0
    %8454 = vmatpush1.bf16.msra.mxu0 0
    %8455 = vmatprep.subr.bf16.mxu0 0
    %8456 = vmatpush1.bf16.msra.mxu0 0
    %8457 = vmatprep.subr.bf16.mxu0 0
    %8458 = vmatpush1.bf16.msra.mxu0 0
    %8459 = vmatprep.subr.bf16.mxu0 0
    %8460 = vmatpush1.bf16.msra.mxu0 0
    %8461 = vmatprep.subr.bf16.mxu0 0
    %8462 = vmatpush1.bf16.msra.mxu0 0
    %8463 = vmatprep.subr.bf16.mxu0 0
    %8464 = vmatpush1.bf16.msra.mxu0 0
    %8465 = vmatprep.subr.bf16.mxu0 0
    %8466 = vmatpush1.bf16.msra.mxu0 0
    %8467 = vmatprep.mubr.bf16.mxu0 0
    %8468 = vmatmul.mubr.bf16.gmra.mrb[0].mxu0 %v8363
    %v8469 = vpop.f32.mrb[0].mxu0
    %v8470 = vadd.f32 %v8385, %v8469
    %v8471 = vpop.f32.mrb[0].mxu0
    %v8472 = vpop.f32.mrb[0].mxu0
    %v8473 = vpop.f32.mrb[0].mxu0
    %8474 = vdwg.mxu0
    %v8475 = vmax.f32 %v8470, 0.0
    %8476 = vst [vmem:[#allocation24] sm:$0x3] %v8475
    // Predicated region
    $region102: #{forward.1} parent=1 // pred_check
      _
    $region103: #{forward.1} parent=1 // pred_check_branch
      %8478 = sbr.rel (0) target = $region105
    $region104: #{forward.1} parent=1 // pred_region
      %s8480 = ssub.s32 32, 32
      %8481 = vsyncadd [#allocation5], %s8480
      %s8483 = sshll.u32 [#allocation23], 4
      %s8484 = int_to_ptr.vmem [resolvable:$true] %s8483
      %8486 = dma.vmem_to_hbm [thread:$0]  %s8484, 32, %s13, [#allocation5]
    $region105: #{forward.1} parent=1 // pred_fallthru
      _
    // Predicated region
    $region106: #{forward.1} parent=1 // pred_check
      _
    $region107: #{forward.1} parent=1 // pred_check_branch
      %8488 = sbr.rel (0) target = $region109
    $region108: #{forward.1} parent=1 // pred_region
      %s8490 = ssub.s32 32, 32
      %8491 = vsyncadd [#allocation25], %s8490
      %s8493 = sshll.u32 [#allocation24], 4
      %s8494 = int_to_ptr.vmem [resolvable:$true] %s8493
      %8496 = dma.vmem_to_hbm [thread:$0]  %s8494, 32, %s14, [#allocation25]
    $region109: #{forward.1} parent=1 // pred_fallthru
      _
    // Predicated region
    $region110: #{forward.1} parent=1 // pred_check
      _
    $region111: #{forward.1} parent=1 // pred_check_branch
      %8498 = sbr.rel (0) target = $region113
    $region112: #{forward.1} parent=1 // pred_region
      %8499 = dma.done [#allocation5], 32
    $region113: #{forward.1} parent=1 // pred_fallthru
      _
    // Predicated region
    $region114: #{forward.1} parent=1 // pred_check
      _
    $region115: #{forward.1} parent=1 // pred_check_branch
      %8501 = sbr.rel (0) target = $region117
    $region116: #{forward.1} parent=1 // pred_region
      %8502 = dma.done [#allocation25], 32
    $region117: #{forward.1} parent=1 // pred_fallthru
      _
    %8503 = vsyncpa [#allocation4], 1
    %8504 = vsyncpa [#allocation7], 1
    %8505 = vsyncpa [#allocation10], 1
    %8506 = vsyncpa [#allocation13], 1
    %8507 = vsyncpa [#allocation16], 1
    %8508 = vsyncpa [#allocation19], 1
    %8509 = vsyncpa [#allocation22], 1
    %8510 = vsyncpa [#allocation5], 1
    %8511 = vsyncpa [#allocation25], 1

</llo_original>
